<compile_context>
chip_gen: v6e
topology: v6e:2x2x1
jax: 0.10.0
libtpu: 0.0.40
codegen_flags: <defaults>
</compile_context>

<pallas_src>
import jax
import jax.numpy as jnp
from jax.experimental import pallas as pl
from jax.experimental.pallas import tpu as pltpu

BN_EPS = 1e-4


# ----------------------------------------------------------------------------
# Bilinear interp matrix (align_corners=True), matching F.interpolate.
# ----------------------------------------------------------------------------
def _interp_matrix(out_size, in_size):
    if out_size == 1:
        src = jnp.zeros((1,), jnp.float32)
    else:
        src = jnp.arange(out_size, dtype=jnp.float32) * (
            (in_size - 1) / (out_size - 1))
    i0 = jnp.clip(jnp.floor(src).astype(jnp.int32), 0, in_size - 1)
    i1 = jnp.clip(i0 + 1, 0, in_size - 1)
    w1 = src - i0.astype(jnp.float32)
    w0 = 1.0 - w1
    rows = jnp.arange(out_size)
    m = jnp.zeros((out_size, in_size), jnp.float32)
    m = m.at[rows, i0].add(w0)
    m = m.at[rows, i1].add(w1)
    return m


# ----------------------------------------------------------------------------
# Fused StackDecoder kernel: resize + (split-)conv1 + conv2 + conv3, per batch.
# ----------------------------------------------------------------------------
def _stack_decoder_kernel(akron_ref, x_ref, dn_ref,
                          w1x_ref, w1d_ref, w2_ref, w3_ref,
                          scale_ref, bias_ref,
                          o_ref,
                          xpad_ref, dpad_ref, apad_ref,
                          rpx_ref, rpd_ref, rpa_ref):
    hd = apad_ref.shape[0] - 2
    wd = apad_ref.shape[1] - 2
    cy = apad_ref.shape[2]
    cx = xpad_ref.shape[2]

    # Zero the 1-pixel conv halo every grid step (scratch persists across grid
    # iterations and the batch axis may be sharded across cores, so this must
    # not be gated on program_id == 0).  Interiors are written below.
    def zero_border(ref):
        hp, wp, c = ref.shape
        zr = jnp.zeros((1, wp, c), ref.dtype)
        ref[0:1, :, :] = zr
        ref[hp - 1:hp, :, :] = zr
        zc = jnp.zeros((hp, 1, c), ref.dtype)
        ref[:, 0:1, :] = zc
        ref[:, wp - 1:wp, :] = zc

    zero_border(xpad_ref)
    zero_border(dpad_ref)
    zero_border(apad_ref)

    # ---- bilinear upsample (align_corners=True) as ONE lane-minor matmul ----
    # akron = kron(Ah, Aw): (Hd*Wd, Hs*Ws); x block is (Hs*Ws, Cx), so the
    # contraction runs over minor dims only and the result is already in the
    # (pixel-rows, channel-lanes) layout the conv wants.
    up = jnp.dot(akron_ref[...], x_ref[0],
                 preferred_element_type=jnp.float32)        # (Hd*Wd, Cx) f32
    xpad_ref[1:hd + 1, 1:wd + 1, :] = (
        up.reshape(hd, wd, cx).astype(jnp.bfloat16))
    dpad_ref[1:hd + 1, 1:wd + 1, :] = dn_ref[0].astype(jnp.bfloat16)

    def build_rp(rp_ref, pad_ref):
        # kw-im2col built once per source: rp[i, w, kw*C + c] = pad[i, w+kw, c]
        # (3 W-shifted views; the per-kh shift below is a cheap row offset).
        rp_ref[...] = jnp.concatenate(
            [pad_ref[:, kw:kw + wd, :] for kw in range(3)], axis=-1)

    def conv3x3(rp_ref, w_ref):
        # 3 chained (Hd*Wd, 3*Cin) x (3*Cin, Cy) MXU matmuls; f32 accumulation
        # stays in registers / MXU result buffer -> no per-tap VMEM RMW.
        k = rp_ref.shape[2]
        acc = jnp.dot(rp_ref[0:hd, :, :].reshape(hd * wd, k), w_ref[0],
                      preferred_element_type=jnp.float32)
        acc = acc + jnp.dot(rp_ref[1:hd + 1, :, :].reshape(hd * wd, k),
                            w_ref[1], preferred_element_type=jnp.float32)
        acc = acc + jnp.dot(rp_ref[2:hd + 2, :, :].reshape(hd * wd, k),
                            w_ref[2], preferred_element_type=jnp.float32)
        return acc

    def bn_relu(acc, layer):
        # Folded inference BatchNorm + ReLU in f32.
        return jnp.maximum(acc * scale_ref[layer] + bias_ref[layer], 0.0)

    # ---- layer 1: conv(concat(up, down)) == conv_x(up) + conv_d(down) ----
    build_rp(rpx_ref, xpad_ref)
    build_rp(rpd_ref, dpad_ref)
    a = bn_relu(conv3x3(rpx_ref, w1x_ref) + conv3x3(rpd_ref, w1d_ref), 0)
    apad_ref[1:hd + 1, 1:wd + 1, :] = a.reshape(hd, wd, cy).astype(jnp.bfloat16)

    # ---- layer 2 (activation stays in VMEM, scratch reused) ----
    build_rp(rpa_ref, apad_ref)
    a = bn_relu(conv3x3(rpa_ref, w2_ref), 1)
    apad_ref[1:hd + 1, 1:wd + 1, :] = a.reshape(hd, wd, cy).astype(jnp.bfloat16)

    # ---- layer 3 -> lane-dense output store ----
    # Fold W into the lane dim (Wd*Cy lanes = 128 here) so the final store is a
    # full-width unmasked vst; built via sublane slices + lane concat (simple,
    # well-supported ops) rather than a minor-dim shape cast.
    build_rp(rpa_ref, apad_ref)
    a = bn_relu(conv3x3(rpa_ref, w3_ref), 2)
    a3 = a.reshape(hd, wd, cy)
    o_ref[0] = jnp.concatenate(
        [a3[:, w, :] for w in range(wd)], axis=-1).astype(o_ref.dtype)


# ----------------------------------------------------------------------------
# Parameters & wrapper
# ----------------------------------------------------------------------------
def _init_conv_bn(key, cin, cout):
    k1, k2, k3, k4, k5 = jax.random.split(key, 5)
    fan_in = cin * 9
    return dict(
        w=jax.random.normal(k1, (3, 3, cin, cout), jnp.float32) / jnp.sqrt(fan_in),
        gamma=1.0 + 0.1 * jax.random.normal(k2, (cout,), jnp.float32),
        beta=0.1 * jax.random.normal(k3, (cout,), jnp.float32),
        mean=0.1 * jax.random.normal(k4, (cout,), jnp.float32),
        var=jnp.abs(jax.random.normal(k5, (cout,), jnp.float32)) + 0.5,
    )


def init_stack_decoder_params(key, x_big_channels, x_channels, y_channels):
    k1, k2, k3 = jax.random.split(key, 3)
    cin0 = x_big_channels + x_channels
    return [
        _init_conv_bn(k1, cin0, y_channels),
        _init_conv_bn(k2, y_channels, y_channels),
        _init_conv_bn(k3, y_channels, y_channels),
    ]


def _fold_bn(layer):
    scale = layer["gamma"] / jnp.sqrt(layer["var"] + BN_EPS)
    bias = layer["beta"] - layer["mean"] * scale
    return scale, bias


def stack_decoder_forward(x_nchw, down_nchw, params):
    """Matches StackDecoder.forward(x, down_tensor) for NCHW inputs
    (inference-mode BatchNorm folded to scale/bias)."""
    x = jnp.transpose(x_nchw, (0, 2, 3, 1))           # NCHW -> NHWC
    down = jnp.transpose(down_nchw, (0, 2, 3, 1))
    n, hs, ws, cx = x.shape
    _, hd, wd, cd = down.shape
    cy = params[0]["w"].shape[-1]

    # Bilinear (align_corners=True) resize as a single (Hd*Wd, Hs*Ws) matrix.
    ah = _interp_matrix(hd, hs)                       # (Hd, Hs)
    aw = _interp_matrix(wd, ws)                       # (Wd, Ws)
    akron = jnp.kron(ah, aw)                          # (Hd*Wd, Hs*Ws) f32

    # Fold BN (inference mode) into per-channel scale/bias, stacked per layer.
    scales, biases = zip(*[_fold_bn(layer) for layer in params])
    scale = jnp.stack(scales).reshape(3, 1, cy).astype(jnp.float32)
    bias = jnp.stack(biases).reshape(3, 1, cy).astype(jnp.float32)

    # Weights (3, 3, Cin, Cy) -> (3, 3*Cin, Cy): one fat matmul per kh tap.
    # First conv split along Cin so the skip-concat never materializes in HBM.
    # bf16 operands (MXU fast path), f32 accumulation.
    w1 = params[0]["w"]
    w1x = w1[:, :, :cx, :].reshape(3, 3 * cx, cy).astype(jnp.bfloat16)
    w1d = w1[:, :, cx:, :].reshape(3, 3 * cd, cy).astype(jnp.bfloat16)
    w2 = params[1]["w"].reshape(3, 3 * cy, cy).astype(jnp.bfloat16)
    w3 = params[2]["w"].reshape(3, 3 * cy, cy).astype(jnp.bfloat16)

    x2 = x.reshape(n, hs * ws, cx)                    # pixel rows, channel lanes

    flops = 2 * n * (hd * wd * hs * ws * cx
                     + hd * wd * 9 * ((cx + cd) * cy + 2 * cy * cy))
    bytes_accessed = int(4 * (x.size + down.size + n * hd * wd * cy
                              + akron.size + scale.size + bias.size)
                         + 2 * (w1x.size + w1d.size + w2.size + w3.size))

    out2d = pl.pallas_call(
        _stack_decoder_kernel,
        out_shape=jax.ShapeDtypeStruct((n, hd, wd * cy), x.dtype),
        grid=(n,),
        in_specs=[
            pl.BlockSpec((hd * wd, hs * ws), lambda i: (0, 0)),      # akron
            pl.BlockSpec((1, hs * ws, cx), lambda i: (i, 0, 0)),     # x (flat)
            pl.BlockSpec((1, hd, wd, cd), lambda i: (i, 0, 0, 0)),   # down
            pl.BlockSpec((3, 3 * cx, cy), lambda i: (0, 0, 0)),      # w1 (x part)
            pl.BlockSpec((3, 3 * cd, cy), lambda i: (0, 0, 0)),      # w1 (down)
            pl.BlockSpec((3, 3 * cy, cy), lambda i: (0, 0, 0)),      # w2
            pl.BlockSpec((3, 3 * cy, cy), lambda i: (0, 0, 0)),      # w3
            pl.BlockSpec((3, 1, cy), lambda i: (0, 0, 0)),           # bn scale
            pl.BlockSpec((3, 1, cy), lambda i: (0, 0, 0)),           # bn bias
        ],
        out_specs=pl.BlockSpec((1, hd, wd * cy), lambda i: (i, 0, 0)),
        scratch_shapes=[
            pltpu.VMEM((hd + 2, wd + 2, cx), jnp.bfloat16),   # padded x_up
            pltpu.VMEM((hd + 2, wd + 2, cd), jnp.bfloat16),   # padded down
            pltpu.VMEM((hd + 2, wd + 2, cy), jnp.bfloat16),   # padded activation
            pltpu.VMEM((hd + 2, wd, 3 * cx), jnp.bfloat16),   # kw-im2col of x_up
            pltpu.VMEM((hd + 2, wd, 3 * cd), jnp.bfloat16),   # kw-im2col of down
            pltpu.VMEM((hd + 2, wd, 3 * cy), jnp.bfloat16),   # kw-im2col of act
        ],
        compiler_params=pltpu.CompilerParams(
            dimension_semantics=("parallel",),        # megacore split on v7x
            vmem_limit_bytes=48 * 1024 * 1024),       # explicit scoped limit
        cost_estimate=pl.CostEstimate(
            flops=int(flops), transcendentals=0,
            bytes_accessed=bytes_accessed),
    )(akron, x2, down, w1x, w1d, w2, w3, scale, bias)

    out = out2d.reshape(n, hd, wd, cy)                # unfold lane-dense output
    return jnp.transpose(out, (0, 3, 1, 2))           # NHWC -> NCHW


# ----------------------------------------------------------------------------
# Plain-JAX reference mirroring the kernel numerics (bf16 conv operands,
# f32 accumulation, inference-mode BN) for correctness checking.
# ----------------------------------------------------------------------------
def stack_decoder_reference(x_nchw, down_nchw, params):
    x = jnp.transpose(x_nchw, (0, 2, 3, 1))
    down = jnp.transpose(down_nchw, (0, 2, 3, 1))
    _, hd, wd, _ = down.shape
    ah = _interp_matrix(hd, x.shape[1])
    aw = _interp_matrix(wd, x.shape[2])
    x = jnp.einsum("oh,nhwc,pw->nopc", ah, x, aw)
    x = jnp.concatenate([x, down], axis=-1)
    for layer in params:
        y = jax.lax.conv_general_dilated(
            x.astype(jnp.bfloat16), layer["w"].astype(jnp.bfloat16),
            (1, 1), "SAME",
            dimension_numbers=("NHWC", "HWIO", "NHWC"),
            preferred_element_type=jnp.float32)
        scale, bias = _fold_bn(layer)
        x = jnp.maximum(y * scale + bias, 0.0)
    return jnp.transpose(x, (0, 3, 1, 2))


if __name__ == "__main__":
    key = jax.random.PRNGKey(0)
    kx, kd, kp = jax.random.split(key, 3)

    N = 2
    x_big_channels = 6   # channels of x (low-res input that gets upsampled)
    x_channels = 4       # channels of down_tensor (skip connection)
    y_channels = 8
    Hs, Ws = 8, 8        # spatial size of x
    Hd, Wd = 16, 16      # spatial size of down_tensor (target size)

    x_nchw = jax.random.normal(kx, (N, x_big_channels, Hs, Ws), jnp.float32)
    down_nchw = jax.random.normal(kd, (N, x_channels, Hd, Wd), jnp.float32)
    params = init_stack_decoder_params(kp, x_big_channels, x_channels,
                                       y_channels)

    fwd = jax.jit(stack_decoder_forward)
    out = jax.block_until_ready(fwd(x_nchw, down_nchw, params))

    ref = stack_decoder_reference(x_nchw, down_nchw, params)
    assert out.shape == (N, y_channels, Hd, Wd), out.shape
    max_err = float(jnp.max(jnp.abs(out - ref)))
    assert jnp.allclose(out, ref, atol=2e-2, rtol=2e-2), max_err

    print("KERNEL_OK")
</pallas_src>

<mosaic_0001>
module attributes {stable_mosaic.version = 11 : i64} {
  func.func private @main(%arg0: i32) attributes {dimension_semantics = [#tpu.dimension_semantics<core_parallel>], iteration_bounds = array<i64: 2>, tpu.core_type = #tpu.core_type<sc_scalar_subcore>, window_params = []} {
    return
  }
}

module attributes {stable_mosaic.version = 11 : i64} {
  func.func private @main(%arg0: i32) attributes {dimension_semantics = [#tpu.dimension_semantics<core_parallel>], iteration_bounds = array<i64: 2>, tpu.core_type = #tpu.core_type<sc_scalar_subcore>, window_params = []} {
    return
  }
}

module attributes {stable_mosaic.version = 11 : i64} {
  func.func @_stack_decoder_kernel(%arg0: i32, %arg1: memref<256x64xf32, #tpu.memory_space<vmem>>, %arg2: memref<1x64x6xf32, #tpu.memory_space<vmem>>, %arg3: memref<1x16x16x4xf32, #tpu.memory_space<vmem>>, %arg4: memref<3x18x8xbf16, #tpu.memory_space<vmem>>, %arg5: memref<3x12x8xbf16, #tpu.memory_space<vmem>>, %arg6: memref<3x24x8xbf16, #tpu.memory_space<vmem>>, %arg7: memref<3x24x8xbf16, #tpu.memory_space<vmem>>, %arg8: memref<3x1x8xf32, #tpu.memory_space<vmem>>, %arg9: memref<3x1x8xf32, #tpu.memory_space<vmem>>, %arg10: memref<1x16x128xf32, #tpu.memory_space<vmem>>, %arg11: memref<18x18x6xbf16, #tpu.memory_space<vmem>>, %arg12: memref<18x18x4xbf16, #tpu.memory_space<vmem>>, %arg13: memref<18x18x8xbf16, #tpu.memory_space<vmem>>, %arg14: memref<18x16x18xbf16, #tpu.memory_space<vmem>>, %arg15: memref<18x16x12xbf16, #tpu.memory_space<vmem>>, %arg16: memref<18x16x24xbf16, #tpu.memory_space<vmem>>) attributes {dimension_semantics = [#tpu.dimension_semantics<parallel>], iteration_bounds = array<i64: 2>, scalar_prefetch = 0 : i64, scratch_operands = 6 : i64, tpu.core_type = #tpu.core_type<tc>, window_params = [{pipeline_mode = #tpu.pipeline_mode<synchronous>, transform_indices = @transform_0, window_bounds = array<i64: 256, 64>}, {transform_indices = @transform_1, window_bounds = array<i64: 1, 64, 6>}, {transform_indices = @transform_2, window_bounds = array<i64: 1, 16, 16, 4>}, {pipeline_mode = #tpu.pipeline_mode<synchronous>, transform_indices = @transform_3, window_bounds = array<i64: 3, 18, 8>}, {pipeline_mode = #tpu.pipeline_mode<synchronous>, transform_indices = @transform_4, window_bounds = array<i64: 3, 12, 8>}, {pipeline_mode = #tpu.pipeline_mode<synchronous>, transform_indices = @transform_5, window_bounds = array<i64: 3, 24, 8>}, {pipeline_mode = #tpu.pipeline_mode<synchronous>, transform_indices = @transform_6, window_bounds = array<i64: 3, 24, 8>}, {pipeline_mode = #tpu.pipeline_mode<synchronous>, transform_indices = @transform_7, window_bounds = array<i64: 3, 1, 8>}, {pipeline_mode = #tpu.pipeline_mode<synchronous>, transform_indices = @transform_8, window_bounds = array<i64: 3, 1, 8>}, {transform_indices = @transform_9, window_bounds = array<i64: 1, 16, 128>}]} {
    %cst = arith.constant 0.000000e+00 : bf16
    %0 = vector.broadcast %cst : bf16 to vector<1x18x6xbf16>
    %c0 = arith.constant 0 : index
    %c0_0 = arith.constant 0 : index
    %c0_1 = arith.constant 0 : index
    %1 = vector.load %arg11[%c0, %c0_0, %c0_1] : memref<18x18x6xbf16, #tpu.memory_space<vmem>>, vector<1x18x6xbf16>
    tpu.vector_store %arg11[%c0, %c0_0, %c0_1], %0 {strides = array<i32>} : memref<18x18x6xbf16, #tpu.memory_space<vmem>>, vector<1x18x6xbf16>,
    %c17 = arith.constant 17 : index
    %c0_2 = arith.constant 0 : index
    %c0_3 = arith.constant 0 : index
    %2 = vector.load %arg11[%c17, %c0_2, %c0_3] : memref<18x18x6xbf16, #tpu.memory_space<vmem>>, vector<1x18x6xbf16>
    tpu.vector_store %arg11[%c17, %c0_2, %c0_3], %0 {strides = array<i32>} : memref<18x18x6xbf16, #tpu.memory_space<vmem>>, vector<1x18x6xbf16>,
    %cst_4 = arith.constant 0.000000e+00 : bf16
    %3 = vector.broadcast %cst_4 : bf16 to vector<18x1x6xbf16>
    %c0_5 = arith.constant 0 : index
    %c0_6 = arith.constant 0 : index
    %c0_7 = arith.constant 0 : index
    %4 = vector.load %arg11[%c0_5, %c0_6, %c0_7] : memref<18x18x6xbf16, #tpu.memory_space<vmem>>, vector<18x1x6xbf16>
    tpu.vector_store %arg11[%c0_5, %c0_6, %c0_7], %3 {strides = array<i32>} : memref<18x18x6xbf16, #tpu.memory_space<vmem>>, vector<18x1x6xbf16>,
    %c0_8 = arith.constant 0 : index
    %c17_9 = arith.constant 17 : index
    %c0_10 = arith.constant 0 : index
    %5 = vector.load %arg11[%c0_8, %c17_9, %c0_10] : memref<18x18x6xbf16, #tpu.memory_space<vmem>>, vector<18x1x6xbf16>
    tpu.vector_store %arg11[%c0_8, %c17_9, %c0_10], %3 {strides = array<i32>} : memref<18x18x6xbf16, #tpu.memory_space<vmem>>, vector<18x1x6xbf16>,
    %cst_11 = arith.constant 0.000000e+00 : bf16
    %6 = vector.broadcast %cst_11 : bf16 to vector<1x18x4xbf16>
    %c0_12 = arith.constant 0 : index
    %c0_13 = arith.constant 0 : index
    %c0_14 = arith.constant 0 : index
    %7 = vector.load %arg12[%c0_12, %c0_13, %c0_14] : memref<18x18x4xbf16, #tpu.memory_space<vmem>>, vector<1x18x4xbf16>
    tpu.vector_store %arg12[%c0_12, %c0_13, %c0_14], %6 {strides = array<i32>} : memref<18x18x4xbf16, #tpu.memory_space<vmem>>, vector<1x18x4xbf16>,
    %c17_15 = arith.constant 17 : index
    %c0_16 = arith.constant 0 : index
    %c0_17 = arith.constant 0 : index
    %8 = vector.load %arg12[%c17_15, %c0_16, %c0_17] : memref<18x18x4xbf16, #tpu.memory_space<vmem>>, vector<1x18x4xbf16>
    tpu.vector_store %arg12[%c17_15, %c0_16, %c0_17], %6 {strides = array<i32>} : memref<18x18x4xbf16, #tpu.memory_space<vmem>>, vector<1x18x4xbf16>,
    %cst_18 = arith.constant 0.000000e+00 : bf16
    %9 = vector.broadcast %cst_18 : bf16 to vector<18x1x4xbf16>
    %c0_19 = arith.constant 0 : index
    %c0_20 = arith.constant 0 : index
    %c0_21 = arith.constant 0 : index
    %10 = vector.load %arg12[%c0_19, %c0_20, %c0_21] : memref<18x18x4xbf16, #tpu.memory_space<vmem>>, vector<18x1x4xbf16>
    tpu.vector_store %arg12[%c0_19, %c0_20, %c0_21], %9 {strides = array<i32>} : memref<18x18x4xbf16, #tpu.memory_space<vmem>>, vector<18x1x4xbf16>,
    %c0_22 = arith.constant 0 : index
    %c17_23 = arith.constant 17 : index
    %c0_24 = arith.constant 0 : index
    %11 = vector.load %arg12[%c0_22, %c17_23, %c0_24] : memref<18x18x4xbf16, #tpu.memory_space<vmem>>, vector<18x1x4xbf16>
    tpu.vector_store %arg12[%c0_22, %c17_23, %c0_24], %9 {strides = array<i32>} : memref<18x18x4xbf16, #tpu.memory_space<vmem>>, vector<18x1x4xbf16>,
    %cst_25 = arith.constant 0.000000e+00 : bf16
    %12 = vector.broadcast %cst_25 : bf16 to vector<1x18x8xbf16>
    %c0_26 = arith.constant 0 : index
    %c0_27 = arith.constant 0 : index
    %c0_28 = arith.constant 0 : index
    %13 = vector.load %arg13[%c0_26, %c0_27, %c0_28] : memref<18x18x8xbf16, #tpu.memory_space<vmem>>, vector<1x18x8xbf16>
    tpu.vector_store %arg13[%c0_26, %c0_27, %c0_28], %12 {strides = array<i32>} : memref<18x18x8xbf16, #tpu.memory_space<vmem>>, vector<1x18x8xbf16>,
    %c17_29 = arith.constant 17 : index
    %c0_30 = arith.constant 0 : index
    %c0_31 = arith.constant 0 : index
    %14 = vector.load %arg13[%c17_29, %c0_30, %c0_31] : memref<18x18x8xbf16, #tpu.memory_space<vmem>>, vector<1x18x8xbf16>
    tpu.vector_store %arg13[%c17_29, %c0_30, %c0_31], %12 {strides = array<i32>} : memref<18x18x8xbf16, #tpu.memory_space<vmem>>, vector<1x18x8xbf16>,
    %cst_32 = arith.constant 0.000000e+00 : bf16
    %15 = vector.broadcast %cst_32 : bf16 to vector<18x1x8xbf16>
    %c0_33 = arith.constant 0 : index
    %c0_34 = arith.constant 0 : index
    %c0_35 = arith.constant 0 : index
    %16 = vector.load %arg13[%c0_33, %c0_34, %c0_35] : memref<18x18x8xbf16, #tpu.memory_space<vmem>>, vector<18x1x8xbf16>
    tpu.vector_store %arg13[%c0_33, %c0_34, %c0_35], %15 {strides = array<i32>} : memref<18x18x8xbf16, #tpu.memory_space<vmem>>, vector<18x1x8xbf16>,
    %c0_36 = arith.constant 0 : index
    %c17_37 = arith.constant 17 : index
    %c0_38 = arith.constant 0 : index
    %17 = vector.load %arg13[%c0_36, %c17_37, %c0_38] : memref<18x18x8xbf16, #tpu.memory_space<vmem>>, vector<18x1x8xbf16>
    tpu.vector_store %arg13[%c0_36, %c17_37, %c0_38], %15 {strides = array<i32>} : memref<18x18x8xbf16, #tpu.memory_space<vmem>>, vector<18x1x8xbf16>,
    %c0_39 = arith.constant 0 : index
    %c0_40 = arith.constant 0 : index
    %18 = vector.load %arg1[%c0_39, %c0_40] : memref<256x64xf32, #tpu.memory_space<vmem>>, vector<256x64xf32>
    %c0_41 = arith.constant 0 : index
    %c0_42 = arith.constant 0 : index
    %c0_43 = arith.constant 0 : index
    %19 = vector.load %arg2[%c0_41, %c0_42, %c0_43] : memref<1x64x6xf32, #tpu.memory_space<vmem>>, vector<1x64x6xf32>
    %20 = vector.shape_cast %19 : vector<1x64x6xf32> to vector<64x6xf32>
    %cst_44 = arith.constant dense<0.000000e+00> : vector<256x6xf32>
    %21 = tpu.matmul %18, %20, %cst_44 {dimension_numbers = #tpu.dot_dimension_numbers<[1], [0], [0], [1], [0, 0, 1, 1], [], []>} : vector<256x64xf32>, vector<64x6xf32>, vector<256x6xf32> -> vector<256x6xf32>
    %22 = vector.shape_cast %21 : vector<256x6xf32> to vector<16x16x6xf32>
    %23 = arith.truncf %22 : vector<16x16x6xf32> to vector<16x16x6xbf16>
    %c1 = arith.constant 1 : index
    %c1_45 = arith.constant 1 : index
    %c0_46 = arith.constant 0 : index
    %24 = vector.load %arg11[%c1, %c1_45, %c0_46] : memref<18x18x6xbf16, #tpu.memory_space<vmem>>, vector<16x16x6xbf16>
    tpu.vector_store %arg11[%c1, %c1_45, %c0_46], %23 {strides = array<i32>} : memref<18x18x6xbf16, #tpu.memory_space<vmem>>, vector<16x16x6xbf16>,
    %c0_47 = arith.constant 0 : index
    %c0_48 = arith.constant 0 : index
    %c0_49 = arith.constant 0 : index
    %c0_50 = arith.constant 0 : index
    %25 = vector.load %arg3[%c0_47, %c0_48, %c0_49, %c0_50] : memref<1x16x16x4xf32, #tpu.memory_space<vmem>>, vector<1x16x16x4xf32>
    %26 = vector.shape_cast %25 : vector<1x16x16x4xf32> to vector<16x16x4xf32>
    %27 = arith.truncf %26 : vector<16x16x4xf32> to vector<16x16x4xbf16>
    %c1_51 = arith.constant 1 : index
    %c1_52 = arith.constant 1 : index
    %c0_53 = arith.constant 0 : index
    %28 = vector.load %arg12[%c1_51, %c1_52, %c0_53] : memref<18x18x4xbf16, #tpu.memory_space<vmem>>, vector<16x16x4xbf16>
    tpu.vector_store %arg12[%c1_51, %c1_52, %c0_53], %27 {strides = array<i32>} : memref<18x18x4xbf16, #tpu.memory_space<vmem>>, vector<16x16x4xbf16>,
    %c0_54 = arith.constant 0 : index
    %c0_55 = arith.constant 0 : index
    %c0_56 = arith.constant 0 : index
    %29 = vector.load %arg11[%c0_54, %c0_55, %c0_56] : memref<18x18x6xbf16, #tpu.memory_space<vmem>>, vector<18x16x6xbf16>
    %c0_57 = arith.constant 0 : index
    %c1_58 = arith.constant 1 : index
    %c0_59 = arith.constant 0 : index
    %30 = vector.load %arg11[%c0_57, %c1_58, %c0_59] : memref<18x18x6xbf16, #tpu.memory_space<vmem>>, vector<18x16x6xbf16>
    %c0_60 = arith.constant 0 : index
    %c2 = arith.constant 2 : index
    %c0_61 = arith.constant 0 : index
    %31 = vector.load %arg11[%c0_60, %c2, %c0_61] : memref<18x18x6xbf16, #tpu.memory_space<vmem>>, vector<18x16x6xbf16>
    %32 = tpu.concatenate %29, %30, %31 in 2 : vector<18x16x6xbf16>, vector<18x16x6xbf16>, vector<18x16x6xbf16> -> vector<18x16x18xbf16>
    %c0_62 = arith.constant 0 : index
    %c0_63 = arith.constant 0 : index
    %c0_64 = arith.constant 0 : index
    %33 = vector.load %arg14[%c0_62, %c0_63, %c0_64] : memref<18x16x18xbf16, #tpu.memory_space<vmem>>, vector<18x16x18xbf16>
    tpu.vector_store %arg14[%c0_62, %c0_63, %c0_64], %32 {strides = array<i32>} : memref<18x16x18xbf16, #tpu.memory_space<vmem>>, vector<18x16x18xbf16>,
    %c0_65 = arith.constant 0 : index
    %c0_66 = arith.constant 0 : index
    %c0_67 = arith.constant 0 : index
    %34 = vector.load %arg12[%c0_65, %c0_66, %c0_67] : memref<18x18x4xbf16, #tpu.memory_space<vmem>>, vector<18x16x4xbf16>
    %c0_68 = arith.constant 0 : index
    %c1_69 = arith.constant 1 : index
    %c0_70 = arith.constant 0 : index
    %35 = vector.load %arg12[%c0_68, %c1_69, %c0_70] : memref<18x18x4xbf16, #tpu.memory_space<vmem>>, vector<18x16x4xbf16>
    %c0_71 = arith.constant 0 : index
    %c2_72 = arith.constant 2 : index
    %c0_73 = arith.constant 0 : index
    %36 = vector.load %arg12[%c0_71, %c2_72, %c0_73] : memref<18x18x4xbf16, #tpu.memory_space<vmem>>, vector<18x16x4xbf16>
    %37 = tpu.concatenate %34, %35, %36 in 2 : vector<18x16x4xbf16>, vector<18x16x4xbf16>, vector<18x16x4xbf16> -> vector<18x16x12xbf16>
    %c0_74 = arith.constant 0 : index
    %c0_75 = arith.constant 0 : index
    %c0_76 = arith.constant 0 : index
    %38 = vector.load %arg15[%c0_74, %c0_75, %c0_76] : memref<18x16x12xbf16, #tpu.memory_space<vmem>>, vector<18x16x12xbf16>
    tpu.vector_store %arg15[%c0_74, %c0_75, %c0_76], %37 {strides = array<i32>} : memref<18x16x12xbf16, #tpu.memory_space<vmem>>, vector<18x16x12xbf16>,
    %c0_77 = arith.constant 0 : index
    %c0_78 = arith.constant 0 : index
    %c0_79 = arith.constant 0 : index
    %39 = vector.load %arg14[%c0_77, %c0_78, %c0_79] : memref<18x16x18xbf16, #tpu.memory_space<vmem>>, vector<16x16x18xbf16>
    %40 = vector.shape_cast %39 : vector<16x16x18xbf16> to vector<256x18xbf16>
    %c0_80 = arith.constant 0 : index
    %c0_81 = arith.constant 0 : index
    %c0_82 = arith.constant 0 : index
    %41 = vector.load %arg4[%c0_80, %c0_81, %c0_82] : memref<3x18x8xbf16, #tpu.memory_space<vmem>>, vector<1x18x8xbf16>
    %42 = vector.shape_cast %41 : vector<1x18x8xbf16> to vector<18x8xbf16>
    %cst_83 = arith.constant dense<0.000000e+00> : vector<256x8xf32>
    %43 = tpu.matmul %40, %42, %cst_83 {dimension_numbers = #tpu.dot_dimension_numbers<[1], [0], [0], [1], [0, 0, 1, 1], [], []>} : vector<256x18xbf16>, vector<18x8xbf16>, vector<256x8xf32> -> vector<256x8xf32>
    %c1_84 = arith.constant 1 : index
    %c0_85 = arith.constant 0 : index
    %c0_86 = arith.constant 0 : index
    %44 = vector.load %arg14[%c1_84, %c0_85, %c0_86] : memref<18x16x18xbf16, #tpu.memory_space<vmem>>, vector<16x16x18xbf16>
    %45 = vector.shape_cast %44 : vector<16x16x18xbf16> to vector<256x18xbf16>
    %c1_87 = arith.constant 1 : index
    %c0_88 = arith.constant 0 : index
    %c0_89 = arith.constant 0 : index
    %46 = vector.load %arg4[%c1_87, %c0_88, %c0_89] : memref<3x18x8xbf16, #tpu.memory_space<vmem>>, vector<1x18x8xbf16>
    %47 = vector.shape_cast %46 : vector<1x18x8xbf16> to vector<18x8xbf16>
    %cst_90 = arith.constant dense<0.000000e+00> : vector<256x8xf32>
    %48 = tpu.matmul %45, %47, %cst_90 {dimension_numbers = #tpu.dot_dimension_numbers<[1], [0], [0], [1], [0, 0, 1, 1], [], []>} : vector<256x18xbf16>, vector<18x8xbf16>, vector<256x8xf32> -> vector<256x8xf32>
    %49 = arith.addf %43, %48 : vector<256x8xf32>
    %c2_91 = arith.constant 2 : index
    %c0_92 = arith.constant 0 : index
    %c0_93 = arith.constant 0 : index
    %50 = vector.load %arg14[%c2_91, %c0_92, %c0_93] : memref<18x16x18xbf16, #tpu.memory_space<vmem>>, vector<16x16x18xbf16>
    %51 = vector.shape_cast %50 : vector<16x16x18xbf16> to vector<256x18xbf16>
    %c2_94 = arith.constant 2 : index
    %c0_95 = arith.constant 0 : index
    %c0_96 = arith.constant 0 : index
    %52 = vector.load %arg4[%c2_94, %c0_95, %c0_96] : memref<3x18x8xbf16, #tpu.memory_space<vmem>>, vector<1x18x8xbf16>
    %53 = vector.shape_cast %52 : vector<1x18x8xbf16> to vector<18x8xbf16>
    %cst_97 = arith.constant dense<0.000000e+00> : vector<256x8xf32>
    %54 = tpu.matmul %51, %53, %cst_97 {dimension_numbers = #tpu.dot_dimension_numbers<[1], [0], [0], [1], [0, 0, 1, 1], [], []>} : vector<256x18xbf16>, vector<18x8xbf16>, vector<256x8xf32> -> vector<256x8xf32>
    %55 = arith.addf %49, %54 : vector<256x8xf32>
    %c0_98 = arith.constant 0 : index
    %c0_99 = arith.constant 0 : index
    %c0_100 = arith.constant 0 : index
    %56 = vector.load %arg15[%c0_98, %c0_99, %c0_100] : memref<18x16x12xbf16, #tpu.memory_space<vmem>>, vector<16x16x12xbf16>
    %57 = vector.shape_cast %56 : vector<16x16x12xbf16> to vector<256x12xbf16>
    %c0_101 = arith.constant 0 : index
    %c0_102 = arith.constant 0 : index
    %c0_103 = arith.constant 0 : index
    %58 = vector.load %arg5[%c0_101, %c0_102, %c0_103] : memref<3x12x8xbf16, #tpu.memory_space<vmem>>, vector<1x12x8xbf16>
    %59 = vector.shape_cast %58 : vector<1x12x8xbf16> to vector<12x8xbf16>
    %cst_104 = arith.constant dense<0.000000e+00> : vector<256x8xf32>
    %60 = tpu.matmul %57, %59, %cst_104 {dimension_numbers = #tpu.dot_dimension_numbers<[1], [0], [0], [1], [0, 0, 1, 1], [], []>} : vector<256x12xbf16>, vector<12x8xbf16>, vector<256x8xf32> -> vector<256x8xf32>
    %c1_105 = arith.constant 1 : index
    %c0_106 = arith.constant 0 : index
    %c0_107 = arith.constant 0 : index
    %61 = vector.load %arg15[%c1_105, %c0_106, %c0_107] : memref<18x16x12xbf16, #tpu.memory_space<vmem>>, vector<16x16x12xbf16>
    %62 = vector.shape_cast %61 : vector<16x16x12xbf16> to vector<256x12xbf16>
    %c1_108 = arith.constant 1 : index
    %c0_109 = arith.constant 0 : index
    %c0_110 = arith.constant 0 : index
    %63 = vector.load %arg5[%c1_108, %c0_109, %c0_110] : memref<3x12x8xbf16, #tpu.memory_space<vmem>>, vector<1x12x8xbf16>
    %64 = vector.shape_cast %63 : vector<1x12x8xbf16> to vector<12x8xbf16>
    %cst_111 = arith.constant dense<0.000000e+00> : vector<256x8xf32>
    %65 = tpu.matmul %62, %64, %cst_111 {dimension_numbers = #tpu.dot_dimension_numbers<[1], [0], [0], [1], [0, 0, 1, 1], [], []>} : vector<256x12xbf16>, vector<12x8xbf16>, vector<256x8xf32> -> vector<256x8xf32>
    %66 = arith.addf %60, %65 : vector<256x8xf32>
    %c2_112 = arith.constant 2 : index
    %c0_113 = arith.constant 0 : index
    %c0_114 = arith.constant 0 : index
    %67 = vector.load %arg15[%c2_112, %c0_113, %c0_114] : memref<18x16x12xbf16, #tpu.memory_space<vmem>>, vector<16x16x12xbf16>
    %68 = vector.shape_cast %67 : vector<16x16x12xbf16> to vector<256x12xbf16>
    %c2_115 = arith.constant 2 : index
    %c0_116 = arith.constant 0 : index
    %c0_117 = arith.constant 0 : index
    %69 = vector.load %arg5[%c2_115, %c0_116, %c0_117] : memref<3x12x8xbf16, #tpu.memory_space<vmem>>, vector<1x12x8xbf16>
    %70 = vector.shape_cast %69 : vector<1x12x8xbf16> to vector<12x8xbf16>
    %cst_118 = arith.constant dense<0.000000e+00> : vector<256x8xf32>
    %71 = tpu.matmul %68, %70, %cst_118 {dimension_numbers = #tpu.dot_dimension_numbers<[1], [0], [0], [1], [0, 0, 1, 1], [], []>} : vector<256x12xbf16>, vector<12x8xbf16>, vector<256x8xf32> -> vector<256x8xf32>
    %72 = arith.addf %66, %71 : vector<256x8xf32>
    %73 = arith.addf %55, %72 : vector<256x8xf32>
    %c0_119 = arith.constant 0 : index
    %c0_120 = arith.constant 0 : index
    %c0_121 = arith.constant 0 : index
    %74 = vector.load %arg8[%c0_119, %c0_120, %c0_121] : memref<3x1x8xf32, #tpu.memory_space<vmem>>, vector<1x1x8xf32>
    %75 = vector.shape_cast %74 : vector<1x1x8xf32> to vector<1x8xf32>
    %76 = vector.broadcast %75 : vector<1x8xf32> to vector<256x8xf32>
    %77 = arith.mulf %73, %76 : vector<256x8xf32>
    %c0_122 = arith.constant 0 : index
    %c0_123 = arith.constant 0 : index
    %c0_124 = arith.constant 0 : index
    %78 = vector.load %arg9[%c0_122, %c0_123, %c0_124] : memref<3x1x8xf32, #tpu.memory_space<vmem>>, vector<1x1x8xf32>
    %79 = vector.shape_cast %78 : vector<1x1x8xf32> to vector<1x8xf32>
    %80 = vector.broadcast %79 : vector<1x8xf32> to vector<256x8xf32>
    %81 = arith.addf %77, %80 : vector<256x8xf32>
    %cst_125 = arith.constant 0.000000e+00 : f32
    %82 = vector.broadcast %cst_125 : f32 to vector<256x8xf32>
    %83 = arith.maximumf %81, %82 : vector<256x8xf32>
    %84 = vector.shape_cast %83 : vector<256x8xf32> to vector<16x16x8xf32>
    %85 = arith.truncf %84 : vector<16x16x8xf32> to vector<16x16x8xbf16>
    %c1_126 = arith.constant 1 : index
    %c1_127 = arith.constant 1 : index
    %c0_128 = arith.constant 0 : index
    %86 = vector.load %arg13[%c1_126, %c1_127, %c0_128] : memref<18x18x8xbf16, #tpu.memory_space<vmem>>, vector<16x16x8xbf16>
    tpu.vector_store %arg13[%c1_126, %c1_127, %c0_128], %85 {strides = array<i32>} : memref<18x18x8xbf16, #tpu.memory_space<vmem>>, vector<16x16x8xbf16>,
    %c0_129 = arith.constant 0 : index
    %c0_130 = arith.constant 0 : index
    %c0_131 = arith.constant 0 : index
    %87 = vector.load %arg13[%c0_129, %c0_130, %c0_131] : memref<18x18x8xbf16, #tpu.memory_space<vmem>>, vector<18x16x8xbf16>
    %c0_132 = arith.constant 0 : index
    %c1_133 = arith.constant 1 : index
    %c0_134 = arith.constant 0 : index
    %88 = vector.load %arg13[%c0_132, %c1_133, %c0_134] : memref<18x18x8xbf16, #tpu.memory_space<vmem>>, vector<18x16x8xbf16>
    %c0_135 = arith.constant 0 : index
    %c2_136 = arith.constant 2 : index
    %c0_137 = arith.constant 0 : index
    %89 = vector.load %arg13[%c0_135, %c2_136, %c0_137] : memref<18x18x8xbf16, #tpu.memory_space<vmem>>, vector<18x16x8xbf16>
    %90 = tpu.concatenate %87, %88, %89 in 2 : vector<18x16x8xbf16>, vector<18x16x8xbf16>, vector<18x16x8xbf16> -> vector<18x16x24xbf16>
    %c0_138 = arith.constant 0 : index
    %c0_139 = arith.constant 0 : index
    %c0_140 = arith.constant 0 : index
    %91 = vector.load %arg16[%c0_138, %c0_139, %c0_140] : memref<18x16x24xbf16, #tpu.memory_space<vmem>>, vector<18x16x24xbf16>
    tpu.vector_store %arg16[%c0_138, %c0_139, %c0_140], %90 {strides = array<i32>} : memref<18x16x24xbf16, #tpu.memory_space<vmem>>, vector<18x16x24xbf16>,
    %c0_141 = arith.constant 0 : index
    %c0_142 = arith.constant 0 : index
    %c0_143 = arith.constant 0 : index
    %92 = vector.load %arg16[%c0_141, %c0_142, %c0_143] : memref<18x16x24xbf16, #tpu.memory_space<vmem>>, vector<16x16x24xbf16>
    %93 = vector.shape_cast %92 : vector<16x16x24xbf16> to vector<256x24xbf16>
    %c0_144 = arith.constant 0 : index
    %c0_145 = arith.constant 0 : index
    %c0_146 = arith.constant 0 : index
    %94 = vector.load %arg6[%c0_144, %c0_145, %c0_146] : memref<3x24x8xbf16, #tpu.memory_space<vmem>>, vector<1x24x8xbf16>
    %95 = vector.shape_cast %94 : vector<1x24x8xbf16> to vector<24x8xbf16>
    %cst_147 = arith.constant dense<0.000000e+00> : vector<256x8xf32>
    %96 = tpu.matmul %93, %95, %cst_147 {dimension_numbers = #tpu.dot_dimension_numbers<[1], [0], [0], [1], [0, 0, 1, 1], [], []>} : vector<256x24xbf16>, vector<24x8xbf16>, vector<256x8xf32> -> vector<256x8xf32>
    %c1_148 = arith.constant 1 : index
    %c0_149 = arith.constant 0 : index
    %c0_150 = arith.constant 0 : index
    %97 = vector.load %arg16[%c1_148, %c0_149, %c0_150] : memref<18x16x24xbf16, #tpu.memory_space<vmem>>, vector<16x16x24xbf16>
    %98 = vector.shape_cast %97 : vector<16x16x24xbf16> to vector<256x24xbf16>
    %c1_151 = arith.constant 1 : index
    %c0_152 = arith.constant 0 : index
    %c0_153 = arith.constant 0 : index
    %99 = vector.load %arg6[%c1_151, %c0_152, %c0_153] : memref<3x24x8xbf16, #tpu.memory_space<vmem>>, vector<1x24x8xbf16>
    %100 = vector.shape_cast %99 : vector<1x24x8xbf16> to vector<24x8xbf16>
    %cst_154 = arith.constant dense<0.000000e+00> : vector<256x8xf32>
    %101 = tpu.matmul %98, %100, %cst_154 {dimension_numbers = #tpu.dot_dimension_numbers<[1], [0], [0], [1], [0, 0, 1, 1], [], []>} : vector<256x24xbf16>, vector<24x8xbf16>, vector<256x8xf32> -> vector<256x8xf32>
    %102 = arith.addf %96, %101 : vector<256x8xf32>
    %c2_155 = arith.constant 2 : index
    %c0_156 = arith.constant 0 : index
    %c0_157 = arith.constant 0 : index
    %103 = vector.load %arg16[%c2_155, %c0_156, %c0_157] : memref<18x16x24xbf16, #tpu.memory_space<vmem>>, vector<16x16x24xbf16>
    %104 = vector.shape_cast %103 : vector<16x16x24xbf16> to vector<256x24xbf16>
    %c2_158 = arith.constant 2 : index
    %c0_159 = arith.constant 0 : index
    %c0_160 = arith.constant 0 : index
    %105 = vector.load %arg6[%c2_158, %c0_159, %c0_160] : memref<3x24x8xbf16, #tpu.memory_space<vmem>>, vector<1x24x8xbf16>
    %106 = vector.shape_cast %105 : vector<1x24x8xbf16> to vector<24x8xbf16>
    %cst_161 = arith.constant dense<0.000000e+00> : vector<256x8xf32>
    %107 = tpu.matmul %104, %106, %cst_161 {dimension_numbers = #tpu.dot_dimension_numbers<[1], [0], [0], [1], [0, 0, 1, 1], [], []>} : vector<256x24xbf16>, vector<24x8xbf16>, vector<256x8xf32> -> vector<256x8xf32>
    %108 = arith.addf %102, %107 : vector<256x8xf32>
    %c1_162 = arith.constant 1 : index
    %c0_163 = arith.constant 0 : index
    %c0_164 = arith.constant 0 : index
    %109 = vector.load %arg8[%c1_162, %c0_163, %c0_164] : memref<3x1x8xf32, #tpu.memory_space<vmem>>, vector<1x1x8xf32>
    %110 = vector.shape_cast %109 : vector<1x1x8xf32> to vector<1x8xf32>
    %111 = vector.broadcast %110 : vector<1x8xf32> to vector<256x8xf32>
    %112 = arith.mulf %108, %111 : vector<256x8xf32>
    %c1_165 = arith.constant 1 : index
    %c0_166 = arith.constant 0 : index
    %c0_167 = arith.constant 0 : index
    %113 = vector.load %arg9[%c1_165, %c0_166, %c0_167] : memref<3x1x8xf32, #tpu.memory_space<vmem>>, vector<1x1x8xf32>
    %114 = vector.shape_cast %113 : vector<1x1x8xf32> to vector<1x8xf32>
    %115 = vector.broadcast %114 : vector<1x8xf32> to vector<256x8xf32>
    %116 = arith.addf %112, %115 : vector<256x8xf32>
    %cst_168 = arith.constant 0.000000e+00 : f32
    %117 = vector.broadcast %cst_168 : f32 to vector<256x8xf32>
    %118 = arith.maximumf %116, %117 : vector<256x8xf32>
    %119 = vector.shape_cast %118 : vector<256x8xf32> to vector<16x16x8xf32>
    %120 = arith.truncf %119 : vector<16x16x8xf32> to vector<16x16x8xbf16>
    %c1_169 = arith.constant 1 : index
    %c1_170 = arith.constant 1 : index
    %c0_171 = arith.constant 0 : index
    %121 = vector.load %arg13[%c1_169, %c1_170, %c0_171] : memref<18x18x8xbf16, #tpu.memory_space<vmem>>, vector<16x16x8xbf16>
    tpu.vector_store %arg13[%c1_169, %c1_170, %c0_171], %120 {strides = array<i32>} : memref<18x18x8xbf16, #tpu.memory_space<vmem>>, vector<16x16x8xbf16>,
    %c0_172 = arith.constant 0 : index
    %c0_173 = arith.constant 0 : index
    %c0_174 = arith.constant 0 : index
    %122 = vector.load %arg13[%c0_172, %c0_173, %c0_174] : memref<18x18x8xbf16, #tpu.memory_space<vmem>>, vector<18x16x8xbf16>
    %c0_175 = arith.constant 0 : index
    %c1_176 = arith.constant 1 : index
    %c0_177 = arith.constant 0 : index
    %123 = vector.load %arg13[%c0_175, %c1_176, %c0_177] : memref<18x18x8xbf16, #tpu.memory_space<vmem>>, vector<18x16x8xbf16>
    %c0_178 = arith.constant 0 : index
    %c2_179 = arith.constant 2 : index
    %c0_180 = arith.constant 0 : index
    %124 = vector.load %arg13[%c0_178, %c2_179, %c0_180] : memref<18x18x8xbf16, #tpu.memory_space<vmem>>, vector<18x16x8xbf16>
    %125 = tpu.concatenate %122, %123, %124 in 2 : vector<18x16x8xbf16>, vector<18x16x8xbf16>, vector<18x16x8xbf16> -> vector<18x16x24xbf16>
    %c0_181 = arith.constant 0 : index
    %c0_182 = arith.constant 0 : index
    %c0_183 = arith.constant 0 : index
    %126 = vector.load %arg16[%c0_181, %c0_182, %c0_183] : memref<18x16x24xbf16, #tpu.memory_space<vmem>>, vector<18x16x24xbf16>
    tpu.vector_store %arg16[%c0_181, %c0_182, %c0_183], %125 {strides = array<i32>} : memref<18x16x24xbf16, #tpu.memory_space<vmem>>, vector<18x16x24xbf16>,
    %c0_184 = arith.constant 0 : index
    %c0_185 = arith.constant 0 : index
    %c0_186 = arith.constant 0 : index
    %127 = vector.load %arg16[%c0_184, %c0_185, %c0_186] : memref<18x16x24xbf16, #tpu.memory_space<vmem>>, vector<16x16x24xbf16>
    %128 = vector.shape_cast %127 : vector<16x16x24xbf16> to vector<256x24xbf16>
    %c0_187 = arith.constant 0 : index
    %c0_188 = arith.constant 0 : index
    %c0_189 = arith.constant 0 : index
    %129 = vector.load %arg7[%c0_187, %c0_188, %c0_189] : memref<3x24x8xbf16, #tpu.memory_space<vmem>>, vector<1x24x8xbf16>
    %130 = vector.shape_cast %129 : vector<1x24x8xbf16> to vector<24x8xbf16>
    %cst_190 = arith.constant dense<0.000000e+00> : vector<256x8xf32>
    %131 = tpu.matmul %128, %130, %cst_190 {dimension_numbers = #tpu.dot_dimension_numbers<[1], [0], [0], [1], [0, 0, 1, 1], [], []>} : vector<256x24xbf16>, vector<24x8xbf16>, vector<256x8xf32> -> vector<256x8xf32>
    %c1_191 = arith.constant 1 : index
    %c0_192 = arith.constant 0 : index
    %c0_193 = arith.constant 0 : index
    %132 = vector.load %arg16[%c1_191, %c0_192, %c0_193] : memref<18x16x24xbf16, #tpu.memory_space<vmem>>, vector<16x16x24xbf16>
    %133 = vector.shape_cast %132 : vector<16x16x24xbf16> to vector<256x24xbf16>
    %c1_194 = arith.constant 1 : index
    %c0_195 = arith.constant 0 : index
    %c0_196 = arith.constant 0 : index
    %134 = vector.load %arg7[%c1_194, %c0_195, %c0_196] : memref<3x24x8xbf16, #tpu.memory_space<vmem>>, vector<1x24x8xbf16>
    %135 = vector.shape_cast %134 : vector<1x24x8xbf16> to vector<24x8xbf16>
    %cst_197 = arith.constant dense<0.000000e+00> : vector<256x8xf32>
    %136 = tpu.matmul %133, %135, %cst_197 {dimension_numbers = #tpu.dot_dimension_numbers<[1], [0], [0], [1], [0, 0, 1, 1], [], []>} : vector<256x24xbf16>, vector<24x8xbf16>, vector<256x8xf32> -> vector<256x8xf32>
    %137 = arith.addf %131, %136 : vector<256x8xf32>
    %c2_198 = arith.constant 2 : index
    %c0_199 = arith.constant 0 : index
    %c0_200 = arith.constant 0 : index
    %138 = vector.load %arg16[%c2_198, %c0_199, %c0_200] : memref<18x16x24xbf16, #tpu.memory_space<vmem>>, vector<16x16x24xbf16>
    %139 = vector.shape_cast %138 : vector<16x16x24xbf16> to vector<256x24xbf16>
    %c2_201 = arith.constant 2 : index
    %c0_202 = arith.constant 0 : index
    %c0_203 = arith.constant 0 : index
    %140 = vector.load %arg7[%c2_201, %c0_202, %c0_203] : memref<3x24x8xbf16, #tpu.memory_space<vmem>>, vector<1x24x8xbf16>
    %141 = vector.shape_cast %140 : vector<1x24x8xbf16> to vector<24x8xbf16>
    %cst_204 = arith.constant dense<0.000000e+00> : vector<256x8xf32>
    %142 = tpu.matmul %139, %141, %cst_204 {dimension_numbers = #tpu.dot_dimension_numbers<[1], [0], [0], [1], [0, 0, 1, 1], [], []>} : vector<256x24xbf16>, vector<24x8xbf16>, vector<256x8xf32> -> vector<256x8xf32>
    %143 = arith.addf %137, %142 : vector<256x8xf32>
    %c2_205 = arith.constant 2 : index
    %c0_206 = arith.constant 0 : index
    %c0_207 = arith.constant 0 : index
    %144 = vector.load %arg8[%c2_205, %c0_206, %c0_207] : memref<3x1x8xf32, #tpu.memory_space<vmem>>, vector<1x1x8xf32>
    %145 = vector.shape_cast %144 : vector<1x1x8xf32> to vector<1x8xf32>
    %146 = vector.broadcast %145 : vector<1x8xf32> to vector<256x8xf32>
    %147 = arith.mulf %143, %146 : vector<256x8xf32>
    %c2_208 = arith.constant 2 : index
    %c0_209 = arith.constant 0 : index
    %c0_210 = arith.constant 0 : index
    %148 = vector.load %arg9[%c2_208, %c0_209, %c0_210] : memref<3x1x8xf32, #tpu.memory_space<vmem>>, vector<1x1x8xf32>
    %149 = vector.shape_cast %148 : vector<1x1x8xf32> to vector<1x8xf32>
    %150 = vector.broadcast %149 : vector<1x8xf32> to vector<256x8xf32>
    %151 = arith.addf %147, %150 : vector<256x8xf32>
    %cst_211 = arith.constant 0.000000e+00 : f32
    %152 = vector.broadcast %cst_211 : f32 to vector<256x8xf32>
    %153 = arith.maximumf %151, %152 : vector<256x8xf32>
    %154 = vector.shape_cast %153 : vector<256x8xf32> to vector<16x16x8xf32>
    %155 = vector.extract_strided_slice %154 {offsets = [0, 0, 0], sizes = [16, 1, 8], strides = [1, 1, 1]} : vector<16x16x8xf32> to vector<16x1x8xf32>
    %156 = vector.shape_cast %155 : vector<16x1x8xf32> to vector<16x8xf32>
    %157 = vector.extract_strided_slice %154 {offsets = [0, 1, 0], sizes = [16, 1, 8], strides = [1, 1, 1]} : vector<16x16x8xf32> to vector<16x1x8xf32>
    %158 = vector.shape_cast %157 : vector<16x1x8xf32> to vector<16x8xf32>
    %159 = vector.extract_strided_slice %154 {offsets = [0, 2, 0], sizes = [16, 1, 8], strides = [1, 1, 1]} : vector<16x16x8xf32> to vector<16x1x8xf32>
    %160 = vector.shape_cast %159 : vector<16x1x8xf32> to vector<16x8xf32>
    %161 = vector.extract_strided_slice %154 {offsets = [0, 3, 0], sizes = [16, 1, 8], strides = [1, 1, 1]} : vector<16x16x8xf32> to vector<16x1x8xf32>
    %162 = vector.shape_cast %161 : vector<16x1x8xf32> to vector<16x8xf32>
    %163 = vector.extract_strided_slice %154 {offsets = [0, 4, 0], sizes = [16, 1, 8], strides = [1, 1, 1]} : vector<16x16x8xf32> to vector<16x1x8xf32>
    %164 = vector.shape_cast %163 : vector<16x1x8xf32> to vector<16x8xf32>
    %165 = vector.extract_strided_slice %154 {offsets = [0, 5, 0], sizes = [16, 1, 8], strides = [1, 1, 1]} : vector<16x16x8xf32> to vector<16x1x8xf32>
    %166 = vector.shape_cast %165 : vector<16x1x8xf32> to vector<16x8xf32>
    %167 = vector.extract_strided_slice %154 {offsets = [0, 6, 0], sizes = [16, 1, 8], strides = [1, 1, 1]} : vector<16x16x8xf32> to vector<16x1x8xf32>
    %168 = vector.shape_cast %167 : vector<16x1x8xf32> to vector<16x8xf32>
    %169 = vector.extract_strided_slice %154 {offsets = [0, 7, 0], sizes = [16, 1, 8], strides = [1, 1, 1]} : vector<16x16x8xf32> to vector<16x1x8xf32>
    %170 = vector.shape_cast %169 : vector<16x1x8xf32> to vector<16x8xf32>
    %171 = vector.extract_strided_slice %154 {offsets = [0, 8, 0], sizes = [16, 1, 8], strides = [1, 1, 1]} : vector<16x16x8xf32> to vector<16x1x8xf32>
    %172 = vector.shape_cast %171 : vector<16x1x8xf32> to vector<16x8xf32>
    %173 = vector.extract_strided_slice %154 {offsets = [0, 9, 0], sizes = [16, 1, 8], strides = [1, 1, 1]} : vector<16x16x8xf32> to vector<16x1x8xf32>
    %174 = vector.shape_cast %173 : vector<16x1x8xf32> to vector<16x8xf32>
    %175 = vector.extract_strided_slice %154 {offsets = [0, 10, 0], sizes = [16, 1, 8], strides = [1, 1, 1]} : vector<16x16x8xf32> to vector<16x1x8xf32>
    %176 = vector.shape_cast %175 : vector<16x1x8xf32> to vector<16x8xf32>
    %177 = vector.extract_strided_slice %154 {offsets = [0, 11, 0], sizes = [16, 1, 8], strides = [1, 1, 1]} : vector<16x16x8xf32> to vector<16x1x8xf32>
    %178 = vector.shape_cast %177 : vector<16x1x8xf32> to vector<16x8xf32>
    %179 = vector.extract_strided_slice %154 {offsets = [0, 12, 0], sizes = [16, 1, 8], strides = [1, 1, 1]} : vector<16x16x8xf32> to vector<16x1x8xf32>
    %180 = vector.shape_cast %179 : vector<16x1x8xf32> to vector<16x8xf32>
    %181 = vector.extract_strided_slice %154 {offsets = [0, 13, 0], sizes = [16, 1, 8], strides = [1, 1, 1]} : vector<16x16x8xf32> to vector<16x1x8xf32>
    %182 = vector.shape_cast %181 : vector<16x1x8xf32> to vector<16x8xf32>
    %183 = vector.extract_strided_slice %154 {offsets = [0, 14, 0], sizes = [16, 1, 8], strides = [1, 1, 1]} : vector<16x16x8xf32> to vector<16x1x8xf32>
    %184 = vector.shape_cast %183 : vector<16x1x8xf32> to vector<16x8xf32>
    %185 = vector.extract_strided_slice %154 {offsets = [0, 15, 0], sizes = [16, 1, 8], strides = [1, 1, 1]} : vector<16x16x8xf32> to vector<16x1x8xf32>
    %186 = vector.shape_cast %185 : vector<16x1x8xf32> to vector<16x8xf32>
    %187 = tpu.concatenate %156, %158, %160, %162, %164, %166, %168, %170, %172, %174, %176, %178, %180, %182, %184, %186 in 1 : vector<16x8xf32>, vector<16x8xf32>, vector<16x8xf32>, vector<16x8xf32>, vector<16x8xf32>, vector<16x8xf32>, vector<16x8xf32>, vector<16x8xf32>, vector<16x8xf32>, vector<16x8xf32>, vector<16x8xf32>, vector<16x8xf32>, vector<16x8xf32>, vector<16x8xf32>, vector<16x8xf32>, vector<16x8xf32> -> vector<16x128xf32>
    %c0_212 = arith.constant 0 : index
    %c0_213 = arith.constant 0 : index
    %c0_214 = arith.constant 0 : index
    %188 = vector.load %arg10[%c0_212, %c0_213, %c0_214] : memref<1x16x128xf32, #tpu.memory_space<vmem>>, vector<1x16x128xf32>
    %189 = vector.shape_cast %188 : vector<1x16x128xf32> to vector<16x128xf32>
    %190 = vector.shape_cast %187 : vector<16x128xf32> to vector<1x16x128xf32>
    tpu.vector_store %arg10[%c0_212, %c0_213, %c0_214], %190 {strides = array<i32>} : memref<1x16x128xf32, #tpu.memory_space<vmem>>, vector<1x16x128xf32>,
    return
  }
  func.func @transform_0(%arg0: i32) -> (i32, i32) {
    %c0_i32 = arith.constant 0 : i32
    %c0_i32_0 = arith.constant 0 : i32
    %c0_i32_1 = arith.constant 0 : i32
    return %c0_i32, %c0_i32_0 : i32, i32
  }
  func.func @transform_1(%arg0: i32) -> (i32, i32, i32) {
    %c0_i32 = arith.constant 0 : i32
    %c0_i32_0 = arith.constant 0 : i32
    %c0_i32_1 = arith.constant 0 : i32
    return %arg0, %c0_i32, %c0_i32_0 : i32, i32, i32
  }
  func.func @transform_2(%arg0: i32) -> (i32, i32, i32, i32) {
    %c0_i32 = arith.constant 0 : i32
    %c0_i32_0 = arith.constant 0 : i32
    %c0_i32_1 = arith.constant 0 : i32
    %c0_i32_2 = arith.constant 0 : i32
    return %arg0, %c0_i32, %c0_i32_0, %c0_i32_1 : i32, i32, i32, i32
  }
  func.func @transform_3(%arg0: i32) -> (i32, i32, i32) {
    %c0_i32 = arith.constant 0 : i32
    %c0_i32_0 = arith.constant 0 : i32
    %c0_i32_1 = arith.constant 0 : i32
    %c0_i32_2 = arith.constant 0 : i32
    return %c0_i32, %c0_i32_0, %c0_i32_1 : i32, i32, i32
  }
  func.func @transform_4(%arg0: i32) -> (i32, i32, i32) {
    %c0_i32 = arith.constant 0 : i32
    %c0_i32_0 = arith.constant 0 : i32
    %c0_i32_1 = arith.constant 0 : i32
    %c0_i32_2 = arith.constant 0 : i32
    return %c0_i32, %c0_i32_0, %c0_i32_1 : i32, i32, i32
  }
  func.func @transform_5(%arg0: i32) -> (i32, i32, i32) {
    %c0_i32 = arith.constant 0 : i32
    %c0_i32_0 = arith.constant 0 : i32
    %c0_i32_1 = arith.constant 0 : i32
    %c0_i32_2 = arith.constant 0 : i32
    return %c0_i32, %c0_i32_0, %c0_i32_1 : i32, i32, i32
  }
  func.func @transform_6(%arg0: i32) -> (i32, i32, i32) {
    %c0_i32 = arith.constant 0 : i32
    %c0_i32_0 = arith.constant 0 : i32
    %c0_i32_1 = arith.constant 0 : i32
    %c0_i32_2 = arith.constant 0 : i32
    return %c0_i32, %c0_i32_0, %c0_i32_1 : i32, i32, i32
  }
  func.func @transform_7(%arg0: i32) -> (i32, i32, i32) {
    %c0_i32 = arith.constant 0 : i32
    %c0_i32_0 = arith.constant 0 : i32
    %c0_i32_1 = arith.constant 0 : i32
    %c0_i32_2 = arith.constant 0 : i32
    return %c0_i32, %c0_i32_0, %c0_i32_1 : i32, i32, i32
  }
  func.func @transform_8(%arg0: i32) -> (i32, i32, i32) {
    %c0_i32 = arith.constant 0 : i32
    %c0_i32_0 = arith.constant 0 : i32
    %c0_i32_1 = arith.constant 0 : i32
    %c0_i32_2 = arith.constant 0 : i32
    return %c0_i32, %c0_i32_0, %c0_i32_1 : i32, i32, i32
  }
  func.func @transform_9(%arg0: i32) -> (i32, i32, i32) {
    %c0_i32 = arith.constant 0 : i32
    %c0_i32_0 = arith.constant 0 : i32
    %c0_i32_1 = arith.constant 0 : i32
    return %arg0, %c0_i32, %c0_i32_0 : i32, i32, i32
  }
}

</mosaic_0001>

<llo_original>
// kernel: stack_decoder_forward.1
$region0: #{stack_decoder_forward.1}
  #allocation0 [shape = 'u32[]', space=smem, size = 0x4, offset = 0x4, fixed_abs, tag = 'smem constant byte address 0x4 - core index']
  #allocation1 [shape = 'u32[144,128]{1,0:T(1,128)}', space=vmem, size = 0x12000, scoped, tag = 'internal scratch']
  #allocation2 [shape = 'bf16[18,18,6]{2,1,0:T(8,128)(2,1)}', space=vmem, size = 0x1b000, scoped, tag = 'scratch operand']
  #allocation3 [shape = 'bf16[18,18,4]{2,1,0:T(8,128)(2,1)}', space=vmem, size = 0x1b000, scoped, tag = 'scratch operand']
  #allocation4 [shape = 'bf16[18,18,8]{2,1,0:T(8,128)(2,1)}', space=vmem, size = 0x1b000, scoped, tag = 'scratch operand']
  #allocation5 [shape = 'bf16[18,16,18]{2,1,0:T(8,128)(2,1)}', space=vmem, size = 0x12000, scoped, tag = 'scratch operand']
  #allocation6 [shape = 'bf16[18,16,12]{2,1,0:T(8,128)(2,1)}', space=vmem, size = 0x12000, scoped, tag = 'scratch operand']
  #allocation7 [shape = 'bf16[18,16,24]{2,1,0:T(8,128)(2,1)}', space=vmem, size = 0x12000, scoped, tag = 'scratch operand']
  %s0 = inlined_call_operand.vmem [shape: f32[256,64], index: 0, kind: input, shape index: {}]
  %s1 = inlined_call_operand.vmem [shape: f32[2,64,6], index: 1, kind: input, shape index: {}]
  %s2 = inlined_call_operand.vmem [shape: f32[2,16,16,4], index: 2, kind: input, shape index: {}]
  %s3 = inlined_call_operand.vmem [shape: bf16[3,18,8], index: 3, kind: input, shape index: {}]
  %s4 = inlined_call_operand.vmem [shape: bf16[3,12,8], index: 4, kind: input, shape index: {}]
  %s5 = inlined_call_operand.vmem [shape: bf16[3,24,8], index: 5, kind: input, shape index: {}]
  %s6 = inlined_call_operand.vmem [shape: bf16[3,24,8], index: 6, kind: input, shape index: {}]
  %s7 = inlined_call_operand.vmem [shape: f32[3,1,8], index: 7, kind: input, shape index: {}]
  %s8 = inlined_call_operand.vmem [shape: f32[3,1,8], index: 8, kind: input, shape index: {}]
  %s9 = inlined_call_operand.vmem [shape: f32[2,16,128], index: 9, kind: output, shape index: {}]
  %s10 = sld [smem:[#allocation0]]
  $region69: #{stack_decoder_forward.1} parent=0
    _
  %s12 = ssub.s32 1, %s10
  %s13 = scalar_select 0, %s12, %s10
  loop: start=0, step=1, limit=4
  $region2: #{stack_decoder_forward.1} parent=0 // loop_pre_header
    _
  $region3: #{stack_decoder_forward.1} parent=0 // loop_header
    %s15 = sphi 0, %s19
    %p16 = scmp.ge.s32.totalorder %s15, 4
    %s23 = sphi 0, %s23
    %s25 = sphi 0, %s23
    %s26 = sphi 0, %s25
    %s40 = sphi 0, %s26
    %s46 = sphi 0, %s48
    %s49 = sphi 0, %s46
    %s50 = sphi 0, %s49
    %s66 = sphi 0, %s50
    %s72 = sphi 0, %s74
    %s75 = sphi 0, %s72
    %s76 = sphi 0, %s75
    %s92 = sphi 0, %s76
    %s96 = sphi 0, %s96
    %s98 = sphi 0, %s96
    %s99 = sphi 0, %s98
    %s113 = sphi 0, %s99
    %s117 = sphi 0, %s117
    %s119 = sphi 0, %s117
    %s120 = sphi 0, %s119
    %s134 = sphi 0, %s120
    %s138 = sphi 0, %s138
    %s140 = sphi 0, %s138
    %s141 = sphi 0, %s140
    %s155 = sphi 0, %s141
    %s159 = sphi 0, %s159
    %s161 = sphi 0, %s159
    %s162 = sphi 0, %s161
    %s176 = sphi 0, %s162
    %s180 = sphi 0, %s180
    %s182 = sphi 0, %s180
    %s183 = sphi 0, %s182
    %s197 = sphi 0, %s183
    %s201 = sphi 0, %s201
    %s203 = sphi 0, %s201
    %s204 = sphi 0, %s203
    %s218 = sphi 0, %s204
    %s224 = sphi 0, %s226
    %s227 = sphi 0, %s224
    %s228 = sphi 0, %s227
    %s244 = sphi 0, %s228
  $region4: #{stack_decoder_forward.1} parent=0 // loop_header_branch
    %18 = sbr.rel (%p16) target = $region8
  $region5: #{stack_decoder_forward.1} parent=0 // loop_body
    %s20 = ssub.s32 %s15, 1
    %s21 = ssub.s32 %s15, 2
    %s22 = sadd.s32 %s15, 1
    %s24 = sadd.s32 %s23, 1
    %p27 = scmp.eq.s32.totalorder %s15, 1
    %p28 = scmp.ne.s32.totalorder %s23, %s25
    %p29 = scmp.eq.s32.totalorder %s15, 0
    %p30 = por %p28, %p29
    %p31 = scmp.ne.s32.totalorder %s23, %s25
    %p32 = scmp.eq.s32.totalorder %s20, 1
    %p33 = por %p31, %p32
    %p34 = scmp.ne.s32.totalorder %s25, %s26
    %p35 = scmp.eq.s32.totalorder %s20, 0
    %p36 = por %p34, %p35
    %p37 = scmp.ne.s32.totalorder %s25, %s26
    %p38 = scmp.eq.s32.totalorder %s21, 1
    %p39 = por %p37, %p38
    %p41 = scmp.ne.s32.totalorder %s26, %s40
    %p42 = scmp.eq.s32.totalorder %s21, 0
    %p43 = por %p41, %p42
    %s44 = ssub.s32 %s15, %s22
    %p45 = scmp.eq.s32.totalorder %s44, 0
    %s47 = sadd.s32 %s46, 1
    %s48 = scalar_select %p45, %s46, %s47
    %p51 = pneg %p45
    %p52 = scmp.eq.s32.totalorder %s15, 1
    %p53 = por %p51, %p52
    %p54 = scmp.ne.s32.totalorder %s46, %s49
    %p55 = scmp.eq.s32.totalorder %s15, 0
    %p56 = por %p54, %p55
    %p57 = scmp.ne.s32.totalorder %s46, %s49
    %p58 = scmp.eq.s32.totalorder %s20, 1
    %p59 = por %p57, %p58
    %p60 = scmp.ne.s32.totalorder %s49, %s50
    %p61 = scmp.eq.s32.totalorder %s20, 0
    %p62 = por %p60, %p61
    %p63 = scmp.ne.s32.totalorder %s49, %s50
    %p64 = scmp.eq.s32.totalorder %s21, 1
    %p65 = por %p63, %p64
    %p67 = scmp.ne.s32.totalorder %s50, %s66
    %p68 = scmp.eq.s32.totalorder %s21, 0
    %p69 = por %p67, %p68
    %s70 = ssub.s32 %s15, %s22
    %p71 = scmp.eq.s32.totalorder %s70, 0
    %s73 = sadd.s32 %s72, 1
    %s74 = scalar_select %p71, %s72, %s73
    %p77 = pneg %p71
    %p78 = scmp.eq.s32.totalorder %s15, 1
    %p79 = por %p77, %p78
    %p80 = scmp.ne.s32.totalorder %s72, %s75
    %p81 = scmp.eq.s32.totalorder %s15, 0
    %p82 = por %p80, %p81
    %p83 = scmp.ne.s32.totalorder %s72, %s75
    %p84 = scmp.eq.s32.totalorder %s20, 1
    %p85 = por %p83, %p84
    %p86 = scmp.ne.s32.totalorder %s75, %s76
    %p87 = scmp.eq.s32.totalorder %s20, 0
    %p88 = por %p86, %p87
    %p89 = scmp.ne.s32.totalorder %s75, %s76
    %p90 = scmp.eq.s32.totalorder %s21, 1
    %p91 = por %p89, %p90
    %p93 = scmp.ne.s32.totalorder %s76, %s92
    %p94 = scmp.eq.s32.totalorder %s21, 0
    %p95 = por %p93, %p94
    %s97 = sadd.s32 %s96, 1
    %p100 = scmp.eq.s32.totalorder %s15, 1
    %p101 = scmp.ne.s32.totalorder %s96, %s98
    %p102 = scmp.eq.s32.totalorder %s15, 0
    %p103 = por %p101, %p102
    %p104 = scmp.ne.s32.totalorder %s96, %s98
    %p105 = scmp.eq.s32.totalorder %s20, 1
    %p106 = por %p104, %p105
    %p107 = scmp.ne.s32.totalorder %s98, %s99
    %p108 = scmp.eq.s32.totalorder %s20, 0
    %p109 = por %p107, %p108
    %p110 = scmp.ne.s32.totalorder %s98, %s99
    %p111 = scmp.eq.s32.totalorder %s21, 1
    %p112 = por %p110, %p111
    %p114 = scmp.ne.s32.totalorder %s99, %s113
    %p115 = scmp.eq.s32.totalorder %s21, 0
    %p116 = por %p114, %p115
    %s118 = sadd.s32 %s117, 1
    %p121 = scmp.eq.s32.totalorder %s15, 1
    %p122 = scmp.ne.s32.totalorder %s117, %s119
    %p123 = scmp.eq.s32.totalorder %s15, 0
    %p124 = por %p122, %p123
    %p125 = scmp.ne.s32.totalorder %s117, %s119
    %p126 = scmp.eq.s32.totalorder %s20, 1
    %p127 = por %p125, %p126
    %p128 = scmp.ne.s32.totalorder %s119, %s120
    %p129 = scmp.eq.s32.totalorder %s20, 0
    %p130 = por %p128, %p129
    %p131 = scmp.ne.s32.totalorder %s119, %s120
    %p132 = scmp.eq.s32.totalorder %s21, 1
    %p133 = por %p131, %p132
    %p135 = scmp.ne.s32.totalorder %s120, %s134
    %p136 = scmp.eq.s32.totalorder %s21, 0
    %p137 = por %p135, %p136
    %s139 = sadd.s32 %s138, 1
    %p142 = scmp.eq.s32.totalorder %s15, 1
    %p143 = scmp.ne.s32.totalorder %s138, %s140
    %p144 = scmp.eq.s32.totalorder %s15, 0
    %p145 = por %p143, %p144
    %p146 = scmp.ne.s32.totalorder %s138, %s140
    %p147 = scmp.eq.s32.totalorder %s20, 1
    %p148 = por %p146, %p147
    %p149 = scmp.ne.s32.totalorder %s140, %s141
    %p150 = scmp.eq.s32.totalorder %s20, 0
    %p151 = por %p149, %p150
    %p152 = scmp.ne.s32.totalorder %s140, %s141
    %p153 = scmp.eq.s32.totalorder %s21, 1
    %p154 = por %p152, %p153
    %p156 = scmp.ne.s32.totalorder %s141, %s155
    %p157 = scmp.eq.s32.totalorder %s21, 0
    %p158 = por %p156, %p157
    %s160 = sadd.s32 %s159, 1
    %p163 = scmp.eq.s32.totalorder %s15, 1
    %p164 = scmp.ne.s32.totalorder %s159, %s161
    %p165 = scmp.eq.s32.totalorder %s15, 0
    %p166 = por %p164, %p165
    %p167 = scmp.ne.s32.totalorder %s159, %s161
    %p168 = scmp.eq.s32.totalorder %s20, 1
    %p169 = por %p167, %p168
    %p170 = scmp.ne.s32.totalorder %s161, %s162
    %p171 = scmp.eq.s32.totalorder %s20, 0
    %p172 = por %p170, %p171
    %p173 = scmp.ne.s32.totalorder %s161, %s162
    %p174 = scmp.eq.s32.totalorder %s21, 1
    %p175 = por %p173, %p174
    %p177 = scmp.ne.s32.totalorder %s162, %s176
    %p178 = scmp.eq.s32.totalorder %s21, 0
    %p179 = por %p177, %p178
    %s181 = sadd.s32 %s180, 1
    %p184 = scmp.eq.s32.totalorder %s15, 1
    %p185 = scmp.ne.s32.totalorder %s180, %s182
    %p186 = scmp.eq.s32.totalorder %s15, 0
    %p187 = por %p185, %p186
    %p188 = scmp.ne.s32.totalorder %s180, %s182
    %p189 = scmp.eq.s32.totalorder %s20, 1
    %p190 = por %p188, %p189
    %p191 = scmp.ne.s32.totalorder %s182, %s183
    %p192 = scmp.eq.s32.totalorder %s20, 0
    %p193 = por %p191, %p192
    %p194 = scmp.ne.s32.totalorder %s182, %s183
    %p195 = scmp.eq.s32.totalorder %s21, 1
    %p196 = por %p194, %p195
    %p198 = scmp.ne.s32.totalorder %s183, %s197
    %p199 = scmp.eq.s32.totalorder %s21, 0
    %p200 = por %p198, %p199
    %s202 = sadd.s32 %s201, 1
    %p205 = scmp.eq.s32.totalorder %s15, 1
    %p206 = scmp.ne.s32.totalorder %s201, %s203
    %p207 = scmp.eq.s32.totalorder %s15, 0
    %p208 = por %p206, %p207
    %p209 = scmp.ne.s32.totalorder %s201, %s203
    %p210 = scmp.eq.s32.totalorder %s20, 1
    %p211 = por %p209, %p210
    %p212 = scmp.ne.s32.totalorder %s203, %s204
    %p213 = scmp.eq.s32.totalorder %s20, 0
    %p214 = por %p212, %p213
    %p215 = scmp.ne.s32.totalorder %s203, %s204
    %p216 = scmp.eq.s32.totalorder %s21, 1
    %p217 = por %p215, %p216
    %p219 = scmp.ne.s32.totalorder %s204, %s218
    %p220 = scmp.eq.s32.totalorder %s21, 0
    %p221 = por %p219, %p220
    %s222 = ssub.s32 %s15, %s22
    %p223 = scmp.eq.s32.totalorder %s222, 0
    %s225 = sadd.s32 %s224, 1
    %s226 = scalar_select %p223, %s224, %s225
    %p229 = pneg %p223
    %p230 = scmp.eq.s32.totalorder %s15, 1
    %p231 = por %p229, %p230
    %p232 = scmp.ne.s32.totalorder %s224, %s227
    %p233 = scmp.eq.s32.totalorder %s15, 0
    %p234 = por %p232, %p233
    %p235 = scmp.ne.s32.totalorder %s224, %s227
    %p236 = scmp.eq.s32.totalorder %s20, 1
    %p237 = por %p235, %p236
    %p238 = scmp.ne.s32.totalorder %s227, %s228
    %p239 = scmp.eq.s32.totalorder %s20, 0
    %p240 = por %p238, %p239
    %p241 = scmp.ne.s32.totalorder %s227, %s228
    %p242 = scmp.eq.s32.totalorder %s21, 1
    %p243 = por %p241, %p242
    %p245 = scmp.ne.s32.totalorder %s228, %s244
    %p246 = scmp.eq.s32.totalorder %s21, 0
    %p247 = por %p245, %p246
    %p248 = scmp.le.s32.totalorder 1, %s15
    %p249 = scmp.lt.s32.totalorder %s15, 3
    %p250 = pnand %p248, %p249
    %p251 = pneg %p250
    // Predicated region
    $region9: #{stack_decoder_forward.1} parent=5 // pred_check
      _
    $region10: #{stack_decoder_forward.1} parent=5 // pred_check_branch
      %253 = sbr.rel (%p250) target = $region12
    $region11: #{stack_decoder_forward.1} parent=5 // pred_region
      %s254 = ssub.s32 %s15, 1
      // Predicated region
      $region13: #{stack_decoder_forward.1} parent=11 // pred_check
        %p255 = pneg %p36
      $region14: #{stack_decoder_forward.1} parent=11 // pred_check_branch
        %257 = sbr.rel (%p255) target = $region16
      $region15: #{stack_decoder_forward.1} parent=11 // pred_region
        _
      $region16: #{stack_decoder_forward.1} parent=11 // pred_fallthru
        _
      // Predicated region
      $region17: #{stack_decoder_forward.1} parent=11 // pred_check
        %p258 = pneg %p109
      $region18: #{stack_decoder_forward.1} parent=11 // pred_check_branch
        %260 = sbr.rel (%p258) target = $region20
      $region19: #{stack_decoder_forward.1} parent=11 // pred_region
        _
      $region20: #{stack_decoder_forward.1} parent=11 // pred_fallthru
        _
      // Predicated region
      $region21: #{stack_decoder_forward.1} parent=11 // pred_check
        %p261 = pneg %p130
      $region22: #{stack_decoder_forward.1} parent=11 // pred_check_branch
        %263 = sbr.rel (%p261) target = $region24
      $region23: #{stack_decoder_forward.1} parent=11 // pred_region
        _
      $region24: #{stack_decoder_forward.1} parent=11 // pred_fallthru
        _
      // Predicated region
      $region25: #{stack_decoder_forward.1} parent=11 // pred_check
        %p264 = pneg %p151
      $region26: #{stack_decoder_forward.1} parent=11 // pred_check_branch
        %266 = sbr.rel (%p264) target = $region28
      $region27: #{stack_decoder_forward.1} parent=11 // pred_region
        _
      $region28: #{stack_decoder_forward.1} parent=11 // pred_fallthru
        _
      // Predicated region
      $region29: #{stack_decoder_forward.1} parent=11 // pred_check
        %p267 = pneg %p172
      $region30: #{stack_decoder_forward.1} parent=11 // pred_check_branch
        %269 = sbr.rel (%p267) target = $region32
      $region31: #{stack_decoder_forward.1} parent=11 // pred_region
        _
      $region32: #{stack_decoder_forward.1} parent=11 // pred_fallthru
        _
      // Predicated region
      $region33: #{stack_decoder_forward.1} parent=11 // pred_check
        %p270 = pneg %p193
      $region34: #{stack_decoder_forward.1} parent=11 // pred_check_branch
        %272 = sbr.rel (%p270) target = $region36
      $region35: #{stack_decoder_forward.1} parent=11 // pred_region
        _
      $region36: #{stack_decoder_forward.1} parent=11 // pred_fallthru
        _
      // Predicated region
      $region37: #{stack_decoder_forward.1} parent=11 // pred_check
        %p273 = pneg %p214
      $region38: #{stack_decoder_forward.1} parent=11 // pred_check_branch
        %275 = sbr.rel (%p273) target = $region40
      $region39: #{stack_decoder_forward.1} parent=11 // pred_region
        _
      $region40: #{stack_decoder_forward.1} parent=11 // pred_fallthru
        _
    $region12: #{stack_decoder_forward.1} parent=5 // pred_fallthru
      _
    %p276 = scmp.lt.s32.totalorder %s15, 2
    // Predicated region
    $region41: #{stack_decoder_forward.1} parent=5 // pred_check
      %p277 = pneg %p276
    $region42: #{stack_decoder_forward.1} parent=5 // pred_check_branch
      %279 = sbr.rel (%p277) target = $region44
    $region43: #{stack_decoder_forward.1} parent=5 // pred_region
      // Predicated region
      $region45: #{stack_decoder_forward.1} parent=43 // pred_check
        %p280 = pneg %p56
      $region46: #{stack_decoder_forward.1} parent=43 // pred_check_branch
        %282 = sbr.rel (%p280) target = $region48
      $region47: #{stack_decoder_forward.1} parent=43 // pred_region
        %p283 = scmp.lt.s32.totalorder %s15, 1
        %s284 = scalar_select %p283, %s15, 1
        %s285 = smul.addr %s284, 8
        %s286 = smul.addr %s285, 8
        %s287 = scalar_lea.vmem %s1, %s286
      $region48: #{stack_decoder_forward.1} parent=43 // pred_fallthru
        _
      // Predicated region
      $region49: #{stack_decoder_forward.1} parent=43 // pred_check
        %p288 = pneg %p82
      $region50: #{stack_decoder_forward.1} parent=43 // pred_check_branch
        %290 = sbr.rel (%p288) target = $region52
      $region51: #{stack_decoder_forward.1} parent=43 // pred_region
        %p291 = scmp.lt.s32.totalorder %s15, 1
        %s292 = scalar_select %p291, %s15, 1
        %s293 = smul.addr %s292, 32
        %s294 = smul.addr %s293, 8
        %s295 = scalar_lea.vmem %s2, %s294
      $region52: #{stack_decoder_forward.1} parent=43 // pred_fallthru
        _
    $region44: #{stack_decoder_forward.1} parent=5 // pred_fallthru
      _
    %p296 = scmp.le.s32.totalorder 1, %s15
    %p297 = scmp.lt.s32.totalorder %s15, 3
    %p298 = pnand %p296, %p297
    %p299 = pneg %p298
    // Predicated region
    $region53: #{stack_decoder_forward.1} parent=5 // pred_check
      _
    $region54: #{stack_decoder_forward.1} parent=5 // pred_check_branch
      %301 = sbr.rel (%p298) target = $region56
    $region55: #{stack_decoder_forward.1} parent=5 // pred_region
      %s302 = ssub.s32 %s15, 1
      %p303 = pneg %p36
      %p304 = pneg %p33
      %p305 = scmp.lt.s32.totalorder %s20, 1
      %s306 = scalar_select %p305, %s20, 1
      %s307 = smul.addr %s306, 8
      %s308 = smul.addr %s307, 8
      %s309 = scalar_lea.vmem %s1, %s308
      %p310 = pneg %p62
      %p311 = pneg %p59
      %p312 = scmp.lt.s32.totalorder %s20, 1
      %s313 = scalar_select %p312, %s20, 1
      %s314 = smul.addr %s313, 32
      %s315 = smul.addr %s314, 8
      %s316 = scalar_lea.vmem %s2, %s315
      %p317 = pneg %p88
      %p318 = pneg %p85
      %p319 = pneg %p109
      %p320 = pneg %p106
      %p321 = pneg %p130
      %p322 = pneg %p127
      %p323 = pneg %p151
      %p324 = pneg %p148
      %p325 = pneg %p172
      %p326 = pneg %p169
      %p327 = pneg %p193
      %p328 = pneg %p190
      %p329 = pneg %p214
      %p330 = pneg %p211
      %p331 = pneg %p240
      %p332 = pneg %p237
      %p333 = scmp.lt.s32.totalorder %s20, 1
      %s334 = scalar_select %p333, %s20, 1
      %s335 = smul.addr %s334, 2
      %s336 = smul.addr %s335, 8
      %s337 = scalar_lea.vmem %s9, %s336
      %p338 = scmp.lt.s32.totalorder %s20, 1
      %s339 = scalar_select %p338, %s20, 1
      %s340 = smul.addr %s339, 8
      %s341 = smul.addr %s340, 8
      %s342 = scalar_lea.vmem %s1, %s341
      %p343 = scmp.lt.s32.totalorder %s20, 1
      %s344 = scalar_select %p343, %s20, 1
      %s345 = smul.addr %s344, 32
      %s346 = smul.addr %s345, 8
      %s347 = scalar_lea.vmem %s2, %s346
      %p348 = scmp.lt.s32.totalorder %s20, 1
      %s349 = scalar_select %p348, %s20, 1
      %s350 = smul.addr %s349, 2
      %s351 = smul.addr %s350, 8
      %s352 = scalar_lea.vmem %s9, %s351
      %vm354 = vcmask 44032
      %355 = vst.msk [vmem:[#allocation2] sm:$0xf] %vm354, 0
      %356 = vst.msk [vmem:[#allocation2 + $0x4] sm:$0xf] %vm354, 0
      %vm357 = vcmask 40960
      %358 = vst.msk [vmem:[#allocation2 + $0x8] sm:$0x1] %vm357, 0
      %s359 = scalar_lea.vmem [#allocation2], 204
      %360 = vst.msk [vmem:[%s359] sm:$0xf] %vm354, 0
      %361 = vst.msk [vmem:[%s359 + $0x4] sm:$0xf] %vm354, 0
      %362 = vst.msk [vmem:[%s359 + $0x8] sm:$0x1] %vm357, 0
      %vm363 = vcmask 40960
      %vm364 = vsmask.f32 256
      %vm365 = vmand %vm363, %vm364
      %v366 = vld [vmem:[#allocation2] sm:$0x1]
      %v367 = vsel %vm365, 0, %v366
      %368 = vst [vmem:[#allocation2] sm:$0x1] %v367
      %v369 = vld [vmem:[#allocation2 + $0xc] sm:$0x1]
      %v370 = vsel %vm365, 0, %v369
      %371 = vst [vmem:[#allocation2 + $0xc] sm:$0x1] %v370
      %v372 = vld [vmem:[#allocation2 + $0x18] sm:$0x1]
      %v373 = vsel %vm365, 0, %v372
      %374 = vst [vmem:[#allocation2 + $0x18] sm:$0x1] %v373
      %v375 = vld [vmem:[#allocation2 + $0x24] sm:$0x1]
      %v376 = vsel %vm365, 0, %v375
      %377 = vst [vmem:[#allocation2 + $0x24] sm:$0x1] %v376
      %v378 = vld [vmem:[#allocation2 + $0x30] sm:$0x1]
      %v379 = vsel %vm365, 0, %v378
      %380 = vst [vmem:[#allocation2 + $0x30] sm:$0x1] %v379
      %v381 = vld [vmem:[#allocation2 + $0x3c] sm:$0x1]
      %v382 = vsel %vm365, 0, %v381
      %383 = vst [vmem:[#allocation2 + $0x3c] sm:$0x1] %v382
      %v384 = vld [vmem:[#allocation2 + $0x48] sm:$0x1]
      %v385 = vsel %vm365, 0, %v384
      %386 = vst [vmem:[#allocation2 + $0x48] sm:$0x1] %v385
      %v387 = vld [vmem:[#allocation2 + $0x54] sm:$0x1]
      %v388 = vsel %vm365, 0, %v387
      %389 = vst [vmem:[#allocation2 + $0x54] sm:$0x1] %v388
      %v390 = vld [vmem:[#allocation2 + $0x60] sm:$0x1]
      %v391 = vsel %vm365, 0, %v390
      %392 = vst [vmem:[#allocation2 + $0x60] sm:$0x1] %v391
      %v393 = vld [vmem:[#allocation2 + $0x6c] sm:$0x1]
      %v394 = vsel %vm365, 0, %v393
      %395 = vst [vmem:[#allocation2 + $0x6c] sm:$0x1] %v394
      %v396 = vld [vmem:[#allocation2 + $0x78] sm:$0x1]
      %v397 = vsel %vm365, 0, %v396
      %398 = vst [vmem:[#allocation2 + $0x78] sm:$0x1] %v397
      %v399 = vld [vmem:[#allocation2 + $0x84] sm:$0x1]
      %v400 = vsel %vm365, 0, %v399
      %401 = vst [vmem:[#allocation2 + $0x84] sm:$0x1] %v400
      %v402 = vld [vmem:[#allocation2 + $0x90] sm:$0x1]
      %v403 = vsel %vm365, 0, %v402
      %404 = vst [vmem:[#allocation2 + $0x90] sm:$0x1] %v403
      %v405 = vld [vmem:[#allocation2 + $0x9c] sm:$0x1]
      %v406 = vsel %vm365, 0, %v405
      %407 = vst [vmem:[#allocation2 + $0x9c] sm:$0x1] %v406
      %v408 = vld [vmem:[#allocation2 + $0xa8] sm:$0x1]
      %v409 = vsel %vm365, 0, %v408
      %410 = vst [vmem:[#allocation2 + $0xa8] sm:$0x1] %v409
      %v411 = vld [vmem:[#allocation2 + $0xb4] sm:$0x1]
      %v412 = vsel %vm365, 0, %v411
      %413 = vst [vmem:[#allocation2 + $0xb4] sm:$0x1] %v412
      %v414 = vld [vmem:[#allocation2 + $0xc0] sm:$0x1]
      %v415 = vsel %vm365, 0, %v414
      %416 = vst [vmem:[#allocation2 + $0xc0] sm:$0x1] %v415
      %v417 = vld [vmem:[#allocation2 + $0xcc] sm:$0x1]
      %v418 = vsel %vm365, 0, %v417
      %419 = vst [vmem:[#allocation2 + $0xcc] sm:$0x1] %v418
      %vm420 = vsmask.f32 7938
      %vm421 = vmand %vm363, %vm420
      %v422 = vld [vmem:[#allocation2 + $0x8] sm:$0x1]
      %v423 = vsel %vm421, 0, %v422
      %424 = vst [vmem:[#allocation2 + $0x8] sm:$0x1] %v423
      %v425 = vld [vmem:[#allocation2 + $0x14] sm:$0x1]
      %v426 = vsel %vm421, 0, %v425
      %427 = vst [vmem:[#allocation2 + $0x14] sm:$0x1] %v426
      %v428 = vld [vmem:[#allocation2 + $0x20] sm:$0x1]
      %v429 = vsel %vm421, 0, %v428
      %430 = vst [vmem:[#allocation2 + $0x20] sm:$0x1] %v429
      %v431 = vld [vmem:[#allocation2 + $0x2c] sm:$0x1]
      %v432 = vsel %vm421, 0, %v431
      %433 = vst [vmem:[#allocation2 + $0x2c] sm:$0x1] %v432
      %v434 = vld [vmem:[#allocation2 + $0x38] sm:$0x1]
      %v435 = vsel %vm421, 0, %v434
      %436 = vst [vmem:[#allocation2 + $0x38] sm:$0x1] %v435
      %v437 = vld [vmem:[#allocation2 + $0x44] sm:$0x1]
      %v438 = vsel %vm421, 0, %v437
      %439 = vst [vmem:[#allocation2 + $0x44] sm:$0x1] %v438
      %v440 = vld [vmem:[#allocation2 + $0x50] sm:$0x1]
      %v441 = vsel %vm421, 0, %v440
      %442 = vst [vmem:[#allocation2 + $0x50] sm:$0x1] %v441
      %v443 = vld [vmem:[#allocation2 + $0x5c] sm:$0x1]
      %v444 = vsel %vm421, 0, %v443
      %445 = vst [vmem:[#allocation2 + $0x5c] sm:$0x1] %v444
      %v446 = vld [vmem:[#allocation2 + $0x68] sm:$0x1]
      %v447 = vsel %vm421, 0, %v446
      %448 = vst [vmem:[#allocation2 + $0x68] sm:$0x1] %v447
      %v449 = vld [vmem:[#allocation2 + $0x74] sm:$0x1]
      %v450 = vsel %vm421, 0, %v449
      %451 = vst [vmem:[#allocation2 + $0x74] sm:$0x1] %v450
      %v452 = vld [vmem:[#allocation2 + $0x80] sm:$0x1]
      %v453 = vsel %vm421, 0, %v452
      %454 = vst [vmem:[#allocation2 + $0x80] sm:$0x1] %v453
      %v455 = vld [vmem:[#allocation2 + $0x8c] sm:$0x1]
      %v456 = vsel %vm421, 0, %v455
      %457 = vst [vmem:[#allocation2 + $0x8c] sm:$0x1] %v456
      %v458 = vld [vmem:[#allocation2 + $0x98] sm:$0x1]
      %v459 = vsel %vm421, 0, %v458
      %460 = vst [vmem:[#allocation2 + $0x98] sm:$0x1] %v459
      %v461 = vld [vmem:[#allocation2 + $0xa4] sm:$0x1]
      %v462 = vsel %vm421, 0, %v461
      %463 = vst [vmem:[#allocation2 + $0xa4] sm:$0x1] %v462
      %v464 = vld [vmem:[#allocation2 + $0xb0] sm:$0x1]
      %v465 = vsel %vm421, 0, %v464
      %466 = vst [vmem:[#allocation2 + $0xb0] sm:$0x1] %v465
      %v467 = vld [vmem:[#allocation2 + $0xbc] sm:$0x1]
      %v468 = vsel %vm421, 0, %v467
      %469 = vst [vmem:[#allocation2 + $0xbc] sm:$0x1] %v468
      %v470 = vld [vmem:[#allocation2 + $0xc8] sm:$0x1]
      %v471 = vsel %vm421, 0, %v470
      %472 = vst [vmem:[#allocation2 + $0xc8] sm:$0x1] %v471
      %v473 = vld [vmem:[#allocation2 + $0xd4] sm:$0x1]
      %v474 = vsel %vm421, 0, %v473
      %475 = vst [vmem:[#allocation2 + $0xd4] sm:$0x1] %v474
      %vm476 = vcmask 27648
      %477 = vst.msk [vmem:[#allocation3] sm:$0xf] %vm476, 0
      %478 = vst.msk [vmem:[#allocation3 + $0x4] sm:$0xf] %vm476, 0
      %vm479 = vcmask 24576
      %480 = vst.msk [vmem:[#allocation3 + $0x8] sm:$0x1] %vm479, 0
      %s481 = scalar_lea.vmem [#allocation3], 204
      %482 = vst.msk [vmem:[%s481] sm:$0xf] %vm476, 0
      %483 = vst.msk [vmem:[%s481 + $0x4] sm:$0xf] %vm476, 0
      %484 = vst.msk [vmem:[%s481 + $0x8] sm:$0x1] %vm479, 0
      %vm485 = vcmask 24576
      %vm486 = vmand %vm485, %vm364
      %v487 = vld [vmem:[#allocation3] sm:$0x1]
      %v488 = vsel %vm486, 0, %v487
      %489 = vst [vmem:[#allocation3] sm:$0x1] %v488
      %v490 = vld [vmem:[#allocation3 + $0xc] sm:$0x1]
      %v491 = vsel %vm486, 0, %v490
      %492 = vst [vmem:[#allocation3 + $0xc] sm:$0x1] %v491
      %v493 = vld [vmem:[#allocation3 + $0x18] sm:$0x1]
      %v494 = vsel %vm486, 0, %v493
      %495 = vst [vmem:[#allocation3 + $0x18] sm:$0x1] %v494
      %v496 = vld [vmem:[#allocation3 + $0x24] sm:$0x1]
      %v497 = vsel %vm486, 0, %v496
      %498 = vst [vmem:[#allocation3 + $0x24] sm:$0x1] %v497
      %v499 = vld [vmem:[#allocation3 + $0x30] sm:$0x1]
      %v500 = vsel %vm486, 0, %v499
      %501 = vst [vmem:[#allocation3 + $0x30] sm:$0x1] %v500
      %v502 = vld [vmem:[#allocation3 + $0x3c] sm:$0x1]
      %v503 = vsel %vm486, 0, %v502
      %504 = vst [vmem:[#allocation3 + $0x3c] sm:$0x1] %v503
      %v505 = vld [vmem:[#allocation3 + $0x48] sm:$0x1]
      %v506 = vsel %vm486, 0, %v505
      %507 = vst [vmem:[#allocation3 + $0x48] sm:$0x1] %v506
      %v508 = vld [vmem:[#allocation3 + $0x54] sm:$0x1]
      %v509 = vsel %vm486, 0, %v508
      %510 = vst [vmem:[#allocation3 + $0x54] sm:$0x1] %v509
      %v511 = vld [vmem:[#allocation3 + $0x60] sm:$0x1]
      %v512 = vsel %vm486, 0, %v511
      %513 = vst [vmem:[#allocation3 + $0x60] sm:$0x1] %v512
      %v514 = vld [vmem:[#allocation3 + $0x6c] sm:$0x1]
      %v515 = vsel %vm486, 0, %v514
      %516 = vst [vmem:[#allocation3 + $0x6c] sm:$0x1] %v515
      %v517 = vld [vmem:[#allocation3 + $0x78] sm:$0x1]
      %v518 = vsel %vm486, 0, %v517
      %519 = vst [vmem:[#allocation3 + $0x78] sm:$0x1] %v518
      %v520 = vld [vmem:[#allocation3 + $0x84] sm:$0x1]
      %v521 = vsel %vm486, 0, %v520
      %522 = vst [vmem:[#allocation3 + $0x84] sm:$0x1] %v521
      %v523 = vld [vmem:[#allocation3 + $0x90] sm:$0x1]
      %v524 = vsel %vm486, 0, %v523
      %525 = vst [vmem:[#allocation3 + $0x90] sm:$0x1] %v524
      %v526 = vld [vmem:[#allocation3 + $0x9c] sm:$0x1]
      %v527 = vsel %vm486, 0, %v526
      %528 = vst [vmem:[#allocation3 + $0x9c] sm:$0x1] %v527
      %v529 = vld [vmem:[#allocation3 + $0xa8] sm:$0x1]
      %v530 = vsel %vm486, 0, %v529
      %531 = vst [vmem:[#allocation3 + $0xa8] sm:$0x1] %v530
      %v532 = vld [vmem:[#allocation3 + $0xb4] sm:$0x1]
      %v533 = vsel %vm486, 0, %v532
      %534 = vst [vmem:[#allocation3 + $0xb4] sm:$0x1] %v533
      %v535 = vld [vmem:[#allocation3 + $0xc0] sm:$0x1]
      %v536 = vsel %vm486, 0, %v535
      %537 = vst [vmem:[#allocation3 + $0xc0] sm:$0x1] %v536
      %v538 = vld [vmem:[#allocation3 + $0xcc] sm:$0x1]
      %v539 = vsel %vm486, 0, %v538
      %540 = vst [vmem:[#allocation3 + $0xcc] sm:$0x1] %v539
      %vm541 = vmand %vm485, %vm420
      %v542 = vld [vmem:[#allocation3 + $0x8] sm:$0x1]
      %v543 = vsel %vm541, 0, %v542
      %544 = vst [vmem:[#allocation3 + $0x8] sm:$0x1] %v543
      %v545 = vld [vmem:[#allocation3 + $0x14] sm:$0x1]
      %v546 = vsel %vm541, 0, %v545
      %547 = vst [vmem:[#allocation3 + $0x14] sm:$0x1] %v546
      %v548 = vld [vmem:[#allocation3 + $0x20] sm:$0x1]
      %v549 = vsel %vm541, 0, %v548
      %550 = vst [vmem:[#allocation3 + $0x20] sm:$0x1] %v549
      %v551 = vld [vmem:[#allocation3 + $0x2c] sm:$0x1]
      %v552 = vsel %vm541, 0, %v551
      %553 = vst [vmem:[#allocation3 + $0x2c] sm:$0x1] %v552
      %v554 = vld [vmem:[#allocation3 + $0x38] sm:$0x1]
      %v555 = vsel %vm541, 0, %v554
      %556 = vst [vmem:[#allocation3 + $0x38] sm:$0x1] %v555
      %v557 = vld [vmem:[#allocation3 + $0x44] sm:$0x1]
      %v558 = vsel %vm541, 0, %v557
      %559 = vst [vmem:[#allocation3 + $0x44] sm:$0x1] %v558
      %v560 = vld [vmem:[#allocation3 + $0x50] sm:$0x1]
      %v561 = vsel %vm541, 0, %v560
      %562 = vst [vmem:[#allocation3 + $0x50] sm:$0x1] %v561
      %v563 = vld [vmem:[#allocation3 + $0x5c] sm:$0x1]
      %v564 = vsel %vm541, 0, %v563
      %565 = vst [vmem:[#allocation3 + $0x5c] sm:$0x1] %v564
      %v566 = vld [vmem:[#allocation3 + $0x68] sm:$0x1]
      %v567 = vsel %vm541, 0, %v566
      %568 = vst [vmem:[#allocation3 + $0x68] sm:$0x1] %v567
      %v569 = vld [vmem:[#allocation3 + $0x74] sm:$0x1]
      %v570 = vsel %vm541, 0, %v569
      %571 = vst [vmem:[#allocation3 + $0x74] sm:$0x1] %v570
      %v572 = vld [vmem:[#allocation3 + $0x80] sm:$0x1]
      %v573 = vsel %vm541, 0, %v572
      %574 = vst [vmem:[#allocation3 + $0x80] sm:$0x1] %v573
      %v575 = vld [vmem:[#allocation3 + $0x8c] sm:$0x1]
      %v576 = vsel %vm541, 0, %v575
      %577 = vst [vmem:[#allocation3 + $0x8c] sm:$0x1] %v576
      %v578 = vld [vmem:[#allocation3 + $0x98] sm:$0x1]
      %v579 = vsel %vm541, 0, %v578
      %580 = vst [vmem:[#allocation3 + $0x98] sm:$0x1] %v579
      %v581 = vld [vmem:[#allocation3 + $0xa4] sm:$0x1]
      %v582 = vsel %vm541, 0, %v581
      %583 = vst [vmem:[#allocation3 + $0xa4] sm:$0x1] %v582
      %v584 = vld [vmem:[#allocation3 + $0xb0] sm:$0x1]
      %v585 = vsel %vm541, 0, %v584
      %586 = vst [vmem:[#allocation3 + $0xb0] sm:$0x1] %v585
      %v587 = vld [vmem:[#allocation3 + $0xbc] sm:$0x1]
      %v588 = vsel %vm541, 0, %v587
      %589 = vst [vmem:[#allocation3 + $0xbc] sm:$0x1] %v588
      %v590 = vld [vmem:[#allocation3 + $0xc8] sm:$0x1]
      %v591 = vsel %vm541, 0, %v590
      %592 = vst [vmem:[#allocation3 + $0xc8] sm:$0x1] %v591
      %v593 = vld [vmem:[#allocation3 + $0xd4] sm:$0x1]
      %v594 = vsel %vm541, 0, %v593
      %595 = vst [vmem:[#allocation3 + $0xd4] sm:$0x1] %v594
      %vm596 = vcmask 60416
      %597 = vst.msk [vmem:[#allocation4] sm:$0xf] %vm596, 0
      %598 = vst.msk [vmem:[#allocation4 + $0x4] sm:$0xf] %vm596, 0
      %vm599 = vcmask 57344
      %600 = vst.msk [vmem:[#allocation4 + $0x8] sm:$0x1] %vm599, 0
      %s601 = scalar_lea.vmem [#allocation4], 204
      %602 = vst.msk [vmem:[%s601] sm:$0xf] %vm596, 0
      %603 = vst.msk [vmem:[%s601 + $0x4] sm:$0xf] %vm596, 0
      %604 = vst.msk [vmem:[%s601 + $0x8] sm:$0x1] %vm599, 0
      %vm605 = vcmask 57344
      %vm606 = vmand %vm605, %vm364
      %v607 = vld [vmem:[#allocation4] sm:$0x1]
      %v608 = vsel %vm606, 0, %v607
      %609 = vst [vmem:[#allocation4] sm:$0x1] %v608
      %v610 = vld [vmem:[#allocation4 + $0xc] sm:$0x1]
      %v611 = vsel %vm606, 0, %v610
      %612 = vst [vmem:[#allocation4 + $0xc] sm:$0x1] %v611
      %v613 = vld [vmem:[#allocation4 + $0x18] sm:$0x1]
      %v614 = vsel %vm606, 0, %v613
      %615 = vst [vmem:[#allocation4 + $0x18] sm:$0x1] %v614
      %v616 = vld [vmem:[#allocation4 + $0x24] sm:$0x1]
      %v617 = vsel %vm606, 0, %v616
      %618 = vst [vmem:[#allocation4 + $0x24] sm:$0x1] %v617
      %v619 = vld [vmem:[#allocation4 + $0x30] sm:$0x1]
      %v620 = vsel %vm606, 0, %v619
      %621 = vst [vmem:[#allocation4 + $0x30] sm:$0x1] %v620
      %v622 = vld [vmem:[#allocation4 + $0x3c] sm:$0x1]
      %v623 = vsel %vm606, 0, %v622
      %624 = vst [vmem:[#allocation4 + $0x3c] sm:$0x1] %v623
      %v625 = vld [vmem:[#allocation4 + $0x48] sm:$0x1]
      %v626 = vsel %vm606, 0, %v625
      %627 = vst [vmem:[#allocation4 + $0x48] sm:$0x1] %v626
      %v628 = vld [vmem:[#allocation4 + $0x54] sm:$0x1]
      %v629 = vsel %vm606, 0, %v628
      %630 = vst [vmem:[#allocation4 + $0x54] sm:$0x1] %v629
      %v631 = vld [vmem:[#allocation4 + $0x60] sm:$0x1]
      %v632 = vsel %vm606, 0, %v631
      %633 = vst [vmem:[#allocation4 + $0x60] sm:$0x1] %v632
      %v634 = vld [vmem:[#allocation4 + $0x6c] sm:$0x1]
      %v635 = vsel %vm606, 0, %v634
      %636 = vst [vmem:[#allocation4 + $0x6c] sm:$0x1] %v635
      %v637 = vld [vmem:[#allocation4 + $0x78] sm:$0x1]
      %v638 = vsel %vm606, 0, %v637
      %639 = vst [vmem:[#allocation4 + $0x78] sm:$0x1] %v638
      %v640 = vld [vmem:[#allocation4 + $0x84] sm:$0x1]
      %v641 = vsel %vm606, 0, %v640
      %642 = vst [vmem:[#allocation4 + $0x84] sm:$0x1] %v641
      %v643 = vld [vmem:[#allocation4 + $0x90] sm:$0x1]
      %v644 = vsel %vm606, 0, %v643
      %645 = vst [vmem:[#allocation4 + $0x90] sm:$0x1] %v644
      %v646 = vld [vmem:[#allocation4 + $0x9c] sm:$0x1]
      %v647 = vsel %vm606, 0, %v646
      %648 = vst [vmem:[#allocation4 + $0x9c] sm:$0x1] %v647
      %v649 = vld [vmem:[#allocation4 + $0xa8] sm:$0x1]
      %v650 = vsel %vm606, 0, %v649
      %651 = vst [vmem:[#allocation4 + $0xa8] sm:$0x1] %v650
      %v652 = vld [vmem:[#allocation4 + $0xb4] sm:$0x1]
      %v653 = vsel %vm606, 0, %v652
      %654 = vst [vmem:[#allocation4 + $0xb4] sm:$0x1] %v653
      %v655 = vld [vmem:[#allocation4 + $0xc0] sm:$0x1]
      %v656 = vsel %vm606, 0, %v655
      %657 = vst [vmem:[#allocation4 + $0xc0] sm:$0x1] %v656
      %v658 = vld [vmem:[#allocation4 + $0xcc] sm:$0x1]
      %v659 = vsel %vm606, 0, %v658
      %660 = vst [vmem:[#allocation4 + $0xcc] sm:$0x1] %v659
      %vm661 = vmand %vm605, %vm420
      %v662 = vld [vmem:[#allocation4 + $0x8] sm:$0x1]
      %v663 = vsel %vm661, 0, %v662
      %664 = vst [vmem:[#allocation4 + $0x8] sm:$0x1] %v663
      %v665 = vld [vmem:[#allocation4 + $0x14] sm:$0x1]
      %v666 = vsel %vm661, 0, %v665
      %667 = vst [vmem:[#allocation4 + $0x14] sm:$0x1] %v666
      %v668 = vld [vmem:[#allocation4 + $0x20] sm:$0x1]
      %v669 = vsel %vm661, 0, %v668
      %670 = vst [vmem:[#allocation4 + $0x20] sm:$0x1] %v669
      %v671 = vld [vmem:[#allocation4 + $0x2c] sm:$0x1]
      %v672 = vsel %vm661, 0, %v671
      %673 = vst [vmem:[#allocation4 + $0x2c] sm:$0x1] %v672
      %v674 = vld [vmem:[#allocation4 + $0x38] sm:$0x1]
      %v675 = vsel %vm661, 0, %v674
      %676 = vst [vmem:[#allocation4 + $0x38] sm:$0x1] %v675
      %v677 = vld [vmem:[#allocation4 + $0x44] sm:$0x1]
      %v678 = vsel %vm661, 0, %v677
      %679 = vst [vmem:[#allocation4 + $0x44] sm:$0x1] %v678
      %v680 = vld [vmem:[#allocation4 + $0x50] sm:$0x1]
      %v681 = vsel %vm661, 0, %v680
      %682 = vst [vmem:[#allocation4 + $0x50] sm:$0x1] %v681
      %v683 = vld [vmem:[#allocation4 + $0x5c] sm:$0x1]
      %v684 = vsel %vm661, 0, %v683
      %685 = vst [vmem:[#allocation4 + $0x5c] sm:$0x1] %v684
      %v686 = vld [vmem:[#allocation4 + $0x68] sm:$0x1]
      %v687 = vsel %vm661, 0, %v686
      %688 = vst [vmem:[#allocation4 + $0x68] sm:$0x1] %v687
      %v689 = vld [vmem:[#allocation4 + $0x74] sm:$0x1]
      %v690 = vsel %vm661, 0, %v689
      %691 = vst [vmem:[#allocation4 + $0x74] sm:$0x1] %v690
      %v692 = vld [vmem:[#allocation4 + $0x80] sm:$0x1]
      %v693 = vsel %vm661, 0, %v692
      %694 = vst [vmem:[#allocation4 + $0x80] sm:$0x1] %v693
      %v695 = vld [vmem:[#allocation4 + $0x8c] sm:$0x1]
      %v696 = vsel %vm661, 0, %v695
      %697 = vst [vmem:[#allocation4 + $0x8c] sm:$0x1] %v696
      %v698 = vld [vmem:[#allocation4 + $0x98] sm:$0x1]
      %v699 = vsel %vm661, 0, %v698
      %700 = vst [vmem:[#allocation4 + $0x98] sm:$0x1] %v699
      %v701 = vld [vmem:[#allocation4 + $0xa4] sm:$0x1]
      %v702 = vsel %vm661, 0, %v701
      %703 = vst [vmem:[#allocation4 + $0xa4] sm:$0x1] %v702
      %v704 = vld [vmem:[#allocation4 + $0xb0] sm:$0x1]
      %v705 = vsel %vm661, 0, %v704
      %706 = vst [vmem:[#allocation4 + $0xb0] sm:$0x1] %v705
      %v707 = vld [vmem:[#allocation4 + $0xbc] sm:$0x1]
      %v708 = vsel %vm661, 0, %v707
      %709 = vst [vmem:[#allocation4 + $0xbc] sm:$0x1] %v708
      %v710 = vld [vmem:[#allocation4 + $0xc8] sm:$0x1]
      %v711 = vsel %vm661, 0, %v710
      %712 = vst [vmem:[#allocation4 + $0xc8] sm:$0x1] %v711
      %v713 = vld [vmem:[#allocation4 + $0xd4] sm:$0x1]
      %v714 = vsel %vm661, 0, %v713
      %715 = vst [vmem:[#allocation4 + $0xd4] sm:$0x1] %v714
      %v716 = vld [vmem:[%s0] sm:$0xff]
      %v717 = vld [vmem:[%s0 + $0x8] sm:$0xff]
      %v718 = vld [vmem:[%s0 + $0x10] sm:$0xff]
      %v719 = vld [vmem:[%s0 + $0x18] sm:$0xff]
      %v720 = vld [vmem:[%s0 + $0x20] sm:$0xff]
      %v721 = vld [vmem:[%s0 + $0x28] sm:$0xff]
      %v722 = vld [vmem:[%s0 + $0x30] sm:$0xff]
      %v723 = vld [vmem:[%s0 + $0x38] sm:$0xff]
      %v724 = vld [vmem:[%s0 + $0x40] sm:$0xff]
      %v725 = vld [vmem:[%s0 + $0x48] sm:$0xff]
      %v726 = vld [vmem:[%s0 + $0x50] sm:$0xff]
      %v727 = vld [vmem:[%s0 + $0x58] sm:$0xff]
      %v728 = vld [vmem:[%s0 + $0x60] sm:$0xff]
      %v729 = vld [vmem:[%s0 + $0x68] sm:$0xff]
      %v730 = vld [vmem:[%s0 + $0x70] sm:$0xff]
      %v731 = vld [vmem:[%s0 + $0x78] sm:$0xff]
      %v732 = vld [vmem:[%s0 + $0x80] sm:$0xff]
      %v733 = vld [vmem:[%s0 + $0x88] sm:$0xff]
      %v734 = vld [vmem:[%s0 + $0x90] sm:$0xff]
      %v735 = vld [vmem:[%s0 + $0x98] sm:$0xff]
      %v736 = vld [vmem:[%s0 + $0xa0] sm:$0xff]
      %v737 = vld [vmem:[%s0 + $0xa8] sm:$0xff]
      %v738 = vld [vmem:[%s0 + $0xb0] sm:$0xff]
      %v739 = vld [vmem:[%s0 + $0xb8] sm:$0xff]
      %v740 = vld [vmem:[%s0 + $0xc0] sm:$0xff]
      %v741 = vld [vmem:[%s0 + $0xc8] sm:$0xff]
      %v742 = vld [vmem:[%s0 + $0xd0] sm:$0xff]
      %v743 = vld [vmem:[%s0 + $0xd8] sm:$0xff]
      %v744 = vld [vmem:[%s0 + $0xe0] sm:$0xff]
      %v745 = vld [vmem:[%s0 + $0xe8] sm:$0xff]
      %v746 = vld [vmem:[%s0 + $0xf0] sm:$0xff]
      %v747 = vld [vmem:[%s0 + $0xf8] sm:$0xff]
      %v748 = vld [vmem:[%s342] sm:$0xff]
      %v749 = vld [vmem:[%s342 + $0x8] sm:$0xff]
      %v750 = vld [vmem:[%s342 + $0x10] sm:$0xff]
      %v751 = vld [vmem:[%s342 + $0x18] sm:$0xff]
      %v752 = vld [vmem:[%s342 + $0x20] sm:$0xff]
      %v753 = vld [vmem:[%s342 + $0x28] sm:$0xff]
      %v754 = vld [vmem:[%s342 + $0x30] sm:$0xff]
      %v755 = vld [vmem:[%s342 + $0x38] sm:$0xff]
      %vm756 = vcmask 523264
      %v758 = vsel %vm756, %v716, 0
      %v761 = vsel %vm756, %v717, 0
      %v764 = vsel %vm756, %v718, 0
      %v767 = vsel %vm756, %v719, 0
      %v770 = vsel %vm756, %v720, 0
      %v773 = vsel %vm756, %v721, 0
      %v776 = vsel %vm756, %v722, 0
      %v779 = vsel %vm756, %v723, 0
      %v782 = vsel %vm756, %v724, 0
      %v785 = vsel %vm756, %v725, 0
      %v788 = vsel %vm756, %v726, 0
      %v791 = vsel %vm756, %v727, 0
      %v794 = vsel %vm756, %v728, 0
      %v797 = vsel %vm756, %v729, 0
      %v800 = vsel %vm756, %v730, 0
      %v803 = vsel %vm756, %v731, 0
      %v806 = vsel %vm756, %v732, 0
      %v809 = vsel %vm756, %v733, 0
      %v812 = vsel %vm756, %v734, 0
      %v815 = vsel %vm756, %v735, 0
      %v818 = vsel %vm756, %v736, 0
      %v821 = vsel %vm756, %v737, 0
      %v824 = vsel %vm756, %v738, 0
      %v827 = vsel %vm756, %v739, 0
      %v830 = vsel %vm756, %v740, 0
      %v833 = vsel %vm756, %v741, 0
      %v836 = vsel %vm756, %v742, 0
      %v839 = vsel %vm756, %v743, 0
      %v842 = vsel %vm756, %v744, 0
      %v845 = vsel %vm756, %v745, 0
      %v848 = vsel %vm756, %v746, 0
      %v851 = vsel %vm756, %v747, 0
      %853 = vmatprep.subr.mxu0 0.0
      %854 = vmatpush1.msra.mxu0 0.0
      %855 = vmatprep.subr.mxu0 0.0
      %856 = vmatpush1.msra.mxu0 0.0
      %857 = vmatprep.subr.mxu0 0.0
      %858 = vmatpush1.msra.mxu0 0.0
      %859 = vmatprep.subr.mxu0 0.0
      %860 = vmatpush1.msra.mxu0 0.0
      %861 = vmatprep.subr.mxu0 0.0
      %862 = vmatpush1.msra.mxu0 0.0
      %863 = vmatprep.subr.mxu0 0.0
      %864 = vmatpush1.msra.mxu0 0.0
      %865 = vmatprep.subr.mxu0 0.0
      %866 = vmatpush1.msra.mxu0 0.0
      %867 = vmatprep.subr.mxu0 0.0
      %868 = vmatpush1.msra.mxu0 0.0
      %869 = vmatprep.subr.mxu0 0.0
      %870 = vmatpush1.msra.mxu0 %v755
      %871 = vmatprep.subr.mxu0 0.0
      %872 = vmatpush1.msra.mxu0 %v754
      %873 = vmatprep.subr.mxu0 0.0
      %874 = vmatpush1.msra.mxu0 %v753
      %875 = vmatprep.subr.mxu0 0.0
      %876 = vmatpush1.msra.mxu0 %v752
      %877 = vmatprep.subr.mxu0 0.0
      %878 = vmatpush1.msra.mxu0 %v751
      %879 = vmatprep.subr.mxu0 0.0
      %880 = vmatpush1.msra.mxu0 %v750
      %881 = vmatprep.subr.mxu0 0.0
      %882 = vmatpush1.msra.mxu0 %v749
      %883 = vmatprep.subr.mxu0 0.0
      %884 = vmatpush1.msra.mxu0 %v748
      %885 = vmatprep.subr.mxu0 0.0
      %886 = vmatpush2.msra.mxu0 0.0
      %887 = vmatprep.subr.mxu0 0.0
      %888 = vmatpush2.msra.mxu0 0.0
      %889 = vmatprep.subr.mxu0 0.0
      %890 = vmatpush2.msra.mxu0 0.0
      %891 = vmatprep.subr.mxu0 0.0
      %892 = vmatpush2.msra.mxu0 0.0
      %893 = vmatprep.subr.mxu0 0.0
      %894 = vmatpush2.msra.mxu0 0.0
      %895 = vmatprep.subr.mxu0 0.0
      %896 = vmatpush2.msra.mxu0 0.0
      %897 = vmatprep.subr.mxu0 0.0
      %898 = vmatpush2.msra.mxu0 0.0
      %899 = vmatprep.subr.mxu0 0.0
      %900 = vmatpush2.msra.mxu0 0.0
      %901 = vmatprep.subr.mxu0 0.0
      %902 = vmatpush2.msra.mxu0 0.0
      %903 = vmatprep.subr.mxu0 0.0
      %904 = vmatpush2.msra.mxu0 0.0
      %905 = vmatprep.subr.mxu0 0.0
      %906 = vmatpush2.msra.mxu0 0.0
      %907 = vmatprep.subr.mxu0 0.0
      %908 = vmatpush2.msra.mxu0 0.0
      %909 = vmatprep.subr.mxu0 0.0
      %910 = vmatpush2.msra.mxu0 0.0
      %911 = vmatprep.subr.mxu0 0.0
      %912 = vmatpush2.msra.mxu0 0.0
      %913 = vmatprep.subr.mxu0 0.0
      %914 = vmatpush2.msra.mxu0 0.0
      %915 = vmatprep.subr.mxu0 0.0
      %916 = vmatpush2.msra.mxu0 0.0
      %917 = vmatprep.mubr.f32.mxu0 0.0
      %918 = vmatmul.mubr.f32.gmra.mxu0 %v758
      %v919 = vpop.f32.mrf.mxu0
      %v920 = vadd.f32 0.0, %v919
      %v921 = vpop.f32.mrf.mxu0
      %922 = vmatprep.mubr.f32.mxu0 0.0
      %923 = vmatmul.mubr.f32.gmra.mxu0 %v761
      %v924 = vpop.f32.mrf.mxu0
      %v925 = vadd.f32 0.0, %v924
      %v926 = vpop.f32.mrf.mxu0
      %927 = vmatprep.mubr.f32.mxu0 0.0
      %928 = vmatmul.mubr.f32.gmra.mxu0 %v764
      %v929 = vpop.f32.mrf.mxu0
      %v930 = vadd.f32 0.0, %v929
      %v931 = vpop.f32.mrf.mxu0
      %932 = vmatprep.mubr.f32.mxu0 0.0
      %933 = vmatmul.mubr.f32.gmra.mxu0 %v767
      %v934 = vpop.f32.mrf.mxu0
      %v935 = vadd.f32 0.0, %v934
      %v936 = vpop.f32.mrf.mxu0
      %937 = vmatprep.mubr.f32.mxu0 0.0
      %938 = vmatmul.mubr.f32.gmra.mxu0 %v770
      %v939 = vpop.f32.mrf.mxu0
      %v940 = vadd.f32 0.0, %v939
      %v941 = vpop.f32.mrf.mxu0
      %942 = vmatprep.mubr.f32.mxu0 0.0
      %943 = vmatmul.mubr.f32.gmra.mxu0 %v773
      %v944 = vpop.f32.mrf.mxu0
      %v945 = vadd.f32 0.0, %v944
      %v946 = vpop.f32.mrf.mxu0
      %947 = vmatprep.mubr.f32.mxu0 0.0
      %948 = vmatmul.mubr.f32.gmra.mxu0 %v776
      %v949 = vpop.f32.mrf.mxu0
      %v950 = vadd.f32 0.0, %v949
      %v951 = vpop.f32.mrf.mxu0
      %952 = vmatprep.mubr.f32.mxu0 0.0
      %953 = vmatmul.mubr.f32.gmra.mxu0 %v779
      %v954 = vpop.f32.mrf.mxu0
      %v955 = vadd.f32 0.0, %v954
      %v956 = vpop.f32.mrf.mxu0
      %957 = vmatprep.mubr.f32.mxu0 0.0
      %958 = vmatmul.mubr.f32.gmra.mxu0 %v782
      %v959 = vpop.f32.mrf.mxu0
      %v960 = vadd.f32 0.0, %v959
      %v961 = vpop.f32.mrf.mxu0
      %962 = vmatprep.mubr.f32.mxu0 0.0
      %963 = vmatmul.mubr.f32.gmra.mxu0 %v785
      %v964 = vpop.f32.mrf.mxu0
      %v965 = vadd.f32 0.0, %v964
      %v966 = vpop.f32.mrf.mxu0
      %967 = vmatprep.mubr.f32.mxu0 0.0
      %968 = vmatmul.mubr.f32.gmra.mxu0 %v788
      %v969 = vpop.f32.mrf.mxu0
      %v970 = vadd.f32 0.0, %v969
      %v971 = vpop.f32.mrf.mxu0
      %972 = vmatprep.mubr.f32.mxu0 0.0
      %973 = vmatmul.mubr.f32.gmra.mxu0 %v791
      %v974 = vpop.f32.mrf.mxu0
      %v975 = vadd.f32 0.0, %v974
      %v976 = vpop.f32.mrf.mxu0
      %977 = vmatprep.mubr.f32.mxu0 0.0
      %978 = vmatmul.mubr.f32.gmra.mxu0 %v794
      %v979 = vpop.f32.mrf.mxu0
      %v980 = vadd.f32 0.0, %v979
      %v981 = vpop.f32.mrf.mxu0
      %982 = vmatprep.mubr.f32.mxu0 0.0
      %983 = vmatmul.mubr.f32.gmra.mxu0 %v797
      %v984 = vpop.f32.mrf.mxu0
      %v985 = vadd.f32 0.0, %v984
      %v986 = vpop.f32.mrf.mxu0
      %987 = vmatprep.mubr.f32.mxu0 0.0
      %988 = vmatmul.mubr.f32.gmra.mxu0 %v800
      %v989 = vpop.f32.mrf.mxu0
      %v990 = vadd.f32 0.0, %v989
      %v991 = vpop.f32.mrf.mxu0
      %992 = vmatprep.mubr.f32.mxu0 0.0
      %993 = vmatmul.mubr.f32.gmra.mxu0 %v803
      %v994 = vpop.f32.mrf.mxu0
      %v995 = vadd.f32 0.0, %v994
      %v996 = vpop.f32.mrf.mxu0
      %997 = vmatprep.mubr.f32.mxu0 0.0
      %998 = vmatmul.mubr.f32.gmra.mxu0 %v806
      %v999 = vpop.f32.mrf.mxu0
      %v1000 = vadd.f32 0.0, %v999
      %v1001 = vpop.f32.mrf.mxu0
      %1002 = vmatprep.mubr.f32.mxu0 0.0
      %1003 = vmatmul.mubr.f32.gmra.mxu0 %v809
      %v1004 = vpop.f32.mrf.mxu0
      %v1005 = vadd.f32 0.0, %v1004
      %v1006 = vpop.f32.mrf.mxu0
      %1007 = vmatprep.mubr.f32.mxu0 0.0
      %1008 = vmatmul.mubr.f32.gmra.mxu0 %v812
      %v1009 = vpop.f32.mrf.mxu0
      %v1010 = vadd.f32 0.0, %v1009
      %v1011 = vpop.f32.mrf.mxu0
      %1012 = vmatprep.mubr.f32.mxu0 0.0
      %1013 = vmatmul.mubr.f32.gmra.mxu0 %v815
      %v1014 = vpop.f32.mrf.mxu0
      %v1015 = vadd.f32 0.0, %v1014
      %v1016 = vpop.f32.mrf.mxu0
      %1017 = vmatprep.mubr.f32.mxu0 0.0
      %1018 = vmatmul.mubr.f32.gmra.mxu0 %v818
      %v1019 = vpop.f32.mrf.mxu0
      %v1020 = vadd.f32 0.0, %v1019
      %v1021 = vpop.f32.mrf.mxu0
      %1022 = vmatprep.mubr.f32.mxu0 0.0
      %1023 = vmatmul.mubr.f32.gmra.mxu0 %v821
      %v1024 = vpop.f32.mrf.mxu0
      %v1025 = vadd.f32 0.0, %v1024
      %v1026 = vpop.f32.mrf.mxu0
      %1027 = vmatprep.mubr.f32.mxu0 0.0
      %1028 = vmatmul.mubr.f32.gmra.mxu0 %v824
      %v1029 = vpop.f32.mrf.mxu0
      %v1030 = vadd.f32 0.0, %v1029
      %v1031 = vpop.f32.mrf.mxu0
      %1032 = vmatprep.mubr.f32.mxu0 0.0
      %1033 = vmatmul.mubr.f32.gmra.mxu0 %v827
      %v1034 = vpop.f32.mrf.mxu0
      %v1035 = vadd.f32 0.0, %v1034
      %v1036 = vpop.f32.mrf.mxu0
      %1037 = vmatprep.mubr.f32.mxu0 0.0
      %1038 = vmatmul.mubr.f32.gmra.mxu0 %v830
      %v1039 = vpop.f32.mrf.mxu0
      %v1040 = vadd.f32 0.0, %v1039
      %v1041 = vpop.f32.mrf.mxu0
      %1042 = vmatprep.mubr.f32.mxu0 0.0
      %1043 = vmatmul.mubr.f32.gmra.mxu0 %v833
      %v1044 = vpop.f32.mrf.mxu0
      %v1045 = vadd.f32 0.0, %v1044
      %v1046 = vpop.f32.mrf.mxu0
      %1047 = vmatprep.mubr.f32.mxu0 0.0
      %1048 = vmatmul.mubr.f32.gmra.mxu0 %v836
      %v1049 = vpop.f32.mrf.mxu0
      %v1050 = vadd.f32 0.0, %v1049
      %v1051 = vpop.f32.mrf.mxu0
      %1052 = vmatprep.mubr.f32.mxu0 0.0
      %1053 = vmatmul.mubr.f32.gmra.mxu0 %v839
      %v1054 = vpop.f32.mrf.mxu0
      %v1055 = vadd.f32 0.0, %v1054
      %v1056 = vpop.f32.mrf.mxu0
      %1057 = vmatprep.mubr.f32.mxu0 0.0
      %1058 = vmatmul.mubr.f32.gmra.mxu0 %v842
      %v1059 = vpop.f32.mrf.mxu0
      %v1060 = vadd.f32 0.0, %v1059
      %v1061 = vpop.f32.mrf.mxu0
      %1062 = vmatprep.mubr.f32.mxu0 0.0
      %1063 = vmatmul.mubr.f32.gmra.mxu0 %v845
      %v1064 = vpop.f32.mrf.mxu0
      %v1065 = vadd.f32 0.0, %v1064
      %v1066 = vpop.f32.mrf.mxu0
      %1067 = vmatprep.mubr.f32.mxu0 0.0
      %1068 = vmatmul.mubr.f32.gmra.mxu0 %v848
      %v1069 = vpop.f32.mrf.mxu0
      %v1070 = vadd.f32 0.0, %v1069
      %v1071 = vpop.f32.mrf.mxu0
      %1072 = vmatprep.mubr.f32.mxu0 0.0
      %1073 = vmatmul.mubr.f32.gmra.mxu0 %v851
      %v1074 = vpop.f32.mrf.mxu0
      %v1075 = vadd.f32 0.0, %v1074
      %v1076 = vpop.f32.mrf.mxu0
      %1077 = vdwg.mxu0
      %v1078 = vpack.c.bf16 %v925, %v920
      %v1079 = vpack.c.bf16 %v935, %v930
      %v1080 = vpack.c.bf16 %v945, %v940
      %v1081 = vpack.c.bf16 %v955, %v950
      %v1082 = vpack.c.bf16 %v965, %v960
      %v1083 = vpack.c.bf16 %v975, %v970
      %v1084 = vpack.c.bf16 %v985, %v980
      %v1085 = vpack.c.bf16 %v995, %v990
      %v1086 = vpack.c.bf16 %v1005, %v1000
      %v1087 = vpack.c.bf16 %v1015, %v1010
      %v1088 = vpack.c.bf16 %v1025, %v1020
      %v1089 = vpack.c.bf16 %v1035, %v1030
      %v1090 = vpack.c.bf16 %v1045, %v1040
      %v1091 = vpack.c.bf16 %v1055, %v1050
      %v1092 = vpack.c.bf16 %v1065, %v1060
      %v1093 = vpack.c.bf16 %v1075, %v1070
      %v1110 = vunpack.c.l.b16 %v1078
      %v1111 = vunpack.c.h.b16 %v1078
      %v1112 = vunpack.c.l.b16 %v1079
      %v1113 = vunpack.c.h.b16 %v1079
      %v1114 = vunpack.c.l.b16 %v1080
      %v1115 = vunpack.c.h.b16 %v1080
      %v1116 = vunpack.c.l.b16 %v1081
      %v1117 = vunpack.c.h.b16 %v1081
      %v1118 = vunpack.c.l.b16 %v1082
      %v1119 = vunpack.c.h.b16 %v1082
      %v1120 = vunpack.c.l.b16 %v1083
      %v1121 = vunpack.c.h.b16 %v1083
      %v1122 = vunpack.c.l.b16 %v1084
      %v1123 = vunpack.c.h.b16 %v1084
      %v1124 = vunpack.c.l.b16 %v1085
      %v1125 = vunpack.c.h.b16 %v1085
      %v1126 = vunpack.c.l.b16 %v1086
      %v1127 = vunpack.c.h.b16 %v1086
      %v1128 = vunpack.c.l.b16 %v1087
      %v1129 = vunpack.c.h.b16 %v1087
      %v1130 = vunpack.c.l.b16 %v1088
      %v1131 = vunpack.c.h.b16 %v1088
      %v1132 = vunpack.c.l.b16 %v1089
      %v1133 = vunpack.c.h.b16 %v1089
      %v1134 = vunpack.c.l.b16 %v1090
      %v1135 = vunpack.c.h.b16 %v1090
      %v1136 = vunpack.c.l.b16 %v1091
      %v1137 = vunpack.c.h.b16 %v1091
      %v1138 = vunpack.c.l.b16 %v1092
      %v1139 = vunpack.c.h.b16 %v1092
      %v1140 = vunpack.c.l.b16 %v1093
      %v1141 = vunpack.c.h.b16 %v1093
      %v1142 = vpack.c.b16 %v1110, %v1110
      %v1143 = vpack.c.b16 %v1111, %v1111
      %v1144 = vpack.c.b16 %v1112, %v1112
      %v1145 = vpack.c.b16 %v1113, %v1113
      %v1146 = vpack.c.b16 %v1114, %v1114
      %v1147 = vpack.c.b16 %v1115, %v1115
      %v1148 = vpack.c.b16 %v1116, %v1116
      %v1149 = vpack.c.b16 %v1117, %v1117
      %v1150 = vpack.c.b16 %v1118, %v1118
      %v1151 = vpack.c.b16 %v1119, %v1119
      %v1152 = vpack.c.b16 %v1120, %v1120
      %v1153 = vpack.c.b16 %v1121, %v1121
      %v1154 = vpack.c.b16 %v1122, %v1122
      %v1155 = vpack.c.b16 %v1123, %v1123
      %v1156 = vpack.c.b16 %v1124, %v1124
      %v1157 = vpack.c.b16 %v1125, %v1125
      %v1158 = vpack.c.b16 %v1126, %v1126
      %v1159 = vpack.c.b16 %v1127, %v1127
      %v1160 = vpack.c.b16 %v1128, %v1128
      %v1161 = vpack.c.b16 %v1129, %v1129
      %v1162 = vpack.c.b16 %v1130, %v1130
      %v1163 = vpack.c.b16 %v1131, %v1131
      %v1164 = vpack.c.b16 %v1132, %v1132
      %v1165 = vpack.c.b16 %v1133, %v1133
      %v1166 = vpack.c.b16 %v1134, %v1134
      %v1167 = vpack.c.b16 %v1135, %v1135
      %v1168 = vpack.c.b16 %v1136, %v1136
      %v1169 = vpack.c.b16 %v1137, %v1137
      %v1170 = vpack.c.b16 %v1138, %v1138
      %v1171 = vpack.c.b16 %v1139, %v1139
      %v1172 = vpack.c.b16 %v1140, %v1140
      %v1173 = vpack.c.b16 %v1141, %v1141
      %vm1174 = vsmask.f32 4368
      %vm1175 = vmor %vm364, %vm1174
      %v1177 = vshrl.u32 %v1142, 16
      %v1179 = vrot.slane %v1177, 7
      %v1180 = vshll.u32 %v1142, 16
      %v1182 = vor.u32 %v1179, %v1180
      %v1183 = vrot.slane %v1179, 4
      %v1185 = vshrl.u32 %v1143, 16
      %v1187 = vrot.slane %v1185, 7
      %v1188 = vshll.u32 %v1143, 16
      %v1190 = vor.u32 %v1187, %v1188
      %v1191 = vsel %vm1175, %v1183, %v1190
      %v1192 = vrot.slane %v1187, 4
      %v1194 = vshrl.u32 %v1144, 16
      %v1196 = vrot.slane %v1194, 7
      %v1197 = vshll.u32 %v1144, 16
      %v1199 = vor.u32 %v1196, %v1197
      %v1200 = vrot.slane %v1196, 4
      %v1202 = vshrl.u32 %v1145, 16
      %v1204 = vrot.slane %v1202, 7
      %v1205 = vshll.u32 %v1145, 16
      %v1207 = vor.u32 %v1204, %v1205
      %v1208 = vsel %vm1175, %v1200, %v1207
      %v1209 = vrot.slane %v1204, 4
      %v1211 = vshrl.u32 %v1146, 16
      %v1213 = vrot.slane %v1211, 7
      %v1214 = vshll.u32 %v1146, 16
      %v1216 = vor.u32 %v1213, %v1214
      %v1217 = vrot.slane %v1213, 4
      %v1219 = vshrl.u32 %v1147, 16
      %v1221 = vrot.slane %v1219, 7
      %v1222 = vshll.u32 %v1147, 16
      %v1224 = vor.u32 %v1221, %v1222
      %v1225 = vsel %vm1175, %v1217, %v1224
      %v1226 = vrot.slane %v1221, 4
      %v1228 = vshrl.u32 %v1148, 16
      %v1230 = vrot.slane %v1228, 7
      %v1231 = vshll.u32 %v1148, 16
      %v1233 = vor.u32 %v1230, %v1231
      %v1234 = vrot.slane %v1230, 4
      %v1236 = vshrl.u32 %v1149, 16
      %v1238 = vrot.slane %v1236, 7
      %v1239 = vshll.u32 %v1149, 16
      %v1241 = vor.u32 %v1238, %v1239
      %v1242 = vsel %vm1175, %v1234, %v1241
      %v1243 = vrot.slane %v1238, 4
      %v1245 = vshrl.u32 %v1150, 16
      %v1247 = vrot.slane %v1245, 7
      %v1248 = vshll.u32 %v1150, 16
      %v1250 = vor.u32 %v1247, %v1248
      %v1251 = vrot.slane %v1247, 4
      %v1253 = vshrl.u32 %v1151, 16
      %v1255 = vrot.slane %v1253, 7
      %v1256 = vshll.u32 %v1151, 16
      %v1258 = vor.u32 %v1255, %v1256
      %v1259 = vsel %vm1175, %v1251, %v1258
      %v1260 = vrot.slane %v1255, 4
      %v1262 = vshrl.u32 %v1152, 16
      %v1264 = vrot.slane %v1262, 7
      %v1265 = vshll.u32 %v1152, 16
      %v1267 = vor.u32 %v1264, %v1265
      %v1268 = vrot.slane %v1264, 4
      %v1270 = vshrl.u32 %v1153, 16
      %v1272 = vrot.slane %v1270, 7
      %v1273 = vshll.u32 %v1153, 16
      %v1275 = vor.u32 %v1272, %v1273
      %v1276 = vsel %vm1175, %v1268, %v1275
      %v1277 = vrot.slane %v1272, 4
      %v1279 = vshrl.u32 %v1154, 16
      %v1281 = vrot.slane %v1279, 7
      %v1282 = vshll.u32 %v1154, 16
      %v1284 = vor.u32 %v1281, %v1282
      %v1285 = vrot.slane %v1281, 4
      %v1287 = vshrl.u32 %v1155, 16
      %v1289 = vrot.slane %v1287, 7
      %v1290 = vshll.u32 %v1155, 16
      %v1292 = vor.u32 %v1289, %v1290
      %v1293 = vsel %vm1175, %v1285, %v1292
      %v1294 = vrot.slane %v1289, 4
      %v1296 = vshrl.u32 %v1156, 16
      %v1298 = vrot.slane %v1296, 7
      %v1299 = vshll.u32 %v1156, 16
      %v1301 = vor.u32 %v1298, %v1299
      %v1302 = vrot.slane %v1298, 4
      %v1304 = vshrl.u32 %v1157, 16
      %v1306 = vrot.slane %v1304, 7
      %v1307 = vshll.u32 %v1157, 16
      %v1309 = vor.u32 %v1306, %v1307
      %v1310 = vsel %vm1175, %v1302, %v1309
      %v1311 = vrot.slane %v1306, 4
      %v1313 = vshrl.u32 %v1158, 16
      %v1315 = vrot.slane %v1313, 7
      %v1316 = vshll.u32 %v1158, 16
      %v1318 = vor.u32 %v1315, %v1316
      %v1319 = vrot.slane %v1315, 4
      %v1321 = vshrl.u32 %v1159, 16
      %v1323 = vrot.slane %v1321, 7
      %v1324 = vshll.u32 %v1159, 16
      %v1326 = vor.u32 %v1323, %v1324
      %v1327 = vsel %vm1175, %v1319, %v1326
      %v1328 = vrot.slane %v1323, 4
      %v1330 = vshrl.u32 %v1160, 16
      %v1332 = vrot.slane %v1330, 7
      %v1333 = vshll.u32 %v1160, 16
      %v1335 = vor.u32 %v1332, %v1333
      %v1336 = vrot.slane %v1332, 4
      %v1338 = vshrl.u32 %v1161, 16
      %v1340 = vrot.slane %v1338, 7
      %v1341 = vshll.u32 %v1161, 16
      %v1343 = vor.u32 %v1340, %v1341
      %v1344 = vsel %vm1175, %v1336, %v1343
      %v1345 = vrot.slane %v1340, 4
      %v1347 = vshrl.u32 %v1162, 16
      %v1349 = vrot.slane %v1347, 7
      %v1350 = vshll.u32 %v1162, 16
      %v1352 = vor.u32 %v1349, %v1350
      %v1353 = vrot.slane %v1349, 4
      %v1355 = vshrl.u32 %v1163, 16
      %v1357 = vrot.slane %v1355, 7
      %v1358 = vshll.u32 %v1163, 16
      %v1360 = vor.u32 %v1357, %v1358
      %v1361 = vsel %vm1175, %v1353, %v1360
      %v1362 = vrot.slane %v1357, 4
      %v1364 = vshrl.u32 %v1164, 16
      %v1366 = vrot.slane %v1364, 7
      %v1367 = vshll.u32 %v1164, 16
      %v1369 = vor.u32 %v1366, %v1367
      %v1370 = vrot.slane %v1366, 4
      %v1372 = vshrl.u32 %v1165, 16
      %v1374 = vrot.slane %v1372, 7
      %v1375 = vshll.u32 %v1165, 16
      %v1377 = vor.u32 %v1374, %v1375
      %v1378 = vsel %vm1175, %v1370, %v1377
      %v1379 = vrot.slane %v1374, 4
      %v1381 = vshrl.u32 %v1166, 16
      %v1383 = vrot.slane %v1381, 7
      %v1384 = vshll.u32 %v1166, 16
      %v1386 = vor.u32 %v1383, %v1384
      %v1387 = vrot.slane %v1383, 4
      %v1389 = vshrl.u32 %v1167, 16
      %v1391 = vrot.slane %v1389, 7
      %v1392 = vshll.u32 %v1167, 16
      %v1394 = vor.u32 %v1391, %v1392
      %v1395 = vsel %vm1175, %v1387, %v1394
      %v1396 = vrot.slane %v1391, 4
      %v1398 = vshrl.u32 %v1168, 16
      %v1400 = vrot.slane %v1398, 7
      %v1401 = vshll.u32 %v1168, 16
      %v1403 = vor.u32 %v1400, %v1401
      %v1404 = vrot.slane %v1400, 4
      %v1406 = vshrl.u32 %v1169, 16
      %v1408 = vrot.slane %v1406, 7
      %v1409 = vshll.u32 %v1169, 16
      %v1411 = vor.u32 %v1408, %v1409
      %v1412 = vsel %vm1175, %v1404, %v1411
      %v1413 = vrot.slane %v1408, 4
      %v1415 = vshrl.u32 %v1170, 16
      %v1417 = vrot.slane %v1415, 7
      %v1418 = vshll.u32 %v1170, 16
      %v1420 = vor.u32 %v1417, %v1418
      %v1421 = vrot.slane %v1417, 4
      %v1423 = vshrl.u32 %v1171, 16
      %v1425 = vrot.slane %v1423, 7
      %v1426 = vshll.u32 %v1171, 16
      %v1428 = vor.u32 %v1425, %v1426
      %v1429 = vsel %vm1175, %v1421, %v1428
      %v1430 = vrot.slane %v1425, 4
      %v1432 = vshrl.u32 %v1172, 16
      %v1434 = vrot.slane %v1432, 7
      %v1435 = vshll.u32 %v1172, 16
      %v1437 = vor.u32 %v1434, %v1435
      %v1438 = vrot.slane %v1434, 4
      %v1440 = vshrl.u32 %v1173, 16
      %v1442 = vrot.slane %v1440, 7
      %v1443 = vshll.u32 %v1173, 16
      %v1445 = vor.u32 %v1442, %v1443
      %v1446 = vsel %vm1175, %v1438, %v1445
      %v1447 = vrot.slane %v1442, 4
      %s1496 = scalar_lea.vmem [#allocation2], 12
      %vm1497 = vcmask 44032
      %vm1498 = vmand %vm1497, %vm420
      %v1499 = vld [vmem:[%s1496] sm:$0xf]
      %v1500 = vsel %vm1498, %v1182, %v1499
      %1501 = vst [vmem:[%s1496] sm:$0xf] %v1500
      %1502 = vst.msk [vmem:[%s1496 + $0x4] sm:$0xf] %vm354, %v1191
      %v1503 = vld [vmem:[%s1496 + $0x8] sm:$0x1]
      %v1504 = vsel %vm365, %v1192, %v1503
      %1505 = vst [vmem:[%s1496 + $0x8] sm:$0x1] %v1504
      %v1506 = vld [vmem:[%s1496 + $0xc] sm:$0xf]
      %v1507 = vsel %vm1498, %v1199, %v1506
      %1508 = vst [vmem:[%s1496 + $0xc] sm:$0xf] %v1507
      %1509 = vst.msk [vmem:[%s1496 + $0x10] sm:$0xf] %vm354, %v1208
      %v1510 = vld [vmem:[%s1496 + $0x14] sm:$0x1]
      %v1511 = vsel %vm365, %v1209, %v1510
      %1512 = vst [vmem:[%s1496 + $0x14] sm:$0x1] %v1511
      %v1513 = vld [vmem:[%s1496 + $0x18] sm:$0xf]
      %v1514 = vsel %vm1498, %v1216, %v1513
      %1515 = vst [vmem:[%s1496 + $0x18] sm:$0xf] %v1514
      %1516 = vst.msk [vmem:[%s1496 + $0x1c] sm:$0xf] %vm354, %v1225
      %v1517 = vld [vmem:[%s1496 + $0x20] sm:$0x1]
      %v1518 = vsel %vm365, %v1226, %v1517
      %1519 = vst [vmem:[%s1496 + $0x20] sm:$0x1] %v1518
      %v1520 = vld [vmem:[%s1496 + $0x24] sm:$0xf]
      %v1521 = vsel %vm1498, %v1233, %v1520
      %1522 = vst [vmem:[%s1496 + $0x24] sm:$0xf] %v1521
      %1523 = vst.msk [vmem:[%s1496 + $0x28] sm:$0xf] %vm354, %v1242
      %v1524 = vld [vmem:[%s1496 + $0x2c] sm:$0x1]
      %v1525 = vsel %vm365, %v1243, %v1524
      %1526 = vst [vmem:[%s1496 + $0x2c] sm:$0x1] %v1525
      %v1527 = vld [vmem:[%s1496 + $0x30] sm:$0xf]
      %v1528 = vsel %vm1498, %v1250, %v1527
      %1529 = vst [vmem:[%s1496 + $0x30] sm:$0xf] %v1528
      %1530 = vst.msk [vmem:[%s1496 + $0x34] sm:$0xf] %vm354, %v1259
      %v1531 = vld [vmem:[%s1496 + $0x38] sm:$0x1]
      %v1532 = vsel %vm365, %v1260, %v1531
      %1533 = vst [vmem:[%s1496 + $0x38] sm:$0x1] %v1532
      %v1534 = vld [vmem:[%s1496 + $0x3c] sm:$0xf]
      %v1535 = vsel %vm1498, %v1267, %v1534
      %1536 = vst [vmem:[%s1496 + $0x3c] sm:$0xf] %v1535
      %1537 = vst.msk [vmem:[%s1496 + $0x40] sm:$0xf] %vm354, %v1276
      %v1538 = vld [vmem:[%s1496 + $0x44] sm:$0x1]
      %v1539 = vsel %vm365, %v1277, %v1538
      %1540 = vst [vmem:[%s1496 + $0x44] sm:$0x1] %v1539
      %v1541 = vld [vmem:[%s1496 + $0x48] sm:$0xf]
      %v1542 = vsel %vm1498, %v1284, %v1541
      %1543 = vst [vmem:[%s1496 + $0x48] sm:$0xf] %v1542
      %1544 = vst.msk [vmem:[%s1496 + $0x4c] sm:$0xf] %vm354, %v1293
      %v1545 = vld [vmem:[%s1496 + $0x50] sm:$0x1]
      %v1546 = vsel %vm365, %v1294, %v1545
      %1547 = vst [vmem:[%s1496 + $0x50] sm:$0x1] %v1546
      %v1548 = vld [vmem:[%s1496 + $0x54] sm:$0xf]
      %v1549 = vsel %vm1498, %v1301, %v1548
      %1550 = vst [vmem:[%s1496 + $0x54] sm:$0xf] %v1549
      %1551 = vst.msk [vmem:[%s1496 + $0x58] sm:$0xf] %vm354, %v1310
      %v1552 = vld [vmem:[%s1496 + $0x5c] sm:$0x1]
      %v1553 = vsel %vm365, %v1311, %v1552
      %1554 = vst [vmem:[%s1496 + $0x5c] sm:$0x1] %v1553
      %v1555 = vld [vmem:[%s1496 + $0x60] sm:$0xf]
      %v1556 = vsel %vm1498, %v1318, %v1555
      %1557 = vst [vmem:[%s1496 + $0x60] sm:$0xf] %v1556
      %1558 = vst.msk [vmem:[%s1496 + $0x64] sm:$0xf] %vm354, %v1327
      %v1559 = vld [vmem:[%s1496 + $0x68] sm:$0x1]
      %v1560 = vsel %vm365, %v1328, %v1559
      %1561 = vst [vmem:[%s1496 + $0x68] sm:$0x1] %v1560
      %v1562 = vld [vmem:[%s1496 + $0x6c] sm:$0xf]
      %v1563 = vsel %vm1498, %v1335, %v1562
      %1564 = vst [vmem:[%s1496 + $0x6c] sm:$0xf] %v1563
      %1565 = vst.msk [vmem:[%s1496 + $0x70] sm:$0xf] %vm354, %v1344
      %v1566 = vld [vmem:[%s1496 + $0x74] sm:$0x1]
      %v1567 = vsel %vm365, %v1345, %v1566
      %1568 = vst [vmem:[%s1496 + $0x74] sm:$0x1] %v1567
      %v1569 = vld [vmem:[%s1496 + $0x78] sm:$0xf]
      %v1570 = vsel %vm1498, %v1352, %v1569
      %1571 = vst [vmem:[%s1496 + $0x78] sm:$0xf] %v1570
      %1572 = vst.msk [vmem:[%s1496 + $0x7c] sm:$0xf] %vm354, %v1361
      %v1573 = vld [vmem:[%s1496 + $0x80] sm:$0x1]
      %v1574 = vsel %vm365, %v1362, %v1573
      %1575 = vst [vmem:[%s1496 + $0x80] sm:$0x1] %v1574
      %v1576 = vld [vmem:[%s1496 + $0x84] sm:$0xf]
      %v1577 = vsel %vm1498, %v1369, %v1576
      %1578 = vst [vmem:[%s1496 + $0x84] sm:$0xf] %v1577
      %1579 = vst.msk [vmem:[%s1496 + $0x88] sm:$0xf] %vm354, %v1378
      %v1580 = vld [vmem:[%s1496 + $0x8c] sm:$0x1]
      %v1581 = vsel %vm365, %v1379, %v1580
      %1582 = vst [vmem:[%s1496 + $0x8c] sm:$0x1] %v1581
      %v1583 = vld [vmem:[%s1496 + $0x90] sm:$0xf]
      %v1584 = vsel %vm1498, %v1386, %v1583
      %1585 = vst [vmem:[%s1496 + $0x90] sm:$0xf] %v1584
      %1586 = vst.msk [vmem:[%s1496 + $0x94] sm:$0xf] %vm354, %v1395
      %v1587 = vld [vmem:[%s1496 + $0x98] sm:$0x1]
      %v1588 = vsel %vm365, %v1396, %v1587
      %1589 = vst [vmem:[%s1496 + $0x98] sm:$0x1] %v1588
      %v1590 = vld [vmem:[%s1496 + $0x9c] sm:$0xf]
      %v1591 = vsel %vm1498, %v1403, %v1590
      %1592 = vst [vmem:[%s1496 + $0x9c] sm:$0xf] %v1591
      %1593 = vst.msk [vmem:[%s1496 + $0xa0] sm:$0xf] %vm354, %v1412
      %v1594 = vld [vmem:[%s1496 + $0xa4] sm:$0x1]
      %v1595 = vsel %vm365, %v1413, %v1594
      %1596 = vst [vmem:[%s1496 + $0xa4] sm:$0x1] %v1595
      %v1597 = vld [vmem:[%s1496 + $0xa8] sm:$0xf]
      %v1598 = vsel %vm1498, %v1420, %v1597
      %1599 = vst [vmem:[%s1496 + $0xa8] sm:$0xf] %v1598
      %1600 = vst.msk [vmem:[%s1496 + $0xac] sm:$0xf] %vm354, %v1429
      %v1601 = vld [vmem:[%s1496 + $0xb0] sm:$0x1]
      %v1602 = vsel %vm365, %v1430, %v1601
      %1603 = vst [vmem:[%s1496 + $0xb0] sm:$0x1] %v1602
      %v1604 = vld [vmem:[%s1496 + $0xb4] sm:$0xf]
      %v1605 = vsel %vm1498, %v1437, %v1604
      %1606 = vst [vmem:[%s1496 + $0xb4] sm:$0xf] %v1605
      %1607 = vst.msk [vmem:[%s1496 + $0xb8] sm:$0xf] %vm354, %v1446
      %v1608 = vld [vmem:[%s1496 + $0xbc] sm:$0x1]
      %v1609 = vsel %vm365, %v1447, %v1608
      %1610 = vst [vmem:[%s1496 + $0xbc] sm:$0x1] %v1609
      %v1611 = vld [vmem:[%s347] sm:$0xff]
      %v1612 = vld [vmem:[%s347 + $0x8] sm:$0xff]
      %v1613 = vld [vmem:[%s347 + $0x10] sm:$0xff]
      %v1614 = vld [vmem:[%s347 + $0x18] sm:$0xff]
      %v1615 = vld [vmem:[%s347 + $0x20] sm:$0xff]
      %v1616 = vld [vmem:[%s347 + $0x28] sm:$0xff]
      %v1617 = vld [vmem:[%s347 + $0x30] sm:$0xff]
      %v1618 = vld [vmem:[%s347 + $0x38] sm:$0xff]
      %v1619 = vld [vmem:[%s347 + $0x40] sm:$0xff]
      %v1620 = vld [vmem:[%s347 + $0x48] sm:$0xff]
      %v1621 = vld [vmem:[%s347 + $0x50] sm:$0xff]
      %v1622 = vld [vmem:[%s347 + $0x58] sm:$0xff]
      %v1623 = vld [vmem:[%s347 + $0x60] sm:$0xff]
      %v1624 = vld [vmem:[%s347 + $0x68] sm:$0xff]
      %v1625 = vld [vmem:[%s347 + $0x70] sm:$0xff]
      %v1626 = vld [vmem:[%s347 + $0x78] sm:$0xff]
      %v1627 = vld [vmem:[%s347 + $0x80] sm:$0xff]
      %v1628 = vld [vmem:[%s347 + $0x88] sm:$0xff]
      %v1629 = vld [vmem:[%s347 + $0x90] sm:$0xff]
      %v1630 = vld [vmem:[%s347 + $0x98] sm:$0xff]
      %v1631 = vld [vmem:[%s347 + $0xa0] sm:$0xff]
      %v1632 = vld [vmem:[%s347 + $0xa8] sm:$0xff]
      %v1633 = vld [vmem:[%s347 + $0xb0] sm:$0xff]
      %v1634 = vld [vmem:[%s347 + $0xb8] sm:$0xff]
      %v1635 = vld [vmem:[%s347 + $0xc0] sm:$0xff]
      %v1636 = vld [vmem:[%s347 + $0xc8] sm:$0xff]
      %v1637 = vld [vmem:[%s347 + $0xd0] sm:$0xff]
      %v1638 = vld [vmem:[%s347 + $0xd8] sm:$0xff]
      %v1639 = vld [vmem:[%s347 + $0xe0] sm:$0xff]
      %v1640 = vld [vmem:[%s347 + $0xe8] sm:$0xff]
      %v1641 = vld [vmem:[%s347 + $0xf0] sm:$0xff]
      %v1642 = vld [vmem:[%s347 + $0xf8] sm:$0xff]
      %v1643 = vpack.c.bf16 %v1612, %v1611
      %v1644 = vpack.c.bf16 %v1614, %v1613
      %v1645 = vpack.c.bf16 %v1616, %v1615
      %v1646 = vpack.c.bf16 %v1618, %v1617
      %v1647 = vpack.c.bf16 %v1620, %v1619
      %v1648 = vpack.c.bf16 %v1622, %v1621
      %v1649 = vpack.c.bf16 %v1624, %v1623
      %v1650 = vpack.c.bf16 %v1626, %v1625
      %v1651 = vpack.c.bf16 %v1628, %v1627
      %v1652 = vpack.c.bf16 %v1630, %v1629
      %v1653 = vpack.c.bf16 %v1632, %v1631
      %v1654 = vpack.c.bf16 %v1634, %v1633
      %v1655 = vpack.c.bf16 %v1636, %v1635
      %v1656 = vpack.c.bf16 %v1638, %v1637
      %v1657 = vpack.c.bf16 %v1640, %v1639
      %v1658 = vpack.c.bf16 %v1642, %v1641
      %v1675 = vunpack.c.l.b16 %v1643
      %v1676 = vunpack.c.h.b16 %v1643
      %v1677 = vunpack.c.l.b16 %v1644
      %v1678 = vunpack.c.h.b16 %v1644
      %v1679 = vunpack.c.l.b16 %v1645
      %v1680 = vunpack.c.h.b16 %v1645
      %v1681 = vunpack.c.l.b16 %v1646
      %v1682 = vunpack.c.h.b16 %v1646
      %v1683 = vunpack.c.l.b16 %v1647
      %v1684 = vunpack.c.h.b16 %v1647
      %v1685 = vunpack.c.l.b16 %v1648
      %v1686 = vunpack.c.h.b16 %v1648
      %v1687 = vunpack.c.l.b16 %v1649
      %v1688 = vunpack.c.h.b16 %v1649
      %v1689 = vunpack.c.l.b16 %v1650
      %v1690 = vunpack.c.h.b16 %v1650
      %v1691 = vunpack.c.l.b16 %v1651
      %v1692 = vunpack.c.h.b16 %v1651
      %v1693 = vunpack.c.l.b16 %v1652
      %v1694 = vunpack.c.h.b16 %v1652
      %v1695 = vunpack.c.l.b16 %v1653
      %v1696 = vunpack.c.h.b16 %v1653
      %v1697 = vunpack.c.l.b16 %v1654
      %v1698 = vunpack.c.h.b16 %v1654
      %v1699 = vunpack.c.l.b16 %v1655
      %v1700 = vunpack.c.h.b16 %v1655
      %v1701 = vunpack.c.l.b16 %v1656
      %v1702 = vunpack.c.h.b16 %v1656
      %v1703 = vunpack.c.l.b16 %v1657
      %v1704 = vunpack.c.h.b16 %v1657
      %v1705 = vunpack.c.l.b16 %v1658
      %v1706 = vunpack.c.h.b16 %v1658
      %v1707 = vpack.c.b16 %v1675, %v1675
      %v1708 = vpack.c.b16 %v1676, %v1676
      %v1709 = vpack.c.b16 %v1677, %v1677
      %v1710 = vpack.c.b16 %v1678, %v1678
      %v1711 = vpack.c.b16 %v1679, %v1679
      %v1712 = vpack.c.b16 %v1680, %v1680
      %v1713 = vpack.c.b16 %v1681, %v1681
      %v1714 = vpack.c.b16 %v1682, %v1682
      %v1715 = vpack.c.b16 %v1683, %v1683
      %v1716 = vpack.c.b16 %v1684, %v1684
      %v1717 = vpack.c.b16 %v1685, %v1685
      %v1718 = vpack.c.b16 %v1686, %v1686
      %v1719 = vpack.c.b16 %v1687, %v1687
      %v1720 = vpack.c.b16 %v1688, %v1688
      %v1721 = vpack.c.b16 %v1689, %v1689
      %v1722 = vpack.c.b16 %v1690, %v1690
      %v1723 = vpack.c.b16 %v1691, %v1691
      %v1724 = vpack.c.b16 %v1692, %v1692
      %v1725 = vpack.c.b16 %v1693, %v1693
      %v1726 = vpack.c.b16 %v1694, %v1694
      %v1727 = vpack.c.b16 %v1695, %v1695
      %v1728 = vpack.c.b16 %v1696, %v1696
      %v1729 = vpack.c.b16 %v1697, %v1697
      %v1730 = vpack.c.b16 %v1698, %v1698
      %v1731 = vpack.c.b16 %v1699, %v1699
      %v1732 = vpack.c.b16 %v1700, %v1700
      %v1733 = vpack.c.b16 %v1701, %v1701
      %v1734 = vpack.c.b16 %v1702, %v1702
      %v1735 = vpack.c.b16 %v1703, %v1703
      %v1736 = vpack.c.b16 %v1704, %v1704
      %v1737 = vpack.c.b16 %v1705, %v1705
      %v1738 = vpack.c.b16 %v1706, %v1706
      %v1740 = vshrl.u32 %v1707, 16
      %v1742 = vrot.slane %v1740, 7
      %v1743 = vshll.u32 %v1707, 16
      %v1745 = vor.u32 %v1742, %v1743
      %v1746 = vrot.slane %v1742, 4
      %v1748 = vshrl.u32 %v1708, 16
      %v1750 = vrot.slane %v1748, 7
      %v1751 = vshll.u32 %v1708, 16
      %v1753 = vor.u32 %v1750, %v1751
      %v1754 = vsel %vm1175, %v1746, %v1753
      %v1755 = vrot.slane %v1750, 4
      %v1757 = vshrl.u32 %v1709, 16
      %v1759 = vrot.slane %v1757, 7
      %v1760 = vshll.u32 %v1709, 16
      %v1762 = vor.u32 %v1759, %v1760
      %v1763 = vrot.slane %v1759, 4
      %v1765 = vshrl.u32 %v1710, 16
      %v1767 = vrot.slane %v1765, 7
      %v1768 = vshll.u32 %v1710, 16
      %v1770 = vor.u32 %v1767, %v1768
      %v1771 = vsel %vm1175, %v1763, %v1770
      %v1772 = vrot.slane %v1767, 4
      %v1774 = vshrl.u32 %v1711, 16
      %v1776 = vrot.slane %v1774, 7
      %v1777 = vshll.u32 %v1711, 16
      %v1779 = vor.u32 %v1776, %v1777
      %v1780 = vrot.slane %v1776, 4
      %v1782 = vshrl.u32 %v1712, 16
      %v1784 = vrot.slane %v1782, 7
      %v1785 = vshll.u32 %v1712, 16
      %v1787 = vor.u32 %v1784, %v1785
      %v1788 = vsel %vm1175, %v1780, %v1787
      %v1789 = vrot.slane %v1784, 4
      %v1791 = vshrl.u32 %v1713, 16
      %v1793 = vrot.slane %v1791, 7
      %v1794 = vshll.u32 %v1713, 16
      %v1796 = vor.u32 %v1793, %v1794
      %v1797 = vrot.slane %v1793, 4
      %v1799 = vshrl.u32 %v1714, 16
      %v1801 = vrot.slane %v1799, 7
      %v1802 = vshll.u32 %v1714, 16
      %v1804 = vor.u32 %v1801, %v1802
      %v1805 = vsel %vm1175, %v1797, %v1804
      %v1806 = vrot.slane %v1801, 4
      %v1808 = vshrl.u32 %v1715, 16
      %v1810 = vrot.slane %v1808, 7
      %v1811 = vshll.u32 %v1715, 16
      %v1813 = vor.u32 %v1810, %v1811
      %v1814 = vrot.slane %v1810, 4
      %v1816 = vshrl.u32 %v1716, 16
      %v1818 = vrot.slane %v1816, 7
      %v1819 = vshll.u32 %v1716, 16
      %v1821 = vor.u32 %v1818, %v1819
      %v1822 = vsel %vm1175, %v1814, %v1821
      %v1823 = vrot.slane %v1818, 4
      %v1825 = vshrl.u32 %v1717, 16
      %v1827 = vrot.slane %v1825, 7
      %v1828 = vshll.u32 %v1717, 16
      %v1830 = vor.u32 %v1827, %v1828
      %v1831 = vrot.slane %v1827, 4
      %v1833 = vshrl.u32 %v1718, 16
      %v1835 = vrot.slane %v1833, 7
      %v1836 = vshll.u32 %v1718, 16
      %v1838 = vor.u32 %v1835, %v1836
      %v1839 = vsel %vm1175, %v1831, %v1838
      %v1840 = vrot.slane %v1835, 4
      %v1842 = vshrl.u32 %v1719, 16
      %v1844 = vrot.slane %v1842, 7
      %v1845 = vshll.u32 %v1719, 16
      %v1847 = vor.u32 %v1844, %v1845
      %v1848 = vrot.slane %v1844, 4
      %v1850 = vshrl.u32 %v1720, 16
      %v1852 = vrot.slane %v1850, 7
      %v1853 = vshll.u32 %v1720, 16
      %v1855 = vor.u32 %v1852, %v1853
      %v1856 = vsel %vm1175, %v1848, %v1855
      %v1857 = vrot.slane %v1852, 4
      %v1859 = vshrl.u32 %v1721, 16
      %v1861 = vrot.slane %v1859, 7
      %v1862 = vshll.u32 %v1721, 16
      %v1864 = vor.u32 %v1861, %v1862
      %v1865 = vrot.slane %v1861, 4
      %v1867 = vshrl.u32 %v1722, 16
      %v1869 = vrot.slane %v1867, 7
      %v1870 = vshll.u32 %v1722, 16
      %v1872 = vor.u32 %v1869, %v1870
      %v1873 = vsel %vm1175, %v1865, %v1872
      %v1874 = vrot.slane %v1869, 4
      %v1876 = vshrl.u32 %v1723, 16
      %v1878 = vrot.slane %v1876, 7
      %v1879 = vshll.u32 %v1723, 16
      %v1881 = vor.u32 %v1878, %v1879
      %v1882 = vrot.slane %v1878, 4
      %v1884 = vshrl.u32 %v1724, 16
      %v1886 = vrot.slane %v1884, 7
      %v1887 = vshll.u32 %v1724, 16
      %v1889 = vor.u32 %v1886, %v1887
      %v1890 = vsel %vm1175, %v1882, %v1889
      %v1891 = vrot.slane %v1886, 4
      %v1893 = vshrl.u32 %v1725, 16
      %v1895 = vrot.slane %v1893, 7
      %v1896 = vshll.u32 %v1725, 16
      %v1898 = vor.u32 %v1895, %v1896
      %v1899 = vrot.slane %v1895, 4
      %v1901 = vshrl.u32 %v1726, 16
      %v1903 = vrot.slane %v1901, 7
      %v1904 = vshll.u32 %v1726, 16
      %v1906 = vor.u32 %v1903, %v1904
      %v1907 = vsel %vm1175, %v1899, %v1906
      %v1908 = vrot.slane %v1903, 4
      %v1910 = vshrl.u32 %v1727, 16
      %v1912 = vrot.slane %v1910, 7
      %v1913 = vshll.u32 %v1727, 16
      %v1915 = vor.u32 %v1912, %v1913
      %v1916 = vrot.slane %v1912, 4
      %v1918 = vshrl.u32 %v1728, 16
      %v1920 = vrot.slane %v1918, 7
      %v1921 = vshll.u32 %v1728, 16
      %v1923 = vor.u32 %v1920, %v1921
      %v1924 = vsel %vm1175, %v1916, %v1923
      %v1925 = vrot.slane %v1920, 4
      %v1927 = vshrl.u32 %v1729, 16
      %v1929 = vrot.slane %v1927, 7
      %v1930 = vshll.u32 %v1729, 16
      %v1932 = vor.u32 %v1929, %v1930
      %v1933 = vrot.slane %v1929, 4
      %v1935 = vshrl.u32 %v1730, 16
      %v1937 = vrot.slane %v1935, 7
      %v1938 = vshll.u32 %v1730, 16
      %v1940 = vor.u32 %v1937, %v1938
      %v1941 = vsel %vm1175, %v1933, %v1940
      %v1942 = vrot.slane %v1937, 4
      %v1944 = vshrl.u32 %v1731, 16
      %v1946 = vrot.slane %v1944, 7
      %v1947 = vshll.u32 %v1731, 16
      %v1949 = vor.u32 %v1946, %v1947
      %v1950 = vrot.slane %v1946, 4
      %v1952 = vshrl.u32 %v1732, 16
      %v1954 = vrot.slane %v1952, 7
      %v1955 = vshll.u32 %v1732, 16
      %v1957 = vor.u32 %v1954, %v1955
      %v1958 = vsel %vm1175, %v1950, %v1957
      %v1959 = vrot.slane %v1954, 4
      %v1961 = vshrl.u32 %v1733, 16
      %v1963 = vrot.slane %v1961, 7
      %v1964 = vshll.u32 %v1733, 16
      %v1966 = vor.u32 %v1963, %v1964
      %v1967 = vrot.slane %v1963, 4
      %v1969 = vshrl.u32 %v1734, 16
      %v1971 = vrot.slane %v1969, 7
      %v1972 = vshll.u32 %v1734, 16
      %v1974 = vor.u32 %v1971, %v1972
      %v1975 = vsel %vm1175, %v1967, %v1974
      %v1976 = vrot.slane %v1971, 4
      %v1978 = vshrl.u32 %v1735, 16
      %v1980 = vrot.slane %v1978, 7
      %v1981 = vshll.u32 %v1735, 16
      %v1983 = vor.u32 %v1980, %v1981
      %v1984 = vrot.slane %v1980, 4
      %v1986 = vshrl.u32 %v1736, 16
      %v1988 = vrot.slane %v1986, 7
      %v1989 = vshll.u32 %v1736, 16
      %v1991 = vor.u32 %v1988, %v1989
      %v1992 = vsel %vm1175, %v1984, %v1991
      %v1993 = vrot.slane %v1988, 4
      %v1995 = vshrl.u32 %v1737, 16
      %v1997 = vrot.slane %v1995, 7
      %v1998 = vshll.u32 %v1737, 16
      %v2000 = vor.u32 %v1997, %v1998
      %v2001 = vrot.slane %v1997, 4
      %v2003 = vshrl.u32 %v1738, 16
      %v2005 = vrot.slane %v2003, 7
      %v2006 = vshll.u32 %v1738, 16
      %v2008 = vor.u32 %v2005, %v2006
      %v2009 = vsel %vm1175, %v2001, %v2008
      %v2010 = vrot.slane %v2005, 4
      %s2059 = scalar_lea.vmem [#allocation3], 12
      %vm2060 = vcmask 27648
      %vm2061 = vmand %vm2060, %vm420
      %v2062 = vld [vmem:[%s2059] sm:$0xf]
      %v2063 = vsel %vm2061, %v1745, %v2062
      %2064 = vst [vmem:[%s2059] sm:$0xf] %v2063
      %2065 = vst.msk [vmem:[%s2059 + $0x4] sm:$0xf] %vm476, %v1754
      %v2066 = vld [vmem:[%s2059 + $0x8] sm:$0x1]
      %v2067 = vsel %vm486, %v1755, %v2066
      %2068 = vst [vmem:[%s2059 + $0x8] sm:$0x1] %v2067
      %v2069 = vld [vmem:[%s2059 + $0xc] sm:$0xf]
      %v2070 = vsel %vm2061, %v1762, %v2069
      %2071 = vst [vmem:[%s2059 + $0xc] sm:$0xf] %v2070
      %2072 = vst.msk [vmem:[%s2059 + $0x10] sm:$0xf] %vm476, %v1771
      %v2073 = vld [vmem:[%s2059 + $0x14] sm:$0x1]
      %v2074 = vsel %vm486, %v1772, %v2073
      %2075 = vst [vmem:[%s2059 + $0x14] sm:$0x1] %v2074
      %v2076 = vld [vmem:[%s2059 + $0x18] sm:$0xf]
      %v2077 = vsel %vm2061, %v1779, %v2076
      %2078 = vst [vmem:[%s2059 + $0x18] sm:$0xf] %v2077
      %2079 = vst.msk [vmem:[%s2059 + $0x1c] sm:$0xf] %vm476, %v1788
      %v2080 = vld [vmem:[%s2059 + $0x20] sm:$0x1]
      %v2081 = vsel %vm486, %v1789, %v2080
      %2082 = vst [vmem:[%s2059 + $0x20] sm:$0x1] %v2081
      %v2083 = vld [vmem:[%s2059 + $0x24] sm:$0xf]
      %v2084 = vsel %vm2061, %v1796, %v2083
      %2085 = vst [vmem:[%s2059 + $0x24] sm:$0xf] %v2084
      %2086 = vst.msk [vmem:[%s2059 + $0x28] sm:$0xf] %vm476, %v1805
      %v2087 = vld [vmem:[%s2059 + $0x2c] sm:$0x1]
      %v2088 = vsel %vm486, %v1806, %v2087
      %2089 = vst [vmem:[%s2059 + $0x2c] sm:$0x1] %v2088
      %v2090 = vld [vmem:[%s2059 + $0x30] sm:$0xf]
      %v2091 = vsel %vm2061, %v1813, %v2090
      %2092 = vst [vmem:[%s2059 + $0x30] sm:$0xf] %v2091
      %2093 = vst.msk [vmem:[%s2059 + $0x34] sm:$0xf] %vm476, %v1822
      %v2094 = vld [vmem:[%s2059 + $0x38] sm:$0x1]
      %v2095 = vsel %vm486, %v1823, %v2094
      %2096 = vst [vmem:[%s2059 + $0x38] sm:$0x1] %v2095
      %v2097 = vld [vmem:[%s2059 + $0x3c] sm:$0xf]
      %v2098 = vsel %vm2061, %v1830, %v2097
      %2099 = vst [vmem:[%s2059 + $0x3c] sm:$0xf] %v2098
      %2100 = vst.msk [vmem:[%s2059 + $0x40] sm:$0xf] %vm476, %v1839
      %v2101 = vld [vmem:[%s2059 + $0x44] sm:$0x1]
      %v2102 = vsel %vm486, %v1840, %v2101
      %2103 = vst [vmem:[%s2059 + $0x44] sm:$0x1] %v2102
      %v2104 = vld [vmem:[%s2059 + $0x48] sm:$0xf]
      %v2105 = vsel %vm2061, %v1847, %v2104
      %2106 = vst [vmem:[%s2059 + $0x48] sm:$0xf] %v2105
      %2107 = vst.msk [vmem:[%s2059 + $0x4c] sm:$0xf] %vm476, %v1856
      %v2108 = vld [vmem:[%s2059 + $0x50] sm:$0x1]
      %v2109 = vsel %vm486, %v1857, %v2108
      %2110 = vst [vmem:[%s2059 + $0x50] sm:$0x1] %v2109
      %v2111 = vld [vmem:[%s2059 + $0x54] sm:$0xf]
      %v2112 = vsel %vm2061, %v1864, %v2111
      %2113 = vst [vmem:[%s2059 + $0x54] sm:$0xf] %v2112
      %2114 = vst.msk [vmem:[%s2059 + $0x58] sm:$0xf] %vm476, %v1873
      %v2115 = vld [vmem:[%s2059 + $0x5c] sm:$0x1]
      %v2116 = vsel %vm486, %v1874, %v2115
      %2117 = vst [vmem:[%s2059 + $0x5c] sm:$0x1] %v2116
      %v2118 = vld [vmem:[%s2059 + $0x60] sm:$0xf]
      %v2119 = vsel %vm2061, %v1881, %v2118
      %2120 = vst [vmem:[%s2059 + $0x60] sm:$0xf] %v2119
      %2121 = vst.msk [vmem:[%s2059 + $0x64] sm:$0xf] %vm476, %v1890
      %v2122 = vld [vmem:[%s2059 + $0x68] sm:$0x1]
      %v2123 = vsel %vm486, %v1891, %v2122
      %2124 = vst [vmem:[%s2059 + $0x68] sm:$0x1] %v2123
      %v2125 = vld [vmem:[%s2059 + $0x6c] sm:$0xf]
      %v2126 = vsel %vm2061, %v1898, %v2125
      %2127 = vst [vmem:[%s2059 + $0x6c] sm:$0xf] %v2126
      %2128 = vst.msk [vmem:[%s2059 + $0x70] sm:$0xf] %vm476, %v1907
      %v2129 = vld [vmem:[%s2059 + $0x74] sm:$0x1]
      %v2130 = vsel %vm486, %v1908, %v2129
      %2131 = vst [vmem:[%s2059 + $0x74] sm:$0x1] %v2130
      %v2132 = vld [vmem:[%s2059 + $0x78] sm:$0xf]
      %v2133 = vsel %vm2061, %v1915, %v2132
      %2134 = vst [vmem:[%s2059 + $0x78] sm:$0xf] %v2133
      %2135 = vst.msk [vmem:[%s2059 + $0x7c] sm:$0xf] %vm476, %v1924
      %v2136 = vld [vmem:[%s2059 + $0x80] sm:$0x1]
      %v2137 = vsel %vm486, %v1925, %v2136
      %2138 = vst [vmem:[%s2059 + $0x80] sm:$0x1] %v2137
      %v2139 = vld [vmem:[%s2059 + $0x84] sm:$0xf]
      %v2140 = vsel %vm2061, %v1932, %v2139
      %2141 = vst [vmem:[%s2059 + $0x84] sm:$0xf] %v2140
      %2142 = vst.msk [vmem:[%s2059 + $0x88] sm:$0xf] %vm476, %v1941
      %v2143 = vld [vmem:[%s2059 + $0x8c] sm:$0x1]
      %v2144 = vsel %vm486, %v1942, %v2143
      %2145 = vst [vmem:[%s2059 + $0x8c] sm:$0x1] %v2144
      %v2146 = vld [vmem:[%s2059 + $0x90] sm:$0xf]
      %v2147 = vsel %vm2061, %v1949, %v2146
      %2148 = vst [vmem:[%s2059 + $0x90] sm:$0xf] %v2147
      %2149 = vst.msk [vmem:[%s2059 + $0x94] sm:$0xf] %vm476, %v1958
      %v2150 = vld [vmem:[%s2059 + $0x98] sm:$0x1]
      %v2151 = vsel %vm486, %v1959, %v2150
      %2152 = vst [vmem:[%s2059 + $0x98] sm:$0x1] %v2151
      %v2153 = vld [vmem:[%s2059 + $0x9c] sm:$0xf]
      %v2154 = vsel %vm2061, %v1966, %v2153
      %2155 = vst [vmem:[%s2059 + $0x9c] sm:$0xf] %v2154
      %2156 = vst.msk [vmem:[%s2059 + $0xa0] sm:$0xf] %vm476, %v1975
      %v2157 = vld [vmem:[%s2059 + $0xa4] sm:$0x1]
      %v2158 = vsel %vm486, %v1976, %v2157
      %2159 = vst [vmem:[%s2059 + $0xa4] sm:$0x1] %v2158
      %v2160 = vld [vmem:[%s2059 + $0xa8] sm:$0xf]
      %v2161 = vsel %vm2061, %v1983, %v2160
      %2162 = vst [vmem:[%s2059 + $0xa8] sm:$0xf] %v2161
      %2163 = vst.msk [vmem:[%s2059 + $0xac] sm:$0xf] %vm476, %v1992
      %v2164 = vld [vmem:[%s2059 + $0xb0] sm:$0x1]
      %v2165 = vsel %vm486, %v1993, %v2164
      %2166 = vst [vmem:[%s2059 + $0xb0] sm:$0x1] %v2165
      %v2167 = vld [vmem:[%s2059 + $0xb4] sm:$0xf]
      %v2168 = vsel %vm2061, %v2000, %v2167
      %2169 = vst [vmem:[%s2059 + $0xb4] sm:$0xf] %v2168
      %2170 = vst.msk [vmem:[%s2059 + $0xb8] sm:$0xf] %vm476, %v2009
      %v2171 = vld [vmem:[%s2059 + $0xbc] sm:$0x1]
      %v2172 = vsel %vm486, %v2010, %v2171
      %2173 = vst [vmem:[%s2059 + $0xbc] sm:$0x1] %v2172
      %v2174 = vld [vmem:[#allocation2] sm:$0xf]
      %v2175 = vld [vmem:[#allocation2 + $0x4] sm:$0xf]
      %v2176 = vld [vmem:[#allocation2 + $0xc] sm:$0xf]
      %v2177 = vld [vmem:[#allocation2 + $0x10] sm:$0xf]
      %v2178 = vld [vmem:[#allocation2 + $0x18] sm:$0xf]
      %v2179 = vld [vmem:[#allocation2 + $0x1c] sm:$0xf]
      %v2180 = vld [vmem:[#allocation2 + $0x24] sm:$0xf]
      %v2181 = vld [vmem:[#allocation2 + $0x28] sm:$0xf]
      %v2182 = vld [vmem:[#allocation2 + $0x30] sm:$0xf]
      %v2183 = vld [vmem:[#allocation2 + $0x34] sm:$0xf]
      %v2184 = vld [vmem:[#allocation2 + $0x3c] sm:$0xf]
      %v2185 = vld [vmem:[#allocation2 + $0x40] sm:$0xf]
      %v2186 = vld [vmem:[#allocation2 + $0x48] sm:$0xf]
      %v2187 = vld [vmem:[#allocation2 + $0x4c] sm:$0xf]
      %v2188 = vld [vmem:[#allocation2 + $0x54] sm:$0xf]
      %v2189 = vld [vmem:[#allocation2 + $0x58] sm:$0xf]
      %v2190 = vld [vmem:[#allocation2 + $0x60] sm:$0xf]
      %v2191 = vld [vmem:[#allocation2 + $0x64] sm:$0xf]
      %v2192 = vld [vmem:[#allocation2 + $0x6c] sm:$0xf]
      %v2193 = vld [vmem:[#allocation2 + $0x70] sm:$0xf]
      %v2194 = vld [vmem:[#allocation2 + $0x78] sm:$0xf]
      %v2195 = vld [vmem:[#allocation2 + $0x7c] sm:$0xf]
      %v2196 = vld [vmem:[#allocation2 + $0x84] sm:$0xf]
      %v2197 = vld [vmem:[#allocation2 + $0x88] sm:$0xf]
      %v2198 = vld [vmem:[#allocation2 + $0x90] sm:$0xf]
      %v2199 = vld [vmem:[#allocation2 + $0x94] sm:$0xf]
      %v2200 = vld [vmem:[#allocation2 + $0x9c] sm:$0xf]
      %v2201 = vld [vmem:[#allocation2 + $0xa0] sm:$0xf]
      %v2202 = vld [vmem:[#allocation2 + $0xa8] sm:$0xf]
      %v2203 = vld [vmem:[#allocation2 + $0xac] sm:$0xf]
      %v2204 = vld [vmem:[#allocation2 + $0xb4] sm:$0xf]
      %v2205 = vld [vmem:[#allocation2 + $0xb8] sm:$0xf]
      %v2206 = vld [vmem:[#allocation2 + $0xc0] sm:$0xf]
      %v2207 = vld [vmem:[#allocation2 + $0xc4] sm:$0xf]
      %v2208 = vld [vmem:[#allocation2 + $0xcc] sm:$0xf]
      %v2209 = vld [vmem:[#allocation2 + $0xd0] sm:$0xf]
      %v2210 = vld [vmem:[#allocation2 + $0x8] sm:$0x1]
      %v2211 = vld [vmem:[#allocation2 + $0x14] sm:$0x1]
      %v2212 = vld [vmem:[#allocation2 + $0x20] sm:$0x1]
      %v2213 = vld [vmem:[#allocation2 + $0x2c] sm:$0x1]
      %v2214 = vld [vmem:[#allocation2 + $0x38] sm:$0x1]
      %v2215 = vld [vmem:[#allocation2 + $0x44] sm:$0x1]
      %v2216 = vld [vmem:[#allocation2 + $0x50] sm:$0x1]
      %v2217 = vld [vmem:[#allocation2 + $0x5c] sm:$0x1]
      %v2218 = vld [vmem:[#allocation2 + $0x68] sm:$0x1]
      %v2219 = vld [vmem:[#allocation2 + $0x74] sm:$0x1]
      %v2220 = vld [vmem:[#allocation2 + $0x80] sm:$0x1]
      %v2221 = vld [vmem:[#allocation2 + $0x8c] sm:$0x1]
      %v2222 = vld [vmem:[#allocation2 + $0x98] sm:$0x1]
      %v2223 = vld [vmem:[#allocation2 + $0xa4] sm:$0x1]
      %v2224 = vld [vmem:[#allocation2 + $0xb0] sm:$0x1]
      %v2225 = vld [vmem:[#allocation2 + $0xbc] sm:$0x1]
      %v2226 = vld [vmem:[#allocation2 + $0xc8] sm:$0x1]
      %v2227 = vld [vmem:[#allocation2 + $0xd4] sm:$0x1]
      %v2228 = vld [vmem:[#allocation2] sm:$0xe]
      %v2229 = vld [vmem:[#allocation2 + $0xc] sm:$0xe]
      %v2230 = vld [vmem:[#allocation2 + $0x18] sm:$0xe]
      %v2231 = vld [vmem:[#allocation2 + $0x24] sm:$0xe]
      %v2232 = vld [vmem:[#allocation2 + $0x30] sm:$0xe]
      %v2233 = vld [vmem:[#allocation2 + $0x3c] sm:$0xe]
      %v2234 = vld [vmem:[#allocation2 + $0x48] sm:$0xe]
      %v2235 = vld [vmem:[#allocation2 + $0x54] sm:$0xe]
      %v2236 = vld [vmem:[#allocation2 + $0x60] sm:$0xe]
      %v2237 = vld [vmem:[#allocation2 + $0x6c] sm:$0xe]
      %v2238 = vld [vmem:[#allocation2 + $0x78] sm:$0xe]
      %v2239 = vld [vmem:[#allocation2 + $0x84] sm:$0xe]
      %v2240 = vld [vmem:[#allocation2 + $0x90] sm:$0xe]
      %v2241 = vld [vmem:[#allocation2 + $0x9c] sm:$0xe]
      %v2242 = vld [vmem:[#allocation2 + $0xa8] sm:$0xe]
      %v2243 = vld [vmem:[#allocation2 + $0xb4] sm:$0xe]
      %v2244 = vld [vmem:[#allocation2 + $0xc0] sm:$0xe]
      %v2245 = vld [vmem:[#allocation2 + $0xcc] sm:$0xe]
      %v2282 = vunpack.c.l.b16 %v2174
      %v2283 = vunpack.c.l.b16 %v2175
      %v2284 = vunpack.c.l.b16 %v2176
      %v2285 = vunpack.c.l.b16 %v2177
      %v2286 = vunpack.c.l.b16 %v2178
      %v2287 = vunpack.c.l.b16 %v2179
      %v2288 = vunpack.c.l.b16 %v2180
      %v2289 = vunpack.c.l.b16 %v2181
      %v2290 = vunpack.c.l.b16 %v2182
      %v2291 = vunpack.c.l.b16 %v2183
      %v2292 = vunpack.c.l.b16 %v2184
      %v2293 = vunpack.c.l.b16 %v2185
      %v2294 = vunpack.c.l.b16 %v2186
      %v2295 = vunpack.c.l.b16 %v2187
      %v2296 = vunpack.c.l.b16 %v2188
      %v2297 = vunpack.c.l.b16 %v2189
      %v2298 = vunpack.c.l.b16 %v2190
      %v2299 = vunpack.c.l.b16 %v2191
      %v2300 = vunpack.c.l.b16 %v2192
      %v2301 = vunpack.c.l.b16 %v2193
      %v2302 = vunpack.c.l.b16 %v2194
      %v2303 = vunpack.c.l.b16 %v2195
      %v2304 = vunpack.c.l.b16 %v2196
      %v2305 = vunpack.c.l.b16 %v2197
      %v2306 = vunpack.c.l.b16 %v2198
      %v2307 = vunpack.c.l.b16 %v2199
      %v2308 = vunpack.c.l.b16 %v2200
      %v2309 = vunpack.c.l.b16 %v2201
      %v2310 = vunpack.c.l.b16 %v2202
      %v2311 = vunpack.c.l.b16 %v2203
      %v2312 = vunpack.c.l.b16 %v2204
      %v2313 = vunpack.c.l.b16 %v2205
      %v2314 = vunpack.c.l.b16 %v2206
      %v2315 = vunpack.c.l.b16 %v2207
      %v2316 = vunpack.c.l.b16 %v2208
      %v2317 = vunpack.c.l.b16 %v2209
      %v2318 = vpack.c.b16 %v2283, %v2282
      %v2319 = vpack.c.b16 %v2285, %v2284
      %v2320 = vpack.c.b16 %v2287, %v2286
      %v2321 = vpack.c.b16 %v2289, %v2288
      %v2322 = vpack.c.b16 %v2291, %v2290
      %v2323 = vpack.c.b16 %v2293, %v2292
      %v2324 = vpack.c.b16 %v2295, %v2294
      %v2325 = vpack.c.b16 %v2297, %v2296
      %v2326 = vpack.c.b16 %v2299, %v2298
      %v2327 = vpack.c.b16 %v2301, %v2300
      %v2328 = vpack.c.b16 %v2303, %v2302
      %v2329 = vpack.c.b16 %v2305, %v2304
      %v2330 = vpack.c.b16 %v2307, %v2306
      %v2331 = vpack.c.b16 %v2309, %v2308
      %v2332 = vpack.c.b16 %v2311, %v2310
      %v2333 = vpack.c.b16 %v2313, %v2312
      %v2334 = vpack.c.b16 %v2315, %v2314
      %v2335 = vpack.c.b16 %v2317, %v2316
      %v2354 = vunpack.c.l.b16 %v2210
      %v2355 = vunpack.c.l.b16 %v2211
      %v2356 = vunpack.c.l.b16 %v2212
      %v2357 = vunpack.c.l.b16 %v2213
      %v2358 = vunpack.c.l.b16 %v2214
      %v2359 = vunpack.c.l.b16 %v2215
      %v2360 = vunpack.c.l.b16 %v2216
      %v2361 = vunpack.c.l.b16 %v2217
      %v2362 = vunpack.c.l.b16 %v2218
      %v2363 = vunpack.c.l.b16 %v2219
      %v2364 = vunpack.c.l.b16 %v2220
      %v2365 = vunpack.c.l.b16 %v2221
      %v2366 = vunpack.c.l.b16 %v2222
      %v2367 = vunpack.c.l.b16 %v2223
      %v2368 = vunpack.c.l.b16 %v2224
      %v2369 = vunpack.c.l.b16 %v2225
      %v2370 = vunpack.c.l.b16 %v2226
      %v2371 = vunpack.c.l.b16 %v2227
      %v2372 = vpack.c.b16 %v2354, %v2354
      %v2373 = vpack.c.b16 %v2355, %v2355
      %v2374 = vpack.c.b16 %v2356, %v2356
      %v2375 = vpack.c.b16 %v2357, %v2357
      %v2376 = vpack.c.b16 %v2358, %v2358
      %v2377 = vpack.c.b16 %v2359, %v2359
      %v2378 = vpack.c.b16 %v2360, %v2360
      %v2379 = vpack.c.b16 %v2361, %v2361
      %v2380 = vpack.c.b16 %v2362, %v2362
      %v2381 = vpack.c.b16 %v2363, %v2363
      %v2382 = vpack.c.b16 %v2364, %v2364
      %v2383 = vpack.c.b16 %v2365, %v2365
      %v2384 = vpack.c.b16 %v2366, %v2366
      %v2385 = vpack.c.b16 %v2367, %v2367
      %v2386 = vpack.c.b16 %v2368, %v2368
      %v2387 = vpack.c.b16 %v2369, %v2369
      %v2388 = vpack.c.b16 %v2370, %v2370
      %v2389 = vpack.c.b16 %v2371, %v2371
      %vm2390 = vsmask.f32 7424
      %v2392 = vshrl.u32 %v2318, 16
      %v2394 = vshll.u32 %v2318, 16
      %v2396 = vrot.slane %v2394, 1
      %v2397 = vor.u32 %v2392, %v2396
      %v2399 = vshll.u32 %v2372, 16
      %v2401 = vrot.slane %v2399, 1
      %v2402 = vsel %vm2390, %v2397, %v2401
      %v2404 = vshrl.u32 %v2319, 16
      %v2406 = vshll.u32 %v2319, 16
      %v2408 = vrot.slane %v2406, 1
      %v2409 = vor.u32 %v2404, %v2408
      %v2411 = vshll.u32 %v2373, 16
      %v2413 = vrot.slane %v2411, 1
      %v2414 = vsel %vm2390, %v2409, %v2413
      %v2416 = vshrl.u32 %v2320, 16
      %v2418 = vshll.u32 %v2320, 16
      %v2420 = vrot.slane %v2418, 1
      %v2421 = vor.u32 %v2416, %v2420
      %v2423 = vshll.u32 %v2374, 16
      %v2425 = vrot.slane %v2423, 1
      %v2426 = vsel %vm2390, %v2421, %v2425
      %v2428 = vshrl.u32 %v2321, 16
      %v2430 = vshll.u32 %v2321, 16
      %v2432 = vrot.slane %v2430, 1
      %v2433 = vor.u32 %v2428, %v2432
      %v2435 = vshll.u32 %v2375, 16
      %v2437 = vrot.slane %v2435, 1
      %v2438 = vsel %vm2390, %v2433, %v2437
      %v2440 = vshrl.u32 %v2322, 16
      %v2442 = vshll.u32 %v2322, 16
      %v2444 = vrot.slane %v2442, 1
      %v2445 = vor.u32 %v2440, %v2444
      %v2447 = vshll.u32 %v2376, 16
      %v2449 = vrot.slane %v2447, 1
      %v2450 = vsel %vm2390, %v2445, %v2449
      %v2452 = vshrl.u32 %v2323, 16
      %v2454 = vshll.u32 %v2323, 16
      %v2456 = vrot.slane %v2454, 1
      %v2457 = vor.u32 %v2452, %v2456
      %v2459 = vshll.u32 %v2377, 16
      %v2461 = vrot.slane %v2459, 1
      %v2462 = vsel %vm2390, %v2457, %v2461
      %v2464 = vshrl.u32 %v2324, 16
      %v2466 = vshll.u32 %v2324, 16
      %v2468 = vrot.slane %v2466, 1
      %v2469 = vor.u32 %v2464, %v2468
      %v2471 = vshll.u32 %v2378, 16
      %v2473 = vrot.slane %v2471, 1
      %v2474 = vsel %vm2390, %v2469, %v2473
      %v2476 = vshrl.u32 %v2325, 16
      %v2478 = vshll.u32 %v2325, 16
      %v2480 = vrot.slane %v2478, 1
      %v2481 = vor.u32 %v2476, %v2480
      %v2483 = vshll.u32 %v2379, 16
      %v2485 = vrot.slane %v2483, 1
      %v2486 = vsel %vm2390, %v2481, %v2485
      %v2488 = vshrl.u32 %v2326, 16
      %v2490 = vshll.u32 %v2326, 16
      %v2492 = vrot.slane %v2490, 1
      %v2493 = vor.u32 %v2488, %v2492
      %v2495 = vshll.u32 %v2380, 16
      %v2497 = vrot.slane %v2495, 1
      %v2498 = vsel %vm2390, %v2493, %v2497
      %v2500 = vshrl.u32 %v2327, 16
      %v2502 = vshll.u32 %v2327, 16
      %v2504 = vrot.slane %v2502, 1
      %v2505 = vor.u32 %v2500, %v2504
      %v2507 = vshll.u32 %v2381, 16
      %v2509 = vrot.slane %v2507, 1
      %v2510 = vsel %vm2390, %v2505, %v2509
      %v2512 = vshrl.u32 %v2328, 16
      %v2514 = vshll.u32 %v2328, 16
      %v2516 = vrot.slane %v2514, 1
      %v2517 = vor.u32 %v2512, %v2516
      %v2519 = vshll.u32 %v2382, 16
      %v2521 = vrot.slane %v2519, 1
      %v2522 = vsel %vm2390, %v2517, %v2521
      %v2524 = vshrl.u32 %v2329, 16
      %v2526 = vshll.u32 %v2329, 16
      %v2528 = vrot.slane %v2526, 1
      %v2529 = vor.u32 %v2524, %v2528
      %v2531 = vshll.u32 %v2383, 16
      %v2533 = vrot.slane %v2531, 1
      %v2534 = vsel %vm2390, %v2529, %v2533
      %v2536 = vshrl.u32 %v2330, 16
      %v2538 = vshll.u32 %v2330, 16
      %v2540 = vrot.slane %v2538, 1
      %v2541 = vor.u32 %v2536, %v2540
      %v2543 = vshll.u32 %v2384, 16
      %v2545 = vrot.slane %v2543, 1
      %v2546 = vsel %vm2390, %v2541, %v2545
      %v2548 = vshrl.u32 %v2331, 16
      %v2550 = vshll.u32 %v2331, 16
      %v2552 = vrot.slane %v2550, 1
      %v2553 = vor.u32 %v2548, %v2552
      %v2555 = vshll.u32 %v2385, 16
      %v2557 = vrot.slane %v2555, 1
      %v2558 = vsel %vm2390, %v2553, %v2557
      %v2560 = vshrl.u32 %v2332, 16
      %v2562 = vshll.u32 %v2332, 16
      %v2564 = vrot.slane %v2562, 1
      %v2565 = vor.u32 %v2560, %v2564
      %v2567 = vshll.u32 %v2386, 16
      %v2569 = vrot.slane %v2567, 1
      %v2570 = vsel %vm2390, %v2565, %v2569
      %v2572 = vshrl.u32 %v2333, 16
      %v2574 = vshll.u32 %v2333, 16
      %v2576 = vrot.slane %v2574, 1
      %v2577 = vor.u32 %v2572, %v2576
      %v2579 = vshll.u32 %v2387, 16
      %v2581 = vrot.slane %v2579, 1
      %v2582 = vsel %vm2390, %v2577, %v2581
      %v2584 = vshrl.u32 %v2334, 16
      %v2586 = vshll.u32 %v2334, 16
      %v2588 = vrot.slane %v2586, 1
      %v2589 = vor.u32 %v2584, %v2588
      %v2591 = vshll.u32 %v2388, 16
      %v2593 = vrot.slane %v2591, 1
      %v2594 = vsel %vm2390, %v2589, %v2593
      %v2596 = vshrl.u32 %v2335, 16
      %v2598 = vshll.u32 %v2335, 16
      %v2600 = vrot.slane %v2598, 1
      %v2601 = vor.u32 %v2596, %v2600
      %v2603 = vshll.u32 %v2389, 16
      %v2605 = vrot.slane %v2603, 1
      %v2606 = vsel %vm2390, %v2601, %v2605
      %2607 = vrot.lane.b32.xlu0 %v2402, 6
      %v2608 = vpop.permute.xlu0 %2607
      %2609 = vrot.lane.b32.xlu0 %v2414, 6
      %v2610 = vpop.permute.xlu0 %2609
      %2611 = vrot.lane.b32.xlu0 %v2426, 6
      %v2612 = vpop.permute.xlu0 %2611
      %2613 = vrot.lane.b32.xlu0 %v2438, 6
      %v2614 = vpop.permute.xlu0 %2613
      %2615 = vrot.lane.b32.xlu0 %v2450, 6
      %v2616 = vpop.permute.xlu0 %2615
      %2617 = vrot.lane.b32.xlu0 %v2462, 6
      %v2618 = vpop.permute.xlu0 %2617
      %2619 = vrot.lane.b32.xlu0 %v2474, 6
      %v2620 = vpop.permute.xlu0 %2619
      %2621 = vrot.lane.b32.xlu0 %v2486, 6
      %v2622 = vpop.permute.xlu0 %2621
      %2623 = vrot.lane.b32.xlu0 %v2498, 6
      %v2624 = vpop.permute.xlu0 %2623
      %2625 = vrot.lane.b32.xlu0 %v2510, 6
      %v2626 = vpop.permute.xlu0 %2625
      %2627 = vrot.lane.b32.xlu0 %v2522, 6
      %v2628 = vpop.permute.xlu0 %2627
      %2629 = vrot.lane.b32.xlu0 %v2534, 6
      %v2630 = vpop.permute.xlu0 %2629
      %2631 = vrot.lane.b32.xlu0 %v2546, 6
      %v2632 = vpop.permute.xlu0 %2631
      %2633 = vrot.lane.b32.xlu0 %v2558, 6
      %v2634 = vpop.permute.xlu0 %2633
      %2635 = vrot.lane.b32.xlu0 %v2570, 6
      %v2636 = vpop.permute.xlu0 %2635
      %2637 = vrot.lane.b32.xlu0 %v2582, 6
      %v2638 = vpop.permute.xlu0 %2637
      %2639 = vrot.lane.b32.xlu0 %v2594, 6
      %v2640 = vpop.permute.xlu0 %2639
      %2641 = vrot.lane.b32.xlu0 %v2606, 6
      %v2642 = vpop.permute.xlu0 %2641
      %v2661 = vunpack.c.l.b16 %v2228
      %v2662 = vunpack.c.l.b16 %v2229
      %v2663 = vunpack.c.l.b16 %v2230
      %v2664 = vunpack.c.l.b16 %v2231
      %v2665 = vunpack.c.l.b16 %v2232
      %v2666 = vunpack.c.l.b16 %v2233
      %v2667 = vunpack.c.l.b16 %v2234
      %v2668 = vunpack.c.l.b16 %v2235
      %v2669 = vunpack.c.l.b16 %v2236
      %v2670 = vunpack.c.l.b16 %v2237
      %v2671 = vunpack.c.l.b16 %v2238
      %v2672 = vunpack.c.l.b16 %v2239
      %v2673 = vunpack.c.l.b16 %v2240
      %v2674 = vunpack.c.l.b16 %v2241
      %v2675 = vunpack.c.l.b16 %v2242
      %v2676 = vunpack.c.l.b16 %v2243
      %v2677 = vunpack.c.l.b16 %v2244
      %v2678 = vunpack.c.l.b16 %v2245
      %v2679 = vpack.c.b16 %v2283, %v2661
      %v2680 = vpack.c.b16 %v2285, %v2662
      %v2681 = vpack.c.b16 %v2287, %v2663
      %v2682 = vpack.c.b16 %v2289, %v2664
      %v2683 = vpack.c.b16 %v2291, %v2665
      %v2684 = vpack.c.b16 %v2293, %v2666
      %v2685 = vpack.c.b16 %v2295, %v2667
      %v2686 = vpack.c.b16 %v2297, %v2668
      %v2687 = vpack.c.b16 %v2299, %v2669
      %v2688 = vpack.c.b16 %v2301, %v2670
      %v2689 = vpack.c.b16 %v2303, %v2671
      %v2690 = vpack.c.b16 %v2305, %v2672
      %v2691 = vpack.c.b16 %v2307, %v2673
      %v2692 = vpack.c.b16 %v2309, %v2674
      %v2693 = vpack.c.b16 %v2311, %v2675
      %v2694 = vpack.c.b16 %v2313, %v2676
      %v2695 = vpack.c.b16 %v2315, %v2677
      %v2696 = vpack.c.b16 %v2317, %v2678
      %vm2697 = vcmask 1046528
      %v2698 = vrot.slane %v2679, 1
      %v2699 = vrot.slane %v2372, 1
      %v2700 = vsel %vm2697, %v2698, %v2699
      %v2701 = vrot.slane %v2680, 1
      %v2702 = vrot.slane %v2373, 1
      %v2703 = vsel %vm2697, %v2701, %v2702
      %v2704 = vrot.slane %v2681, 1
      %v2705 = vrot.slane %v2374, 1
      %v2706 = vsel %vm2697, %v2704, %v2705
      %v2707 = vrot.slane %v2682, 1
      %v2708 = vrot.slane %v2375, 1
      %v2709 = vsel %vm2697, %v2707, %v2708
      %v2710 = vrot.slane %v2683, 1
      %v2711 = vrot.slane %v2376, 1
      %v2712 = vsel %vm2697, %v2710, %v2711
      %v2713 = vrot.slane %v2684, 1
      %v2714 = vrot.slane %v2377, 1
      %v2715 = vsel %vm2697, %v2713, %v2714
      %v2716 = vrot.slane %v2685, 1
      %v2717 = vrot.slane %v2378, 1
      %v2718 = vsel %vm2697, %v2716, %v2717
      %v2719 = vrot.slane %v2686, 1
      %v2720 = vrot.slane %v2379, 1
      %v2721 = vsel %vm2697, %v2719, %v2720
      %v2722 = vrot.slane %v2687, 1
      %v2723 = vrot.slane %v2380, 1
      %v2724 = vsel %vm2697, %v2722, %v2723
      %v2725 = vrot.slane %v2688, 1
      %v2726 = vrot.slane %v2381, 1
      %v2727 = vsel %vm2697, %v2725, %v2726
      %v2728 = vrot.slane %v2689, 1
      %v2729 = vrot.slane %v2382, 1
      %v2730 = vsel %vm2697, %v2728, %v2729
      %v2731 = vrot.slane %v2690, 1
      %v2732 = vrot.slane %v2383, 1
      %v2733 = vsel %vm2697, %v2731, %v2732
      %v2734 = vrot.slane %v2691, 1
      %v2735 = vrot.slane %v2384, 1
      %v2736 = vsel %vm2697, %v2734, %v2735
      %v2737 = vrot.slane %v2692, 1
      %v2738 = vrot.slane %v2385, 1
      %v2739 = vsel %vm2697, %v2737, %v2738
      %v2740 = vrot.slane %v2693, 1
      %v2741 = vrot.slane %v2386, 1
      %v2742 = vsel %vm2697, %v2740, %v2741
      %v2743 = vrot.slane %v2694, 1
      %v2744 = vrot.slane %v2387, 1
      %v2745 = vsel %vm2697, %v2743, %v2744
      %v2746 = vrot.slane %v2695, 1
      %v2747 = vrot.slane %v2388, 1
      %v2748 = vsel %vm2697, %v2746, %v2747
      %v2749 = vrot.slane %v2696, 1
      %v2750 = vrot.slane %v2389, 1
      %v2751 = vsel %vm2697, %v2749, %v2750
      %2752 = vrot.lane.b32.xlu0 %v2700, 12
      %v2753 = vpop.permute.xlu0 %2752
      %2754 = vrot.lane.b32.xlu0 %v2703, 12
      %v2755 = vpop.permute.xlu0 %2754
      %2756 = vrot.lane.b32.xlu0 %v2706, 12
      %v2757 = vpop.permute.xlu0 %2756
      %2758 = vrot.lane.b32.xlu0 %v2709, 12
      %v2759 = vpop.permute.xlu0 %2758
      %2760 = vrot.lane.b32.xlu0 %v2712, 12
      %v2761 = vpop.permute.xlu0 %2760
      %2762 = vrot.lane.b32.xlu0 %v2715, 12
      %v2763 = vpop.permute.xlu0 %2762
      %2764 = vrot.lane.b32.xlu0 %v2718, 12
      %v2765 = vpop.permute.xlu0 %2764
      %2766 = vrot.lane.b32.xlu0 %v2721, 12
      %v2767 = vpop.permute.xlu0 %2766
      %2768 = vrot.lane.b32.xlu0 %v2724, 12
      %v2769 = vpop.permute.xlu0 %2768
      %2770 = vrot.lane.b32.xlu0 %v2727, 12
      %v2771 = vpop.permute.xlu0 %2770
      %2772 = vrot.lane.b32.xlu0 %v2730, 12
      %v2773 = vpop.permute.xlu0 %2772
      %2774 = vrot.lane.b32.xlu0 %v2733, 12
      %v2775 = vpop.permute.xlu0 %2774
      %2776 = vrot.lane.b32.xlu0 %v2736, 12
      %v2777 = vpop.permute.xlu0 %2776
      %2778 = vrot.lane.b32.xlu0 %v2739, 12
      %v2779 = vpop.permute.xlu0 %2778
      %2780 = vrot.lane.b32.xlu0 %v2742, 12
      %v2781 = vpop.permute.xlu0 %2780
      %2782 = vrot.lane.b32.xlu0 %v2745, 12
      %v2783 = vpop.permute.xlu0 %2782
      %2784 = vrot.lane.b32.xlu0 %v2748, 12
      %v2785 = vpop.permute.xlu0 %2784
      %2786 = vrot.lane.b32.xlu0 %v2751, 12
      %v2787 = vpop.permute.xlu0 %2786
      %vm2788 = vcmask 48128
      %v2790 = vsel %vm2788, %v2318, %v2608
      %v2792 = vsel %vm2788, %v2319, %v2610
      %v2794 = vsel %vm2788, %v2320, %v2612
      %v2796 = vsel %vm2788, %v2321, %v2614
      %v2798 = vsel %vm2788, %v2322, %v2616
      %v2800 = vsel %vm2788, %v2323, %v2618
      %v2802 = vsel %vm2788, %v2324, %v2620
      %v2804 = vsel %vm2788, %v2325, %v2622
      %v2806 = vsel %vm2788, %v2326, %v2624
      %v2808 = vsel %vm2788, %v2327, %v2626
      %v2810 = vsel %vm2788, %v2328, %v2628
      %v2812 = vsel %vm2788, %v2329, %v2630
      %v2814 = vsel %vm2788, %v2330, %v2632
      %v2816 = vsel %vm2788, %v2331, %v2634
      %v2818 = vsel %vm2788, %v2332, %v2636
      %v2820 = vsel %vm2788, %v2333, %v2638
      %v2822 = vsel %vm2788, %v2334, %v2640
      %v2824 = vsel %vm2788, %v2335, %v2642
      %vm2825 = vcmask 97280
      %v2827 = vsel %vm2825, %v2790, %v2753
      %v2829 = vsel %vm2825, %v2792, %v2755
      %v2831 = vsel %vm2825, %v2794, %v2757
      %v2833 = vsel %vm2825, %v2796, %v2759
      %v2835 = vsel %vm2825, %v2798, %v2761
      %v2837 = vsel %vm2825, %v2800, %v2763
      %v2839 = vsel %vm2825, %v2802, %v2765
      %v2841 = vsel %vm2825, %v2804, %v2767
      %v2843 = vsel %vm2825, %v2806, %v2769
      %v2845 = vsel %vm2825, %v2808, %v2771
      %v2847 = vsel %vm2825, %v2810, %v2773
      %v2849 = vsel %vm2825, %v2812, %v2775
      %v2851 = vsel %vm2825, %v2814, %v2777
      %v2853 = vsel %vm2825, %v2816, %v2779
      %v2855 = vsel %vm2825, %v2818, %v2781
      %v2857 = vsel %vm2825, %v2820, %v2783
      %v2859 = vsel %vm2825, %v2822, %v2785
      %v2861 = vsel %vm2825, %v2824, %v2787
      %v2880 = vunpack.c.l.b16 %v2827
      %v2881 = vunpack.c.h.b16 %v2827
      %v2882 = vunpack.c.l.b16 %v2829
      %v2883 = vunpack.c.h.b16 %v2829
      %v2884 = vunpack.c.l.b16 %v2831
      %v2885 = vunpack.c.h.b16 %v2831
      %v2886 = vunpack.c.l.b16 %v2833
      %v2887 = vunpack.c.h.b16 %v2833
      %v2888 = vunpack.c.l.b16 %v2835
      %v2889 = vunpack.c.h.b16 %v2835
      %v2890 = vunpack.c.l.b16 %v2837
      %v2891 = vunpack.c.h.b16 %v2837
      %v2892 = vunpack.c.l.b16 %v2839
      %v2893 = vunpack.c.h.b16 %v2839
      %v2894 = vunpack.c.l.b16 %v2841
      %v2895 = vunpack.c.h.b16 %v2841
      %v2896 = vunpack.c.l.b16 %v2843
      %v2897 = vunpack.c.h.b16 %v2843
      %v2898 = vunpack.c.l.b16 %v2845
      %v2899 = vunpack.c.h.b16 %v2845
      %v2900 = vunpack.c.l.b16 %v2847
      %v2901 = vunpack.c.h.b16 %v2847
      %v2902 = vunpack.c.l.b16 %v2849
      %v2903 = vunpack.c.h.b16 %v2849
      %v2904 = vunpack.c.l.b16 %v2851
      %v2905 = vunpack.c.h.b16 %v2851
      %v2906 = vunpack.c.l.b16 %v2853
      %v2907 = vunpack.c.h.b16 %v2853
      %v2908 = vunpack.c.l.b16 %v2855
      %v2909 = vunpack.c.h.b16 %v2855
      %v2910 = vunpack.c.l.b16 %v2857
      %v2911 = vunpack.c.h.b16 %v2857
      %v2912 = vunpack.c.l.b16 %v2859
      %v2913 = vunpack.c.h.b16 %v2859
      %v2914 = vunpack.c.l.b16 %v2861
      %v2915 = vunpack.c.h.b16 %v2861
      %v2916 = vpack.c.b16 %v2880, %v2880
      %v2917 = vpack.c.b16 %v2881, %v2881
      %v2918 = vpack.c.b16 %v2882, %v2882
      %v2919 = vpack.c.b16 %v2883, %v2883
      %v2920 = vpack.c.b16 %v2884, %v2884
      %v2921 = vpack.c.b16 %v2885, %v2885
      %v2922 = vpack.c.b16 %v2886, %v2886
      %v2923 = vpack.c.b16 %v2887, %v2887
      %v2924 = vpack.c.b16 %v2888, %v2888
      %v2925 = vpack.c.b16 %v2889, %v2889
      %v2926 = vpack.c.b16 %v2890, %v2890
      %v2927 = vpack.c.b16 %v2891, %v2891
      %v2928 = vpack.c.b16 %v2892, %v2892
      %v2929 = vpack.c.b16 %v2893, %v2893
      %v2930 = vpack.c.b16 %v2894, %v2894
      %v2931 = vpack.c.b16 %v2895, %v2895
      %v2932 = vpack.c.b16 %v2896, %v2896
      %v2933 = vpack.c.b16 %v2897, %v2897
      %v2934 = vpack.c.b16 %v2898, %v2898
      %v2935 = vpack.c.b16 %v2899, %v2899
      %v2936 = vpack.c.b16 %v2900, %v2900
      %v2937 = vpack.c.b16 %v2901, %v2901
      %v2938 = vpack.c.b16 %v2902, %v2902
      %v2939 = vpack.c.b16 %v2903, %v2903
      %v2940 = vpack.c.b16 %v2904, %v2904
      %v2941 = vpack.c.b16 %v2905, %v2905
      %v2942 = vpack.c.b16 %v2906, %v2906
      %v2943 = vpack.c.b16 %v2907, %v2907
      %v2944 = vpack.c.b16 %v2908, %v2908
      %v2945 = vpack.c.b16 %v2909, %v2909
      %v2946 = vpack.c.b16 %v2910, %v2910
      %v2947 = vpack.c.b16 %v2911, %v2911
      %v2948 = vpack.c.b16 %v2912, %v2912
      %v2949 = vpack.c.b16 %v2913, %v2913
      %v2950 = vpack.c.b16 %v2914, %v2914
      %v2951 = vpack.c.b16 %v2915, %v2915
      %vm2988 = vcmask 142336
      %2989 = vst.msk [vmem:[#allocation5] sm:$0xf] %vm2988, %v2916
      %2990 = vst.msk [vmem:[#allocation5 + $0x4] sm:$0xf] %vm2988, %v2917
      %2991 = vst.msk [vmem:[#allocation5 + $0x8] sm:$0xf] %vm2988, %v2918
      %2992 = vst.msk [vmem:[#allocation5 + $0xc] sm:$0xf] %vm2988, %v2919
      %2993 = vst.msk [vmem:[#allocation5 + $0x10] sm:$0xf] %vm2988, %v2920
      %2994 = vst.msk [vmem:[#allocation5 + $0x14] sm:$0xf] %vm2988, %v2921
      %2995 = vst.msk [vmem:[#allocation5 + $0x18] sm:$0xf] %vm2988, %v2922
      %2996 = vst.msk [vmem:[#allocation5 + $0x1c] sm:$0xf] %vm2988, %v2923
      %2997 = vst.msk [vmem:[#allocation5 + $0x20] sm:$0xf] %vm2988, %v2924
      %2998 = vst.msk [vmem:[#allocation5 + $0x24] sm:$0xf] %vm2988, %v2925
      %2999 = vst.msk [vmem:[#allocation5 + $0x28] sm:$0xf] %vm2988, %v2926
      %3000 = vst.msk [vmem:[#allocation5 + $0x2c] sm:$0xf] %vm2988, %v2927
      %3001 = vst.msk [vmem:[#allocation5 + $0x30] sm:$0xf] %vm2988, %v2928
      %3002 = vst.msk [vmem:[#allocation5 + $0x34] sm:$0xf] %vm2988, %v2929
      %3003 = vst.msk [vmem:[#allocation5 + $0x38] sm:$0xf] %vm2988, %v2930
      %3004 = vst.msk [vmem:[#allocation5 + $0x3c] sm:$0xf] %vm2988, %v2931
      %3005 = vst.msk [vmem:[#allocation5 + $0x40] sm:$0xf] %vm2988, %v2932
      %3006 = vst.msk [vmem:[#allocation5 + $0x44] sm:$0xf] %vm2988, %v2933
      %3007 = vst.msk [vmem:[#allocation5 + $0x48] sm:$0xf] %vm2988, %v2934
      %3008 = vst.msk [vmem:[#allocation5 + $0x4c] sm:$0xf] %vm2988, %v2935
      %3009 = vst.msk [vmem:[#allocation5 + $0x50] sm:$0xf] %vm2988, %v2936
      %3010 = vst.msk [vmem:[#allocation5 + $0x54] sm:$0xf] %vm2988, %v2937
      %3011 = vst.msk [vmem:[#allocation5 + $0x58] sm:$0xf] %vm2988, %v2938
      %3012 = vst.msk [vmem:[#allocation5 + $0x5c] sm:$0xf] %vm2988, %v2939
      %3013 = vst.msk [vmem:[#allocation5 + $0x60] sm:$0xf] %vm2988, %v2940
      %3014 = vst.msk [vmem:[#allocation5 + $0x64] sm:$0xf] %vm2988, %v2941
      %3015 = vst.msk [vmem:[#allocation5 + $0x68] sm:$0xf] %vm2988, %v2942
      %3016 = vst.msk [vmem:[#allocation5 + $0x6c] sm:$0xf] %vm2988, %v2943
      %3017 = vst.msk [vmem:[#allocation5 + $0x70] sm:$0xf] %vm2988, %v2944
      %3018 = vst.msk [vmem:[#allocation5 + $0x74] sm:$0xf] %vm2988, %v2945
      %3019 = vst.msk [vmem:[#allocation5 + $0x78] sm:$0xf] %vm2988, %v2946
      %3020 = vst.msk [vmem:[#allocation5 + $0x7c] sm:$0xf] %vm2988, %v2947
      %3021 = vst.msk [vmem:[#allocation5 + $0x80] sm:$0xf] %vm2988, %v2948
      %3022 = vst.msk [vmem:[#allocation5 + $0x84] sm:$0xf] %vm2988, %v2949
      %3023 = vst.msk [vmem:[#allocation5 + $0x88] sm:$0xf] %vm2988, %v2950
      %3024 = vst.msk [vmem:[#allocation5 + $0x8c] sm:$0xf] %vm2988, %v2951
      %v3025 = vld [vmem:[#allocation3] sm:$0xf]
      %v3026 = vld [vmem:[#allocation3 + $0x4] sm:$0xf]
      %v3027 = vld [vmem:[#allocation3 + $0xc] sm:$0xf]
      %v3028 = vld [vmem:[#allocation3 + $0x10] sm:$0xf]
      %v3029 = vld [vmem:[#allocation3 + $0x18] sm:$0xf]
      %v3030 = vld [vmem:[#allocation3 + $0x1c] sm:$0xf]
      %v3031 = vld [vmem:[#allocation3 + $0x24] sm:$0xf]
      %v3032 = vld [vmem:[#allocation3 + $0x28] sm:$0xf]
      %v3033 = vld [vmem:[#allocation3 + $0x30] sm:$0xf]
      %v3034 = vld [vmem:[#allocation3 + $0x34] sm:$0xf]
      %v3035 = vld [vmem:[#allocation3 + $0x3c] sm:$0xf]
      %v3036 = vld [vmem:[#allocation3 + $0x40] sm:$0xf]
      %v3037 = vld [vmem:[#allocation3 + $0x48] sm:$0xf]
      %v3038 = vld [vmem:[#allocation3 + $0x4c] sm:$0xf]
      %v3039 = vld [vmem:[#allocation3 + $0x54] sm:$0xf]
      %v3040 = vld [vmem:[#allocation3 + $0x58] sm:$0xf]
      %v3041 = vld [vmem:[#allocation3 + $0x60] sm:$0xf]
      %v3042 = vld [vmem:[#allocation3 + $0x64] sm:$0xf]
      %v3043 = vld [vmem:[#allocation3 + $0x6c] sm:$0xf]
      %v3044 = vld [vmem:[#allocation3 + $0x70] sm:$0xf]
      %v3045 = vld [vmem:[#allocation3 + $0x78] sm:$0xf]
      %v3046 = vld [vmem:[#allocation3 + $0x7c] sm:$0xf]
      %v3047 = vld [vmem:[#allocation3 + $0x84] sm:$0xf]
      %v3048 = vld [vmem:[#allocation3 + $0x88] sm:$0xf]
      %v3049 = vld [vmem:[#allocation3 + $0x90] sm:$0xf]
      %v3050 = vld [vmem:[#allocation3 + $0x94] sm:$0xf]
      %v3051 = vld [vmem:[#allocation3 + $0x9c] sm:$0xf]
      %v3052 = vld [vmem:[#allocation3 + $0xa0] sm:$0xf]
      %v3053 = vld [vmem:[#allocation3 + $0xa8] sm:$0xf]
      %v3054 = vld [vmem:[#allocation3 + $0xac] sm:$0xf]
      %v3055 = vld [vmem:[#allocation3 + $0xb4] sm:$0xf]
      %v3056 = vld [vmem:[#allocation3 + $0xb8] sm:$0xf]
      %v3057 = vld [vmem:[#allocation3 + $0xc0] sm:$0xf]
      %v3058 = vld [vmem:[#allocation3 + $0xc4] sm:$0xf]
      %v3059 = vld [vmem:[#allocation3 + $0xcc] sm:$0xf]
      %v3060 = vld [vmem:[#allocation3 + $0xd0] sm:$0xf]
      %v3061 = vld [vmem:[#allocation3 + $0x8] sm:$0x1]
      %v3062 = vld [vmem:[#allocation3 + $0x14] sm:$0x1]
      %v3063 = vld [vmem:[#allocation3 + $0x20] sm:$0x1]
      %v3064 = vld [vmem:[#allocation3 + $0x2c] sm:$0x1]
      %v3065 = vld [vmem:[#allocation3 + $0x38] sm:$0x1]
      %v3066 = vld [vmem:[#allocation3 + $0x44] sm:$0x1]
      %v3067 = vld [vmem:[#allocation3 + $0x50] sm:$0x1]
      %v3068 = vld [vmem:[#allocation3 + $0x5c] sm:$0x1]
      %v3069 = vld [vmem:[#allocation3 + $0x68] sm:$0x1]
      %v3070 = vld [vmem:[#allocation3 + $0x74] sm:$0x1]
      %v3071 = vld [vmem:[#allocation3 + $0x80] sm:$0x1]
      %v3072 = vld [vmem:[#allocation3 + $0x8c] sm:$0x1]
      %v3073 = vld [vmem:[#allocation3 + $0x98] sm:$0x1]
      %v3074 = vld [vmem:[#allocation3 + $0xa4] sm:$0x1]
      %v3075 = vld [vmem:[#allocation3 + $0xb0] sm:$0x1]
      %v3076 = vld [vmem:[#allocation3 + $0xbc] sm:$0x1]
      %v3077 = vld [vmem:[#allocation3 + $0xc8] sm:$0x1]
      %v3078 = vld [vmem:[#allocation3 + $0xd4] sm:$0x1]
      %v3079 = vld [vmem:[#allocation3] sm:$0xe]
      %v3080 = vld [vmem:[#allocation3 + $0xc] sm:$0xe]
      %v3081 = vld [vmem:[#allocation3 + $0x18] sm:$0xe]
      %v3082 = vld [vmem:[#allocation3 + $0x24] sm:$0xe]
      %v3083 = vld [vmem:[#allocation3 + $0x30] sm:$0xe]
      %v3084 = vld [vmem:[#allocation3 + $0x3c] sm:$0xe]
      %v3085 = vld [vmem:[#allocation3 + $0x48] sm:$0xe]
      %v3086 = vld [vmem:[#allocation3 + $0x54] sm:$0xe]
      %v3087 = vld [vmem:[#allocation3 + $0x60] sm:$0xe]
      %v3088 = vld [vmem:[#allocation3 + $0x6c] sm:$0xe]
      %v3089 = vld [vmem:[#allocation3 + $0x78] sm:$0xe]
      %v3090 = vld [vmem:[#allocation3 + $0x84] sm:$0xe]
      %v3091 = vld [vmem:[#allocation3 + $0x90] sm:$0xe]
      %v3092 = vld [vmem:[#allocation3 + $0x9c] sm:$0xe]
      %v3093 = vld [vmem:[#allocation3 + $0xa8] sm:$0xe]
      %v3094 = vld [vmem:[#allocation3 + $0xb4] sm:$0xe]
      %v3095 = vld [vmem:[#allocation3 + $0xc0] sm:$0xe]
      %v3096 = vld [vmem:[#allocation3 + $0xcc] sm:$0xe]
      %v3133 = vunpack.c.l.b16 %v3025
      %v3134 = vunpack.c.l.b16 %v3026
      %v3135 = vunpack.c.l.b16 %v3027
      %v3136 = vunpack.c.l.b16 %v3028
      %v3137 = vunpack.c.l.b16 %v3029
      %v3138 = vunpack.c.l.b16 %v3030
      %v3139 = vunpack.c.l.b16 %v3031
      %v3140 = vunpack.c.l.b16 %v3032
      %v3141 = vunpack.c.l.b16 %v3033
      %v3142 = vunpack.c.l.b16 %v3034
      %v3143 = vunpack.c.l.b16 %v3035
      %v3144 = vunpack.c.l.b16 %v3036
      %v3145 = vunpack.c.l.b16 %v3037
      %v3146 = vunpack.c.l.b16 %v3038
      %v3147 = vunpack.c.l.b16 %v3039
      %v3148 = vunpack.c.l.b16 %v3040
      %v3149 = vunpack.c.l.b16 %v3041
      %v3150 = vunpack.c.l.b16 %v3042
      %v3151 = vunpack.c.l.b16 %v3043
      %v3152 = vunpack.c.l.b16 %v3044
      %v3153 = vunpack.c.l.b16 %v3045
      %v3154 = vunpack.c.l.b16 %v3046
      %v3155 = vunpack.c.l.b16 %v3047
      %v3156 = vunpack.c.l.b16 %v3048
      %v3157 = vunpack.c.l.b16 %v3049
      %v3158 = vunpack.c.l.b16 %v3050
      %v3159 = vunpack.c.l.b16 %v3051
      %v3160 = vunpack.c.l.b16 %v3052
      %v3161 = vunpack.c.l.b16 %v3053
      %v3162 = vunpack.c.l.b16 %v3054
      %v3163 = vunpack.c.l.b16 %v3055
      %v3164 = vunpack.c.l.b16 %v3056
      %v3165 = vunpack.c.l.b16 %v3057
      %v3166 = vunpack.c.l.b16 %v3058
      %v3167 = vunpack.c.l.b16 %v3059
      %v3168 = vunpack.c.l.b16 %v3060
      %v3169 = vpack.c.b16 %v3134, %v3133
      %v3170 = vpack.c.b16 %v3136, %v3135
      %v3171 = vpack.c.b16 %v3138, %v3137
      %v3172 = vpack.c.b16 %v3140, %v3139
      %v3173 = vpack.c.b16 %v3142, %v3141
      %v3174 = vpack.c.b16 %v3144, %v3143
      %v3175 = vpack.c.b16 %v3146, %v3145
      %v3176 = vpack.c.b16 %v3148, %v3147
      %v3177 = vpack.c.b16 %v3150, %v3149
      %v3178 = vpack.c.b16 %v3152, %v3151
      %v3179 = vpack.c.b16 %v3154, %v3153
      %v3180 = vpack.c.b16 %v3156, %v3155
      %v3181 = vpack.c.b16 %v3158, %v3157
      %v3182 = vpack.c.b16 %v3160, %v3159
      %v3183 = vpack.c.b16 %v3162, %v3161
      %v3184 = vpack.c.b16 %v3164, %v3163
      %v3185 = vpack.c.b16 %v3166, %v3165
      %v3186 = vpack.c.b16 %v3168, %v3167
      %v3205 = vunpack.c.l.b16 %v3061
      %v3206 = vunpack.c.l.b16 %v3062
      %v3207 = vunpack.c.l.b16 %v3063
      %v3208 = vunpack.c.l.b16 %v3064
      %v3209 = vunpack.c.l.b16 %v3065
      %v3210 = vunpack.c.l.b16 %v3066
      %v3211 = vunpack.c.l.b16 %v3067
      %v3212 = vunpack.c.l.b16 %v3068
      %v3213 = vunpack.c.l.b16 %v3069
      %v3214 = vunpack.c.l.b16 %v3070
      %v3215 = vunpack.c.l.b16 %v3071
      %v3216 = vunpack.c.l.b16 %v3072
      %v3217 = vunpack.c.l.b16 %v3073
      %v3218 = vunpack.c.l.b16 %v3074
      %v3219 = vunpack.c.l.b16 %v3075
      %v3220 = vunpack.c.l.b16 %v3076
      %v3221 = vunpack.c.l.b16 %v3077
      %v3222 = vunpack.c.l.b16 %v3078
      %v3223 = vpack.c.b16 %v3205, %v3205
      %v3224 = vpack.c.b16 %v3206, %v3206
      %v3225 = vpack.c.b16 %v3207, %v3207
      %v3226 = vpack.c.b16 %v3208, %v3208
      %v3227 = vpack.c.b16 %v3209, %v3209
      %v3228 = vpack.c.b16 %v3210, %v3210
      %v3229 = vpack.c.b16 %v3211, %v3211
      %v3230 = vpack.c.b16 %v3212, %v3212
      %v3231 = vpack.c.b16 %v3213, %v3213
      %v3232 = vpack.c.b16 %v3214, %v3214
      %v3233 = vpack.c.b16 %v3215, %v3215
      %v3234 = vpack.c.b16 %v3216, %v3216
      %v3235 = vpack.c.b16 %v3217, %v3217
      %v3236 = vpack.c.b16 %v3218, %v3218
      %v3237 = vpack.c.b16 %v3219, %v3219
      %v3238 = vpack.c.b16 %v3220, %v3220
      %v3239 = vpack.c.b16 %v3221, %v3221
      %v3240 = vpack.c.b16 %v3222, %v3222
      %v3242 = vshrl.u32 %v3169, 16
      %v3244 = vshll.u32 %v3169, 16
      %v3246 = vrot.slane %v3244, 1
      %v3247 = vor.u32 %v3242, %v3246
      %v3249 = vshll.u32 %v3223, 16
      %v3251 = vrot.slane %v3249, 1
      %v3252 = vsel %vm2390, %v3247, %v3251
      %v3254 = vshrl.u32 %v3170, 16
      %v3256 = vshll.u32 %v3170, 16
      %v3258 = vrot.slane %v3256, 1
      %v3259 = vor.u32 %v3254, %v3258
      %v3261 = vshll.u32 %v3224, 16
      %v3263 = vrot.slane %v3261, 1
      %v3264 = vsel %vm2390, %v3259, %v3263
      %v3266 = vshrl.u32 %v3171, 16
      %v3268 = vshll.u32 %v3171, 16
      %v3270 = vrot.slane %v3268, 1
      %v3271 = vor.u32 %v3266, %v3270
      %v3273 = vshll.u32 %v3225, 16
      %v3275 = vrot.slane %v3273, 1
      %v3276 = vsel %vm2390, %v3271, %v3275
      %v3278 = vshrl.u32 %v3172, 16
      %v3280 = vshll.u32 %v3172, 16
      %v3282 = vrot.slane %v3280, 1
      %v3283 = vor.u32 %v3278, %v3282
      %v3285 = vshll.u32 %v3226, 16
      %v3287 = vrot.slane %v3285, 1
      %v3288 = vsel %vm2390, %v3283, %v3287
      %v3290 = vshrl.u32 %v3173, 16
      %v3292 = vshll.u32 %v3173, 16
      %v3294 = vrot.slane %v3292, 1
      %v3295 = vor.u32 %v3290, %v3294
      %v3297 = vshll.u32 %v3227, 16
      %v3299 = vrot.slane %v3297, 1
      %v3300 = vsel %vm2390, %v3295, %v3299
      %v3302 = vshrl.u32 %v3174, 16
      %v3304 = vshll.u32 %v3174, 16
      %v3306 = vrot.slane %v3304, 1
      %v3307 = vor.u32 %v3302, %v3306
      %v3309 = vshll.u32 %v3228, 16
      %v3311 = vrot.slane %v3309, 1
      %v3312 = vsel %vm2390, %v3307, %v3311
      %v3314 = vshrl.u32 %v3175, 16
      %v3316 = vshll.u32 %v3175, 16
      %v3318 = vrot.slane %v3316, 1
      %v3319 = vor.u32 %v3314, %v3318
      %v3321 = vshll.u32 %v3229, 16
      %v3323 = vrot.slane %v3321, 1
      %v3324 = vsel %vm2390, %v3319, %v3323
      %v3326 = vshrl.u32 %v3176, 16
      %v3328 = vshll.u32 %v3176, 16
      %v3330 = vrot.slane %v3328, 1
      %v3331 = vor.u32 %v3326, %v3330
      %v3333 = vshll.u32 %v3230, 16
      %v3335 = vrot.slane %v3333, 1
      %v3336 = vsel %vm2390, %v3331, %v3335
      %v3338 = vshrl.u32 %v3177, 16
      %v3340 = vshll.u32 %v3177, 16
      %v3342 = vrot.slane %v3340, 1
      %v3343 = vor.u32 %v3338, %v3342
      %v3345 = vshll.u32 %v3231, 16
      %v3347 = vrot.slane %v3345, 1
      %v3348 = vsel %vm2390, %v3343, %v3347
      %v3350 = vshrl.u32 %v3178, 16
      %v3352 = vshll.u32 %v3178, 16
      %v3354 = vrot.slane %v3352, 1
      %v3355 = vor.u32 %v3350, %v3354
      %v3357 = vshll.u32 %v3232, 16
      %v3359 = vrot.slane %v3357, 1
      %v3360 = vsel %vm2390, %v3355, %v3359
      %v3362 = vshrl.u32 %v3179, 16
      %v3364 = vshll.u32 %v3179, 16
      %v3366 = vrot.slane %v3364, 1
      %v3367 = vor.u32 %v3362, %v3366
      %v3369 = vshll.u32 %v3233, 16
      %v3371 = vrot.slane %v3369, 1
      %v3372 = vsel %vm2390, %v3367, %v3371
      %v3374 = vshrl.u32 %v3180, 16
      %v3376 = vshll.u32 %v3180, 16
      %v3378 = vrot.slane %v3376, 1
      %v3379 = vor.u32 %v3374, %v3378
      %v3381 = vshll.u32 %v3234, 16
      %v3383 = vrot.slane %v3381, 1
      %v3384 = vsel %vm2390, %v3379, %v3383
      %v3386 = vshrl.u32 %v3181, 16
      %v3388 = vshll.u32 %v3181, 16
      %v3390 = vrot.slane %v3388, 1
      %v3391 = vor.u32 %v3386, %v3390
      %v3393 = vshll.u32 %v3235, 16
      %v3395 = vrot.slane %v3393, 1
      %v3396 = vsel %vm2390, %v3391, %v3395
      %v3398 = vshrl.u32 %v3182, 16
      %v3400 = vshll.u32 %v3182, 16
      %v3402 = vrot.slane %v3400, 1
      %v3403 = vor.u32 %v3398, %v3402
      %v3405 = vshll.u32 %v3236, 16
      %v3407 = vrot.slane %v3405, 1
      %v3408 = vsel %vm2390, %v3403, %v3407
      %v3410 = vshrl.u32 %v3183, 16
      %v3412 = vshll.u32 %v3183, 16
      %v3414 = vrot.slane %v3412, 1
      %v3415 = vor.u32 %v3410, %v3414
      %v3417 = vshll.u32 %v3237, 16
      %v3419 = vrot.slane %v3417, 1
      %v3420 = vsel %vm2390, %v3415, %v3419
      %v3422 = vshrl.u32 %v3184, 16
      %v3424 = vshll.u32 %v3184, 16
      %v3426 = vrot.slane %v3424, 1
      %v3427 = vor.u32 %v3422, %v3426
      %v3429 = vshll.u32 %v3238, 16
      %v3431 = vrot.slane %v3429, 1
      %v3432 = vsel %vm2390, %v3427, %v3431
      %v3434 = vshrl.u32 %v3185, 16
      %v3436 = vshll.u32 %v3185, 16
      %v3438 = vrot.slane %v3436, 1
      %v3439 = vor.u32 %v3434, %v3438
      %v3441 = vshll.u32 %v3239, 16
      %v3443 = vrot.slane %v3441, 1
      %v3444 = vsel %vm2390, %v3439, %v3443
      %v3446 = vshrl.u32 %v3186, 16
      %v3448 = vshll.u32 %v3186, 16
      %v3450 = vrot.slane %v3448, 1
      %v3451 = vor.u32 %v3446, %v3450
      %v3453 = vshll.u32 %v3240, 16
      %v3455 = vrot.slane %v3453, 1
      %v3456 = vsel %vm2390, %v3451, %v3455
      %3457 = vrot.lane.b32.xlu0 %v3252, 4
      %v3458 = vpop.permute.xlu0 %3457
      %3459 = vrot.lane.b32.xlu0 %v3264, 4
      %v3460 = vpop.permute.xlu0 %3459
      %3461 = vrot.lane.b32.xlu0 %v3276, 4
      %v3462 = vpop.permute.xlu0 %3461
      %3463 = vrot.lane.b32.xlu0 %v3288, 4
      %v3464 = vpop.permute.xlu0 %3463
      %3465 = vrot.lane.b32.xlu0 %v3300, 4
      %v3466 = vpop.permute.xlu0 %3465
      %3467 = vrot.lane.b32.xlu0 %v3312, 4
      %v3468 = vpop.permute.xlu0 %3467
      %3469 = vrot.lane.b32.xlu0 %v3324, 4
      %v3470 = vpop.permute.xlu0 %3469
      %3471 = vrot.lane.b32.xlu0 %v3336, 4
      %v3472 = vpop.permute.xlu0 %3471
      %3473 = vrot.lane.b32.xlu0 %v3348, 4
      %v3474 = vpop.permute.xlu0 %3473
      %3475 = vrot.lane.b32.xlu0 %v3360, 4
      %v3476 = vpop.permute.xlu0 %3475
      %3477 = vrot.lane.b32.xlu0 %v3372, 4
      %v3478 = vpop.permute.xlu0 %3477
      %3479 = vrot.lane.b32.xlu0 %v3384, 4
      %v3480 = vpop.permute.xlu0 %3479
      %3481 = vrot.lane.b32.xlu0 %v3396, 4
      %v3482 = vpop.permute.xlu0 %3481
      %3483 = vrot.lane.b32.xlu0 %v3408, 4
      %v3484 = vpop.permute.xlu0 %3483
      %3485 = vrot.lane.b32.xlu0 %v3420, 4
      %v3486 = vpop.permute.xlu0 %3485
      %3487 = vrot.lane.b32.xlu0 %v3432, 4
      %v3488 = vpop.permute.xlu0 %3487
      %3489 = vrot.lane.b32.xlu0 %v3444, 4
      %v3490 = vpop.permute.xlu0 %3489
      %3491 = vrot.lane.b32.xlu0 %v3456, 4
      %v3492 = vpop.permute.xlu0 %3491
      %v3511 = vunpack.c.l.b16 %v3079
      %v3512 = vunpack.c.l.b16 %v3080
      %v3513 = vunpack.c.l.b16 %v3081
      %v3514 = vunpack.c.l.b16 %v3082
      %v3515 = vunpack.c.l.b16 %v3083
      %v3516 = vunpack.c.l.b16 %v3084
      %v3517 = vunpack.c.l.b16 %v3085
      %v3518 = vunpack.c.l.b16 %v3086
      %v3519 = vunpack.c.l.b16 %v3087
      %v3520 = vunpack.c.l.b16 %v3088
      %v3521 = vunpack.c.l.b16 %v3089
      %v3522 = vunpack.c.l.b16 %v3090
      %v3523 = vunpack.c.l.b16 %v3091
      %v3524 = vunpack.c.l.b16 %v3092
      %v3525 = vunpack.c.l.b16 %v3093
      %v3526 = vunpack.c.l.b16 %v3094
      %v3527 = vunpack.c.l.b16 %v3095
      %v3528 = vunpack.c.l.b16 %v3096
      %v3529 = vpack.c.b16 %v3134, %v3511
      %v3530 = vpack.c.b16 %v3136, %v3512
      %v3531 = vpack.c.b16 %v3138, %v3513
      %v3532 = vpack.c.b16 %v3140, %v3514
      %v3533 = vpack.c.b16 %v3142, %v3515
      %v3534 = vpack.c.b16 %v3144, %v3516
      %v3535 = vpack.c.b16 %v3146, %v3517
      %v3536 = vpack.c.b16 %v3148, %v3518
      %v3537 = vpack.c.b16 %v3150, %v3519
      %v3538 = vpack.c.b16 %v3152, %v3520
      %v3539 = vpack.c.b16 %v3154, %v3521
      %v3540 = vpack.c.b16 %v3156, %v3522
      %v3541 = vpack.c.b16 %v3158, %v3523
      %v3542 = vpack.c.b16 %v3160, %v3524
      %v3543 = vpack.c.b16 %v3162, %v3525
      %v3544 = vpack.c.b16 %v3164, %v3526
      %v3545 = vpack.c.b16 %v3166, %v3527
      %v3546 = vpack.c.b16 %v3168, %v3528
      %v3547 = vrot.slane %v3529, 1
      %v3548 = vrot.slane %v3223, 1
      %v3549 = vsel %vm2697, %v3547, %v3548
      %v3550 = vrot.slane %v3530, 1
      %v3551 = vrot.slane %v3224, 1
      %v3552 = vsel %vm2697, %v3550, %v3551
      %v3553 = vrot.slane %v3531, 1
      %v3554 = vrot.slane %v3225, 1
      %v3555 = vsel %vm2697, %v3553, %v3554
      %v3556 = vrot.slane %v3532, 1
      %v3557 = vrot.slane %v3226, 1
      %v3558 = vsel %vm2697, %v3556, %v3557
      %v3559 = vrot.slane %v3533, 1
      %v3560 = vrot.slane %v3227, 1
      %v3561 = vsel %vm2697, %v3559, %v3560
      %v3562 = vrot.slane %v3534, 1
      %v3563 = vrot.slane %v3228, 1
      %v3564 = vsel %vm2697, %v3562, %v3563
      %v3565 = vrot.slane %v3535, 1
      %v3566 = vrot.slane %v3229, 1
      %v3567 = vsel %vm2697, %v3565, %v3566
      %v3568 = vrot.slane %v3536, 1
      %v3569 = vrot.slane %v3230, 1
      %v3570 = vsel %vm2697, %v3568, %v3569
      %v3571 = vrot.slane %v3537, 1
      %v3572 = vrot.slane %v3231, 1
      %v3573 = vsel %vm2697, %v3571, %v3572
      %v3574 = vrot.slane %v3538, 1
      %v3575 = vrot.slane %v3232, 1
      %v3576 = vsel %vm2697, %v3574, %v3575
      %v3577 = vrot.slane %v3539, 1
      %v3578 = vrot.slane %v3233, 1
      %v3579 = vsel %vm2697, %v3577, %v3578
      %v3580 = vrot.slane %v3540, 1
      %v3581 = vrot.slane %v3234, 1
      %v3582 = vsel %vm2697, %v3580, %v3581
      %v3583 = vrot.slane %v3541, 1
      %v3584 = vrot.slane %v3235, 1
      %v3585 = vsel %vm2697, %v3583, %v3584
      %v3586 = vrot.slane %v3542, 1
      %v3587 = vrot.slane %v3236, 1
      %v3588 = vsel %vm2697, %v3586, %v3587
      %v3589 = vrot.slane %v3543, 1
      %v3590 = vrot.slane %v3237, 1
      %v3591 = vsel %vm2697, %v3589, %v3590
      %v3592 = vrot.slane %v3544, 1
      %v3593 = vrot.slane %v3238, 1
      %v3594 = vsel %vm2697, %v3592, %v3593
      %v3595 = vrot.slane %v3545, 1
      %v3596 = vrot.slane %v3239, 1
      %v3597 = vsel %vm2697, %v3595, %v3596
      %v3598 = vrot.slane %v3546, 1
      %v3599 = vrot.slane %v3240, 1
      %v3600 = vsel %vm2697, %v3598, %v3599
      %3601 = vrot.lane.b32.xlu0 %v3549, 8
      %v3602 = vpop.permute.xlu0 %3601
      %3603 = vrot.lane.b32.xlu0 %v3552, 8
      %v3604 = vpop.permute.xlu0 %3603
      %3605 = vrot.lane.b32.xlu0 %v3555, 8
      %v3606 = vpop.permute.xlu0 %3605
      %3607 = vrot.lane.b32.xlu0 %v3558, 8
      %v3608 = vpop.permute.xlu0 %3607
      %3609 = vrot.lane.b32.xlu0 %v3561, 8
      %v3610 = vpop.permute.xlu0 %3609
      %3611 = vrot.lane.b32.xlu0 %v3564, 8
      %v3612 = vpop.permute.xlu0 %3611
      %3613 = vrot.lane.b32.xlu0 %v3567, 8
      %v3614 = vpop.permute.xlu0 %3613
      %3615 = vrot.lane.b32.xlu0 %v3570, 8
      %v3616 = vpop.permute.xlu0 %3615
      %3617 = vrot.lane.b32.xlu0 %v3573, 8
      %v3618 = vpop.permute.xlu0 %3617
      %3619 = vrot.lane.b32.xlu0 %v3576, 8
      %v3620 = vpop.permute.xlu0 %3619
      %3621 = vrot.lane.b32.xlu0 %v3579, 8
      %v3622 = vpop.permute.xlu0 %3621
      %3623 = vrot.lane.b32.xlu0 %v3582, 8
      %v3624 = vpop.permute.xlu0 %3623
      %3625 = vrot.lane.b32.xlu0 %v3585, 8
      %v3626 = vpop.permute.xlu0 %3625
      %3627 = vrot.lane.b32.xlu0 %v3588, 8
      %v3628 = vpop.permute.xlu0 %3627
      %3629 = vrot.lane.b32.xlu0 %v3591, 8
      %v3630 = vpop.permute.xlu0 %3629
      %3631 = vrot.lane.b32.xlu0 %v3594, 8
      %v3632 = vpop.permute.xlu0 %3631
      %3633 = vrot.lane.b32.xlu0 %v3597, 8
      %v3634 = vpop.permute.xlu0 %3633
      %3635 = vrot.lane.b32.xlu0 %v3600, 8
      %v3636 = vpop.permute.xlu0 %3635
      %vm3637 = vcmask 31744
      %v3639 = vsel %vm3637, %v3169, %v3458
      %v3641 = vsel %vm3637, %v3170, %v3460
      %v3643 = vsel %vm3637, %v3171, %v3462
      %v3645 = vsel %vm3637, %v3172, %v3464
      %v3647 = vsel %vm3637, %v3173, %v3466
      %v3649 = vsel %vm3637, %v3174, %v3468
      %v3651 = vsel %vm3637, %v3175, %v3470
      %v3653 = vsel %vm3637, %v3176, %v3472
      %v3655 = vsel %vm3637, %v3177, %v3474
      %v3657 = vsel %vm3637, %v3178, %v3476
      %v3659 = vsel %vm3637, %v3179, %v3478
      %v3661 = vsel %vm3637, %v3180, %v3480
      %v3663 = vsel %vm3637, %v3181, %v3482
      %v3665 = vsel %vm3637, %v3182, %v3484
      %v3667 = vsel %vm3637, %v3183, %v3486
      %v3669 = vsel %vm3637, %v3184, %v3488
      %v3671 = vsel %vm3637, %v3185, %v3490
      %v3673 = vsel %vm3637, %v3186, %v3492
      %vm3674 = vcmask 64512
      %v3676 = vsel %vm3674, %v3639, %v3602
      %v3678 = vsel %vm3674, %v3641, %v3604
      %v3680 = vsel %vm3674, %v3643, %v3606
      %v3682 = vsel %vm3674, %v3645, %v3608
      %v3684 = vsel %vm3674, %v3647, %v3610
      %v3686 = vsel %vm3674, %v3649, %v3612
      %v3688 = vsel %vm3674, %v3651, %v3614
      %v3690 = vsel %vm3674, %v3653, %v3616
      %v3692 = vsel %vm3674, %v3655, %v3618
      %v3694 = vsel %vm3674, %v3657, %v3620
      %v3696 = vsel %vm3674, %v3659, %v3622
      %v3698 = vsel %vm3674, %v3661, %v3624
      %v3700 = vsel %vm3674, %v3663, %v3626
      %v3702 = vsel %vm3674, %v3665, %v3628
      %v3704 = vsel %vm3674, %v3667, %v3630
      %v3706 = vsel %vm3674, %v3669, %v3632
      %v3708 = vsel %vm3674, %v3671, %v3634
      %v3710 = vsel %vm3674, %v3673, %v3636
      %v3729 = vunpack.c.l.b16 %v3676
      %v3730 = vunpack.c.h.b16 %v3676
      %v3731 = vunpack.c.l.b16 %v3678
      %v3732 = vunpack.c.h.b16 %v3678
      %v3733 = vunpack.c.l.b16 %v3680
      %v3734 = vunpack.c.h.b16 %v3680
      %v3735 = vunpack.c.l.b16 %v3682
      %v3736 = vunpack.c.h.b16 %v3682
      %v3737 = vunpack.c.l.b16 %v3684
      %v3738 = vunpack.c.h.b16 %v3684
      %v3739 = vunpack.c.l.b16 %v3686
      %v3740 = vunpack.c.h.b16 %v3686
      %v3741 = vunpack.c.l.b16 %v3688
      %v3742 = vunpack.c.h.b16 %v3688
      %v3743 = vunpack.c.l.b16 %v3690
      %v3744 = vunpack.c.h.b16 %v3690
      %v3745 = vunpack.c.l.b16 %v3692
      %v3746 = vunpack.c.h.b16 %v3692
      %v3747 = vunpack.c.l.b16 %v3694
      %v3748 = vunpack.c.h.b16 %v3694
      %v3749 = vunpack.c.l.b16 %v3696
      %v3750 = vunpack.c.h.b16 %v3696
      %v3751 = vunpack.c.l.b16 %v3698
      %v3752 = vunpack.c.h.b16 %v3698
      %v3753 = vunpack.c.l.b16 %v3700
      %v3754 = vunpack.c.h.b16 %v3700
      %v3755 = vunpack.c.l.b16 %v3702
      %v3756 = vunpack.c.h.b16 %v3702
      %v3757 = vunpack.c.l.b16 %v3704
      %v3758 = vunpack.c.h.b16 %v3704
      %v3759 = vunpack.c.l.b16 %v3706
      %v3760 = vunpack.c.h.b16 %v3706
      %v3761 = vunpack.c.l.b16 %v3708
      %v3762 = vunpack.c.h.b16 %v3708
      %v3763 = vunpack.c.l.b16 %v3710
      %v3764 = vunpack.c.h.b16 %v3710
      %v3765 = vpack.c.b16 %v3729, %v3729
      %v3766 = vpack.c.b16 %v3730, %v3730
      %v3767 = vpack.c.b16 %v3731, %v3731
      %v3768 = vpack.c.b16 %v3732, %v3732
      %v3769 = vpack.c.b16 %v3733, %v3733
      %v3770 = vpack.c.b16 %v3734, %v3734
      %v3771 = vpack.c.b16 %v3735, %v3735
      %v3772 = vpack.c.b16 %v3736, %v3736
      %v3773 = vpack.c.b16 %v3737, %v3737
      %v3774 = vpack.c.b16 %v3738, %v3738
      %v3775 = vpack.c.b16 %v3739, %v3739
      %v3776 = vpack.c.b16 %v3740, %v3740
      %v3777 = vpack.c.b16 %v3741, %v3741
      %v3778 = vpack.c.b16 %v3742, %v3742
      %v3779 = vpack.c.b16 %v3743, %v3743
      %v3780 = vpack.c.b16 %v3744, %v3744
      %v3781 = vpack.c.b16 %v3745, %v3745
      %v3782 = vpack.c.b16 %v3746, %v3746
      %v3783 = vpack.c.b16 %v3747, %v3747
      %v3784 = vpack.c.b16 %v3748, %v3748
      %v3785 = vpack.c.b16 %v3749, %v3749
      %v3786 = vpack.c.b16 %v3750, %v3750
      %v3787 = vpack.c.b16 %v3751, %v3751
      %v3788 = vpack.c.b16 %v3752, %v3752
      %v3789 = vpack.c.b16 %v3753, %v3753
      %v3790 = vpack.c.b16 %v3754, %v3754
      %v3791 = vpack.c.b16 %v3755, %v3755
      %v3792 = vpack.c.b16 %v3756, %v3756
      %v3793 = vpack.c.b16 %v3757, %v3757
      %v3794 = vpack.c.b16 %v3758, %v3758
      %v3795 = vpack.c.b16 %v3759, %v3759
      %v3796 = vpack.c.b16 %v3760, %v3760
      %v3797 = vpack.c.b16 %v3761, %v3761
      %v3798 = vpack.c.b16 %v3762, %v3762
      %v3799 = vpack.c.b16 %v3763, %v3763
      %v3800 = vpack.c.b16 %v3764, %v3764
      %vm3837 = vcmask 93184
      %3838 = vst.msk [vmem:[#allocation6] sm:$0xf] %vm3837, %v3765
      %3839 = vst.msk [vmem:[#allocation6 + $0x4] sm:$0xf] %vm3837, %v3766
      %3840 = vst.msk [vmem:[#allocation6 + $0x8] sm:$0xf] %vm3837, %v3767
      %3841 = vst.msk [vmem:[#allocation6 + $0xc] sm:$0xf] %vm3837, %v3768
      %3842 = vst.msk [vmem:[#allocation6 + $0x10] sm:$0xf] %vm3837, %v3769
      %3843 = vst.msk [vmem:[#allocation6 + $0x14] sm:$0xf] %vm3837, %v3770
      %3844 = vst.msk [vmem:[#allocation6 + $0x18] sm:$0xf] %vm3837, %v3771
      %3845 = vst.msk [vmem:[#allocation6 + $0x1c] sm:$0xf] %vm3837, %v3772
      %3846 = vst.msk [vmem:[#allocation6 + $0x20] sm:$0xf] %vm3837, %v3773
      %3847 = vst.msk [vmem:[#allocation6 + $0x24] sm:$0xf] %vm3837, %v3774
      %3848 = vst.msk [vmem:[#allocation6 + $0x28] sm:$0xf] %vm3837, %v3775
      %3849 = vst.msk [vmem:[#allocation6 + $0x2c] sm:$0xf] %vm3837, %v3776
      %3850 = vst.msk [vmem:[#allocation6 + $0x30] sm:$0xf] %vm3837, %v3777
      %3851 = vst.msk [vmem:[#allocation6 + $0x34] sm:$0xf] %vm3837, %v3778
      %3852 = vst.msk [vmem:[#allocation6 + $0x38] sm:$0xf] %vm3837, %v3779
      %3853 = vst.msk [vmem:[#allocation6 + $0x3c] sm:$0xf] %vm3837, %v3780
      %3854 = vst.msk [vmem:[#allocation6 + $0x40] sm:$0xf] %vm3837, %v3781
      %3855 = vst.msk [vmem:[#allocation6 + $0x44] sm:$0xf] %vm3837, %v3782
      %3856 = vst.msk [vmem:[#allocation6 + $0x48] sm:$0xf] %vm3837, %v3783
      %3857 = vst.msk [vmem:[#allocation6 + $0x4c] sm:$0xf] %vm3837, %v3784
      %3858 = vst.msk [vmem:[#allocation6 + $0x50] sm:$0xf] %vm3837, %v3785
      %3859 = vst.msk [vmem:[#allocation6 + $0x54] sm:$0xf] %vm3837, %v3786
      %3860 = vst.msk [vmem:[#allocation6 + $0x58] sm:$0xf] %vm3837, %v3787
      %3861 = vst.msk [vmem:[#allocation6 + $0x5c] sm:$0xf] %vm3837, %v3788
      %3862 = vst.msk [vmem:[#allocation6 + $0x60] sm:$0xf] %vm3837, %v3789
      %3863 = vst.msk [vmem:[#allocation6 + $0x64] sm:$0xf] %vm3837, %v3790
      %3864 = vst.msk [vmem:[#allocation6 + $0x68] sm:$0xf] %vm3837, %v3791
      %3865 = vst.msk [vmem:[#allocation6 + $0x6c] sm:$0xf] %vm3837, %v3792
      %3866 = vst.msk [vmem:[#allocation6 + $0x70] sm:$0xf] %vm3837, %v3793
      %3867 = vst.msk [vmem:[#allocation6 + $0x74] sm:$0xf] %vm3837, %v3794
      %3868 = vst.msk [vmem:[#allocation6 + $0x78] sm:$0xf] %vm3837, %v3795
      %3869 = vst.msk [vmem:[#allocation6 + $0x7c] sm:$0xf] %vm3837, %v3796
      %3870 = vst.msk [vmem:[#allocation6 + $0x80] sm:$0xf] %vm3837, %v3797
      %3871 = vst.msk [vmem:[#allocation6 + $0x84] sm:$0xf] %vm3837, %v3798
      %3872 = vst.msk [vmem:[#allocation6 + $0x88] sm:$0xf] %vm3837, %v3799
      %3873 = vst.msk [vmem:[#allocation6 + $0x8c] sm:$0xf] %vm3837, %v3800
      %v3874 = vld [vmem:[#allocation5] sm:$0xf]
      %v3875 = vld [vmem:[#allocation5 + $0x4] sm:$0xf]
      %v3876 = vld [vmem:[#allocation5 + $0x8] sm:$0xf]
      %v3877 = vld [vmem:[#allocation5 + $0xc] sm:$0xf]
      %v3878 = vld [vmem:[#allocation5 + $0x10] sm:$0xf]
      %v3879 = vld [vmem:[#allocation5 + $0x14] sm:$0xf]
      %v3880 = vld [vmem:[#allocation5 + $0x18] sm:$0xf]
      %v3881 = vld [vmem:[#allocation5 + $0x1c] sm:$0xf]
      %v3882 = vld [vmem:[#allocation5 + $0x20] sm:$0xf]
      %v3883 = vld [vmem:[#allocation5 + $0x24] sm:$0xf]
      %v3884 = vld [vmem:[#allocation5 + $0x28] sm:$0xf]
      %v3885 = vld [vmem:[#allocation5 + $0x2c] sm:$0xf]
      %v3886 = vld [vmem:[#allocation5 + $0x30] sm:$0xf]
      %v3887 = vld [vmem:[#allocation5 + $0x34] sm:$0xf]
      %v3888 = vld [vmem:[#allocation5 + $0x38] sm:$0xf]
      %v3889 = vld [vmem:[#allocation5 + $0x3c] sm:$0xf]
      %v3890 = vld [vmem:[#allocation5 + $0x40] sm:$0xf]
      %v3891 = vld [vmem:[#allocation5 + $0x44] sm:$0xf]
      %v3892 = vld [vmem:[#allocation5 + $0x48] sm:$0xf]
      %v3893 = vld [vmem:[#allocation5 + $0x4c] sm:$0xf]
      %v3894 = vld [vmem:[#allocation5 + $0x50] sm:$0xf]
      %v3895 = vld [vmem:[#allocation5 + $0x54] sm:$0xf]
      %v3896 = vld [vmem:[#allocation5 + $0x58] sm:$0xf]
      %v3897 = vld [vmem:[#allocation5 + $0x5c] sm:$0xf]
      %v3898 = vld [vmem:[#allocation5 + $0x60] sm:$0xf]
      %v3899 = vld [vmem:[#allocation5 + $0x64] sm:$0xf]
      %v3900 = vld [vmem:[#allocation5 + $0x68] sm:$0xf]
      %v3901 = vld [vmem:[#allocation5 + $0x6c] sm:$0xf]
      %v3902 = vld [vmem:[#allocation5 + $0x70] sm:$0xf]
      %v3903 = vld [vmem:[#allocation5 + $0x74] sm:$0xf]
      %v3904 = vld [vmem:[#allocation5 + $0x78] sm:$0xf]
      %v3905 = vld [vmem:[#allocation5 + $0x7c] sm:$0xf]
      %v3906 = vld [vmem:[%s3] sm:$0xf]
      %v3907 = vld [vmem:[%s3 + $0x4] sm:$0xf]
      %v3908 = vld [vmem:[%s3 + $0x8] sm:$0x1]
      %s3909 = scalar_lea.vmem [#allocation5], 8
      %v3910 = vld [vmem:[%s3909] sm:$0xf]
      %v3911 = vld [vmem:[%s3909 + $0x4] sm:$0xf]
      %v3912 = vld [vmem:[%s3909 + $0x8] sm:$0xf]
      %v3913 = vld [vmem:[%s3909 + $0xc] sm:$0xf]
      %v3914 = vld [vmem:[%s3909 + $0x10] sm:$0xf]
      %v3915 = vld [vmem:[%s3909 + $0x14] sm:$0xf]
      %v3916 = vld [vmem:[%s3909 + $0x18] sm:$0xf]
      %v3917 = vld [vmem:[%s3909 + $0x1c] sm:$0xf]
      %v3918 = vld [vmem:[%s3909 + $0x20] sm:$0xf]
      %v3919 = vld [vmem:[%s3909 + $0x24] sm:$0xf]
      %v3920 = vld [vmem:[%s3909 + $0x28] sm:$0xf]
      %v3921 = vld [vmem:[%s3909 + $0x2c] sm:$0xf]
      %v3922 = vld [vmem:[%s3909 + $0x30] sm:$0xf]
      %v3923 = vld [vmem:[%s3909 + $0x34] sm:$0xf]
      %v3924 = vld [vmem:[%s3909 + $0x38] sm:$0xf]
      %v3925 = vld [vmem:[%s3909 + $0x3c] sm:$0xf]
      %v3926 = vld [vmem:[%s3909 + $0x40] sm:$0xf]
      %v3927 = vld [vmem:[%s3909 + $0x44] sm:$0xf]
      %v3928 = vld [vmem:[%s3909 + $0x48] sm:$0xf]
      %v3929 = vld [vmem:[%s3909 + $0x4c] sm:$0xf]
      %v3930 = vld [vmem:[%s3909 + $0x50] sm:$0xf]
      %v3931 = vld [vmem:[%s3909 + $0x54] sm:$0xf]
      %v3932 = vld [vmem:[%s3909 + $0x58] sm:$0xf]
      %v3933 = vld [vmem:[%s3909 + $0x5c] sm:$0xf]
      %v3934 = vld [vmem:[%s3909 + $0x60] sm:$0xf]
      %v3935 = vld [vmem:[%s3909 + $0x64] sm:$0xf]
      %v3936 = vld [vmem:[%s3909 + $0x68] sm:$0xf]
      %v3937 = vld [vmem:[%s3909 + $0x6c] sm:$0xf]
      %v3938 = vld [vmem:[%s3909 + $0x70] sm:$0xf]
      %v3939 = vld [vmem:[%s3909 + $0x74] sm:$0xf]
      %v3940 = vld [vmem:[%s3909 + $0x78] sm:$0xf]
      %v3941 = vld [vmem:[%s3909 + $0x7c] sm:$0xf]
      %s3942 = scalar_lea.vmem %s3, 12
      %v3943 = vld [vmem:[%s3942] sm:$0xf]
      %v3944 = vld [vmem:[%s3942 + $0x4] sm:$0xf]
      %v3945 = vld [vmem:[%s3942 + $0x8] sm:$0x1]
      %v3978 = vunpack.c.l.b16 %v3910
      %v3979 = vunpack.c.l.b16 %v3911
      %v3980 = vunpack.c.l.b16 %v3912
      %v3981 = vunpack.c.l.b16 %v3913
      %v3982 = vunpack.c.l.b16 %v3914
      %v3983 = vunpack.c.l.b16 %v3915
      %v3984 = vunpack.c.l.b16 %v3916
      %v3985 = vunpack.c.l.b16 %v3917
      %v3986 = vunpack.c.l.b16 %v3918
      %v3987 = vunpack.c.l.b16 %v3919
      %v3988 = vunpack.c.l.b16 %v3920
      %v3989 = vunpack.c.l.b16 %v3921
      %v3990 = vunpack.c.l.b16 %v3922
      %v3991 = vunpack.c.l.b16 %v3923
      %v3992 = vunpack.c.l.b16 %v3924
      %v3993 = vunpack.c.l.b16 %v3925
      %v3994 = vunpack.c.l.b16 %v3926
      %v3995 = vunpack.c.l.b16 %v3927
      %v3996 = vunpack.c.l.b16 %v3928
      %v3997 = vunpack.c.l.b16 %v3929
      %v3998 = vunpack.c.l.b16 %v3930
      %v3999 = vunpack.c.l.b16 %v3931
      %v4000 = vunpack.c.l.b16 %v3932
      %v4001 = vunpack.c.l.b16 %v3933
      %v4002 = vunpack.c.l.b16 %v3934
      %v4003 = vunpack.c.l.b16 %v3935
      %v4004 = vunpack.c.l.b16 %v3936
      %v4005 = vunpack.c.l.b16 %v3937
      %v4006 = vunpack.c.l.b16 %v3938
      %v4007 = vunpack.c.l.b16 %v3939
      %v4008 = vunpack.c.l.b16 %v3940
      %v4009 = vunpack.c.l.b16 %v3941
      %v4010 = vpack.c.b16 %v3979, %v3978
      %v4011 = vpack.c.b16 %v3981, %v3980
      %v4012 = vpack.c.b16 %v3983, %v3982
      %v4013 = vpack.c.b16 %v3985, %v3984
      %v4014 = vpack.c.b16 %v3987, %v3986
      %v4015 = vpack.c.b16 %v3989, %v3988
      %v4016 = vpack.c.b16 %v3991, %v3990
      %v4017 = vpack.c.b16 %v3993, %v3992
      %v4018 = vpack.c.b16 %v3995, %v3994
      %v4019 = vpack.c.b16 %v3997, %v3996
      %v4020 = vpack.c.b16 %v3999, %v3998
      %v4021 = vpack.c.b16 %v4001, %v4000
      %v4022 = vpack.c.b16 %v4003, %v4002
      %v4023 = vpack.c.b16 %v4005, %v4004
      %v4024 = vpack.c.b16 %v4007, %v4006
      %v4025 = vpack.c.b16 %v4009, %v4008
      %v4029 = vunpack.c.l.b16 %v3943
      %v4030 = vunpack.c.l.b16 %v3944
      %v4031 = vunpack.c.l.b16 %v3945
      %v4032 = vpack.c.b16 %v4030, %v4029
      %v4033 = vpack.c.b16 %v4031, %v4031
      %vm4035 = vcmask 146432
      %v4037 = vsel %vm4035, %v4010, 0
      %v4040 = vsel %vm4035, %v4011, 0
      %v4043 = vsel %vm4035, %v4012, 0
      %v4046 = vsel %vm4035, %v4013, 0
      %v4049 = vsel %vm4035, %v4014, 0
      %v4052 = vsel %vm4035, %v4015, 0
      %v4055 = vsel %vm4035, %v4016, 0
      %v4058 = vsel %vm4035, %v4017, 0
      %v4061 = vsel %vm4035, %v4018, 0
      %v4064 = vsel %vm4035, %v4019, 0
      %v4067 = vsel %vm4035, %v4020, 0
      %v4070 = vsel %vm4035, %v4021, 0
      %v4073 = vsel %vm4035, %v4022, 0
      %v4076 = vsel %vm4035, %v4023, 0
      %v4079 = vsel %vm4035, %v4024, 0
      %v4082 = vsel %vm4035, %v4025, 0
      %vm4084 = vcmask 1040384
      %v4086 = vsel %vm4084, %v4033, 0
      %4088 = vmatprep.subr.bf16.mxu0 0
      %4089 = vmatpush1.bf16.msra.mxu0 0
      %4090 = vmatprep.subr.bf16.mxu0 0
      %4091 = vmatpush1.bf16.msra.mxu0 0
      %4092 = vmatprep.subr.bf16.mxu0 0
      %4093 = vmatpush1.bf16.msra.mxu0 0
      %4094 = vmatprep.subr.bf16.mxu0 0
      %4095 = vmatpush1.bf16.msra.mxu0 0
      %4096 = vmatprep.subr.bf16.mxu0 0
      %4097 = vmatpush1.bf16.msra.mxu0 0
      %4098 = vmatprep.subr.bf16.mxu0 0
      %4099 = vmatpush1.bf16.msra.mxu0 0
      %4100 = vmatprep.subr.bf16.mxu0 0
      %4101 = vmatpush1.bf16.msra.mxu0 %v4086
      %4102 = vmatprep.subr.bf16.mxu0 0
      %4103 = vmatpush1.bf16.msra.mxu0 %v4032
      %4104 = vmatprep.subr.bf16.mxu0 0
      %4105 = vmatpush2.bf16.msra.mxu0 0
      %4106 = vmatprep.subr.bf16.mxu0 0
      %4107 = vmatpush2.bf16.msra.mxu0 0
      %4108 = vmatprep.subr.bf16.mxu0 0
      %4109 = vmatpush2.bf16.msra.mxu0 0
      %4110 = vmatprep.subr.bf16.mxu0 0
      %4111 = vmatpush2.bf16.msra.mxu0 0
      %4112 = vmatprep.subr.bf16.mxu0 0
      %4113 = vmatpush2.bf16.msra.mxu0 0
      %4114 = vmatprep.subr.bf16.mxu0 0
      %4115 = vmatpush2.bf16.msra.mxu0 0
      %4116 = vmatprep.subr.bf16.mxu0 0
      %4117 = vmatpush2.bf16.msra.mxu0 0
      %4118 = vmatprep.subr.bf16.mxu0 0
      %4119 = vmatpush2.bf16.msra.mxu0 0
      %4120 = vmatprep.mubr.bf16.mxu0 0
      %4121 = vmatmul.mubr.bf16.gmra.mxu0 %v4037
      %v4122 = vpop.f32.mrf.mxu0
      %v4123 = vadd.f32 0.0, %v4122
      %v4124 = vpop.f32.mrf.mxu0
      %v4125 = vpop.f32.mrf.mxu0
      %v4126 = vadd.f32 0.0, %v4125
      %v4127 = vpop.f32.mrf.mxu0
      %4128 = vmatprep.mubr.bf16.mxu0 0
      %4129 = vmatmul.mubr.bf16.gmra.mxu0 %v4040
      %v4130 = vpop.f32.mrf.mxu0
      %v4131 = vadd.f32 0.0, %v4130
      %v4132 = vpop.f32.mrf.mxu0
      %v4133 = vpop.f32.mrf.mxu0
      %v4134 = vadd.f32 0.0, %v4133
      %v4135 = vpop.f32.mrf.mxu0
      %4136 = vmatprep.mubr.bf16.mxu0 0
      %4137 = vmatmul.mubr.bf16.gmra.mxu0 %v4043
      %v4138 = vpop.f32.mrf.mxu0
      %v4139 = vadd.f32 0.0, %v4138
      %v4140 = vpop.f32.mrf.mxu0
      %v4141 = vpop.f32.mrf.mxu0
      %v4142 = vadd.f32 0.0, %v4141
      %v4143 = vpop.f32.mrf.mxu0
      %4144 = vmatprep.mubr.bf16.mxu0 0
      %4145 = vmatmul.mubr.bf16.gmra.mxu0 %v4046
      %v4146 = vpop.f32.mrf.mxu0
      %v4147 = vadd.f32 0.0, %v4146
      %v4148 = vpop.f32.mrf.mxu0
      %v4149 = vpop.f32.mrf.mxu0
      %v4150 = vadd.f32 0.0, %v4149
      %v4151 = vpop.f32.mrf.mxu0
      %4152 = vmatprep.mubr.bf16.mxu0 0
      %4153 = vmatmul.mubr.bf16.gmra.mxu0 %v4049
      %v4154 = vpop.f32.mrf.mxu0
      %v4155 = vadd.f32 0.0, %v4154
      %v4156 = vpop.f32.mrf.mxu0
      %v4157 = vpop.f32.mrf.mxu0
      %v4158 = vadd.f32 0.0, %v4157
      %v4159 = vpop.f32.mrf.mxu0
      %4160 = vmatprep.mubr.bf16.mxu0 0
      %4161 = vmatmul.mubr.bf16.gmra.mxu0 %v4052
      %v4162 = vpop.f32.mrf.mxu0
      %v4163 = vadd.f32 0.0, %v4162
      %v4164 = vpop.f32.mrf.mxu0
      %v4165 = vpop.f32.mrf.mxu0
      %v4166 = vadd.f32 0.0, %v4165
      %v4167 = vpop.f32.mrf.mxu0
      %4168 = vmatprep.mubr.bf16.mxu0 0
      %4169 = vmatmul.mubr.bf16.gmra.mxu0 %v4055
      %v4170 = vpop.f32.mrf.mxu0
      %v4171 = vadd.f32 0.0, %v4170
      %v4172 = vpop.f32.mrf.mxu0
      %v4173 = vpop.f32.mrf.mxu0
      %v4174 = vadd.f32 0.0, %v4173
      %v4175 = vpop.f32.mrf.mxu0
      %4176 = vmatprep.mubr.bf16.mxu0 0
      %4177 = vmatmul.mubr.bf16.gmra.mxu0 %v4058
      %v4178 = vpop.f32.mrf.mxu0
      %v4179 = vadd.f32 0.0, %v4178
      %v4180 = vpop.f32.mrf.mxu0
      %v4181 = vpop.f32.mrf.mxu0
      %v4182 = vadd.f32 0.0, %v4181
      %v4183 = vpop.f32.mrf.mxu0
      %4184 = vmatprep.mubr.bf16.mxu0 0
      %4185 = vmatmul.mubr.bf16.gmra.mxu0 %v4061
      %v4186 = vpop.f32.mrf.mxu0
      %v4187 = vadd.f32 0.0, %v4186
      %v4188 = vpop.f32.mrf.mxu0
      %v4189 = vpop.f32.mrf.mxu0
      %v4190 = vadd.f32 0.0, %v4189
      %v4191 = vpop.f32.mrf.mxu0
      %4192 = vmatprep.mubr.bf16.mxu0 0
      %4193 = vmatmul.mubr.bf16.gmra.mxu0 %v4064
      %v4194 = vpop.f32.mrf.mxu0
      %v4195 = vadd.f32 0.0, %v4194
      %v4196 = vpop.f32.mrf.mxu0
      %v4197 = vpop.f32.mrf.mxu0
      %v4198 = vadd.f32 0.0, %v4197
      %v4199 = vpop.f32.mrf.mxu0
      %4200 = vmatprep.mubr.bf16.mxu0 0
      %4201 = vmatmul.mubr.bf16.gmra.mxu0 %v4067
      %v4202 = vpop.f32.mrf.mxu0
      %v4203 = vadd.f32 0.0, %v4202
      %v4204 = vpop.f32.mrf.mxu0
      %v4205 = vpop.f32.mrf.mxu0
      %v4206 = vadd.f32 0.0, %v4205
      %v4207 = vpop.f32.mrf.mxu0
      %4208 = vmatprep.mubr.bf16.mxu0 0
      %4209 = vmatmul.mubr.bf16.gmra.mxu0 %v4070
      %v4210 = vpop.f32.mrf.mxu0
      %v4211 = vadd.f32 0.0, %v4210
      %v4212 = vpop.f32.mrf.mxu0
      %v4213 = vpop.f32.mrf.mxu0
      %v4214 = vadd.f32 0.0, %v4213
      %v4215 = vpop.f32.mrf.mxu0
      %4216 = vmatprep.mubr.bf16.mxu0 0
      %4217 = vmatmul.mubr.bf16.gmra.mxu0 %v4073
      %v4218 = vpop.f32.mrf.mxu0
      %v4219 = vadd.f32 0.0, %v4218
      %v4220 = vpop.f32.mrf.mxu0
      %v4221 = vpop.f32.mrf.mxu0
      %v4222 = vadd.f32 0.0, %v4221
      %v4223 = vpop.f32.mrf.mxu0
      %4224 = vmatprep.mubr.bf16.mxu0 0
      %4225 = vmatmul.mubr.bf16.gmra.mxu0 %v4076
      %v4226 = vpop.f32.mrf.mxu0
      %v4227 = vadd.f32 0.0, %v4226
      %v4228 = vpop.f32.mrf.mxu0
      %v4229 = vpop.f32.mrf.mxu0
      %v4230 = vadd.f32 0.0, %v4229
      %v4231 = vpop.f32.mrf.mxu0
      %4232 = vmatprep.mubr.bf16.mxu0 0
      %4233 = vmatmul.mubr.bf16.gmra.mxu0 %v4079
      %v4234 = vpop.f32.mrf.mxu0
      %v4235 = vadd.f32 0.0, %v4234
      %v4236 = vpop.f32.mrf.mxu0
      %v4237 = vpop.f32.mrf.mxu0
      %v4238 = vadd.f32 0.0, %v4237
      %v4239 = vpop.f32.mrf.mxu0
      %4240 = vmatprep.mubr.bf16.mxu0 0
      %4241 = vmatmul.mubr.bf16.gmra.mxu0 %v4082
      %v4242 = vpop.f32.mrf.mxu0
      %v4243 = vadd.f32 0.0, %v4242
      %v4244 = vpop.f32.mrf.mxu0
      %v4245 = vpop.f32.mrf.mxu0
      %v4246 = vadd.f32 0.0, %v4245
      %v4247 = vpop.f32.mrf.mxu0
      %4248 = vdwg.mxu0
      %v4281 = vunpack.c.l.b16 %v3874
      %v4282 = vunpack.c.l.b16 %v3875
      %v4283 = vunpack.c.l.b16 %v3876
      %v4284 = vunpack.c.l.b16 %v3877
      %v4285 = vunpack.c.l.b16 %v3878
      %v4286 = vunpack.c.l.b16 %v3879
      %v4287 = vunpack.c.l.b16 %v3880
      %v4288 = vunpack.c.l.b16 %v3881
      %v4289 = vunpack.c.l.b16 %v3882
      %v4290 = vunpack.c.l.b16 %v3883
      %v4291 = vunpack.c.l.b16 %v3884
      %v4292 = vunpack.c.l.b16 %v3885
      %v4293 = vunpack.c.l.b16 %v3886
      %v4294 = vunpack.c.l.b16 %v3887
      %v4295 = vunpack.c.l.b16 %v3888
      %v4296 = vunpack.c.l.b16 %v3889
      %v4297 = vunpack.c.l.b16 %v3890
      %v4298 = vunpack.c.l.b16 %v3891
      %v4299 = vunpack.c.l.b16 %v3892
      %v4300 = vunpack.c.l.b16 %v3893
      %v4301 = vunpack.c.l.b16 %v3894
      %v4302 = vunpack.c.l.b16 %v3895
      %v4303 = vunpack.c.l.b16 %v3896
      %v4304 = vunpack.c.l.b16 %v3897
      %v4305 = vunpack.c.l.b16 %v3898
      %v4306 = vunpack.c.l.b16 %v3899
      %v4307 = vunpack.c.l.b16 %v3900
      %v4308 = vunpack.c.l.b16 %v3901
      %v4309 = vunpack.c.l.b16 %v3902
      %v4310 = vunpack.c.l.b16 %v3903
      %v4311 = vunpack.c.l.b16 %v3904
      %v4312 = vunpack.c.l.b16 %v3905
      %v4313 = vpack.c.b16 %v4282, %v4281
      %v4314 = vpack.c.b16 %v4284, %v4283
      %v4315 = vpack.c.b16 %v4286, %v4285
      %v4316 = vpack.c.b16 %v4288, %v4287
      %v4317 = vpack.c.b16 %v4290, %v4289
      %v4318 = vpack.c.b16 %v4292, %v4291
      %v4319 = vpack.c.b16 %v4294, %v4293
      %v4320 = vpack.c.b16 %v4296, %v4295
      %v4321 = vpack.c.b16 %v4298, %v4297
      %v4322 = vpack.c.b16 %v4300, %v4299
      %v4323 = vpack.c.b16 %v4302, %v4301
      %v4324 = vpack.c.b16 %v4304, %v4303
      %v4325 = vpack.c.b16 %v4306, %v4305
      %v4326 = vpack.c.b16 %v4308, %v4307
      %v4327 = vpack.c.b16 %v4310, %v4309
      %v4328 = vpack.c.b16 %v4312, %v4311
      %v4332 = vunpack.c.l.b16 %v3906
      %v4333 = vunpack.c.l.b16 %v3907
      %v4334 = vunpack.c.l.b16 %v3908
      %v4335 = vpack.c.b16 %v4333, %v4332
      %v4336 = vpack.c.b16 %v4334, %v4334
      %v4339 = vsel %vm4035, %v4313, 0
      %v4342 = vsel %vm4035, %v4314, 0
      %v4345 = vsel %vm4035, %v4315, 0
      %v4348 = vsel %vm4035, %v4316, 0
      %v4351 = vsel %vm4035, %v4317, 0
      %v4354 = vsel %vm4035, %v4318, 0
      %v4357 = vsel %vm4035, %v4319, 0
      %v4360 = vsel %vm4035, %v4320, 0
      %v4363 = vsel %vm4035, %v4321, 0
      %v4366 = vsel %vm4035, %v4322, 0
      %v4369 = vsel %vm4035, %v4323, 0
      %v4372 = vsel %vm4035, %v4324, 0
      %v4375 = vsel %vm4035, %v4325, 0
      %v4378 = vsel %vm4035, %v4326, 0
      %v4381 = vsel %vm4035, %v4327, 0
      %v4384 = vsel %vm4035, %v4328, 0
      %v4387 = vsel %vm4084, %v4336, 0
      %4389 = vmatprep.subr.bf16.mxu0 0
      %4390 = vmatpush1.bf16.msra.mxu0 0
      %4391 = vmatprep.subr.bf16.mxu0 0
      %4392 = vmatpush1.bf16.msra.mxu0 0
      %4393 = vmatprep.subr.bf16.mxu0 0
      %4394 = vmatpush1.bf16.msra.mxu0 0
      %4395 = vmatprep.subr.bf16.mxu0 0
      %4396 = vmatpush1.bf16.msra.mxu0 0
      %4397 = vmatprep.subr.bf16.mxu0 0
      %4398 = vmatpush1.bf16.msra.mxu0 0
      %4399 = vmatprep.subr.bf16.mxu0 0
      %4400 = vmatpush1.bf16.msra.mxu0 0
      %4401 = vmatprep.subr.bf16.mxu0 0
      %4402 = vmatpush1.bf16.msra.mxu0 %v4387
      %4403 = vmatprep.subr.bf16.mxu0 0
      %4404 = vmatpush1.bf16.msra.mxu0 %v4335
      %4405 = vmatprep.subr.bf16.mxu0 0
      %4406 = vmatpush2.bf16.msra.mxu0 0
      %4407 = vmatprep.subr.bf16.mxu0 0
      %4408 = vmatpush2.bf16.msra.mxu0 0
      %4409 = vmatprep.subr.bf16.mxu0 0
      %4410 = vmatpush2.bf16.msra.mxu0 0
      %4411 = vmatprep.subr.bf16.mxu0 0
      %4412 = vmatpush2.bf16.msra.mxu0 0
      %4413 = vmatprep.subr.bf16.mxu0 0
      %4414 = vmatpush2.bf16.msra.mxu0 0
      %4415 = vmatprep.subr.bf16.mxu0 0
      %4416 = vmatpush2.bf16.msra.mxu0 0
      %4417 = vmatprep.subr.bf16.mxu0 0
      %4418 = vmatpush2.bf16.msra.mxu0 0
      %4419 = vmatprep.subr.bf16.mxu0 0
      %4420 = vmatpush2.bf16.msra.mxu0 0
      %4421 = vmatprep.mubr.bf16.mxu0 0
      %4422 = vmatmul.mubr.bf16.gmra.mxu0 %v4339
      %v4423 = vpop.f32.mrf.mxu0
      %v4424 = vadd.f32 %v4123, %v4423
      %v4425 = vpop.f32.mrf.mxu0
      %v4426 = vpop.f32.mrf.mxu0
      %v4427 = vadd.f32 %v4126, %v4426
      %v4428 = vpop.f32.mrf.mxu0
      %4429 = vmatprep.mubr.bf16.mxu0 0
      %4430 = vmatmul.mubr.bf16.gmra.mxu0 %v4342
      %v4431 = vpop.f32.mrf.mxu0
      %v4432 = vadd.f32 %v4131, %v4431
      %v4433 = vpop.f32.mrf.mxu0
      %v4434 = vpop.f32.mrf.mxu0
      %v4435 = vadd.f32 %v4134, %v4434
      %v4436 = vpop.f32.mrf.mxu0
      %4437 = vmatprep.mubr.bf16.mxu0 0
      %4438 = vmatmul.mubr.bf16.gmra.mxu0 %v4345
      %v4439 = vpop.f32.mrf.mxu0
      %v4440 = vadd.f32 %v4139, %v4439
      %v4441 = vpop.f32.mrf.mxu0
      %v4442 = vpop.f32.mrf.mxu0
      %v4443 = vadd.f32 %v4142, %v4442
      %v4444 = vpop.f32.mrf.mxu0
      %4445 = vmatprep.mubr.bf16.mxu0 0
      %4446 = vmatmul.mubr.bf16.gmra.mxu0 %v4348
      %v4447 = vpop.f32.mrf.mxu0
      %v4448 = vadd.f32 %v4147, %v4447
      %v4449 = vpop.f32.mrf.mxu0
      %v4450 = vpop.f32.mrf.mxu0
      %v4451 = vadd.f32 %v4150, %v4450
      %v4452 = vpop.f32.mrf.mxu0
      %4453 = vmatprep.mubr.bf16.mxu0 0
      %4454 = vmatmul.mubr.bf16.gmra.mxu0 %v4351
      %v4455 = vpop.f32.mrf.mxu0
      %v4456 = vadd.f32 %v4155, %v4455
      %v4457 = vpop.f32.mrf.mxu0
      %v4458 = vpop.f32.mrf.mxu0
      %v4459 = vadd.f32 %v4158, %v4458
      %v4460 = vpop.f32.mrf.mxu0
      %4461 = vmatprep.mubr.bf16.mxu0 0
      %4462 = vmatmul.mubr.bf16.gmra.mxu0 %v4354
      %v4463 = vpop.f32.mrf.mxu0
      %v4464 = vadd.f32 %v4163, %v4463
      %v4465 = vpop.f32.mrf.mxu0
      %v4466 = vpop.f32.mrf.mxu0
      %v4467 = vadd.f32 %v4166, %v4466
      %v4468 = vpop.f32.mrf.mxu0
      %4469 = vmatprep.mubr.bf16.mxu0 0
      %4470 = vmatmul.mubr.bf16.gmra.mxu0 %v4357
      %v4471 = vpop.f32.mrf.mxu0
      %v4472 = vadd.f32 %v4171, %v4471
      %v4473 = vpop.f32.mrf.mxu0
      %v4474 = vpop.f32.mrf.mxu0
      %v4475 = vadd.f32 %v4174, %v4474
      %v4476 = vpop.f32.mrf.mxu0
      %4477 = vmatprep.mubr.bf16.mxu0 0
      %4478 = vmatmul.mubr.bf16.gmra.mxu0 %v4360
      %v4479 = vpop.f32.mrf.mxu0
      %v4480 = vadd.f32 %v4179, %v4479
      %v4481 = vpop.f32.mrf.mxu0
      %v4482 = vpop.f32.mrf.mxu0
      %v4483 = vadd.f32 %v4182, %v4482
      %v4484 = vpop.f32.mrf.mxu0
      %4485 = vmatprep.mubr.bf16.mxu0 0
      %4486 = vmatmul.mubr.bf16.gmra.mxu0 %v4363
      %v4487 = vpop.f32.mrf.mxu0
      %v4488 = vadd.f32 %v4187, %v4487
      %v4489 = vpop.f32.mrf.mxu0
      %v4490 = vpop.f32.mrf.mxu0
      %v4491 = vadd.f32 %v4190, %v4490
      %v4492 = vpop.f32.mrf.mxu0
      %4493 = vmatprep.mubr.bf16.mxu0 0
      %4494 = vmatmul.mubr.bf16.gmra.mxu0 %v4366
      %v4495 = vpop.f32.mrf.mxu0
      %v4496 = vadd.f32 %v4195, %v4495
      %v4497 = vpop.f32.mrf.mxu0
      %v4498 = vpop.f32.mrf.mxu0
      %v4499 = vadd.f32 %v4198, %v4498
      %v4500 = vpop.f32.mrf.mxu0
      %4501 = vmatprep.mubr.bf16.mxu0 0
      %4502 = vmatmul.mubr.bf16.gmra.mxu0 %v4369
      %v4503 = vpop.f32.mrf.mxu0
      %v4504 = vadd.f32 %v4203, %v4503
      %v4505 = vpop.f32.mrf.mxu0
      %v4506 = vpop.f32.mrf.mxu0
      %v4507 = vadd.f32 %v4206, %v4506
      %v4508 = vpop.f32.mrf.mxu0
      %4509 = vmatprep.mubr.bf16.mxu0 0
      %4510 = vmatmul.mubr.bf16.gmra.mxu0 %v4372
      %v4511 = vpop.f32.mrf.mxu0
      %v4512 = vadd.f32 %v4211, %v4511
      %v4513 = vpop.f32.mrf.mxu0
      %v4514 = vpop.f32.mrf.mxu0
      %v4515 = vadd.f32 %v4214, %v4514
      %v4516 = vpop.f32.mrf.mxu0
      %4517 = vmatprep.mubr.bf16.mxu0 0
      %4518 = vmatmul.mubr.bf16.gmra.mxu0 %v4375
      %v4519 = vpop.f32.mrf.mxu0
      %v4520 = vadd.f32 %v4219, %v4519
      %v4521 = vpop.f32.mrf.mxu0
      %v4522 = vpop.f32.mrf.mxu0
      %v4523 = vadd.f32 %v4222, %v4522
      %v4524 = vpop.f32.mrf.mxu0
      %4525 = vmatprep.mubr.bf16.mxu0 0
      %4526 = vmatmul.mubr.bf16.gmra.mxu0 %v4378
      %v4527 = vpop.f32.mrf.mxu0
      %v4528 = vadd.f32 %v4227, %v4527
      %v4529 = vpop.f32.mrf.mxu0
      %v4530 = vpop.f32.mrf.mxu0
      %v4531 = vadd.f32 %v4230, %v4530
      %v4532 = vpop.f32.mrf.mxu0
      %4533 = vmatprep.mubr.bf16.mxu0 0
      %4534 = vmatmul.mubr.bf16.gmra.mxu0 %v4381
      %v4535 = vpop.f32.mrf.mxu0
      %v4536 = vadd.f32 %v4235, %v4535
      %v4537 = vpop.f32.mrf.mxu0
      %v4538 = vpop.f32.mrf.mxu0
      %v4539 = vadd.f32 %v4238, %v4538
      %v4540 = vpop.f32.mrf.mxu0
      %4541 = vmatprep.mubr.bf16.mxu0 0
      %4542 = vmatmul.mubr.bf16.gmra.mxu0 %v4384
      %v4543 = vpop.f32.mrf.mxu0
      %v4544 = vadd.f32 %v4243, %v4543
      %v4545 = vpop.f32.mrf.mxu0
      %v4546 = vpop.f32.mrf.mxu0
      %v4547 = vadd.f32 %v4246, %v4546
      %v4548 = vpop.f32.mrf.mxu0
      %4549 = vdwg.mxu0
      %s4550 = scalar_lea.vmem [#allocation5], 16
      %v4551 = vld [vmem:[%s4550] sm:$0xf]
      %v4552 = vld [vmem:[%s4550 + $0x4] sm:$0xf]
      %v4553 = vld [vmem:[%s4550 + $0x8] sm:$0xf]
      %v4554 = vld [vmem:[%s4550 + $0xc] sm:$0xf]
      %v4555 = vld [vmem:[%s4550 + $0x10] sm:$0xf]
      %v4556 = vld [vmem:[%s4550 + $0x14] sm:$0xf]
      %v4557 = vld [vmem:[%s4550 + $0x18] sm:$0xf]
      %v4558 = vld [vmem:[%s4550 + $0x1c] sm:$0xf]
      %v4559 = vld [vmem:[%s4550 + $0x20] sm:$0xf]
      %v4560 = vld [vmem:[%s4550 + $0x24] sm:$0xf]
      %v4561 = vld [vmem:[%s4550 + $0x28] sm:$0xf]
      %v4562 = vld [vmem:[%s4550 + $0x2c] sm:$0xf]
      %v4563 = vld [vmem:[%s4550 + $0x30] sm:$0xf]
      %v4564 = vld [vmem:[%s4550 + $0x34] sm:$0xf]
      %v4565 = vld [vmem:[%s4550 + $0x38] sm:$0xf]
      %v4566 = vld [vmem:[%s4550 + $0x3c] sm:$0xf]
      %v4567 = vld [vmem:[%s4550 + $0x40] sm:$0xf]
      %v4568 = vld [vmem:[%s4550 + $0x44] sm:$0xf]
      %v4569 = vld [vmem:[%s4550 + $0x48] sm:$0xf]
      %v4570 = vld [vmem:[%s4550 + $0x4c] sm:$0xf]
      %v4571 = vld [vmem:[%s4550 + $0x50] sm:$0xf]
      %v4572 = vld [vmem:[%s4550 + $0x54] sm:$0xf]
      %v4573 = vld [vmem:[%s4550 + $0x58] sm:$0xf]
      %v4574 = vld [vmem:[%s4550 + $0x5c] sm:$0xf]
      %v4575 = vld [vmem:[%s4550 + $0x60] sm:$0xf]
      %v4576 = vld [vmem:[%s4550 + $0x64] sm:$0xf]
      %v4577 = vld [vmem:[%s4550 + $0x68] sm:$0xf]
      %v4578 = vld [vmem:[%s4550 + $0x6c] sm:$0xf]
      %v4579 = vld [vmem:[%s4550 + $0x70] sm:$0xf]
      %v4580 = vld [vmem:[%s4550 + $0x74] sm:$0xf]
      %v4581 = vld [vmem:[%s4550 + $0x78] sm:$0xf]
      %v4582 = vld [vmem:[%s4550 + $0x7c] sm:$0xf]
      %s4583 = scalar_lea.vmem %s3, 24
      %v4584 = vld [vmem:[%s4583] sm:$0xf]
      %v4585 = vld [vmem:[%s4583 + $0x4] sm:$0xf]
      %v4586 = vld [vmem:[%s4583 + $0x8] sm:$0x1]
      %v4619 = vunpack.c.l.b16 %v4551
      %v4620 = vunpack.c.l.b16 %v4552
      %v4621 = vunpack.c.l.b16 %v4553
      %v4622 = vunpack.c.l.b16 %v4554
      %v4623 = vunpack.c.l.b16 %v4555
      %v4624 = vunpack.c.l.b16 %v4556
      %v4625 = vunpack.c.l.b16 %v4557
      %v4626 = vunpack.c.l.b16 %v4558
      %v4627 = vunpack.c.l.b16 %v4559
      %v4628 = vunpack.c.l.b16 %v4560
      %v4629 = vunpack.c.l.b16 %v4561
      %v4630 = vunpack.c.l.b16 %v4562
      %v4631 = vunpack.c.l.b16 %v4563
      %v4632 = vunpack.c.l.b16 %v4564
      %v4633 = vunpack.c.l.b16 %v4565
      %v4634 = vunpack.c.l.b16 %v4566
      %v4635 = vunpack.c.l.b16 %v4567
      %v4636 = vunpack.c.l.b16 %v4568
      %v4637 = vunpack.c.l.b16 %v4569
      %v4638 = vunpack.c.l.b16 %v4570
      %v4639 = vunpack.c.l.b16 %v4571
      %v4640 = vunpack.c.l.b16 %v4572
      %v4641 = vunpack.c.l.b16 %v4573
      %v4642 = vunpack.c.l.b16 %v4574
      %v4643 = vunpack.c.l.b16 %v4575
      %v4644 = vunpack.c.l.b16 %v4576
      %v4645 = vunpack.c.l.b16 %v4577
      %v4646 = vunpack.c.l.b16 %v4578
      %v4647 = vunpack.c.l.b16 %v4579
      %v4648 = vunpack.c.l.b16 %v4580
      %v4649 = vunpack.c.l.b16 %v4581
      %v4650 = vunpack.c.l.b16 %v4582
      %v4651 = vpack.c.b16 %v4620, %v4619
      %v4652 = vpack.c.b16 %v4622, %v4621
      %v4653 = vpack.c.b16 %v4624, %v4623
      %v4654 = vpack.c.b16 %v4626, %v4625
      %v4655 = vpack.c.b16 %v4628, %v4627
      %v4656 = vpack.c.b16 %v4630, %v4629
      %v4657 = vpack.c.b16 %v4632, %v4631
      %v4658 = vpack.c.b16 %v4634, %v4633
      %v4659 = vpack.c.b16 %v4636, %v4635
      %v4660 = vpack.c.b16 %v4638, %v4637
      %v4661 = vpack.c.b16 %v4640, %v4639
      %v4662 = vpack.c.b16 %v4642, %v4641
      %v4663 = vpack.c.b16 %v4644, %v4643
      %v4664 = vpack.c.b16 %v4646, %v4645
      %v4665 = vpack.c.b16 %v4648, %v4647
      %v4666 = vpack.c.b16 %v4650, %v4649
      %v4670 = vunpack.c.l.b16 %v4584
      %v4671 = vunpack.c.l.b16 %v4585
      %v4672 = vunpack.c.l.b16 %v4586
      %v4673 = vpack.c.b16 %v4671, %v4670
      %v4674 = vpack.c.b16 %v4672, %v4672
      %v4677 = vsel %vm4035, %v4651, 0
      %v4680 = vsel %vm4035, %v4652, 0
      %v4683 = vsel %vm4035, %v4653, 0
      %v4686 = vsel %vm4035, %v4654, 0
      %v4689 = vsel %vm4035, %v4655, 0
      %v4692 = vsel %vm4035, %v4656, 0
      %v4695 = vsel %vm4035, %v4657, 0
      %v4698 = vsel %vm4035, %v4658, 0
      %v4701 = vsel %vm4035, %v4659, 0
      %v4704 = vsel %vm4035, %v4660, 0
      %v4707 = vsel %vm4035, %v4661, 0
      %v4710 = vsel %vm4035, %v4662, 0
      %v4713 = vsel %vm4035, %v4663, 0
      %v4716 = vsel %vm4035, %v4664, 0
      %v4719 = vsel %vm4035, %v4665, 0
      %v4722 = vsel %vm4035, %v4666, 0
      %v4725 = vsel %vm4084, %v4674, 0
      %4727 = vmatprep.subr.bf16.mxu0 0
      %4728 = vmatpush1.bf16.msra.mxu0 0
      %4729 = vmatprep.subr.bf16.mxu0 0
      %4730 = vmatpush1.bf16.msra.mxu0 0
      %4731 = vmatprep.subr.bf16.mxu0 0
      %4732 = vmatpush1.bf16.msra.mxu0 0
      %4733 = vmatprep.subr.bf16.mxu0 0
      %4734 = vmatpush1.bf16.msra.mxu0 0
      %4735 = vmatprep.subr.bf16.mxu0 0
      %4736 = vmatpush1.bf16.msra.mxu0 0
      %4737 = vmatprep.subr.bf16.mxu0 0
      %4738 = vmatpush1.bf16.msra.mxu0 0
      %4739 = vmatprep.subr.bf16.mxu0 0
      %4740 = vmatpush1.bf16.msra.mxu0 %v4725
      %4741 = vmatprep.subr.bf16.mxu0 0
      %4742 = vmatpush1.bf16.msra.mxu0 %v4673
      %4743 = vmatprep.subr.bf16.mxu0 0
      %4744 = vmatpush2.bf16.msra.mxu0 0
      %4745 = vmatprep.subr.bf16.mxu0 0
      %4746 = vmatpush2.bf16.msra.mxu0 0
      %4747 = vmatprep.subr.bf16.mxu0 0
      %4748 = vmatpush2.bf16.msra.mxu0 0
      %4749 = vmatprep.subr.bf16.mxu0 0
      %4750 = vmatpush2.bf16.msra.mxu0 0
      %4751 = vmatprep.subr.bf16.mxu0 0
      %4752 = vmatpush2.bf16.msra.mxu0 0
      %4753 = vmatprep.subr.bf16.mxu0 0
      %4754 = vmatpush2.bf16.msra.mxu0 0
      %4755 = vmatprep.subr.bf16.mxu0 0
      %4756 = vmatpush2.bf16.msra.mxu0 0
      %4757 = vmatprep.subr.bf16.mxu0 0
      %4758 = vmatpush2.bf16.msra.mxu0 0
      %4759 = vmatprep.mubr.bf16.mxu0 0
      %4760 = vmatmul.mubr.bf16.gmra.mxu0 %v4677
      %v4761 = vpop.f32.mrf.mxu0
      %v4762 = vadd.f32 0.0, %v4761
      %v4763 = vpop.f32.mrf.mxu0
      %v4764 = vpop.f32.mrf.mxu0
      %v4765 = vadd.f32 0.0, %v4764
      %v4766 = vpop.f32.mrf.mxu0
      %4767 = vmatprep.mubr.bf16.mxu0 0
      %4768 = vmatmul.mubr.bf16.gmra.mxu0 %v4680
      %v4769 = vpop.f32.mrf.mxu0
      %v4770 = vadd.f32 0.0, %v4769
      %v4771 = vpop.f32.mrf.mxu0
      %v4772 = vpop.f32.mrf.mxu0
      %v4773 = vadd.f32 0.0, %v4772
      %v4774 = vpop.f32.mrf.mxu0
      %4775 = vmatprep.mubr.bf16.mxu0 0
      %4776 = vmatmul.mubr.bf16.gmra.mxu0 %v4683
      %v4777 = vpop.f32.mrf.mxu0
      %v4778 = vadd.f32 0.0, %v4777
      %v4779 = vpop.f32.mrf.mxu0
      %v4780 = vpop.f32.mrf.mxu0
      %v4781 = vadd.f32 0.0, %v4780
      %v4782 = vpop.f32.mrf.mxu0
      %4783 = vmatprep.mubr.bf16.mxu0 0
      %4784 = vmatmul.mubr.bf16.gmra.mxu0 %v4686
      %v4785 = vpop.f32.mrf.mxu0
      %v4786 = vadd.f32 0.0, %v4785
      %v4787 = vpop.f32.mrf.mxu0
      %v4788 = vpop.f32.mrf.mxu0
      %v4789 = vadd.f32 0.0, %v4788
      %v4790 = vpop.f32.mrf.mxu0
      %4791 = vmatprep.mubr.bf16.mxu0 0
      %4792 = vmatmul.mubr.bf16.gmra.mxu0 %v4689
      %v4793 = vpop.f32.mrf.mxu0
      %v4794 = vadd.f32 0.0, %v4793
      %v4795 = vpop.f32.mrf.mxu0
      %v4796 = vpop.f32.mrf.mxu0
      %v4797 = vadd.f32 0.0, %v4796
      %v4798 = vpop.f32.mrf.mxu0
      %4799 = vmatprep.mubr.bf16.mxu0 0
      %4800 = vmatmul.mubr.bf16.gmra.mxu0 %v4692
      %v4801 = vpop.f32.mrf.mxu0
      %v4802 = vadd.f32 0.0, %v4801
      %v4803 = vpop.f32.mrf.mxu0
      %v4804 = vpop.f32.mrf.mxu0
      %v4805 = vadd.f32 0.0, %v4804
      %v4806 = vpop.f32.mrf.mxu0
      %4807 = vmatprep.mubr.bf16.mxu0 0
      %4808 = vmatmul.mubr.bf16.gmra.mxu0 %v4695
      %v4809 = vpop.f32.mrf.mxu0
      %v4810 = vadd.f32 0.0, %v4809
      %v4811 = vpop.f32.mrf.mxu0
      %v4812 = vpop.f32.mrf.mxu0
      %v4813 = vadd.f32 0.0, %v4812
      %v4814 = vpop.f32.mrf.mxu0
      %4815 = vmatprep.mubr.bf16.mxu0 0
      %4816 = vmatmul.mubr.bf16.gmra.mxu0 %v4698
      %v4817 = vpop.f32.mrf.mxu0
      %v4818 = vadd.f32 0.0, %v4817
      %v4819 = vpop.f32.mrf.mxu0
      %v4820 = vpop.f32.mrf.mxu0
      %v4821 = vadd.f32 0.0, %v4820
      %v4822 = vpop.f32.mrf.mxu0
      %4823 = vmatprep.mubr.bf16.mxu0 0
      %4824 = vmatmul.mubr.bf16.gmra.mxu0 %v4701
      %v4825 = vpop.f32.mrf.mxu0
      %v4826 = vadd.f32 0.0, %v4825
      %v4827 = vpop.f32.mrf.mxu0
      %v4828 = vpop.f32.mrf.mxu0
      %v4829 = vadd.f32 0.0, %v4828
      %v4830 = vpop.f32.mrf.mxu0
      %4831 = vmatprep.mubr.bf16.mxu0 0
      %4832 = vmatmul.mubr.bf16.gmra.mxu0 %v4704
      %v4833 = vpop.f32.mrf.mxu0
      %v4834 = vadd.f32 0.0, %v4833
      %v4835 = vpop.f32.mrf.mxu0
      %v4836 = vpop.f32.mrf.mxu0
      %v4837 = vadd.f32 0.0, %v4836
      %v4838 = vpop.f32.mrf.mxu0
      %4839 = vmatprep.mubr.bf16.mxu0 0
      %4840 = vmatmul.mubr.bf16.gmra.mxu0 %v4707
      %v4841 = vpop.f32.mrf.mxu0
      %v4842 = vadd.f32 0.0, %v4841
      %v4843 = vpop.f32.mrf.mxu0
      %v4844 = vpop.f32.mrf.mxu0
      %v4845 = vadd.f32 0.0, %v4844
      %v4846 = vpop.f32.mrf.mxu0
      %4847 = vmatprep.mubr.bf16.mxu0 0
      %4848 = vmatmul.mubr.bf16.gmra.mxu0 %v4710
      %v4849 = vpop.f32.mrf.mxu0
      %v4850 = vadd.f32 0.0, %v4849
      %v4851 = vpop.f32.mrf.mxu0
      %v4852 = vpop.f32.mrf.mxu0
      %v4853 = vadd.f32 0.0, %v4852
      %v4854 = vpop.f32.mrf.mxu0
      %4855 = vmatprep.mubr.bf16.mxu0 0
      %4856 = vmatmul.mubr.bf16.gmra.mxu0 %v4713
      %v4857 = vpop.f32.mrf.mxu0
      %v4858 = vadd.f32 0.0, %v4857
      %v4859 = vpop.f32.mrf.mxu0
      %v4860 = vpop.f32.mrf.mxu0
      %v4861 = vadd.f32 0.0, %v4860
      %v4862 = vpop.f32.mrf.mxu0
      %4863 = vmatprep.mubr.bf16.mxu0 0
      %4864 = vmatmul.mubr.bf16.gmra.mxu0 %v4716
      %v4865 = vpop.f32.mrf.mxu0
      %v4866 = vadd.f32 0.0, %v4865
      %v4867 = vpop.f32.mrf.mxu0
      %v4868 = vpop.f32.mrf.mxu0
      %v4869 = vadd.f32 0.0, %v4868
      %v4870 = vpop.f32.mrf.mxu0
      %4871 = vmatprep.mubr.bf16.mxu0 0
      %4872 = vmatmul.mubr.bf16.gmra.mxu0 %v4719
      %v4873 = vpop.f32.mrf.mxu0
      %v4874 = vadd.f32 0.0, %v4873
      %v4875 = vpop.f32.mrf.mxu0
      %v4876 = vpop.f32.mrf.mxu0
      %v4877 = vadd.f32 0.0, %v4876
      %v4878 = vpop.f32.mrf.mxu0
      %4879 = vmatprep.mubr.bf16.mxu0 0
      %4880 = vmatmul.mubr.bf16.gmra.mxu0 %v4722
      %v4881 = vpop.f32.mrf.mxu0
      %v4882 = vadd.f32 0.0, %v4881
      %v4883 = vpop.f32.mrf.mxu0
      %v4884 = vpop.f32.mrf.mxu0
      %v4885 = vadd.f32 0.0, %v4884
      %v4886 = vpop.f32.mrf.mxu0
      %4887 = vdwg.mxu0
      %v4888 = vadd.f32 %v4424, %v4762
      %v4889 = vadd.f32 %v4427, %v4765
      %v4890 = vadd.f32 %v4432, %v4770
      %v4891 = vadd.f32 %v4435, %v4773
      %v4892 = vadd.f32 %v4440, %v4778
      %v4893 = vadd.f32 %v4443, %v4781
      %v4894 = vadd.f32 %v4448, %v4786
      %v4895 = vadd.f32 %v4451, %v4789
      %v4896 = vadd.f32 %v4456, %v4794
      %v4897 = vadd.f32 %v4459, %v4797
      %v4898 = vadd.f32 %v4464, %v4802
      %v4899 = vadd.f32 %v4467, %v4805
      %v4900 = vadd.f32 %v4472, %v4810
      %v4901 = vadd.f32 %v4475, %v4813
      %v4902 = vadd.f32 %v4480, %v4818
      %v4903 = vadd.f32 %v4483, %v4821
      %v4904 = vadd.f32 %v4488, %v4826
      %v4905 = vadd.f32 %v4491, %v4829
      %v4906 = vadd.f32 %v4496, %v4834
      %v4907 = vadd.f32 %v4499, %v4837
      %v4908 = vadd.f32 %v4504, %v4842
      %v4909 = vadd.f32 %v4507, %v4845
      %v4910 = vadd.f32 %v4512, %v4850
      %v4911 = vadd.f32 %v4515, %v4853
      %v4912 = vadd.f32 %v4520, %v4858
      %v4913 = vadd.f32 %v4523, %v4861
      %v4914 = vadd.f32 %v4528, %v4866
      %v4915 = vadd.f32 %v4531, %v4869
      %v4916 = vadd.f32 %v4536, %v4874
      %v4917 = vadd.f32 %v4539, %v4877
      %v4918 = vadd.f32 %v4544, %v4882
      %v4919 = vadd.f32 %v4547, %v4885
      %v4920 = vld [vmem:[#allocation6] sm:$0xf]
      %v4921 = vld [vmem:[#allocation6 + $0x4] sm:$0xf]
      %v4922 = vld [vmem:[#allocation6 + $0x8] sm:$0xf]
      %v4923 = vld [vmem:[#allocation6 + $0xc] sm:$0xf]
      %v4924 = vld [vmem:[#allocation6 + $0x10] sm:$0xf]
      %v4925 = vld [vmem:[#allocation6 + $0x14] sm:$0xf]
      %v4926 = vld [vmem:[#allocation6 + $0x18] sm:$0xf]
      %v4927 = vld [vmem:[#allocation6 + $0x1c] sm:$0xf]
      %v4928 = vld [vmem:[#allocation6 + $0x20] sm:$0xf]
      %v4929 = vld [vmem:[#allocation6 + $0x24] sm:$0xf]
      %v4930 = vld [vmem:[#allocation6 + $0x28] sm:$0xf]
      %v4931 = vld [vmem:[#allocation6 + $0x2c] sm:$0xf]
      %v4932 = vld [vmem:[#allocation6 + $0x30] sm:$0xf]
      %v4933 = vld [vmem:[#allocation6 + $0x34] sm:$0xf]
      %v4934 = vld [vmem:[#allocation6 + $0x38] sm:$0xf]
      %v4935 = vld [vmem:[#allocation6 + $0x3c] sm:$0xf]
      %v4936 = vld [vmem:[#allocation6 + $0x40] sm:$0xf]
      %v4937 = vld [vmem:[#allocation6 + $0x44] sm:$0xf]
      %v4938 = vld [vmem:[#allocation6 + $0x48] sm:$0xf]
      %v4939 = vld [vmem:[#allocation6 + $0x4c] sm:$0xf]
      %v4940 = vld [vmem:[#allocation6 + $0x50] sm:$0xf]
      %v4941 = vld [vmem:[#allocation6 + $0x54] sm:$0xf]
      %v4942 = vld [vmem:[#allocation6 + $0x58] sm:$0xf]
      %v4943 = vld [vmem:[#allocation6 + $0x5c] sm:$0xf]
      %v4944 = vld [vmem:[#allocation6 + $0x60] sm:$0xf]
      %v4945 = vld [vmem:[#allocation6 + $0x64] sm:$0xf]
      %v4946 = vld [vmem:[#allocation6 + $0x68] sm:$0xf]
      %v4947 = vld [vmem:[#allocation6 + $0x6c] sm:$0xf]
      %v4948 = vld [vmem:[#allocation6 + $0x70] sm:$0xf]
      %v4949 = vld [vmem:[#allocation6 + $0x74] sm:$0xf]
      %v4950 = vld [vmem:[#allocation6 + $0x78] sm:$0xf]
      %v4951 = vld [vmem:[#allocation6 + $0x7c] sm:$0xf]
      %v4952 = vld [vmem:[%s4] sm:$0xf]
      %v4953 = vld [vmem:[%s4 + $0x4] sm:$0x3]
      %s4954 = scalar_lea.vmem [#allocation6], 8
      %v4955 = vld [vmem:[%s4954] sm:$0xf]
      %v4956 = vld [vmem:[%s4954 + $0x4] sm:$0xf]
      %v4957 = vld [vmem:[%s4954 + $0x8] sm:$0xf]
      %v4958 = vld [vmem:[%s4954 + $0xc] sm:$0xf]
      %v4959 = vld [vmem:[%s4954 + $0x10] sm:$0xf]
      %v4960 = vld [vmem:[%s4954 + $0x14] sm:$0xf]
      %v4961 = vld [vmem:[%s4954 + $0x18] sm:$0xf]
      %v4962 = vld [vmem:[%s4954 + $0x1c] sm:$0xf]
      %v4963 = vld [vmem:[%s4954 + $0x20] sm:$0xf]
      %v4964 = vld [vmem:[%s4954 + $0x24] sm:$0xf]
      %v4965 = vld [vmem:[%s4954 + $0x28] sm:$0xf]
      %v4966 = vld [vmem:[%s4954 + $0x2c] sm:$0xf]
      %v4967 = vld [vmem:[%s4954 + $0x30] sm:$0xf]
      %v4968 = vld [vmem:[%s4954 + $0x34] sm:$0xf]
      %v4969 = vld [vmem:[%s4954 + $0x38] sm:$0xf]
      %v4970 = vld [vmem:[%s4954 + $0x3c] sm:$0xf]
      %v4971 = vld [vmem:[%s4954 + $0x40] sm:$0xf]
      %v4972 = vld [vmem:[%s4954 + $0x44] sm:$0xf]
      %v4973 = vld [vmem:[%s4954 + $0x48] sm:$0xf]
      %v4974 = vld [vmem:[%s4954 + $0x4c] sm:$0xf]
      %v4975 = vld [vmem:[%s4954 + $0x50] sm:$0xf]
      %v4976 = vld [vmem:[%s4954 + $0x54] sm:$0xf]
      %v4977 = vld [vmem:[%s4954 + $0x58] sm:$0xf]
      %v4978 = vld [vmem:[%s4954 + $0x5c] sm:$0xf]
      %v4979 = vld [vmem:[%s4954 + $0x60] sm:$0xf]
      %v4980 = vld [vmem:[%s4954 + $0x64] sm:$0xf]
      %v4981 = vld [vmem:[%s4954 + $0x68] sm:$0xf]
      %v4982 = vld [vmem:[%s4954 + $0x6c] sm:$0xf]
      %v4983 = vld [vmem:[%s4954 + $0x70] sm:$0xf]
      %v4984 = vld [vmem:[%s4954 + $0x74] sm:$0xf]
      %v4985 = vld [vmem:[%s4954 + $0x78] sm:$0xf]
      %v4986 = vld [vmem:[%s4954 + $0x7c] sm:$0xf]
      %s4987 = scalar_lea.vmem %s4, 8
      %v4988 = vld [vmem:[%s4987] sm:$0xf]
      %v4989 = vld [vmem:[%s4987 + $0x4] sm:$0x3]
      %v5022 = vunpack.c.l.b16 %v4955
      %v5023 = vunpack.c.l.b16 %v4956
      %v5024 = vunpack.c.l.b16 %v4957
      %v5025 = vunpack.c.l.b16 %v4958
      %v5026 = vunpack.c.l.b16 %v4959
      %v5027 = vunpack.c.l.b16 %v4960
      %v5028 = vunpack.c.l.b16 %v4961
      %v5029 = vunpack.c.l.b16 %v4962
      %v5030 = vunpack.c.l.b16 %v4963
      %v5031 = vunpack.c.l.b16 %v4964
      %v5032 = vunpack.c.l.b16 %v4965
      %v5033 = vunpack.c.l.b16 %v4966
      %v5034 = vunpack.c.l.b16 %v4967
      %v5035 = vunpack.c.l.b16 %v4968
      %v5036 = vunpack.c.l.b16 %v4969
      %v5037 = vunpack.c.l.b16 %v4970
      %v5038 = vunpack.c.l.b16 %v4971
      %v5039 = vunpack.c.l.b16 %v4972
      %v5040 = vunpack.c.l.b16 %v4973
      %v5041 = vunpack.c.l.b16 %v4974
      %v5042 = vunpack.c.l.b16 %v4975
      %v5043 = vunpack.c.l.b16 %v4976
      %v5044 = vunpack.c.l.b16 %v4977
      %v5045 = vunpack.c.l.b16 %v4978
      %v5046 = vunpack.c.l.b16 %v4979
      %v5047 = vunpack.c.l.b16 %v4980
      %v5048 = vunpack.c.l.b16 %v4981
      %v5049 = vunpack.c.l.b16 %v4982
      %v5050 = vunpack.c.l.b16 %v4983
      %v5051 = vunpack.c.l.b16 %v4984
      %v5052 = vunpack.c.l.b16 %v4985
      %v5053 = vunpack.c.l.b16 %v4986
      %v5054 = vpack.c.b16 %v5023, %v5022
      %v5055 = vpack.c.b16 %v5025, %v5024
      %v5056 = vpack.c.b16 %v5027, %v5026
      %v5057 = vpack.c.b16 %v5029, %v5028
      %v5058 = vpack.c.b16 %v5031, %v5030
      %v5059 = vpack.c.b16 %v5033, %v5032
      %v5060 = vpack.c.b16 %v5035, %v5034
      %v5061 = vpack.c.b16 %v5037, %v5036
      %v5062 = vpack.c.b16 %v5039, %v5038
      %v5063 = vpack.c.b16 %v5041, %v5040
      %v5064 = vpack.c.b16 %v5043, %v5042
      %v5065 = vpack.c.b16 %v5045, %v5044
      %v5066 = vpack.c.b16 %v5047, %v5046
      %v5067 = vpack.c.b16 %v5049, %v5048
      %v5068 = vpack.c.b16 %v5051, %v5050
      %v5069 = vpack.c.b16 %v5053, %v5052
      %v5072 = vunpack.c.l.b16 %v4988
      %v5073 = vunpack.c.l.b16 %v4989
      %v5074 = vpack.c.b16 %v5073, %v5072
      %v5076 = vsel %vm2825, %v5054, 0
      %v5079 = vsel %vm2825, %v5055, 0
      %v5082 = vsel %vm2825, %v5056, 0
      %v5085 = vsel %vm2825, %v5057, 0
      %v5088 = vsel %vm2825, %v5058, 0
      %v5091 = vsel %vm2825, %v5059, 0
      %v5094 = vsel %vm2825, %v5060, 0
      %v5097 = vsel %vm2825, %v5061, 0
      %v5100 = vsel %vm2825, %v5062, 0
      %v5103 = vsel %vm2825, %v5063, 0
      %v5106 = vsel %vm2825, %v5064, 0
      %v5109 = vsel %vm2825, %v5065, 0
      %v5112 = vsel %vm2825, %v5066, 0
      %v5115 = vsel %vm2825, %v5067, 0
      %v5118 = vsel %vm2825, %v5068, 0
      %v5121 = vsel %vm2825, %v5069, 0
      %vm5123 = vcmask 1045504
      %v5125 = vsel %vm5123, %v5074, 0
      %5127 = vmatprep.subr.bf16.mxu0 0
      %5128 = vmatpush1.bf16.msra.mxu0 0
      %5129 = vmatprep.subr.bf16.mxu0 0
      %5130 = vmatpush1.bf16.msra.mxu0 0
      %5131 = vmatprep.subr.bf16.mxu0 0
      %5132 = vmatpush1.bf16.msra.mxu0 0
      %5133 = vmatprep.subr.bf16.mxu0 0
      %5134 = vmatpush1.bf16.msra.mxu0 0
      %5135 = vmatprep.subr.bf16.mxu0 0
      %5136 = vmatpush1.bf16.msra.mxu0 0
      %5137 = vmatprep.subr.bf16.mxu0 0
      %5138 = vmatpush1.bf16.msra.mxu0 0
      %5139 = vmatprep.subr.bf16.mxu0 0
      %5140 = vmatpush1.bf16.msra.mxu0 0
      %5141 = vmatprep.subr.bf16.mxu0 0
      %5142 = vmatpush1.bf16.msra.mxu0 %v5125
      %5143 = vmatprep.subr.bf16.mxu0 0
      %5144 = vmatpush2.bf16.msra.mxu0 0
      %5145 = vmatprep.subr.bf16.mxu0 0
      %5146 = vmatpush2.bf16.msra.mxu0 0
      %5147 = vmatprep.subr.bf16.mxu0 0
      %5148 = vmatpush2.bf16.msra.mxu0 0
      %5149 = vmatprep.subr.bf16.mxu0 0
      %5150 = vmatpush2.bf16.msra.mxu0 0
      %5151 = vmatprep.subr.bf16.mxu0 0
      %5152 = vmatpush2.bf16.msra.mxu0 0
      %5153 = vmatprep.subr.bf16.mxu0 0
      %5154 = vmatpush2.bf16.msra.mxu0 0
      %5155 = vmatprep.subr.bf16.mxu0 0
      %5156 = vmatpush2.bf16.msra.mxu0 0
      %5157 = vmatprep.subr.bf16.mxu0 0
      %5158 = vmatpush2.bf16.msra.mxu0 0
      %5159 = vmatprep.mubr.bf16.mxu0 0
      %5160 = vmatmul.mubr.bf16.gmra.mxu0 %v5076
      %v5161 = vpop.f32.mrf.mxu0
      %v5162 = vadd.f32 0.0, %v5161
      %v5163 = vpop.f32.mrf.mxu0
      %v5164 = vpop.f32.mrf.mxu0
      %v5165 = vadd.f32 0.0, %v5164
      %v5166 = vpop.f32.mrf.mxu0
      %5167 = vmatprep.mubr.bf16.mxu0 0
      %5168 = vmatmul.mubr.bf16.gmra.mxu0 %v5079
      %v5169 = vpop.f32.mrf.mxu0
      %v5170 = vadd.f32 0.0, %v5169
      %v5171 = vpop.f32.mrf.mxu0
      %v5172 = vpop.f32.mrf.mxu0
      %v5173 = vadd.f32 0.0, %v5172
      %v5174 = vpop.f32.mrf.mxu0
      %5175 = vmatprep.mubr.bf16.mxu0 0
      %5176 = vmatmul.mubr.bf16.gmra.mxu0 %v5082
      %v5177 = vpop.f32.mrf.mxu0
      %v5178 = vadd.f32 0.0, %v5177
      %v5179 = vpop.f32.mrf.mxu0
      %v5180 = vpop.f32.mrf.mxu0
      %v5181 = vadd.f32 0.0, %v5180
      %v5182 = vpop.f32.mrf.mxu0
      %5183 = vmatprep.mubr.bf16.mxu0 0
      %5184 = vmatmul.mubr.bf16.gmra.mxu0 %v5085
      %v5185 = vpop.f32.mrf.mxu0
      %v5186 = vadd.f32 0.0, %v5185
      %v5187 = vpop.f32.mrf.mxu0
      %v5188 = vpop.f32.mrf.mxu0
      %v5189 = vadd.f32 0.0, %v5188
      %v5190 = vpop.f32.mrf.mxu0
      %5191 = vmatprep.mubr.bf16.mxu0 0
      %5192 = vmatmul.mubr.bf16.gmra.mxu0 %v5088
      %v5193 = vpop.f32.mrf.mxu0
      %v5194 = vadd.f32 0.0, %v5193
      %v5195 = vpop.f32.mrf.mxu0
      %v5196 = vpop.f32.mrf.mxu0
      %v5197 = vadd.f32 0.0, %v5196
      %v5198 = vpop.f32.mrf.mxu0
      %5199 = vmatprep.mubr.bf16.mxu0 0
      %5200 = vmatmul.mubr.bf16.gmra.mxu0 %v5091
      %v5201 = vpop.f32.mrf.mxu0
      %v5202 = vadd.f32 0.0, %v5201
      %v5203 = vpop.f32.mrf.mxu0
      %v5204 = vpop.f32.mrf.mxu0
      %v5205 = vadd.f32 0.0, %v5204
      %v5206 = vpop.f32.mrf.mxu0
      %5207 = vmatprep.mubr.bf16.mxu0 0
      %5208 = vmatmul.mubr.bf16.gmra.mxu0 %v5094
      %v5209 = vpop.f32.mrf.mxu0
      %v5210 = vadd.f32 0.0, %v5209
      %v5211 = vpop.f32.mrf.mxu0
      %v5212 = vpop.f32.mrf.mxu0
      %v5213 = vadd.f32 0.0, %v5212
      %v5214 = vpop.f32.mrf.mxu0
      %5215 = vmatprep.mubr.bf16.mxu0 0
      %5216 = vmatmul.mubr.bf16.gmra.mxu0 %v5097
      %v5217 = vpop.f32.mrf.mxu0
      %v5218 = vadd.f32 0.0, %v5217
      %v5219 = vpop.f32.mrf.mxu0
      %v5220 = vpop.f32.mrf.mxu0
      %v5221 = vadd.f32 0.0, %v5220
      %v5222 = vpop.f32.mrf.mxu0
      %5223 = vmatprep.mubr.bf16.mxu0 0
      %5224 = vmatmul.mubr.bf16.gmra.mxu0 %v5100
      %v5225 = vpop.f32.mrf.mxu0
      %v5226 = vadd.f32 0.0, %v5225
      %v5227 = vpop.f32.mrf.mxu0
      %v5228 = vpop.f32.mrf.mxu0
      %v5229 = vadd.f32 0.0, %v5228
      %v5230 = vpop.f32.mrf.mxu0
      %5231 = vmatprep.mubr.bf16.mxu0 0
      %5232 = vmatmul.mubr.bf16.gmra.mxu0 %v5103
      %v5233 = vpop.f32.mrf.mxu0
      %v5234 = vadd.f32 0.0, %v5233
      %v5235 = vpop.f32.mrf.mxu0
      %v5236 = vpop.f32.mrf.mxu0
      %v5237 = vadd.f32 0.0, %v5236
      %v5238 = vpop.f32.mrf.mxu0
      %5239 = vmatprep.mubr.bf16.mxu0 0
      %5240 = vmatmul.mubr.bf16.gmra.mxu0 %v5106
      %v5241 = vpop.f32.mrf.mxu0
      %v5242 = vadd.f32 0.0, %v5241
      %v5243 = vpop.f32.mrf.mxu0
      %v5244 = vpop.f32.mrf.mxu0
      %v5245 = vadd.f32 0.0, %v5244
      %v5246 = vpop.f32.mrf.mxu0
      %5247 = vmatprep.mubr.bf16.mxu0 0
      %5248 = vmatmul.mubr.bf16.gmra.mxu0 %v5109
      %v5249 = vpop.f32.mrf.mxu0
      %v5250 = vadd.f32 0.0, %v5249
      %v5251 = vpop.f32.mrf.mxu0
      %v5252 = vpop.f32.mrf.mxu0
      %v5253 = vadd.f32 0.0, %v5252
      %v5254 = vpop.f32.mrf.mxu0
      %5255 = vmatprep.mubr.bf16.mxu0 0
      %5256 = vmatmul.mubr.bf16.gmra.mxu0 %v5112
      %v5257 = vpop.f32.mrf.mxu0
      %v5258 = vadd.f32 0.0, %v5257
      %v5259 = vpop.f32.mrf.mxu0
      %v5260 = vpop.f32.mrf.mxu0
      %v5261 = vadd.f32 0.0, %v5260
      %v5262 = vpop.f32.mrf.mxu0
      %5263 = vmatprep.mubr.bf16.mxu0 0
      %5264 = vmatmul.mubr.bf16.gmra.mxu0 %v5115
      %v5265 = vpop.f32.mrf.mxu0
      %v5266 = vadd.f32 0.0, %v5265
      %v5267 = vpop.f32.mrf.mxu0
      %v5268 = vpop.f32.mrf.mxu0
      %v5269 = vadd.f32 0.0, %v5268
      %v5270 = vpop.f32.mrf.mxu0
      %5271 = vmatprep.mubr.bf16.mxu0 0
      %5272 = vmatmul.mubr.bf16.gmra.mxu0 %v5118
      %v5273 = vpop.f32.mrf.mxu0
      %v5274 = vadd.f32 0.0, %v5273
      %v5275 = vpop.f32.mrf.mxu0
      %v5276 = vpop.f32.mrf.mxu0
      %v5277 = vadd.f32 0.0, %v5276
      %v5278 = vpop.f32.mrf.mxu0
      %5279 = vmatprep.mubr.bf16.mxu0 0
      %5280 = vmatmul.mubr.bf16.gmra.mxu0 %v5121
      %v5281 = vpop.f32.mrf.mxu0
      %v5282 = vadd.f32 0.0, %v5281
      %v5283 = vpop.f32.mrf.mxu0
      %v5284 = vpop.f32.mrf.mxu0
      %v5285 = vadd.f32 0.0, %v5284
      %v5286 = vpop.f32.mrf.mxu0
      %5287 = vdwg.mxu0
      %v5320 = vunpack.c.l.b16 %v4920
      %v5321 = vunpack.c.l.b16 %v4921
      %v5322 = vunpack.c.l.b16 %v4922
      %v5323 = vunpack.c.l.b16 %v4923
      %v5324 = vunpack.c.l.b16 %v4924
      %v5325 = vunpack.c.l.b16 %v4925
      %v5326 = vunpack.c.l.b16 %v4926
      %v5327 = vunpack.c.l.b16 %v4927
      %v5328 = vunpack.c.l.b16 %v4928
      %v5329 = vunpack.c.l.b16 %v4929
      %v5330 = vunpack.c.l.b16 %v4930
      %v5331 = vunpack.c.l.b16 %v4931
      %v5332 = vunpack.c.l.b16 %v4932
      %v5333 = vunpack.c.l.b16 %v4933
      %v5334 = vunpack.c.l.b16 %v4934
      %v5335 = vunpack.c.l.b16 %v4935
      %v5336 = vunpack.c.l.b16 %v4936
      %v5337 = vunpack.c.l.b16 %v4937
      %v5338 = vunpack.c.l.b16 %v4938
      %v5339 = vunpack.c.l.b16 %v4939
      %v5340 = vunpack.c.l.b16 %v4940
      %v5341 = vunpack.c.l.b16 %v4941
      %v5342 = vunpack.c.l.b16 %v4942
      %v5343 = vunpack.c.l.b16 %v4943
      %v5344 = vunpack.c.l.b16 %v4944
      %v5345 = vunpack.c.l.b16 %v4945
      %v5346 = vunpack.c.l.b16 %v4946
      %v5347 = vunpack.c.l.b16 %v4947
      %v5348 = vunpack.c.l.b16 %v4948
      %v5349 = vunpack.c.l.b16 %v4949
      %v5350 = vunpack.c.l.b16 %v4950
      %v5351 = vunpack.c.l.b16 %v4951
      %v5352 = vpack.c.b16 %v5321, %v5320
      %v5353 = vpack.c.b16 %v5323, %v5322
      %v5354 = vpack.c.b16 %v5325, %v5324
      %v5355 = vpack.c.b16 %v5327, %v5326
      %v5356 = vpack.c.b16 %v5329, %v5328
      %v5357 = vpack.c.b16 %v5331, %v5330
      %v5358 = vpack.c.b16 %v5333, %v5332
      %v5359 = vpack.c.b16 %v5335, %v5334
      %v5360 = vpack.c.b16 %v5337, %v5336
      %v5361 = vpack.c.b16 %v5339, %v5338
      %v5362 = vpack.c.b16 %v5341, %v5340
      %v5363 = vpack.c.b16 %v5343, %v5342
      %v5364 = vpack.c.b16 %v5345, %v5344
      %v5365 = vpack.c.b16 %v5347, %v5346
      %v5366 = vpack.c.b16 %v5349, %v5348
      %v5367 = vpack.c.b16 %v5351, %v5350
      %v5370 = vunpack.c.l.b16 %v4952
      %v5371 = vunpack.c.l.b16 %v4953
      %v5372 = vpack.c.b16 %v5371, %v5370
      %v5374 = vsel %vm2825, %v5352, 0
      %v5377 = vsel %vm2825, %v5353, 0
      %v5380 = vsel %vm2825, %v5354, 0
      %v5383 = vsel %vm2825, %v5355, 0
      %v5386 = vsel %vm2825, %v5356, 0
      %v5389 = vsel %vm2825, %v5357, 0
      %v5392 = vsel %vm2825, %v5358, 0
      %v5395 = vsel %vm2825, %v5359, 0
      %v5398 = vsel %vm2825, %v5360, 0
      %v5401 = vsel %vm2825, %v5361, 0
      %v5404 = vsel %vm2825, %v5362, 0
      %v5407 = vsel %vm2825, %v5363, 0
      %v5410 = vsel %vm2825, %v5364, 0
      %v5413 = vsel %vm2825, %v5365, 0
      %v5416 = vsel %vm2825, %v5366, 0
      %v5419 = vsel %vm2825, %v5367, 0
      %v5422 = vsel %vm5123, %v5372, 0
      %5424 = vmatprep.subr.bf16.mxu0 0
      %5425 = vmatpush1.bf16.msra.mxu0 0
      %5426 = vmatprep.subr.bf16.mxu0 0
      %5427 = vmatpush1.bf16.msra.mxu0 0
      %5428 = vmatprep.subr.bf16.mxu0 0
      %5429 = vmatpush1.bf16.msra.mxu0 0
      %5430 = vmatprep.subr.bf16.mxu0 0
      %5431 = vmatpush1.bf16.msra.mxu0 0
      %5432 = vmatprep.subr.bf16.mxu0 0
      %5433 = vmatpush1.bf16.msra.mxu0 0
      %5434 = vmatprep.subr.bf16.mxu0 0
      %5435 = vmatpush1.bf16.msra.mxu0 0
      %5436 = vmatprep.subr.bf16.mxu0 0
      %5437 = vmatpush1.bf16.msra.mxu0 0
      %5438 = vmatprep.subr.bf16.mxu0 0
      %5439 = vmatpush1.bf16.msra.mxu0 %v5422
      %5440 = vmatprep.subr.bf16.mxu0 0
      %5441 = vmatpush2.bf16.msra.mxu0 0
      %5442 = vmatprep.subr.bf16.mxu0 0
      %5443 = vmatpush2.bf16.msra.mxu0 0
      %5444 = vmatprep.subr.bf16.mxu0 0
      %5445 = vmatpush2.bf16.msra.mxu0 0
      %5446 = vmatprep.subr.bf16.mxu0 0
      %5447 = vmatpush2.bf16.msra.mxu0 0
      %5448 = vmatprep.subr.bf16.mxu0 0
      %5449 = vmatpush2.bf16.msra.mxu0 0
      %5450 = vmatprep.subr.bf16.mxu0 0
      %5451 = vmatpush2.bf16.msra.mxu0 0
      %5452 = vmatprep.subr.bf16.mxu0 0
      %5453 = vmatpush2.bf16.msra.mxu0 0
      %5454 = vmatprep.subr.bf16.mxu0 0
      %5455 = vmatpush2.bf16.msra.mxu0 0
      %5456 = vmatprep.mubr.bf16.mxu0 0
      %5457 = vmatmul.mubr.bf16.gmra.mxu0 %v5374
      %v5458 = vpop.f32.mrf.mxu0
      %v5459 = vadd.f32 %v5162, %v5458
      %v5460 = vpop.f32.mrf.mxu0
      %v5461 = vpop.f32.mrf.mxu0
      %v5462 = vadd.f32 %v5165, %v5461
      %v5463 = vpop.f32.mrf.mxu0
      %5464 = vmatprep.mubr.bf16.mxu0 0
      %5465 = vmatmul.mubr.bf16.gmra.mxu0 %v5377
      %v5466 = vpop.f32.mrf.mxu0
      %v5467 = vadd.f32 %v5170, %v5466
      %v5468 = vpop.f32.mrf.mxu0
      %v5469 = vpop.f32.mrf.mxu0
      %v5470 = vadd.f32 %v5173, %v5469
      %v5471 = vpop.f32.mrf.mxu0
      %5472 = vmatprep.mubr.bf16.mxu0 0
      %5473 = vmatmul.mubr.bf16.gmra.mxu0 %v5380
      %v5474 = vpop.f32.mrf.mxu0
      %v5475 = vadd.f32 %v5178, %v5474
      %v5476 = vpop.f32.mrf.mxu0
      %v5477 = vpop.f32.mrf.mxu0
      %v5478 = vadd.f32 %v5181, %v5477
      %v5479 = vpop.f32.mrf.mxu0
      %5480 = vmatprep.mubr.bf16.mxu0 0
      %5481 = vmatmul.mubr.bf16.gmra.mxu0 %v5383
      %v5482 = vpop.f32.mrf.mxu0
      %v5483 = vadd.f32 %v5186, %v5482
      %v5484 = vpop.f32.mrf.mxu0
      %v5485 = vpop.f32.mrf.mxu0
      %v5486 = vadd.f32 %v5189, %v5485
      %v5487 = vpop.f32.mrf.mxu0
      %5488 = vmatprep.mubr.bf16.mxu0 0
      %5489 = vmatmul.mubr.bf16.gmra.mxu0 %v5386
      %v5490 = vpop.f32.mrf.mxu0
      %v5491 = vadd.f32 %v5194, %v5490
      %v5492 = vpop.f32.mrf.mxu0
      %v5493 = vpop.f32.mrf.mxu0
      %v5494 = vadd.f32 %v5197, %v5493
      %v5495 = vpop.f32.mrf.mxu0
      %5496 = vmatprep.mubr.bf16.mxu0 0
      %5497 = vmatmul.mubr.bf16.gmra.mxu0 %v5389
      %v5498 = vpop.f32.mrf.mxu0
      %v5499 = vadd.f32 %v5202, %v5498
      %v5500 = vpop.f32.mrf.mxu0
      %v5501 = vpop.f32.mrf.mxu0
      %v5502 = vadd.f32 %v5205, %v5501
      %v5503 = vpop.f32.mrf.mxu0
      %5504 = vmatprep.mubr.bf16.mxu0 0
      %5505 = vmatmul.mubr.bf16.gmra.mxu0 %v5392
      %v5506 = vpop.f32.mrf.mxu0
      %v5507 = vadd.f32 %v5210, %v5506
      %v5508 = vpop.f32.mrf.mxu0
      %v5509 = vpop.f32.mrf.mxu0
      %v5510 = vadd.f32 %v5213, %v5509
      %v5511 = vpop.f32.mrf.mxu0
      %5512 = vmatprep.mubr.bf16.mxu0 0
      %5513 = vmatmul.mubr.bf16.gmra.mxu0 %v5395
      %v5514 = vpop.f32.mrf.mxu0
      %v5515 = vadd.f32 %v5218, %v5514
      %v5516 = vpop.f32.mrf.mxu0
      %v5517 = vpop.f32.mrf.mxu0
      %v5518 = vadd.f32 %v5221, %v5517
      %v5519 = vpop.f32.mrf.mxu0
      %5520 = vmatprep.mubr.bf16.mxu0 0
      %5521 = vmatmul.mubr.bf16.gmra.mxu0 %v5398
      %v5522 = vpop.f32.mrf.mxu0
      %v5523 = vadd.f32 %v5226, %v5522
      %v5524 = vpop.f32.mrf.mxu0
      %v5525 = vpop.f32.mrf.mxu0
      %v5526 = vadd.f32 %v5229, %v5525
      %v5527 = vpop.f32.mrf.mxu0
      %5528 = vmatprep.mubr.bf16.mxu0 0
      %5529 = vmatmul.mubr.bf16.gmra.mxu0 %v5401
      %v5530 = vpop.f32.mrf.mxu0
      %v5531 = vadd.f32 %v5234, %v5530
      %v5532 = vpop.f32.mrf.mxu0
      %v5533 = vpop.f32.mrf.mxu0
      %v5534 = vadd.f32 %v5237, %v5533
      %v5535 = vpop.f32.mrf.mxu0
      %5536 = vmatprep.mubr.bf16.mxu0 0
      %5537 = vmatmul.mubr.bf16.gmra.mxu0 %v5404
      %v5538 = vpop.f32.mrf.mxu0
      %v5539 = vadd.f32 %v5242, %v5538
      %v5540 = vpop.f32.mrf.mxu0
      %v5541 = vpop.f32.mrf.mxu0
      %v5542 = vadd.f32 %v5245, %v5541
      %v5543 = vpop.f32.mrf.mxu0
      %5544 = vmatprep.mubr.bf16.mxu0 0
      %5545 = vmatmul.mubr.bf16.gmra.mxu0 %v5407
      %v5546 = vpop.f32.mrf.mxu0
      %v5547 = vadd.f32 %v5250, %v5546
      %v5548 = vpop.f32.mrf.mxu0
      %v5549 = vpop.f32.mrf.mxu0
      %v5550 = vadd.f32 %v5253, %v5549
      %v5551 = vpop.f32.mrf.mxu0
      %5552 = vmatprep.mubr.bf16.mxu0 0
      %5553 = vmatmul.mubr.bf16.gmra.mxu0 %v5410
      %v5554 = vpop.f32.mrf.mxu0
      %v5555 = vadd.f32 %v5258, %v5554
      %v5556 = vpop.f32.mrf.mxu0
      %v5557 = vpop.f32.mrf.mxu0
      %v5558 = vadd.f32 %v5261, %v5557
      %v5559 = vpop.f32.mrf.mxu0
      %5560 = vmatprep.mubr.bf16.mxu0 0
      %5561 = vmatmul.mubr.bf16.gmra.mxu0 %v5413
      %v5562 = vpop.f32.mrf.mxu0
      %v5563 = vadd.f32 %v5266, %v5562
      %v5564 = vpop.f32.mrf.mxu0
      %v5565 = vpop.f32.mrf.mxu0
      %v5566 = vadd.f32 %v5269, %v5565
      %v5567 = vpop.f32.mrf.mxu0
      %5568 = vmatprep.mubr.bf16.mxu0 0
      %5569 = vmatmul.mubr.bf16.gmra.mxu0 %v5416
      %v5570 = vpop.f32.mrf.mxu0
      %v5571 = vadd.f32 %v5274, %v5570
      %v5572 = vpop.f32.mrf.mxu0
      %v5573 = vpop.f32.mrf.mxu0
      %v5574 = vadd.f32 %v5277, %v5573
      %v5575 = vpop.f32.mrf.mxu0
      %5576 = vmatprep.mubr.bf16.mxu0 0
      %5577 = vmatmul.mubr.bf16.gmra.mxu0 %v5419
      %v5578 = vpop.f32.mrf.mxu0
      %v5579 = vadd.f32 %v5282, %v5578
      %v5580 = vpop.f32.mrf.mxu0
      %v5581 = vpop.f32.mrf.mxu0
      %v5582 = vadd.f32 %v5285, %v5581
      %v5583 = vpop.f32.mrf.mxu0
      %5584 = vdwg.mxu0
      %s5585 = scalar_lea.vmem [#allocation6], 16
      %v5586 = vld [vmem:[%s5585] sm:$0xf]
      %v5587 = vld [vmem:[%s5585 + $0x4] sm:$0xf]
      %v5588 = vld [vmem:[%s5585 + $0x8] sm:$0xf]
      %v5589 = vld [vmem:[%s5585 + $0xc] sm:$0xf]
      %v5590 = vld [vmem:[%s5585 + $0x10] sm:$0xf]
      %v5591 = vld [vmem:[%s5585 + $0x14] sm:$0xf]
      %v5592 = vld [vmem:[%s5585 + $0x18] sm:$0xf]
      %v5593 = vld [vmem:[%s5585 + $0x1c] sm:$0xf]
      %v5594 = vld [vmem:[%s5585 + $0x20] sm:$0xf]
      %v5595 = vld [vmem:[%s5585 + $0x24] sm:$0xf]
      %v5596 = vld [vmem:[%s5585 + $0x28] sm:$0xf]
      %v5597 = vld [vmem:[%s5585 + $0x2c] sm:$0xf]
      %v5598 = vld [vmem:[%s5585 + $0x30] sm:$0xf]
      %v5599 = vld [vmem:[%s5585 + $0x34] sm:$0xf]
      %v5600 = vld [vmem:[%s5585 + $0x38] sm:$0xf]
      %v5601 = vld [vmem:[%s5585 + $0x3c] sm:$0xf]
      %v5602 = vld [vmem:[%s5585 + $0x40] sm:$0xf]
      %v5603 = vld [vmem:[%s5585 + $0x44] sm:$0xf]
      %v5604 = vld [vmem:[%s5585 + $0x48] sm:$0xf]
      %v5605 = vld [vmem:[%s5585 + $0x4c] sm:$0xf]
      %v5606 = vld [vmem:[%s5585 + $0x50] sm:$0xf]
      %v5607 = vld [vmem:[%s5585 + $0x54] sm:$0xf]
      %v5608 = vld [vmem:[%s5585 + $0x58] sm:$0xf]
      %v5609 = vld [vmem:[%s5585 + $0x5c] sm:$0xf]
      %v5610 = vld [vmem:[%s5585 + $0x60] sm:$0xf]
      %v5611 = vld [vmem:[%s5585 + $0x64] sm:$0xf]
      %v5612 = vld [vmem:[%s5585 + $0x68] sm:$0xf]
      %v5613 = vld [vmem:[%s5585 + $0x6c] sm:$0xf]
      %v5614 = vld [vmem:[%s5585 + $0x70] sm:$0xf]
      %v5615 = vld [vmem:[%s5585 + $0x74] sm:$0xf]
      %v5616 = vld [vmem:[%s5585 + $0x78] sm:$0xf]
      %v5617 = vld [vmem:[%s5585 + $0x7c] sm:$0xf]
      %s5618 = scalar_lea.vmem %s4, 16
      %v5619 = vld [vmem:[%s5618] sm:$0xf]
      %v5620 = vld [vmem:[%s5618 + $0x4] sm:$0x3]
      %v5653 = vunpack.c.l.b16 %v5586
      %v5654 = vunpack.c.l.b16 %v5587
      %v5655 = vunpack.c.l.b16 %v5588
      %v5656 = vunpack.c.l.b16 %v5589
      %v5657 = vunpack.c.l.b16 %v5590
      %v5658 = vunpack.c.l.b16 %v5591
      %v5659 = vunpack.c.l.b16 %v5592
      %v5660 = vunpack.c.l.b16 %v5593
      %v5661 = vunpack.c.l.b16 %v5594
      %v5662 = vunpack.c.l.b16 %v5595
      %v5663 = vunpack.c.l.b16 %v5596
      %v5664 = vunpack.c.l.b16 %v5597
      %v5665 = vunpack.c.l.b16 %v5598
      %v5666 = vunpack.c.l.b16 %v5599
      %v5667 = vunpack.c.l.b16 %v5600
      %v5668 = vunpack.c.l.b16 %v5601
      %v5669 = vunpack.c.l.b16 %v5602
      %v5670 = vunpack.c.l.b16 %v5603
      %v5671 = vunpack.c.l.b16 %v5604
      %v5672 = vunpack.c.l.b16 %v5605
      %v5673 = vunpack.c.l.b16 %v5606
      %v5674 = vunpack.c.l.b16 %v5607
      %v5675 = vunpack.c.l.b16 %v5608
      %v5676 = vunpack.c.l.b16 %v5609
      %v5677 = vunpack.c.l.b16 %v5610
      %v5678 = vunpack.c.l.b16 %v5611
      %v5679 = vunpack.c.l.b16 %v5612
      %v5680 = vunpack.c.l.b16 %v5613
      %v5681 = vunpack.c.l.b16 %v5614
      %v5682 = vunpack.c.l.b16 %v5615
      %v5683 = vunpack.c.l.b16 %v5616
      %v5684 = vunpack.c.l.b16 %v5617
      %v5685 = vpack.c.b16 %v5654, %v5653
      %v5686 = vpack.c.b16 %v5656, %v5655
      %v5687 = vpack.c.b16 %v5658, %v5657
      %v5688 = vpack.c.b16 %v5660, %v5659
      %v5689 = vpack.c.b16 %v5662, %v5661
      %v5690 = vpack.c.b16 %v5664, %v5663
      %v5691 = vpack.c.b16 %v5666, %v5665
      %v5692 = vpack.c.b16 %v5668, %v5667
      %v5693 = vpack.c.b16 %v5670, %v5669
      %v5694 = vpack.c.b16 %v5672, %v5671
      %v5695 = vpack.c.b16 %v5674, %v5673
      %v5696 = vpack.c.b16 %v5676, %v5675
      %v5697 = vpack.c.b16 %v5678, %v5677
      %v5698 = vpack.c.b16 %v5680, %v5679
      %v5699 = vpack.c.b16 %v5682, %v5681
      %v5700 = vpack.c.b16 %v5684, %v5683
      %v5703 = vunpack.c.l.b16 %v5619
      %v5704 = vunpack.c.l.b16 %v5620
      %v5705 = vpack.c.b16 %v5704, %v5703
      %v5707 = vsel %vm2825, %v5685, 0
      %v5710 = vsel %vm2825, %v5686, 0
      %v5713 = vsel %vm2825, %v5687, 0
      %v5716 = vsel %vm2825, %v5688, 0
      %v5719 = vsel %vm2825, %v5689, 0
      %v5722 = vsel %vm2825, %v5690, 0
      %v5725 = vsel %vm2825, %v5691, 0
      %v5728 = vsel %vm2825, %v5692, 0
      %v5731 = vsel %vm2825, %v5693, 0
      %v5734 = vsel %vm2825, %v5694, 0
      %v5737 = vsel %vm2825, %v5695, 0
      %v5740 = vsel %vm2825, %v5696, 0
      %v5743 = vsel %vm2825, %v5697, 0
      %v5746 = vsel %vm2825, %v5698, 0
      %v5749 = vsel %vm2825, %v5699, 0
      %v5752 = vsel %vm2825, %v5700, 0
      %v5755 = vsel %vm5123, %v5705, 0
      %5757 = vmatprep.subr.bf16.mxu0 0
      %5758 = vmatpush1.bf16.msra.mxu0 0
      %5759 = vmatprep.subr.bf16.mxu0 0
      %5760 = vmatpush1.bf16.msra.mxu0 0
      %5761 = vmatprep.subr.bf16.mxu0 0
      %5762 = vmatpush1.bf16.msra.mxu0 0
      %5763 = vmatprep.subr.bf16.mxu0 0
      %5764 = vmatpush1.bf16.msra.mxu0 0
      %5765 = vmatprep.subr.bf16.mxu0 0
      %5766 = vmatpush1.bf16.msra.mxu0 0
      %5767 = vmatprep.subr.bf16.mxu0 0
      %5768 = vmatpush1.bf16.msra.mxu0 0
      %5769 = vmatprep.subr.bf16.mxu0 0
      %5770 = vmatpush1.bf16.msra.mxu0 0
      %5771 = vmatprep.subr.bf16.mxu0 0
      %5772 = vmatpush1.bf16.msra.mxu0 %v5755
      %5773 = vmatprep.subr.bf16.mxu0 0
      %5774 = vmatpush2.bf16.msra.mxu0 0
      %5775 = vmatprep.subr.bf16.mxu0 0
      %5776 = vmatpush2.bf16.msra.mxu0 0
      %5777 = vmatprep.subr.bf16.mxu0 0
      %5778 = vmatpush2.bf16.msra.mxu0 0
      %5779 = vmatprep.subr.bf16.mxu0 0
      %5780 = vmatpush2.bf16.msra.mxu0 0
      %5781 = vmatprep.subr.bf16.mxu0 0
      %5782 = vmatpush2.bf16.msra.mxu0 0
      %5783 = vmatprep.subr.bf16.mxu0 0
      %5784 = vmatpush2.bf16.msra.mxu0 0
      %5785 = vmatprep.subr.bf16.mxu0 0
      %5786 = vmatpush2.bf16.msra.mxu0 0
      %5787 = vmatprep.subr.bf16.mxu0 0
      %5788 = vmatpush2.bf16.msra.mxu0 0
      %5789 = vmatprep.mubr.bf16.mxu0 0
      %5790 = vmatmul.mubr.bf16.gmra.mxu0 %v5707
      %v5791 = vpop.f32.mrf.mxu0
      %v5792 = vadd.f32 0.0, %v5791
      %v5793 = vpop.f32.mrf.mxu0
      %v5794 = vpop.f32.mrf.mxu0
      %v5795 = vadd.f32 0.0, %v5794
      %v5796 = vpop.f32.mrf.mxu0
      %5797 = vmatprep.mubr.bf16.mxu0 0
      %5798 = vmatmul.mubr.bf16.gmra.mxu0 %v5710
      %v5799 = vpop.f32.mrf.mxu0
      %v5800 = vadd.f32 0.0, %v5799
      %v5801 = vpop.f32.mrf.mxu0
      %v5802 = vpop.f32.mrf.mxu0
      %v5803 = vadd.f32 0.0, %v5802
      %v5804 = vpop.f32.mrf.mxu0
      %5805 = vmatprep.mubr.bf16.mxu0 0
      %5806 = vmatmul.mubr.bf16.gmra.mxu0 %v5713
      %v5807 = vpop.f32.mrf.mxu0
      %v5808 = vadd.f32 0.0, %v5807
      %v5809 = vpop.f32.mrf.mxu0
      %v5810 = vpop.f32.mrf.mxu0
      %v5811 = vadd.f32 0.0, %v5810
      %v5812 = vpop.f32.mrf.mxu0
      %5813 = vmatprep.mubr.bf16.mxu0 0
      %5814 = vmatmul.mubr.bf16.gmra.mxu0 %v5716
      %v5815 = vpop.f32.mrf.mxu0
      %v5816 = vadd.f32 0.0, %v5815
      %v5817 = vpop.f32.mrf.mxu0
      %v5818 = vpop.f32.mrf.mxu0
      %v5819 = vadd.f32 0.0, %v5818
      %v5820 = vpop.f32.mrf.mxu0
      %5821 = vmatprep.mubr.bf16.mxu0 0
      %5822 = vmatmul.mubr.bf16.gmra.mxu0 %v5719
      %v5823 = vpop.f32.mrf.mxu0
      %v5824 = vadd.f32 0.0, %v5823
      %v5825 = vpop.f32.mrf.mxu0
      %v5826 = vpop.f32.mrf.mxu0
      %v5827 = vadd.f32 0.0, %v5826
      %v5828 = vpop.f32.mrf.mxu0
      %5829 = vmatprep.mubr.bf16.mxu0 0
      %5830 = vmatmul.mubr.bf16.gmra.mxu0 %v5722
      %v5831 = vpop.f32.mrf.mxu0
      %v5832 = vadd.f32 0.0, %v5831
      %v5833 = vpop.f32.mrf.mxu0
      %v5834 = vpop.f32.mrf.mxu0
      %v5835 = vadd.f32 0.0, %v5834
      %v5836 = vpop.f32.mrf.mxu0
      %5837 = vmatprep.mubr.bf16.mxu0 0
      %5838 = vmatmul.mubr.bf16.gmra.mxu0 %v5725
      %v5839 = vpop.f32.mrf.mxu0
      %v5840 = vadd.f32 0.0, %v5839
      %v5841 = vpop.f32.mrf.mxu0
      %v5842 = vpop.f32.mrf.mxu0
      %v5843 = vadd.f32 0.0, %v5842
      %v5844 = vpop.f32.mrf.mxu0
      %5845 = vmatprep.mubr.bf16.mxu0 0
      %5846 = vmatmul.mubr.bf16.gmra.mxu0 %v5728
      %v5847 = vpop.f32.mrf.mxu0
      %v5848 = vadd.f32 0.0, %v5847
      %v5849 = vpop.f32.mrf.mxu0
      %v5850 = vpop.f32.mrf.mxu0
      %v5851 = vadd.f32 0.0, %v5850
      %v5852 = vpop.f32.mrf.mxu0
      %5853 = vmatprep.mubr.bf16.mxu0 0
      %5854 = vmatmul.mubr.bf16.gmra.mxu0 %v5731
      %v5855 = vpop.f32.mrf.mxu0
      %v5856 = vadd.f32 0.0, %v5855
      %v5857 = vpop.f32.mrf.mxu0
      %v5858 = vpop.f32.mrf.mxu0
      %v5859 = vadd.f32 0.0, %v5858
      %v5860 = vpop.f32.mrf.mxu0
      %5861 = vmatprep.mubr.bf16.mxu0 0
      %5862 = vmatmul.mubr.bf16.gmra.mxu0 %v5734
      %v5863 = vpop.f32.mrf.mxu0
      %v5864 = vadd.f32 0.0, %v5863
      %v5865 = vpop.f32.mrf.mxu0
      %v5866 = vpop.f32.mrf.mxu0
      %v5867 = vadd.f32 0.0, %v5866
      %v5868 = vpop.f32.mrf.mxu0
      %5869 = vmatprep.mubr.bf16.mxu0 0
      %5870 = vmatmul.mubr.bf16.gmra.mxu0 %v5737
      %v5871 = vpop.f32.mrf.mxu0
      %v5872 = vadd.f32 0.0, %v5871
      %v5873 = vpop.f32.mrf.mxu0
      %v5874 = vpop.f32.mrf.mxu0
      %v5875 = vadd.f32 0.0, %v5874
      %v5876 = vpop.f32.mrf.mxu0
      %5877 = vmatprep.mubr.bf16.mxu0 0
      %5878 = vmatmul.mubr.bf16.gmra.mxu0 %v5740
      %v5879 = vpop.f32.mrf.mxu0
      %v5880 = vadd.f32 0.0, %v5879
      %v5881 = vpop.f32.mrf.mxu0
      %v5882 = vpop.f32.mrf.mxu0
      %v5883 = vadd.f32 0.0, %v5882
      %v5884 = vpop.f32.mrf.mxu0
      %5885 = vmatprep.mubr.bf16.mxu0 0
      %5886 = vmatmul.mubr.bf16.gmra.mxu0 %v5743
      %v5887 = vpop.f32.mrf.mxu0
      %v5888 = vadd.f32 0.0, %v5887
      %v5889 = vpop.f32.mrf.mxu0
      %v5890 = vpop.f32.mrf.mxu0
      %v5891 = vadd.f32 0.0, %v5890
      %v5892 = vpop.f32.mrf.mxu0
      %5893 = vmatprep.mubr.bf16.mxu0 0
      %5894 = vmatmul.mubr.bf16.gmra.mxu0 %v5746
      %v5895 = vpop.f32.mrf.mxu0
      %v5896 = vadd.f32 0.0, %v5895
      %v5897 = vpop.f32.mrf.mxu0
      %v5898 = vpop.f32.mrf.mxu0
      %v5899 = vadd.f32 0.0, %v5898
      %v5900 = vpop.f32.mrf.mxu0
      %5901 = vmatprep.mubr.bf16.mxu0 0
      %5902 = vmatmul.mubr.bf16.gmra.mxu0 %v5749
      %v5903 = vpop.f32.mrf.mxu0
      %v5904 = vadd.f32 0.0, %v5903
      %v5905 = vpop.f32.mrf.mxu0
      %v5906 = vpop.f32.mrf.mxu0
      %v5907 = vadd.f32 0.0, %v5906
      %v5908 = vpop.f32.mrf.mxu0
      %5909 = vmatprep.mubr.bf16.mxu0 0
      %5910 = vmatmul.mubr.bf16.gmra.mxu0 %v5752
      %v5911 = vpop.f32.mrf.mxu0
      %v5912 = vadd.f32 0.0, %v5911
      %v5913 = vpop.f32.mrf.mxu0
      %v5914 = vpop.f32.mrf.mxu0
      %v5915 = vadd.f32 0.0, %v5914
      %v5916 = vpop.f32.mrf.mxu0
      %5917 = vdwg.mxu0
      %v5918 = vadd.f32 %v5459, %v5792
      %v5919 = vadd.f32 %v5462, %v5795
      %v5920 = vadd.f32 %v5467, %v5800
      %v5921 = vadd.f32 %v5470, %v5803
      %v5922 = vadd.f32 %v5475, %v5808
      %v5923 = vadd.f32 %v5478, %v5811
      %v5924 = vadd.f32 %v5483, %v5816
      %v5925 = vadd.f32 %v5486, %v5819
      %v5926 = vadd.f32 %v5491, %v5824
      %v5927 = vadd.f32 %v5494, %v5827
      %v5928 = vadd.f32 %v5499, %v5832
      %v5929 = vadd.f32 %v5502, %v5835
      %v5930 = vadd.f32 %v5507, %v5840
      %v5931 = vadd.f32 %v5510, %v5843
      %v5932 = vadd.f32 %v5515, %v5848
      %v5933 = vadd.f32 %v5518, %v5851
      %v5934 = vadd.f32 %v5523, %v5856
      %v5935 = vadd.f32 %v5526, %v5859
      %v5936 = vadd.f32 %v5531, %v5864
      %v5937 = vadd.f32 %v5534, %v5867
      %v5938 = vadd.f32 %v5539, %v5872
      %v5939 = vadd.f32 %v5542, %v5875
      %v5940 = vadd.f32 %v5547, %v5880
      %v5941 = vadd.f32 %v5550, %v5883
      %v5942 = vadd.f32 %v5555, %v5888
      %v5943 = vadd.f32 %v5558, %v5891
      %v5944 = vadd.f32 %v5563, %v5896
      %v5945 = vadd.f32 %v5566, %v5899
      %v5946 = vadd.f32 %v5571, %v5904
      %v5947 = vadd.f32 %v5574, %v5907
      %v5948 = vadd.f32 %v5579, %v5912
      %v5949 = vadd.f32 %v5582, %v5915
      %v5950 = vadd.f32 %v4888, %v5918
      %v5951 = vadd.f32 %v4889, %v5919
      %v5952 = vadd.f32 %v4890, %v5920
      %v5953 = vadd.f32 %v4891, %v5921
      %v5954 = vadd.f32 %v4892, %v5922
      %v5955 = vadd.f32 %v4893, %v5923
      %v5956 = vadd.f32 %v4894, %v5924
      %v5957 = vadd.f32 %v4895, %v5925
      %v5958 = vadd.f32 %v4896, %v5926
      %v5959 = vadd.f32 %v4897, %v5927
      %v5960 = vadd.f32 %v4898, %v5928
      %v5961 = vadd.f32 %v4899, %v5929
      %v5962 = vadd.f32 %v4900, %v5930
      %v5963 = vadd.f32 %v4901, %v5931
      %v5964 = vadd.f32 %v4902, %v5932
      %v5965 = vadd.f32 %v4903, %v5933
      %v5966 = vadd.f32 %v4904, %v5934
      %v5967 = vadd.f32 %v4905, %v5935
      %v5968 = vadd.f32 %v4906, %v5936
      %v5969 = vadd.f32 %v4907, %v5937
      %v5970 = vadd.f32 %v4908, %v5938
      %v5971 = vadd.f32 %v4909, %v5939
      %v5972 = vadd.f32 %v4910, %v5940
      %v5973 = vadd.f32 %v4911, %v5941
      %v5974 = vadd.f32 %v4912, %v5942
      %v5975 = vadd.f32 %v4913, %v5943
      %v5976 = vadd.f32 %v4914, %v5944
      %v5977 = vadd.f32 %v4915, %v5945
      %v5978 = vadd.f32 %v4916, %v5946
      %v5979 = vadd.f32 %v4917, %v5947
      %v5980 = vadd.f32 %v4918, %v5948
      %v5981 = vadd.f32 %v4919, %v5949
      %v5982 = vld [vmem:[%s7] sm:$0x1]
      %v5984 = vlaneseq
      %v5985 = vshrl.u32 %v5984, 7
      %v5986 = vsub.s32 0, %v5985
      %v5987 = vrot.slane %v5982, %v5986
      %v5989 = vmul.f32 %v5950, %v5987
      %v5990 = vmul.f32 %v5951, %v5987
      %v5991 = vmul.f32 %v5952, %v5987
      %v5992 = vmul.f32 %v5953, %v5987
      %v5993 = vmul.f32 %v5954, %v5987
      %v5994 = vmul.f32 %v5955, %v5987
      %v5995 = vmul.f32 %v5956, %v5987
      %v5996 = vmul.f32 %v5957, %v5987
      %v5997 = vmul.f32 %v5958, %v5987
      %v5998 = vmul.f32 %v5959, %v5987
      %v5999 = vmul.f32 %v5960, %v5987
      %v6000 = vmul.f32 %v5961, %v5987
      %v6001 = vmul.f32 %v5962, %v5987
      %v6002 = vmul.f32 %v5963, %v5987
      %v6003 = vmul.f32 %v5964, %v5987
      %v6004 = vmul.f32 %v5965, %v5987
      %v6005 = vmul.f32 %v5966, %v5987
      %v6006 = vmul.f32 %v5967, %v5987
      %v6007 = vmul.f32 %v5968, %v5987
      %v6008 = vmul.f32 %v5969, %v5987
      %v6009 = vmul.f32 %v5970, %v5987
      %v6010 = vmul.f32 %v5971, %v5987
      %v6011 = vmul.f32 %v5972, %v5987
      %v6012 = vmul.f32 %v5973, %v5987
      %v6013 = vmul.f32 %v5974, %v5987
      %v6014 = vmul.f32 %v5975, %v5987
      %v6015 = vmul.f32 %v5976, %v5987
      %v6016 = vmul.f32 %v5977, %v5987
      %v6017 = vmul.f32 %v5978, %v5987
      %v6018 = vmul.f32 %v5979, %v5987
      %v6019 = vmul.f32 %v5980, %v5987
      %v6020 = vmul.f32 %v5981, %v5987
      %v6021 = vld [vmem:[%s8] sm:$0x1]
      %v6023 = vlaneseq
      %v6024 = vshrl.u32 %v6023, 7
      %v6025 = vsub.s32 0, %v6024
      %v6026 = vrot.slane %v6021, %v6025
      %v6028 = vadd.f32 %v5989, %v6026
      %v6029 = vadd.f32 %v5990, %v6026
      %v6030 = vadd.f32 %v5991, %v6026
      %v6031 = vadd.f32 %v5992, %v6026
      %v6032 = vadd.f32 %v5993, %v6026
      %v6033 = vadd.f32 %v5994, %v6026
      %v6034 = vadd.f32 %v5995, %v6026
      %v6035 = vadd.f32 %v5996, %v6026
      %v6036 = vadd.f32 %v5997, %v6026
      %v6037 = vadd.f32 %v5998, %v6026
      %v6038 = vadd.f32 %v5999, %v6026
      %v6039 = vadd.f32 %v6000, %v6026
      %v6040 = vadd.f32 %v6001, %v6026
      %v6041 = vadd.f32 %v6002, %v6026
      %v6042 = vadd.f32 %v6003, %v6026
      %v6043 = vadd.f32 %v6004, %v6026
      %v6044 = vadd.f32 %v6005, %v6026
      %v6045 = vadd.f32 %v6006, %v6026
      %v6046 = vadd.f32 %v6007, %v6026
      %v6047 = vadd.f32 %v6008, %v6026
      %v6048 = vadd.f32 %v6009, %v6026
      %v6049 = vadd.f32 %v6010, %v6026
      %v6050 = vadd.f32 %v6011, %v6026
      %v6051 = vadd.f32 %v6012, %v6026
      %v6052 = vadd.f32 %v6013, %v6026
      %v6053 = vadd.f32 %v6014, %v6026
      %v6054 = vadd.f32 %v6015, %v6026
      %v6055 = vadd.f32 %v6016, %v6026
      %v6056 = vadd.f32 %v6017, %v6026
      %v6057 = vadd.f32 %v6018, %v6026
      %v6058 = vadd.f32 %v6019, %v6026
      %v6059 = vadd.f32 %v6020, %v6026
      %v6060 = vmax.f32 %v6028, 0.0
      %v6061 = vmax.f32 %v6029, 0.0
      %v6062 = vmax.f32 %v6030, 0.0
      %v6063 = vmax.f32 %v6031, 0.0
      %v6064 = vmax.f32 %v6032, 0.0
      %v6065 = vmax.f32 %v6033, 0.0
      %v6066 = vmax.f32 %v6034, 0.0
      %v6067 = vmax.f32 %v6035, 0.0
      %v6068 = vmax.f32 %v6036, 0.0
      %v6069 = vmax.f32 %v6037, 0.0
      %v6070 = vmax.f32 %v6038, 0.0
      %v6071 = vmax.f32 %v6039, 0.0
      %v6072 = vmax.f32 %v6040, 0.0
      %v6073 = vmax.f32 %v6041, 0.0
      %v6074 = vmax.f32 %v6042, 0.0
      %v6075 = vmax.f32 %v6043, 0.0
      %v6076 = vmax.f32 %v6044, 0.0
      %v6077 = vmax.f32 %v6045, 0.0
      %v6078 = vmax.f32 %v6046, 0.0
      %v6079 = vmax.f32 %v6047, 0.0
      %v6080 = vmax.f32 %v6048, 0.0
      %v6081 = vmax.f32 %v6049, 0.0
      %v6082 = vmax.f32 %v6050, 0.0
      %v6083 = vmax.f32 %v6051, 0.0
      %v6084 = vmax.f32 %v6052, 0.0
      %v6085 = vmax.f32 %v6053, 0.0
      %v6086 = vmax.f32 %v6054, 0.0
      %v6087 = vmax.f32 %v6055, 0.0
      %v6088 = vmax.f32 %v6056, 0.0
      %v6089 = vmax.f32 %v6057, 0.0
      %v6090 = vmax.f32 %v6058, 0.0
      %v6091 = vmax.f32 %v6059, 0.0
      %v6092 = vpack.c.bf16 %v6061, %v6060
      %v6093 = vpack.c.bf16 %v6063, %v6062
      %v6094 = vpack.c.bf16 %v6065, %v6064
      %v6095 = vpack.c.bf16 %v6067, %v6066
      %v6096 = vpack.c.bf16 %v6069, %v6068
      %v6097 = vpack.c.bf16 %v6071, %v6070
      %v6098 = vpack.c.bf16 %v6073, %v6072
      %v6099 = vpack.c.bf16 %v6075, %v6074
      %v6100 = vpack.c.bf16 %v6077, %v6076
      %v6101 = vpack.c.bf16 %v6079, %v6078
      %v6102 = vpack.c.bf16 %v6081, %v6080
      %v6103 = vpack.c.bf16 %v6083, %v6082
      %v6104 = vpack.c.bf16 %v6085, %v6084
      %v6105 = vpack.c.bf16 %v6087, %v6086
      %v6106 = vpack.c.bf16 %v6089, %v6088
      %v6107 = vpack.c.bf16 %v6091, %v6090
      %v6124 = vunpack.c.l.b16 %v6092
      %v6125 = vunpack.c.h.b16 %v6092
      %v6126 = vunpack.c.l.b16 %v6093
      %v6127 = vunpack.c.h.b16 %v6093
      %v6128 = vunpack.c.l.b16 %v6094
      %v6129 = vunpack.c.h.b16 %v6094
      %v6130 = vunpack.c.l.b16 %v6095
      %v6131 = vunpack.c.h.b16 %v6095
      %v6132 = vunpack.c.l.b16 %v6096
      %v6133 = vunpack.c.h.b16 %v6096
      %v6134 = vunpack.c.l.b16 %v6097
      %v6135 = vunpack.c.h.b16 %v6097
      %v6136 = vunpack.c.l.b16 %v6098
      %v6137 = vunpack.c.h.b16 %v6098
      %v6138 = vunpack.c.l.b16 %v6099
      %v6139 = vunpack.c.h.b16 %v6099
      %v6140 = vunpack.c.l.b16 %v6100
      %v6141 = vunpack.c.h.b16 %v6100
      %v6142 = vunpack.c.l.b16 %v6101
      %v6143 = vunpack.c.h.b16 %v6101
      %v6144 = vunpack.c.l.b16 %v6102
      %v6145 = vunpack.c.h.b16 %v6102
      %v6146 = vunpack.c.l.b16 %v6103
      %v6147 = vunpack.c.h.b16 %v6103
      %v6148 = vunpack.c.l.b16 %v6104
      %v6149 = vunpack.c.h.b16 %v6104
      %v6150 = vunpack.c.l.b16 %v6105
      %v6151 = vunpack.c.h.b16 %v6105
      %v6152 = vunpack.c.l.b16 %v6106
      %v6153 = vunpack.c.h.b16 %v6106
      %v6154 = vunpack.c.l.b16 %v6107
      %v6155 = vunpack.c.h.b16 %v6107
      %v6156 = vpack.c.b16 %v6124, %v6124
      %v6157 = vpack.c.b16 %v6125, %v6125
      %v6158 = vpack.c.b16 %v6126, %v6126
      %v6159 = vpack.c.b16 %v6127, %v6127
      %v6160 = vpack.c.b16 %v6128, %v6128
      %v6161 = vpack.c.b16 %v6129, %v6129
      %v6162 = vpack.c.b16 %v6130, %v6130
      %v6163 = vpack.c.b16 %v6131, %v6131
      %v6164 = vpack.c.b16 %v6132, %v6132
      %v6165 = vpack.c.b16 %v6133, %v6133
      %v6166 = vpack.c.b16 %v6134, %v6134
      %v6167 = vpack.c.b16 %v6135, %v6135
      %v6168 = vpack.c.b16 %v6136, %v6136
      %v6169 = vpack.c.b16 %v6137, %v6137
      %v6170 = vpack.c.b16 %v6138, %v6138
      %v6171 = vpack.c.b16 %v6139, %v6139
      %v6172 = vpack.c.b16 %v6140, %v6140
      %v6173 = vpack.c.b16 %v6141, %v6141
      %v6174 = vpack.c.b16 %v6142, %v6142
      %v6175 = vpack.c.b16 %v6143, %v6143
      %v6176 = vpack.c.b16 %v6144, %v6144
      %v6177 = vpack.c.b16 %v6145, %v6145
      %v6178 = vpack.c.b16 %v6146, %v6146
      %v6179 = vpack.c.b16 %v6147, %v6147
      %v6180 = vpack.c.b16 %v6148, %v6148
      %v6181 = vpack.c.b16 %v6149, %v6149
      %v6182 = vpack.c.b16 %v6150, %v6150
      %v6183 = vpack.c.b16 %v6151, %v6151
      %v6184 = vpack.c.b16 %v6152, %v6152
      %v6185 = vpack.c.b16 %v6153, %v6153
      %v6186 = vpack.c.b16 %v6154, %v6154
      %v6187 = vpack.c.b16 %v6155, %v6155
      %v6189 = vshrl.u32 %v6156, 16
      %v6191 = vrot.slane %v6189, 7
      %v6192 = vshll.u32 %v6156, 16
      %v6194 = vor.u32 %v6191, %v6192
      %v6195 = vrot.slane %v6191, 4
      %v6197 = vshrl.u32 %v6157, 16
      %v6199 = vrot.slane %v6197, 7
      %v6200 = vshll.u32 %v6157, 16
      %v6202 = vor.u32 %v6199, %v6200
      %v6203 = vsel %vm1175, %v6195, %v6202
      %v6204 = vrot.slane %v6199, 4
      %v6206 = vshrl.u32 %v6158, 16
      %v6208 = vrot.slane %v6206, 7
      %v6209 = vshll.u32 %v6158, 16
      %v6211 = vor.u32 %v6208, %v6209
      %v6212 = vrot.slane %v6208, 4
      %v6214 = vshrl.u32 %v6159, 16
      %v6216 = vrot.slane %v6214, 7
      %v6217 = vshll.u32 %v6159, 16
      %v6219 = vor.u32 %v6216, %v6217
      %v6220 = vsel %vm1175, %v6212, %v6219
      %v6221 = vrot.slane %v6216, 4
      %v6223 = vshrl.u32 %v6160, 16
      %v6225 = vrot.slane %v6223, 7
      %v6226 = vshll.u32 %v6160, 16
      %v6228 = vor.u32 %v6225, %v6226
      %v6229 = vrot.slane %v6225, 4
      %v6231 = vshrl.u32 %v6161, 16
      %v6233 = vrot.slane %v6231, 7
      %v6234 = vshll.u32 %v6161, 16
      %v6236 = vor.u32 %v6233, %v6234
      %v6237 = vsel %vm1175, %v6229, %v6236
      %v6238 = vrot.slane %v6233, 4
      %v6240 = vshrl.u32 %v6162, 16
      %v6242 = vrot.slane %v6240, 7
      %v6243 = vshll.u32 %v6162, 16
      %v6245 = vor.u32 %v6242, %v6243
      %v6246 = vrot.slane %v6242, 4
      %v6248 = vshrl.u32 %v6163, 16
      %v6250 = vrot.slane %v6248, 7
      %v6251 = vshll.u32 %v6163, 16
      %v6253 = vor.u32 %v6250, %v6251
      %v6254 = vsel %vm1175, %v6246, %v6253
      %v6255 = vrot.slane %v6250, 4
      %v6257 = vshrl.u32 %v6164, 16
      %v6259 = vrot.slane %v6257, 7
      %v6260 = vshll.u32 %v6164, 16
      %v6262 = vor.u32 %v6259, %v6260
      %v6263 = vrot.slane %v6259, 4
      %v6265 = vshrl.u32 %v6165, 16
      %v6267 = vrot.slane %v6265, 7
      %v6268 = vshll.u32 %v6165, 16
      %v6270 = vor.u32 %v6267, %v6268
      %v6271 = vsel %vm1175, %v6263, %v6270
      %v6272 = vrot.slane %v6267, 4
      %v6274 = vshrl.u32 %v6166, 16
      %v6276 = vrot.slane %v6274, 7
      %v6277 = vshll.u32 %v6166, 16
      %v6279 = vor.u32 %v6276, %v6277
      %v6280 = vrot.slane %v6276, 4
      %v6282 = vshrl.u32 %v6167, 16
      %v6284 = vrot.slane %v6282, 7
      %v6285 = vshll.u32 %v6167, 16
      %v6287 = vor.u32 %v6284, %v6285
      %v6288 = vsel %vm1175, %v6280, %v6287
      %v6289 = vrot.slane %v6284, 4
      %v6291 = vshrl.u32 %v6168, 16
      %v6293 = vrot.slane %v6291, 7
      %v6294 = vshll.u32 %v6168, 16
      %v6296 = vor.u32 %v6293, %v6294
      %v6297 = vrot.slane %v6293, 4
      %v6299 = vshrl.u32 %v6169, 16
      %v6301 = vrot.slane %v6299, 7
      %v6302 = vshll.u32 %v6169, 16
      %v6304 = vor.u32 %v6301, %v6302
      %v6305 = vsel %vm1175, %v6297, %v6304
      %v6306 = vrot.slane %v6301, 4
      %v6308 = vshrl.u32 %v6170, 16
      %v6310 = vrot.slane %v6308, 7
      %v6311 = vshll.u32 %v6170, 16
      %v6313 = vor.u32 %v6310, %v6311
      %v6314 = vrot.slane %v6310, 4
      %v6316 = vshrl.u32 %v6171, 16
      %v6318 = vrot.slane %v6316, 7
      %v6319 = vshll.u32 %v6171, 16
      %v6321 = vor.u32 %v6318, %v6319
      %v6322 = vsel %vm1175, %v6314, %v6321
      %v6323 = vrot.slane %v6318, 4
      %v6325 = vshrl.u32 %v6172, 16
      %v6327 = vrot.slane %v6325, 7
      %v6328 = vshll.u32 %v6172, 16
      %v6330 = vor.u32 %v6327, %v6328
      %v6331 = vrot.slane %v6327, 4
      %v6333 = vshrl.u32 %v6173, 16
      %v6335 = vrot.slane %v6333, 7
      %v6336 = vshll.u32 %v6173, 16
      %v6338 = vor.u32 %v6335, %v6336
      %v6339 = vsel %vm1175, %v6331, %v6338
      %v6340 = vrot.slane %v6335, 4
      %v6342 = vshrl.u32 %v6174, 16
      %v6344 = vrot.slane %v6342, 7
      %v6345 = vshll.u32 %v6174, 16
      %v6347 = vor.u32 %v6344, %v6345
      %v6348 = vrot.slane %v6344, 4
      %v6350 = vshrl.u32 %v6175, 16
      %v6352 = vrot.slane %v6350, 7
      %v6353 = vshll.u32 %v6175, 16
      %v6355 = vor.u32 %v6352, %v6353
      %v6356 = vsel %vm1175, %v6348, %v6355
      %v6357 = vrot.slane %v6352, 4
      %v6359 = vshrl.u32 %v6176, 16
      %v6361 = vrot.slane %v6359, 7
      %v6362 = vshll.u32 %v6176, 16
      %v6364 = vor.u32 %v6361, %v6362
      %v6365 = vrot.slane %v6361, 4
      %v6367 = vshrl.u32 %v6177, 16
      %v6369 = vrot.slane %v6367, 7
      %v6370 = vshll.u32 %v6177, 16
      %v6372 = vor.u32 %v6369, %v6370
      %v6373 = vsel %vm1175, %v6365, %v6372
      %v6374 = vrot.slane %v6369, 4
      %v6376 = vshrl.u32 %v6178, 16
      %v6378 = vrot.slane %v6376, 7
      %v6379 = vshll.u32 %v6178, 16
      %v6381 = vor.u32 %v6378, %v6379
      %v6382 = vrot.slane %v6378, 4
      %v6384 = vshrl.u32 %v6179, 16
      %v6386 = vrot.slane %v6384, 7
      %v6387 = vshll.u32 %v6179, 16
      %v6389 = vor.u32 %v6386, %v6387
      %v6390 = vsel %vm1175, %v6382, %v6389
      %v6391 = vrot.slane %v6386, 4
      %v6393 = vshrl.u32 %v6180, 16
      %v6395 = vrot.slane %v6393, 7
      %v6396 = vshll.u32 %v6180, 16
      %v6398 = vor.u32 %v6395, %v6396
      %v6399 = vrot.slane %v6395, 4
      %v6401 = vshrl.u32 %v6181, 16
      %v6403 = vrot.slane %v6401, 7
      %v6404 = vshll.u32 %v6181, 16
      %v6406 = vor.u32 %v6403, %v6404
      %v6407 = vsel %vm1175, %v6399, %v6406
      %v6408 = vrot.slane %v6403, 4
      %v6410 = vshrl.u32 %v6182, 16
      %v6412 = vrot.slane %v6410, 7
      %v6413 = vshll.u32 %v6182, 16
      %v6415 = vor.u32 %v6412, %v6413
      %v6416 = vrot.slane %v6412, 4
      %v6418 = vshrl.u32 %v6183, 16
      %v6420 = vrot.slane %v6418, 7
      %v6421 = vshll.u32 %v6183, 16
      %v6423 = vor.u32 %v6420, %v6421
      %v6424 = vsel %vm1175, %v6416, %v6423
      %v6425 = vrot.slane %v6420, 4
      %v6427 = vshrl.u32 %v6184, 16
      %v6429 = vrot.slane %v6427, 7
      %v6430 = vshll.u32 %v6184, 16
      %v6432 = vor.u32 %v6429, %v6430
      %v6433 = vrot.slane %v6429, 4
      %v6435 = vshrl.u32 %v6185, 16
      %v6437 = vrot.slane %v6435, 7
      %v6438 = vshll.u32 %v6185, 16
      %v6440 = vor.u32 %v6437, %v6438
      %v6441 = vsel %vm1175, %v6433, %v6440
      %v6442 = vrot.slane %v6437, 4
      %v6444 = vshrl.u32 %v6186, 16
      %v6446 = vrot.slane %v6444, 7
      %v6447 = vshll.u32 %v6186, 16
      %v6449 = vor.u32 %v6446, %v6447
      %v6450 = vrot.slane %v6446, 4
      %v6452 = vshrl.u32 %v6187, 16
      %v6454 = vrot.slane %v6452, 7
      %v6455 = vshll.u32 %v6187, 16
      %v6457 = vor.u32 %v6454, %v6455
      %v6458 = vsel %vm1175, %v6450, %v6457
      %v6459 = vrot.slane %v6454, 4
      %s6508 = scalar_lea.vmem [#allocation4], 12
      %vm6509 = vcmask 60416
      %vm6510 = vmand %vm6509, %vm420
      %v6511 = vld [vmem:[%s6508] sm:$0xf]
      %v6512 = vsel %vm6510, %v6194, %v6511
      %6513 = vst [vmem:[%s6508] sm:$0xf] %v6512
      %6514 = vst.msk [vmem:[%s6508 + $0x4] sm:$0xf] %vm596, %v6203
      %v6515 = vld [vmem:[%s6508 + $0x8] sm:$0x1]
      %v6516 = vsel %vm606, %v6204, %v6515
      %6517 = vst [vmem:[%s6508 + $0x8] sm:$0x1] %v6516
      %v6518 = vld [vmem:[%s6508 + $0xc] sm:$0xf]
      %v6519 = vsel %vm6510, %v6211, %v6518
      %6520 = vst [vmem:[%s6508 + $0xc] sm:$0xf] %v6519
      %6521 = vst.msk [vmem:[%s6508 + $0x10] sm:$0xf] %vm596, %v6220
      %v6522 = vld [vmem:[%s6508 + $0x14] sm:$0x1]
      %v6523 = vsel %vm606, %v6221, %v6522
      %6524 = vst [vmem:[%s6508 + $0x14] sm:$0x1] %v6523
      %v6525 = vld [vmem:[%s6508 + $0x18] sm:$0xf]
      %v6526 = vsel %vm6510, %v6228, %v6525
      %6527 = vst [vmem:[%s6508 + $0x18] sm:$0xf] %v6526
      %6528 = vst.msk [vmem:[%s6508 + $0x1c] sm:$0xf] %vm596, %v6237
      %v6529 = vld [vmem:[%s6508 + $0x20] sm:$0x1]
      %v6530 = vsel %vm606, %v6238, %v6529
      %6531 = vst [vmem:[%s6508 + $0x20] sm:$0x1] %v6530
      %v6532 = vld [vmem:[%s6508 + $0x24] sm:$0xf]
      %v6533 = vsel %vm6510, %v6245, %v6532
      %6534 = vst [vmem:[%s6508 + $0x24] sm:$0xf] %v6533
      %6535 = vst.msk [vmem:[%s6508 + $0x28] sm:$0xf] %vm596, %v6254
      %v6536 = vld [vmem:[%s6508 + $0x2c] sm:$0x1]
      %v6537 = vsel %vm606, %v6255, %v6536
      %6538 = vst [vmem:[%s6508 + $0x2c] sm:$0x1] %v6537
      %v6539 = vld [vmem:[%s6508 + $0x30] sm:$0xf]
      %v6540 = vsel %vm6510, %v6262, %v6539
      %6541 = vst [vmem:[%s6508 + $0x30] sm:$0xf] %v6540
      %6542 = vst.msk [vmem:[%s6508 + $0x34] sm:$0xf] %vm596, %v6271
      %v6543 = vld [vmem:[%s6508 + $0x38] sm:$0x1]
      %v6544 = vsel %vm606, %v6272, %v6543
      %6545 = vst [vmem:[%s6508 + $0x38] sm:$0x1] %v6544
      %v6546 = vld [vmem:[%s6508 + $0x3c] sm:$0xf]
      %v6547 = vsel %vm6510, %v6279, %v6546
      %6548 = vst [vmem:[%s6508 + $0x3c] sm:$0xf] %v6547
      %6549 = vst.msk [vmem:[%s6508 + $0x40] sm:$0xf] %vm596, %v6288
      %v6550 = vld [vmem:[%s6508 + $0x44] sm:$0x1]
      %v6551 = vsel %vm606, %v6289, %v6550
      %6552 = vst [vmem:[%s6508 + $0x44] sm:$0x1] %v6551
      %v6553 = vld [vmem:[%s6508 + $0x48] sm:$0xf]
      %v6554 = vsel %vm6510, %v6296, %v6553
      %6555 = vst [vmem:[%s6508 + $0x48] sm:$0xf] %v6554
      %6556 = vst.msk [vmem:[%s6508 + $0x4c] sm:$0xf] %vm596, %v6305
      %v6557 = vld [vmem:[%s6508 + $0x50] sm:$0x1]
      %v6558 = vsel %vm606, %v6306, %v6557
      %6559 = vst [vmem:[%s6508 + $0x50] sm:$0x1] %v6558
      %v6560 = vld [vmem:[%s6508 + $0x54] sm:$0xf]
      %v6561 = vsel %vm6510, %v6313, %v6560
      %6562 = vst [vmem:[%s6508 + $0x54] sm:$0xf] %v6561
      %6563 = vst.msk [vmem:[%s6508 + $0x58] sm:$0xf] %vm596, %v6322
      %v6564 = vld [vmem:[%s6508 + $0x5c] sm:$0x1]
      %v6565 = vsel %vm606, %v6323, %v6564
      %6566 = vst [vmem:[%s6508 + $0x5c] sm:$0x1] %v6565
      %v6567 = vld [vmem:[%s6508 + $0x60] sm:$0xf]
      %v6568 = vsel %vm6510, %v6330, %v6567
      %6569 = vst [vmem:[%s6508 + $0x60] sm:$0xf] %v6568
      %6570 = vst.msk [vmem:[%s6508 + $0x64] sm:$0xf] %vm596, %v6339
      %v6571 = vld [vmem:[%s6508 + $0x68] sm:$0x1]
      %v6572 = vsel %vm606, %v6340, %v6571
      %6573 = vst [vmem:[%s6508 + $0x68] sm:$0x1] %v6572
      %v6574 = vld [vmem:[%s6508 + $0x6c] sm:$0xf]
      %v6575 = vsel %vm6510, %v6347, %v6574
      %6576 = vst [vmem:[%s6508 + $0x6c] sm:$0xf] %v6575
      %6577 = vst.msk [vmem:[%s6508 + $0x70] sm:$0xf] %vm596, %v6356
      %v6578 = vld [vmem:[%s6508 + $0x74] sm:$0x1]
      %v6579 = vsel %vm606, %v6357, %v6578
      %6580 = vst [vmem:[%s6508 + $0x74] sm:$0x1] %v6579
      %v6581 = vld [vmem:[%s6508 + $0x78] sm:$0xf]
      %v6582 = vsel %vm6510, %v6364, %v6581
      %6583 = vst [vmem:[%s6508 + $0x78] sm:$0xf] %v6582
      %6584 = vst.msk [vmem:[%s6508 + $0x7c] sm:$0xf] %vm596, %v6373
      %v6585 = vld [vmem:[%s6508 + $0x80] sm:$0x1]
      %v6586 = vsel %vm606, %v6374, %v6585
      %6587 = vst [vmem:[%s6508 + $0x80] sm:$0x1] %v6586
      %v6588 = vld [vmem:[%s6508 + $0x84] sm:$0xf]
      %v6589 = vsel %vm6510, %v6381, %v6588
      %6590 = vst [vmem:[%s6508 + $0x84] sm:$0xf] %v6589
      %6591 = vst.msk [vmem:[%s6508 + $0x88] sm:$0xf] %vm596, %v6390
      %v6592 = vld [vmem:[%s6508 + $0x8c] sm:$0x1]
      %v6593 = vsel %vm606, %v6391, %v6592
      %6594 = vst [vmem:[%s6508 + $0x8c] sm:$0x1] %v6593
      %v6595 = vld [vmem:[%s6508 + $0x90] sm:$0xf]
      %v6596 = vsel %vm6510, %v6398, %v6595
      %6597 = vst [vmem:[%s6508 + $0x90] sm:$0xf] %v6596
      %6598 = vst.msk [vmem:[%s6508 + $0x94] sm:$0xf] %vm596, %v6407
      %v6599 = vld [vmem:[%s6508 + $0x98] sm:$0x1]
      %v6600 = vsel %vm606, %v6408, %v6599
      %6601 = vst [vmem:[%s6508 + $0x98] sm:$0x1] %v6600
      %v6602 = vld [vmem:[%s6508 + $0x9c] sm:$0xf]
      %v6603 = vsel %vm6510, %v6415, %v6602
      %6604 = vst [vmem:[%s6508 + $0x9c] sm:$0xf] %v6603
      %6605 = vst.msk [vmem:[%s6508 + $0xa0] sm:$0xf] %vm596, %v6424
      %v6606 = vld [vmem:[%s6508 + $0xa4] sm:$0x1]
      %v6607 = vsel %vm606, %v6425, %v6606
      %6608 = vst [vmem:[%s6508 + $0xa4] sm:$0x1] %v6607
      %v6609 = vld [vmem:[%s6508 + $0xa8] sm:$0xf]
      %v6610 = vsel %vm6510, %v6432, %v6609
      %6611 = vst [vmem:[%s6508 + $0xa8] sm:$0xf] %v6610
      %6612 = vst.msk [vmem:[%s6508 + $0xac] sm:$0xf] %vm596, %v6441
      %v6613 = vld [vmem:[%s6508 + $0xb0] sm:$0x1]
      %v6614 = vsel %vm606, %v6442, %v6613
      %6615 = vst [vmem:[%s6508 + $0xb0] sm:$0x1] %v6614
      %v6616 = vld [vmem:[%s6508 + $0xb4] sm:$0xf]
      %v6617 = vsel %vm6510, %v6449, %v6616
      %6618 = vst [vmem:[%s6508 + $0xb4] sm:$0xf] %v6617
      %6619 = vst.msk [vmem:[%s6508 + $0xb8] sm:$0xf] %vm596, %v6458
      %v6620 = vld [vmem:[%s6508 + $0xbc] sm:$0x1]
      %v6621 = vsel %vm606, %v6459, %v6620
      %6622 = vst [vmem:[%s6508 + $0xbc] sm:$0x1] %v6621
      %v6623 = vld [vmem:[#allocation4] sm:$0xf]
      %v6624 = vld [vmem:[#allocation4 + $0x4] sm:$0xf]
      %v6625 = vld [vmem:[#allocation4 + $0xc] sm:$0xf]
      %v6626 = vld [vmem:[#allocation4 + $0x10] sm:$0xf]
      %v6627 = vld [vmem:[#allocation4 + $0x18] sm:$0xf]
      %v6628 = vld [vmem:[#allocation4 + $0x1c] sm:$0xf]
      %v6629 = vld [vmem:[#allocation4 + $0x24] sm:$0xf]
      %v6630 = vld [vmem:[#allocation4 + $0x28] sm:$0xf]
      %v6631 = vld [vmem:[#allocation4 + $0x30] sm:$0xf]
      %v6632 = vld [vmem:[#allocation4 + $0x34] sm:$0xf]
      %v6633 = vld [vmem:[#allocation4 + $0x3c] sm:$0xf]
      %v6634 = vld [vmem:[#allocation4 + $0x40] sm:$0xf]
      %v6635 = vld [vmem:[#allocation4 + $0x48] sm:$0xf]
      %v6636 = vld [vmem:[#allocation4 + $0x4c] sm:$0xf]
      %v6637 = vld [vmem:[#allocation4 + $0x54] sm:$0xf]
      %v6638 = vld [vmem:[#allocation4 + $0x58] sm:$0xf]
      %v6639 = vld [vmem:[#allocation4 + $0x60] sm:$0xf]
      %v6640 = vld [vmem:[#allocation4 + $0x64] sm:$0xf]
      %v6641 = vld [vmem:[#allocation4 + $0x6c] sm:$0xf]
      %v6642 = vld [vmem:[#allocation4 + $0x70] sm:$0xf]
      %v6643 = vld [vmem:[#allocation4 + $0x78] sm:$0xf]
      %v6644 = vld [vmem:[#allocation4 + $0x7c] sm:$0xf]
      %v6645 = vld [vmem:[#allocation4 + $0x84] sm:$0xf]
      %v6646 = vld [vmem:[#allocation4 + $0x88] sm:$0xf]
      %v6647 = vld [vmem:[#allocation4 + $0x90] sm:$0xf]
      %v6648 = vld [vmem:[#allocation4 + $0x94] sm:$0xf]
      %v6649 = vld [vmem:[#allocation4 + $0x9c] sm:$0xf]
      %v6650 = vld [vmem:[#allocation4 + $0xa0] sm:$0xf]
      %v6651 = vld [vmem:[#allocation4 + $0xa8] sm:$0xf]
      %v6652 = vld [vmem:[#allocation4 + $0xac] sm:$0xf]
      %v6653 = vld [vmem:[#allocation4 + $0xb4] sm:$0xf]
      %v6654 = vld [vmem:[#allocation4 + $0xb8] sm:$0xf]
      %v6655 = vld [vmem:[#allocation4 + $0xc0] sm:$0xf]
      %v6656 = vld [vmem:[#allocation4 + $0xc4] sm:$0xf]
      %v6657 = vld [vmem:[#allocation4 + $0xcc] sm:$0xf]
      %v6658 = vld [vmem:[#allocation4 + $0xd0] sm:$0xf]
      %v6659 = vld [vmem:[#allocation4 + $0x8] sm:$0x1]
      %v6660 = vld [vmem:[#allocation4 + $0x14] sm:$0x1]
      %v6661 = vld [vmem:[#allocation4 + $0x20] sm:$0x1]
      %v6662 = vld [vmem:[#allocation4 + $0x2c] sm:$0x1]
      %v6663 = vld [vmem:[#allocation4 + $0x38] sm:$0x1]
      %v6664 = vld [vmem:[#allocation4 + $0x44] sm:$0x1]
      %v6665 = vld [vmem:[#allocation4 + $0x50] sm:$0x1]
      %v6666 = vld [vmem:[#allocation4 + $0x5c] sm:$0x1]
      %v6667 = vld [vmem:[#allocation4 + $0x68] sm:$0x1]
      %v6668 = vld [vmem:[#allocation4 + $0x74] sm:$0x1]
      %v6669 = vld [vmem:[#allocation4 + $0x80] sm:$0x1]
      %v6670 = vld [vmem:[#allocation4 + $0x8c] sm:$0x1]
      %v6671 = vld [vmem:[#allocation4 + $0x98] sm:$0x1]
      %v6672 = vld [vmem:[#allocation4 + $0xa4] sm:$0x1]
      %v6673 = vld [vmem:[#allocation4 + $0xb0] sm:$0x1]
      %v6674 = vld [vmem:[#allocation4 + $0xbc] sm:$0x1]
      %v6675 = vld [vmem:[#allocation4 + $0xc8] sm:$0x1]
      %v6676 = vld [vmem:[#allocation4 + $0xd4] sm:$0x1]
      %v6677 = vld [vmem:[#allocation4] sm:$0xe]
      %v6678 = vld [vmem:[#allocation4 + $0xc] sm:$0xe]
      %v6679 = vld [vmem:[#allocation4 + $0x18] sm:$0xe]
      %v6680 = vld [vmem:[#allocation4 + $0x24] sm:$0xe]
      %v6681 = vld [vmem:[#allocation4 + $0x30] sm:$0xe]
      %v6682 = vld [vmem:[#allocation4 + $0x3c] sm:$0xe]
      %v6683 = vld [vmem:[#allocation4 + $0x48] sm:$0xe]
      %v6684 = vld [vmem:[#allocation4 + $0x54] sm:$0xe]
      %v6685 = vld [vmem:[#allocation4 + $0x60] sm:$0xe]
      %v6686 = vld [vmem:[#allocation4 + $0x6c] sm:$0xe]
      %v6687 = vld [vmem:[#allocation4 + $0x78] sm:$0xe]
      %v6688 = vld [vmem:[#allocation4 + $0x84] sm:$0xe]
      %v6689 = vld [vmem:[#allocation4 + $0x90] sm:$0xe]
      %v6690 = vld [vmem:[#allocation4 + $0x9c] sm:$0xe]
      %v6691 = vld [vmem:[#allocation4 + $0xa8] sm:$0xe]
      %v6692 = vld [vmem:[#allocation4 + $0xb4] sm:$0xe]
      %v6693 = vld [vmem:[#allocation4 + $0xc0] sm:$0xe]
      %v6694 = vld [vmem:[#allocation4 + $0xcc] sm:$0xe]
      %v6731 = vunpack.c.l.b16 %v6623
      %v6732 = vunpack.c.l.b16 %v6624
      %v6733 = vunpack.c.l.b16 %v6625
      %v6734 = vunpack.c.l.b16 %v6626
      %v6735 = vunpack.c.l.b16 %v6627
      %v6736 = vunpack.c.l.b16 %v6628
      %v6737 = vunpack.c.l.b16 %v6629
      %v6738 = vunpack.c.l.b16 %v6630
      %v6739 = vunpack.c.l.b16 %v6631
      %v6740 = vunpack.c.l.b16 %v6632
      %v6741 = vunpack.c.l.b16 %v6633
      %v6742 = vunpack.c.l.b16 %v6634
      %v6743 = vunpack.c.l.b16 %v6635
      %v6744 = vunpack.c.l.b16 %v6636
      %v6745 = vunpack.c.l.b16 %v6637
      %v6746 = vunpack.c.l.b16 %v6638
      %v6747 = vunpack.c.l.b16 %v6639
      %v6748 = vunpack.c.l.b16 %v6640
      %v6749 = vunpack.c.l.b16 %v6641
      %v6750 = vunpack.c.l.b16 %v6642
      %v6751 = vunpack.c.l.b16 %v6643
      %v6752 = vunpack.c.l.b16 %v6644
      %v6753 = vunpack.c.l.b16 %v6645
      %v6754 = vunpack.c.l.b16 %v6646
      %v6755 = vunpack.c.l.b16 %v6647
      %v6756 = vunpack.c.l.b16 %v6648
      %v6757 = vunpack.c.l.b16 %v6649
      %v6758 = vunpack.c.l.b16 %v6650
      %v6759 = vunpack.c.l.b16 %v6651
      %v6760 = vunpack.c.l.b16 %v6652
      %v6761 = vunpack.c.l.b16 %v6653
      %v6762 = vunpack.c.l.b16 %v6654
      %v6763 = vunpack.c.l.b16 %v6655
      %v6764 = vunpack.c.l.b16 %v6656
      %v6765 = vunpack.c.l.b16 %v6657
      %v6766 = vunpack.c.l.b16 %v6658
      %v6767 = vpack.c.b16 %v6732, %v6731
      %v6768 = vpack.c.b16 %v6734, %v6733
      %v6769 = vpack.c.b16 %v6736, %v6735
      %v6770 = vpack.c.b16 %v6738, %v6737
      %v6771 = vpack.c.b16 %v6740, %v6739
      %v6772 = vpack.c.b16 %v6742, %v6741
      %v6773 = vpack.c.b16 %v6744, %v6743
      %v6774 = vpack.c.b16 %v6746, %v6745
      %v6775 = vpack.c.b16 %v6748, %v6747
      %v6776 = vpack.c.b16 %v6750, %v6749
      %v6777 = vpack.c.b16 %v6752, %v6751
      %v6778 = vpack.c.b16 %v6754, %v6753
      %v6779 = vpack.c.b16 %v6756, %v6755
      %v6780 = vpack.c.b16 %v6758, %v6757
      %v6781 = vpack.c.b16 %v6760, %v6759
      %v6782 = vpack.c.b16 %v6762, %v6761
      %v6783 = vpack.c.b16 %v6764, %v6763
      %v6784 = vpack.c.b16 %v6766, %v6765
      %v6803 = vunpack.c.l.b16 %v6659
      %v6804 = vunpack.c.l.b16 %v6660
      %v6805 = vunpack.c.l.b16 %v6661
      %v6806 = vunpack.c.l.b16 %v6662
      %v6807 = vunpack.c.l.b16 %v6663
      %v6808 = vunpack.c.l.b16 %v6664
      %v6809 = vunpack.c.l.b16 %v6665
      %v6810 = vunpack.c.l.b16 %v6666
      %v6811 = vunpack.c.l.b16 %v6667
      %v6812 = vunpack.c.l.b16 %v6668
      %v6813 = vunpack.c.l.b16 %v6669
      %v6814 = vunpack.c.l.b16 %v6670
      %v6815 = vunpack.c.l.b16 %v6671
      %v6816 = vunpack.c.l.b16 %v6672
      %v6817 = vunpack.c.l.b16 %v6673
      %v6818 = vunpack.c.l.b16 %v6674
      %v6819 = vunpack.c.l.b16 %v6675
      %v6820 = vunpack.c.l.b16 %v6676
      %v6821 = vpack.c.b16 %v6803, %v6803
      %v6822 = vpack.c.b16 %v6804, %v6804
      %v6823 = vpack.c.b16 %v6805, %v6805
      %v6824 = vpack.c.b16 %v6806, %v6806
      %v6825 = vpack.c.b16 %v6807, %v6807
      %v6826 = vpack.c.b16 %v6808, %v6808
      %v6827 = vpack.c.b16 %v6809, %v6809
      %v6828 = vpack.c.b16 %v6810, %v6810
      %v6829 = vpack.c.b16 %v6811, %v6811
      %v6830 = vpack.c.b16 %v6812, %v6812
      %v6831 = vpack.c.b16 %v6813, %v6813
      %v6832 = vpack.c.b16 %v6814, %v6814
      %v6833 = vpack.c.b16 %v6815, %v6815
      %v6834 = vpack.c.b16 %v6816, %v6816
      %v6835 = vpack.c.b16 %v6817, %v6817
      %v6836 = vpack.c.b16 %v6818, %v6818
      %v6837 = vpack.c.b16 %v6819, %v6819
      %v6838 = vpack.c.b16 %v6820, %v6820
      %v6840 = vshrl.u32 %v6767, 16
      %v6842 = vshll.u32 %v6767, 16
      %v6844 = vrot.slane %v6842, 1
      %v6845 = vor.u32 %v6840, %v6844
      %v6847 = vshll.u32 %v6821, 16
      %v6849 = vrot.slane %v6847, 1
      %v6850 = vsel %vm2390, %v6845, %v6849
      %v6852 = vshrl.u32 %v6768, 16
      %v6854 = vshll.u32 %v6768, 16
      %v6856 = vrot.slane %v6854, 1
      %v6857 = vor.u32 %v6852, %v6856
      %v6859 = vshll.u32 %v6822, 16
      %v6861 = vrot.slane %v6859, 1
      %v6862 = vsel %vm2390, %v6857, %v6861
      %v6864 = vshrl.u32 %v6769, 16
      %v6866 = vshll.u32 %v6769, 16
      %v6868 = vrot.slane %v6866, 1
      %v6869 = vor.u32 %v6864, %v6868
      %v6871 = vshll.u32 %v6823, 16
      %v6873 = vrot.slane %v6871, 1
      %v6874 = vsel %vm2390, %v6869, %v6873
      %v6876 = vshrl.u32 %v6770, 16
      %v6878 = vshll.u32 %v6770, 16
      %v6880 = vrot.slane %v6878, 1
      %v6881 = vor.u32 %v6876, %v6880
      %v6883 = vshll.u32 %v6824, 16
      %v6885 = vrot.slane %v6883, 1
      %v6886 = vsel %vm2390, %v6881, %v6885
      %v6888 = vshrl.u32 %v6771, 16
      %v6890 = vshll.u32 %v6771, 16
      %v6892 = vrot.slane %v6890, 1
      %v6893 = vor.u32 %v6888, %v6892
      %v6895 = vshll.u32 %v6825, 16
      %v6897 = vrot.slane %v6895, 1
      %v6898 = vsel %vm2390, %v6893, %v6897
      %v6900 = vshrl.u32 %v6772, 16
      %v6902 = vshll.u32 %v6772, 16
      %v6904 = vrot.slane %v6902, 1
      %v6905 = vor.u32 %v6900, %v6904
      %v6907 = vshll.u32 %v6826, 16
      %v6909 = vrot.slane %v6907, 1
      %v6910 = vsel %vm2390, %v6905, %v6909
      %v6912 = vshrl.u32 %v6773, 16
      %v6914 = vshll.u32 %v6773, 16
      %v6916 = vrot.slane %v6914, 1
      %v6917 = vor.u32 %v6912, %v6916
      %v6919 = vshll.u32 %v6827, 16
      %v6921 = vrot.slane %v6919, 1
      %v6922 = vsel %vm2390, %v6917, %v6921
      %v6924 = vshrl.u32 %v6774, 16
      %v6926 = vshll.u32 %v6774, 16
      %v6928 = vrot.slane %v6926, 1
      %v6929 = vor.u32 %v6924, %v6928
      %v6931 = vshll.u32 %v6828, 16
      %v6933 = vrot.slane %v6931, 1
      %v6934 = vsel %vm2390, %v6929, %v6933
      %v6936 = vshrl.u32 %v6775, 16
      %v6938 = vshll.u32 %v6775, 16
      %v6940 = vrot.slane %v6938, 1
      %v6941 = vor.u32 %v6936, %v6940
      %v6943 = vshll.u32 %v6829, 16
      %v6945 = vrot.slane %v6943, 1
      %v6946 = vsel %vm2390, %v6941, %v6945
      %v6948 = vshrl.u32 %v6776, 16
      %v6950 = vshll.u32 %v6776, 16
      %v6952 = vrot.slane %v6950, 1
      %v6953 = vor.u32 %v6948, %v6952
      %v6955 = vshll.u32 %v6830, 16
      %v6957 = vrot.slane %v6955, 1
      %v6958 = vsel %vm2390, %v6953, %v6957
      %v6960 = vshrl.u32 %v6777, 16
      %v6962 = vshll.u32 %v6777, 16
      %v6964 = vrot.slane %v6962, 1
      %v6965 = vor.u32 %v6960, %v6964
      %v6967 = vshll.u32 %v6831, 16
      %v6969 = vrot.slane %v6967, 1
      %v6970 = vsel %vm2390, %v6965, %v6969
      %v6972 = vshrl.u32 %v6778, 16
      %v6974 = vshll.u32 %v6778, 16
      %v6976 = vrot.slane %v6974, 1
      %v6977 = vor.u32 %v6972, %v6976
      %v6979 = vshll.u32 %v6832, 16
      %v6981 = vrot.slane %v6979, 1
      %v6982 = vsel %vm2390, %v6977, %v6981
      %v6984 = vshrl.u32 %v6779, 16
      %v6986 = vshll.u32 %v6779, 16
      %v6988 = vrot.slane %v6986, 1
      %v6989 = vor.u32 %v6984, %v6988
      %v6991 = vshll.u32 %v6833, 16
      %v6993 = vrot.slane %v6991, 1
      %v6994 = vsel %vm2390, %v6989, %v6993
      %v6996 = vshrl.u32 %v6780, 16
      %v6998 = vshll.u32 %v6780, 16
      %v7000 = vrot.slane %v6998, 1
      %v7001 = vor.u32 %v6996, %v7000
      %v7003 = vshll.u32 %v6834, 16
      %v7005 = vrot.slane %v7003, 1
      %v7006 = vsel %vm2390, %v7001, %v7005
      %v7008 = vshrl.u32 %v6781, 16
      %v7010 = vshll.u32 %v6781, 16
      %v7012 = vrot.slane %v7010, 1
      %v7013 = vor.u32 %v7008, %v7012
      %v7015 = vshll.u32 %v6835, 16
      %v7017 = vrot.slane %v7015, 1
      %v7018 = vsel %vm2390, %v7013, %v7017
      %v7020 = vshrl.u32 %v6782, 16
      %v7022 = vshll.u32 %v6782, 16
      %v7024 = vrot.slane %v7022, 1
      %v7025 = vor.u32 %v7020, %v7024
      %v7027 = vshll.u32 %v6836, 16
      %v7029 = vrot.slane %v7027, 1
      %v7030 = vsel %vm2390, %v7025, %v7029
      %v7032 = vshrl.u32 %v6783, 16
      %v7034 = vshll.u32 %v6783, 16
      %v7036 = vrot.slane %v7034, 1
      %v7037 = vor.u32 %v7032, %v7036
      %v7039 = vshll.u32 %v6837, 16
      %v7041 = vrot.slane %v7039, 1
      %v7042 = vsel %vm2390, %v7037, %v7041
      %v7044 = vshrl.u32 %v6784, 16
      %v7046 = vshll.u32 %v6784, 16
      %v7048 = vrot.slane %v7046, 1
      %v7049 = vor.u32 %v7044, %v7048
      %v7051 = vshll.u32 %v6838, 16
      %v7053 = vrot.slane %v7051, 1
      %v7054 = vsel %vm2390, %v7049, %v7053
      %7055 = vrot.lane.b32.xlu0 %v6850, 8
      %v7056 = vpop.permute.xlu0 %7055
      %7057 = vrot.lane.b32.xlu0 %v6862, 8
      %v7058 = vpop.permute.xlu0 %7057
      %7059 = vrot.lane.b32.xlu0 %v6874, 8
      %v7060 = vpop.permute.xlu0 %7059
      %7061 = vrot.lane.b32.xlu0 %v6886, 8
      %v7062 = vpop.permute.xlu0 %7061
      %7063 = vrot.lane.b32.xlu0 %v6898, 8
      %v7064 = vpop.permute.xlu0 %7063
      %7065 = vrot.lane.b32.xlu0 %v6910, 8
      %v7066 = vpop.permute.xlu0 %7065
      %7067 = vrot.lane.b32.xlu0 %v6922, 8
      %v7068 = vpop.permute.xlu0 %7067
      %7069 = vrot.lane.b32.xlu0 %v6934, 8
      %v7070 = vpop.permute.xlu0 %7069
      %7071 = vrot.lane.b32.xlu0 %v6946, 8
      %v7072 = vpop.permute.xlu0 %7071
      %7073 = vrot.lane.b32.xlu0 %v6958, 8
      %v7074 = vpop.permute.xlu0 %7073
      %7075 = vrot.lane.b32.xlu0 %v6970, 8
      %v7076 = vpop.permute.xlu0 %7075
      %7077 = vrot.lane.b32.xlu0 %v6982, 8
      %v7078 = vpop.permute.xlu0 %7077
      %7079 = vrot.lane.b32.xlu0 %v6994, 8
      %v7080 = vpop.permute.xlu0 %7079
      %7081 = vrot.lane.b32.xlu0 %v7006, 8
      %v7082 = vpop.permute.xlu0 %7081
      %7083 = vrot.lane.b32.xlu0 %v7018, 8
      %v7084 = vpop.permute.xlu0 %7083
      %7085 = vrot.lane.b32.xlu0 %v7030, 8
      %v7086 = vpop.permute.xlu0 %7085
      %7087 = vrot.lane.b32.xlu0 %v7042, 8
      %v7088 = vpop.permute.xlu0 %7087
      %7089 = vrot.lane.b32.xlu0 %v7054, 8
      %v7090 = vpop.permute.xlu0 %7089
      %v7109 = vunpack.c.l.b16 %v6677
      %v7110 = vunpack.c.l.b16 %v6678
      %v7111 = vunpack.c.l.b16 %v6679
      %v7112 = vunpack.c.l.b16 %v6680
      %v7113 = vunpack.c.l.b16 %v6681
      %v7114 = vunpack.c.l.b16 %v6682
      %v7115 = vunpack.c.l.b16 %v6683
      %v7116 = vunpack.c.l.b16 %v6684
      %v7117 = vunpack.c.l.b16 %v6685
      %v7118 = vunpack.c.l.b16 %v6686
      %v7119 = vunpack.c.l.b16 %v6687
      %v7120 = vunpack.c.l.b16 %v6688
      %v7121 = vunpack.c.l.b16 %v6689
      %v7122 = vunpack.c.l.b16 %v6690
      %v7123 = vunpack.c.l.b16 %v6691
      %v7124 = vunpack.c.l.b16 %v6692
      %v7125 = vunpack.c.l.b16 %v6693
      %v7126 = vunpack.c.l.b16 %v6694
      %v7127 = vpack.c.b16 %v6732, %v7109
      %v7128 = vpack.c.b16 %v6734, %v7110
      %v7129 = vpack.c.b16 %v6736, %v7111
      %v7130 = vpack.c.b16 %v6738, %v7112
      %v7131 = vpack.c.b16 %v6740, %v7113
      %v7132 = vpack.c.b16 %v6742, %v7114
      %v7133 = vpack.c.b16 %v6744, %v7115
      %v7134 = vpack.c.b16 %v6746, %v7116
      %v7135 = vpack.c.b16 %v6748, %v7117
      %v7136 = vpack.c.b16 %v6750, %v7118
      %v7137 = vpack.c.b16 %v6752, %v7119
      %v7138 = vpack.c.b16 %v6754, %v7120
      %v7139 = vpack.c.b16 %v6756, %v7121
      %v7140 = vpack.c.b16 %v6758, %v7122
      %v7141 = vpack.c.b16 %v6760, %v7123
      %v7142 = vpack.c.b16 %v6762, %v7124
      %v7143 = vpack.c.b16 %v6764, %v7125
      %v7144 = vpack.c.b16 %v6766, %v7126
      %v7145 = vrot.slane %v7127, 1
      %v7146 = vrot.slane %v6821, 1
      %v7147 = vsel %vm2697, %v7145, %v7146
      %v7148 = vrot.slane %v7128, 1
      %v7149 = vrot.slane %v6822, 1
      %v7150 = vsel %vm2697, %v7148, %v7149
      %v7151 = vrot.slane %v7129, 1
      %v7152 = vrot.slane %v6823, 1
      %v7153 = vsel %vm2697, %v7151, %v7152
      %v7154 = vrot.slane %v7130, 1
      %v7155 = vrot.slane %v6824, 1
      %v7156 = vsel %vm2697, %v7154, %v7155
      %v7157 = vrot.slane %v7131, 1
      %v7158 = vrot.slane %v6825, 1
      %v7159 = vsel %vm2697, %v7157, %v7158
      %v7160 = vrot.slane %v7132, 1
      %v7161 = vrot.slane %v6826, 1
      %v7162 = vsel %vm2697, %v7160, %v7161
      %v7163 = vrot.slane %v7133, 1
      %v7164 = vrot.slane %v6827, 1
      %v7165 = vsel %vm2697, %v7163, %v7164
      %v7166 = vrot.slane %v7134, 1
      %v7167 = vrot.slane %v6828, 1
      %v7168 = vsel %vm2697, %v7166, %v7167
      %v7169 = vrot.slane %v7135, 1
      %v7170 = vrot.slane %v6829, 1
      %v7171 = vsel %vm2697, %v7169, %v7170
      %v7172 = vrot.slane %v7136, 1
      %v7173 = vrot.slane %v6830, 1
      %v7174 = vsel %vm2697, %v7172, %v7173
      %v7175 = vrot.slane %v7137, 1
      %v7176 = vrot.slane %v6831, 1
      %v7177 = vsel %vm2697, %v7175, %v7176
      %v7178 = vrot.slane %v7138, 1
      %v7179 = vrot.slane %v6832, 1
      %v7180 = vsel %vm2697, %v7178, %v7179
      %v7181 = vrot.slane %v7139, 1
      %v7182 = vrot.slane %v6833, 1
      %v7183 = vsel %vm2697, %v7181, %v7182
      %v7184 = vrot.slane %v7140, 1
      %v7185 = vrot.slane %v6834, 1
      %v7186 = vsel %vm2697, %v7184, %v7185
      %v7187 = vrot.slane %v7141, 1
      %v7188 = vrot.slane %v6835, 1
      %v7189 = vsel %vm2697, %v7187, %v7188
      %v7190 = vrot.slane %v7142, 1
      %v7191 = vrot.slane %v6836, 1
      %v7192 = vsel %vm2697, %v7190, %v7191
      %v7193 = vrot.slane %v7143, 1
      %v7194 = vrot.slane %v6837, 1
      %v7195 = vsel %vm2697, %v7193, %v7194
      %v7196 = vrot.slane %v7144, 1
      %v7197 = vrot.slane %v6838, 1
      %v7198 = vsel %vm2697, %v7196, %v7197
      %7199 = vrot.lane.b32.xlu0 %v7147, 16
      %v7200 = vpop.permute.xlu0 %7199
      %7201 = vrot.lane.b32.xlu0 %v7150, 16
      %v7202 = vpop.permute.xlu0 %7201
      %7203 = vrot.lane.b32.xlu0 %v7153, 16
      %v7204 = vpop.permute.xlu0 %7203
      %7205 = vrot.lane.b32.xlu0 %v7156, 16
      %v7206 = vpop.permute.xlu0 %7205
      %7207 = vrot.lane.b32.xlu0 %v7159, 16
      %v7208 = vpop.permute.xlu0 %7207
      %7209 = vrot.lane.b32.xlu0 %v7162, 16
      %v7210 = vpop.permute.xlu0 %7209
      %7211 = vrot.lane.b32.xlu0 %v7165, 16
      %v7212 = vpop.permute.xlu0 %7211
      %7213 = vrot.lane.b32.xlu0 %v7168, 16
      %v7214 = vpop.permute.xlu0 %7213
      %7215 = vrot.lane.b32.xlu0 %v7171, 16
      %v7216 = vpop.permute.xlu0 %7215
      %7217 = vrot.lane.b32.xlu0 %v7174, 16
      %v7218 = vpop.permute.xlu0 %7217
      %7219 = vrot.lane.b32.xlu0 %v7177, 16
      %v7220 = vpop.permute.xlu0 %7219
      %7221 = vrot.lane.b32.xlu0 %v7180, 16
      %v7222 = vpop.permute.xlu0 %7221
      %7223 = vrot.lane.b32.xlu0 %v7183, 16
      %v7224 = vpop.permute.xlu0 %7223
      %7225 = vrot.lane.b32.xlu0 %v7186, 16
      %v7226 = vpop.permute.xlu0 %7225
      %7227 = vrot.lane.b32.xlu0 %v7189, 16
      %v7228 = vpop.permute.xlu0 %7227
      %7229 = vrot.lane.b32.xlu0 %v7192, 16
      %v7230 = vpop.permute.xlu0 %7229
      %7231 = vrot.lane.b32.xlu0 %v7195, 16
      %v7232 = vpop.permute.xlu0 %7231
      %7233 = vrot.lane.b32.xlu0 %v7198, 16
      %v7234 = vpop.permute.xlu0 %7233
      %v7236 = vsel %vm3674, %v6767, %v7056
      %v7238 = vsel %vm3674, %v6768, %v7058
      %v7240 = vsel %vm3674, %v6769, %v7060
      %v7242 = vsel %vm3674, %v6770, %v7062
      %v7244 = vsel %vm3674, %v6771, %v7064
      %v7246 = vsel %vm3674, %v6772, %v7066
      %v7248 = vsel %vm3674, %v6773, %v7068
      %v7250 = vsel %vm3674, %v6774, %v7070
      %v7252 = vsel %vm3674, %v6775, %v7072
      %v7254 = vsel %vm3674, %v6776, %v7074
      %v7256 = vsel %vm3674, %v6777, %v7076
      %v7258 = vsel %vm3674, %v6778, %v7078
      %v7260 = vsel %vm3674, %v6779, %v7080
      %v7262 = vsel %vm3674, %v6780, %v7082
      %v7264 = vsel %vm3674, %v6781, %v7084
      %v7266 = vsel %vm3674, %v6782, %v7086
      %v7268 = vsel %vm3674, %v6783, %v7088
      %v7270 = vsel %vm3674, %v6784, %v7090
      %vm7271 = vcmask 130048
      %v7273 = vsel %vm7271, %v7236, %v7200
      %v7275 = vsel %vm7271, %v7238, %v7202
      %v7277 = vsel %vm7271, %v7240, %v7204
      %v7279 = vsel %vm7271, %v7242, %v7206
      %v7281 = vsel %vm7271, %v7244, %v7208
      %v7283 = vsel %vm7271, %v7246, %v7210
      %v7285 = vsel %vm7271, %v7248, %v7212
      %v7287 = vsel %vm7271, %v7250, %v7214
      %v7289 = vsel %vm7271, %v7252, %v7216
      %v7291 = vsel %vm7271, %v7254, %v7218
      %v7293 = vsel %vm7271, %v7256, %v7220
      %v7295 = vsel %vm7271, %v7258, %v7222
      %v7297 = vsel %vm7271, %v7260, %v7224
      %v7299 = vsel %vm7271, %v7262, %v7226
      %v7301 = vsel %vm7271, %v7264, %v7228
      %v7303 = vsel %vm7271, %v7266, %v7230
      %v7305 = vsel %vm7271, %v7268, %v7232
      %v7307 = vsel %vm7271, %v7270, %v7234
      %v7326 = vunpack.c.l.b16 %v7273
      %v7327 = vunpack.c.h.b16 %v7273
      %v7328 = vunpack.c.l.b16 %v7275
      %v7329 = vunpack.c.h.b16 %v7275
      %v7330 = vunpack.c.l.b16 %v7277
      %v7331 = vunpack.c.h.b16 %v7277
      %v7332 = vunpack.c.l.b16 %v7279
      %v7333 = vunpack.c.h.b16 %v7279
      %v7334 = vunpack.c.l.b16 %v7281
      %v7335 = vunpack.c.h.b16 %v7281
      %v7336 = vunpack.c.l.b16 %v7283
      %v7337 = vunpack.c.h.b16 %v7283
      %v7338 = vunpack.c.l.b16 %v7285
      %v7339 = vunpack.c.h.b16 %v7285
      %v7340 = vunpack.c.l.b16 %v7287
      %v7341 = vunpack.c.h.b16 %v7287
      %v7342 = vunpack.c.l.b16 %v7289
      %v7343 = vunpack.c.h.b16 %v7289
      %v7344 = vunpack.c.l.b16 %v7291
      %v7345 = vunpack.c.h.b16 %v7291
      %v7346 = vunpack.c.l.b16 %v7293
      %v7347 = vunpack.c.h.b16 %v7293
      %v7348 = vunpack.c.l.b16 %v7295
      %v7349 = vunpack.c.h.b16 %v7295
      %v7350 = vunpack.c.l.b16 %v7297
      %v7351 = vunpack.c.h.b16 %v7297
      %v7352 = vunpack.c.l.b16 %v7299
      %v7353 = vunpack.c.h.b16 %v7299
      %v7354 = vunpack.c.l.b16 %v7301
      %v7355 = vunpack.c.h.b16 %v7301
      %v7356 = vunpack.c.l.b16 %v7303
      %v7357 = vunpack.c.h.b16 %v7303
      %v7358 = vunpack.c.l.b16 %v7305
      %v7359 = vunpack.c.h.b16 %v7305
      %v7360 = vunpack.c.l.b16 %v7307
      %v7361 = vunpack.c.h.b16 %v7307
      %v7362 = vpack.c.b16 %v7326, %v7326
      %v7363 = vpack.c.b16 %v7327, %v7327
      %v7364 = vpack.c.b16 %v7328, %v7328
      %v7365 = vpack.c.b16 %v7329, %v7329
      %v7366 = vpack.c.b16 %v7330, %v7330
      %v7367 = vpack.c.b16 %v7331, %v7331
      %v7368 = vpack.c.b16 %v7332, %v7332
      %v7369 = vpack.c.b16 %v7333, %v7333
      %v7370 = vpack.c.b16 %v7334, %v7334
      %v7371 = vpack.c.b16 %v7335, %v7335
      %v7372 = vpack.c.b16 %v7336, %v7336
      %v7373 = vpack.c.b16 %v7337, %v7337
      %v7374 = vpack.c.b16 %v7338, %v7338
      %v7375 = vpack.c.b16 %v7339, %v7339
      %v7376 = vpack.c.b16 %v7340, %v7340
      %v7377 = vpack.c.b16 %v7341, %v7341
      %v7378 = vpack.c.b16 %v7342, %v7342
      %v7379 = vpack.c.b16 %v7343, %v7343
      %v7380 = vpack.c.b16 %v7344, %v7344
      %v7381 = vpack.c.b16 %v7345, %v7345
      %v7382 = vpack.c.b16 %v7346, %v7346
      %v7383 = vpack.c.b16 %v7347, %v7347
      %v7384 = vpack.c.b16 %v7348, %v7348
      %v7385 = vpack.c.b16 %v7349, %v7349
      %v7386 = vpack.c.b16 %v7350, %v7350
      %v7387 = vpack.c.b16 %v7351, %v7351
      %v7388 = vpack.c.b16 %v7352, %v7352
      %v7389 = vpack.c.b16 %v7353, %v7353
      %v7390 = vpack.c.b16 %v7354, %v7354
      %v7391 = vpack.c.b16 %v7355, %v7355
      %v7392 = vpack.c.b16 %v7356, %v7356
      %v7393 = vpack.c.b16 %v7357, %v7357
      %v7394 = vpack.c.b16 %v7358, %v7358
      %v7395 = vpack.c.b16 %v7359, %v7359
      %v7396 = vpack.c.b16 %v7360, %v7360
      %v7397 = vpack.c.b16 %v7361, %v7361
      %vm7434 = vcmask 191488
      %7435 = vst.msk [vmem:[#allocation7] sm:$0xf] %vm7434, %v7362
      %7436 = vst.msk [vmem:[#allocation7 + $0x4] sm:$0xf] %vm7434, %v7363
      %7437 = vst.msk [vmem:[#allocation7 + $0x8] sm:$0xf] %vm7434, %v7364
      %7438 = vst.msk [vmem:[#allocation7 + $0xc] sm:$0xf] %vm7434, %v7365
      %7439 = vst.msk [vmem:[#allocation7 + $0x10] sm:$0xf] %vm7434, %v7366
      %7440 = vst.msk [vmem:[#allocation7 + $0x14] sm:$0xf] %vm7434, %v7367
      %7441 = vst.msk [vmem:[#allocation7 + $0x18] sm:$0xf] %vm7434, %v7368
      %7442 = vst.msk [vmem:[#allocation7 + $0x1c] sm:$0xf] %vm7434, %v7369
      %7443 = vst.msk [vmem:[#allocation7 + $0x20] sm:$0xf] %vm7434, %v7370
      %7444 = vst.msk [vmem:[#allocation7 + $0x24] sm:$0xf] %vm7434, %v7371
      %7445 = vst.msk [vmem:[#allocation7 + $0x28] sm:$0xf] %vm7434, %v7372
      %7446 = vst.msk [vmem:[#allocation7 + $0x2c] sm:$0xf] %vm7434, %v7373
      %7447 = vst.msk [vmem:[#allocation7 + $0x30] sm:$0xf] %vm7434, %v7374
      %7448 = vst.msk [vmem:[#allocation7 + $0x34] sm:$0xf] %vm7434, %v7375
      %7449 = vst.msk [vmem:[#allocation7 + $0x38] sm:$0xf] %vm7434, %v7376
      %7450 = vst.msk [vmem:[#allocation7 + $0x3c] sm:$0xf] %vm7434, %v7377
      %7451 = vst.msk [vmem:[#allocation7 + $0x40] sm:$0xf] %vm7434, %v7378
      %7452 = vst.msk [vmem:[#allocation7 + $0x44] sm:$0xf] %vm7434, %v7379
      %7453 = vst.msk [vmem:[#allocation7 + $0x48] sm:$0xf] %vm7434, %v7380
      %7454 = vst.msk [vmem:[#allocation7 + $0x4c] sm:$0xf] %vm7434, %v7381
      %7455 = vst.msk [vmem:[#allocation7 + $0x50] sm:$0xf] %vm7434, %v7382
      %7456 = vst.msk [vmem:[#allocation7 + $0x54] sm:$0xf] %vm7434, %v7383
      %7457 = vst.msk [vmem:[#allocation7 + $0x58] sm:$0xf] %vm7434, %v7384
      %7458 = vst.msk [vmem:[#allocation7 + $0x5c] sm:$0xf] %vm7434, %v7385
      %7459 = vst.msk [vmem:[#allocation7 + $0x60] sm:$0xf] %vm7434, %v7386
      %7460 = vst.msk [vmem:[#allocation7 + $0x64] sm:$0xf] %vm7434, %v7387
      %7461 = vst.msk [vmem:[#allocation7 + $0x68] sm:$0xf] %vm7434, %v7388
      %7462 = vst.msk [vmem:[#allocation7 + $0x6c] sm:$0xf] %vm7434, %v7389
      %7463 = vst.msk [vmem:[#allocation7 + $0x70] sm:$0xf] %vm7434, %v7390
      %7464 = vst.msk [vmem:[#allocation7 + $0x74] sm:$0xf] %vm7434, %v7391
      %7465 = vst.msk [vmem:[#allocation7 + $0x78] sm:$0xf] %vm7434, %v7392
      %7466 = vst.msk [vmem:[#allocation7 + $0x7c] sm:$0xf] %vm7434, %v7393
      %7467 = vst.msk [vmem:[#allocation7 + $0x80] sm:$0xf] %vm7434, %v7394
      %7468 = vst.msk [vmem:[#allocation7 + $0x84] sm:$0xf] %vm7434, %v7395
      %7469 = vst.msk [vmem:[#allocation7 + $0x88] sm:$0xf] %vm7434, %v7396
      %7470 = vst.msk [vmem:[#allocation7 + $0x8c] sm:$0xf] %vm7434, %v7397
      %v7471 = vld [vmem:[#allocation7] sm:$0xf]
      %v7472 = vld [vmem:[#allocation7 + $0x4] sm:$0xf]
      %v7473 = vld [vmem:[#allocation7 + $0x8] sm:$0xf]
      %v7474 = vld [vmem:[#allocation7 + $0xc] sm:$0xf]
      %v7475 = vld [vmem:[#allocation7 + $0x10] sm:$0xf]
      %v7476 = vld [vmem:[#allocation7 + $0x14] sm:$0xf]
      %v7477 = vld [vmem:[#allocation7 + $0x18] sm:$0xf]
      %v7478 = vld [vmem:[#allocation7 + $0x1c] sm:$0xf]
      %v7479 = vld [vmem:[#allocation7 + $0x20] sm:$0xf]
      %v7480 = vld [vmem:[#allocation7 + $0x24] sm:$0xf]
      %v7481 = vld [vmem:[#allocation7 + $0x28] sm:$0xf]
      %v7482 = vld [vmem:[#allocation7 + $0x2c] sm:$0xf]
      %v7483 = vld [vmem:[#allocation7 + $0x30] sm:$0xf]
      %v7484 = vld [vmem:[#allocation7 + $0x34] sm:$0xf]
      %v7485 = vld [vmem:[#allocation7 + $0x38] sm:$0xf]
      %v7486 = vld [vmem:[#allocation7 + $0x3c] sm:$0xf]
      %v7487 = vld [vmem:[#allocation7 + $0x40] sm:$0xf]
      %v7488 = vld [vmem:[#allocation7 + $0x44] sm:$0xf]
      %v7489 = vld [vmem:[#allocation7 + $0x48] sm:$0xf]
      %v7490 = vld [vmem:[#allocation7 + $0x4c] sm:$0xf]
      %v7491 = vld [vmem:[#allocation7 + $0x50] sm:$0xf]
      %v7492 = vld [vmem:[#allocation7 + $0x54] sm:$0xf]
      %v7493 = vld [vmem:[#allocation7 + $0x58] sm:$0xf]
      %v7494 = vld [vmem:[#allocation7 + $0x5c] sm:$0xf]
      %v7495 = vld [vmem:[#allocation7 + $0x60] sm:$0xf]
      %v7496 = vld [vmem:[#allocation7 + $0x64] sm:$0xf]
      %v7497 = vld [vmem:[#allocation7 + $0x68] sm:$0xf]
      %v7498 = vld [vmem:[#allocation7 + $0x6c] sm:$0xf]
      %v7499 = vld [vmem:[#allocation7 + $0x70] sm:$0xf]
      %v7500 = vld [vmem:[#allocation7 + $0x74] sm:$0xf]
      %v7501 = vld [vmem:[#allocation7 + $0x78] sm:$0xf]
      %v7502 = vld [vmem:[#allocation7 + $0x7c] sm:$0xf]
      %v7503 = vld [vmem:[%s5] sm:$0xf]
      %v7504 = vld [vmem:[%s5 + $0x4] sm:$0xf]
      %v7505 = vld [vmem:[%s5 + $0x8] sm:$0xf]
      %s7506 = scalar_lea.vmem [#allocation7], 8
      %v7507 = vld [vmem:[%s7506] sm:$0xf]
      %v7508 = vld [vmem:[%s7506 + $0x4] sm:$0xf]
      %v7509 = vld [vmem:[%s7506 + $0x8] sm:$0xf]
      %v7510 = vld [vmem:[%s7506 + $0xc] sm:$0xf]
      %v7511 = vld [vmem:[%s7506 + $0x10] sm:$0xf]
      %v7512 = vld [vmem:[%s7506 + $0x14] sm:$0xf]
      %v7513 = vld [vmem:[%s7506 + $0x18] sm:$0xf]
      %v7514 = vld [vmem:[%s7506 + $0x1c] sm:$0xf]
      %v7515 = vld [vmem:[%s7506 + $0x20] sm:$0xf]
      %v7516 = vld [vmem:[%s7506 + $0x24] sm:$0xf]
      %v7517 = vld [vmem:[%s7506 + $0x28] sm:$0xf]
      %v7518 = vld [vmem:[%s7506 + $0x2c] sm:$0xf]
      %v7519 = vld [vmem:[%s7506 + $0x30] sm:$0xf]
      %v7520 = vld [vmem:[%s7506 + $0x34] sm:$0xf]
      %v7521 = vld [vmem:[%s7506 + $0x38] sm:$0xf]
      %v7522 = vld [vmem:[%s7506 + $0x3c] sm:$0xf]
      %v7523 = vld [vmem:[%s7506 + $0x40] sm:$0xf]
      %v7524 = vld [vmem:[%s7506 + $0x44] sm:$0xf]
      %v7525 = vld [vmem:[%s7506 + $0x48] sm:$0xf]
      %v7526 = vld [vmem:[%s7506 + $0x4c] sm:$0xf]
      %v7527 = vld [vmem:[%s7506 + $0x50] sm:$0xf]
      %v7528 = vld [vmem:[%s7506 + $0x54] sm:$0xf]
      %v7529 = vld [vmem:[%s7506 + $0x58] sm:$0xf]
      %v7530 = vld [vmem:[%s7506 + $0x5c] sm:$0xf]
      %v7531 = vld [vmem:[%s7506 + $0x60] sm:$0xf]
      %v7532 = vld [vmem:[%s7506 + $0x64] sm:$0xf]
      %v7533 = vld [vmem:[%s7506 + $0x68] sm:$0xf]
      %v7534 = vld [vmem:[%s7506 + $0x6c] sm:$0xf]
      %v7535 = vld [vmem:[%s7506 + $0x70] sm:$0xf]
      %v7536 = vld [vmem:[%s7506 + $0x74] sm:$0xf]
      %v7537 = vld [vmem:[%s7506 + $0x78] sm:$0xf]
      %v7538 = vld [vmem:[%s7506 + $0x7c] sm:$0xf]
      %s7539 = scalar_lea.vmem %s5, 12
      %v7540 = vld [vmem:[%s7539] sm:$0xf]
      %v7541 = vld [vmem:[%s7539 + $0x4] sm:$0xf]
      %v7542 = vld [vmem:[%s7539 + $0x8] sm:$0xf]
      %v7575 = vunpack.c.l.b16 %v7507
      %v7576 = vunpack.c.l.b16 %v7508
      %v7577 = vunpack.c.l.b16 %v7509
      %v7578 = vunpack.c.l.b16 %v7510
      %v7579 = vunpack.c.l.b16 %v7511
      %v7580 = vunpack.c.l.b16 %v7512
      %v7581 = vunpack.c.l.b16 %v7513
      %v7582 = vunpack.c.l.b16 %v7514
      %v7583 = vunpack.c.l.b16 %v7515
      %v7584 = vunpack.c.l.b16 %v7516
      %v7585 = vunpack.c.l.b16 %v7517
      %v7586 = vunpack.c.l.b16 %v7518
      %v7587 = vunpack.c.l.b16 %v7519
      %v7588 = vunpack.c.l.b16 %v7520
      %v7589 = vunpack.c.l.b16 %v7521
      %v7590 = vunpack.c.l.b16 %v7522
      %v7591 = vunpack.c.l.b16 %v7523
      %v7592 = vunpack.c.l.b16 %v7524
      %v7593 = vunpack.c.l.b16 %v7525
      %v7594 = vunpack.c.l.b16 %v7526
      %v7595 = vunpack.c.l.b16 %v7527
      %v7596 = vunpack.c.l.b16 %v7528
      %v7597 = vunpack.c.l.b16 %v7529
      %v7598 = vunpack.c.l.b16 %v7530
      %v7599 = vunpack.c.l.b16 %v7531
      %v7600 = vunpack.c.l.b16 %v7532
      %v7601 = vunpack.c.l.b16 %v7533
      %v7602 = vunpack.c.l.b16 %v7534
      %v7603 = vunpack.c.l.b16 %v7535
      %v7604 = vunpack.c.l.b16 %v7536
      %v7605 = vunpack.c.l.b16 %v7537
      %v7606 = vunpack.c.l.b16 %v7538
      %v7607 = vpack.c.b16 %v7576, %v7575
      %v7608 = vpack.c.b16 %v7578, %v7577
      %v7609 = vpack.c.b16 %v7580, %v7579
      %v7610 = vpack.c.b16 %v7582, %v7581
      %v7611 = vpack.c.b16 %v7584, %v7583
      %v7612 = vpack.c.b16 %v7586, %v7585
      %v7613 = vpack.c.b16 %v7588, %v7587
      %v7614 = vpack.c.b16 %v7590, %v7589
      %v7615 = vpack.c.b16 %v7592, %v7591
      %v7616 = vpack.c.b16 %v7594, %v7593
      %v7617 = vpack.c.b16 %v7596, %v7595
      %v7618 = vpack.c.b16 %v7598, %v7597
      %v7619 = vpack.c.b16 %v7600, %v7599
      %v7620 = vpack.c.b16 %v7602, %v7601
      %v7621 = vpack.c.b16 %v7604, %v7603
      %v7622 = vpack.c.b16 %v7606, %v7605
      %v7626 = vunpack.c.l.b16 %v7540
      %v7627 = vunpack.c.l.b16 %v7541
      %v7628 = vunpack.c.l.b16 %v7542
      %v7629 = vpack.c.b16 %v7627, %v7626
      %v7630 = vpack.c.b16 %v7628, %v7628
      %vm7632 = vcmask 195584
      %v7634 = vsel %vm7632, %v7607, 0
      %v7637 = vsel %vm7632, %v7608, 0
      %v7640 = vsel %vm7632, %v7609, 0
      %v7643 = vsel %vm7632, %v7610, 0
      %v7646 = vsel %vm7632, %v7611, 0
      %v7649 = vsel %vm7632, %v7612, 0
      %v7652 = vsel %vm7632, %v7613, 0
      %v7655 = vsel %vm7632, %v7614, 0
      %v7658 = vsel %vm7632, %v7615, 0
      %v7661 = vsel %vm7632, %v7616, 0
      %v7664 = vsel %vm7632, %v7617, 0
      %v7667 = vsel %vm7632, %v7618, 0
      %v7670 = vsel %vm7632, %v7619, 0
      %v7673 = vsel %vm7632, %v7620, 0
      %v7676 = vsel %vm7632, %v7621, 0
      %v7679 = vsel %vm7632, %v7622, 0
      %vm7681 = vcmask 1043456
      %v7683 = vsel %vm7681, %v7630, 0
      %7685 = vmatprep.subr.bf16.mxu0 0
      %7686 = vmatpush1.bf16.msra.mxu0 0
      %7687 = vmatprep.subr.bf16.mxu0 0
      %7688 = vmatpush1.bf16.msra.mxu0 0
      %7689 = vmatprep.subr.bf16.mxu0 0
      %7690 = vmatpush1.bf16.msra.mxu0 0
      %7691 = vmatprep.subr.bf16.mxu0 0
      %7692 = vmatpush1.bf16.msra.mxu0 0
      %7693 = vmatprep.subr.bf16.mxu0 0
      %7694 = vmatpush1.bf16.msra.mxu0 0
      %7695 = vmatprep.subr.bf16.mxu0 0
      %7696 = vmatpush1.bf16.msra.mxu0 0
      %7697 = vmatprep.subr.bf16.mxu0 0
      %7698 = vmatpush1.bf16.msra.mxu0 %v7683
      %7699 = vmatprep.subr.bf16.mxu0 0
      %7700 = vmatpush1.bf16.msra.mxu0 %v7629
      %7701 = vmatprep.subr.bf16.mxu0 0
      %7702 = vmatpush2.bf16.msra.mxu0 0
      %7703 = vmatprep.subr.bf16.mxu0 0
      %7704 = vmatpush2.bf16.msra.mxu0 0
      %7705 = vmatprep.subr.bf16.mxu0 0
      %7706 = vmatpush2.bf16.msra.mxu0 0
      %7707 = vmatprep.subr.bf16.mxu0 0
      %7708 = vmatpush2.bf16.msra.mxu0 0
      %7709 = vmatprep.subr.bf16.mxu0 0
      %7710 = vmatpush2.bf16.msra.mxu0 0
      %7711 = vmatprep.subr.bf16.mxu0 0
      %7712 = vmatpush2.bf16.msra.mxu0 0
      %7713 = vmatprep.subr.bf16.mxu0 0
      %7714 = vmatpush2.bf16.msra.mxu0 0
      %7715 = vmatprep.subr.bf16.mxu0 0
      %7716 = vmatpush2.bf16.msra.mxu0 0
      %7717 = vmatprep.mubr.bf16.mxu0 0
      %7718 = vmatmul.mubr.bf16.gmra.mxu0 %v7634
      %v7719 = vpop.f32.mrf.mxu0
      %v7720 = vadd.f32 0.0, %v7719
      %v7721 = vpop.f32.mrf.mxu0
      %v7722 = vpop.f32.mrf.mxu0
      %v7723 = vadd.f32 0.0, %v7722
      %v7724 = vpop.f32.mrf.mxu0
      %7725 = vmatprep.mubr.bf16.mxu0 0
      %7726 = vmatmul.mubr.bf16.gmra.mxu0 %v7637
      %v7727 = vpop.f32.mrf.mxu0
      %v7728 = vadd.f32 0.0, %v7727
      %v7729 = vpop.f32.mrf.mxu0
      %v7730 = vpop.f32.mrf.mxu0
      %v7731 = vadd.f32 0.0, %v7730
      %v7732 = vpop.f32.mrf.mxu0
      %7733 = vmatprep.mubr.bf16.mxu0 0
      %7734 = vmatmul.mubr.bf16.gmra.mxu0 %v7640
      %v7735 = vpop.f32.mrf.mxu0
      %v7736 = vadd.f32 0.0, %v7735
      %v7737 = vpop.f32.mrf.mxu0
      %v7738 = vpop.f32.mrf.mxu0
      %v7739 = vadd.f32 0.0, %v7738
      %v7740 = vpop.f32.mrf.mxu0
      %7741 = vmatprep.mubr.bf16.mxu0 0
      %7742 = vmatmul.mubr.bf16.gmra.mxu0 %v7643
      %v7743 = vpop.f32.mrf.mxu0
      %v7744 = vadd.f32 0.0, %v7743
      %v7745 = vpop.f32.mrf.mxu0
      %v7746 = vpop.f32.mrf.mxu0
      %v7747 = vadd.f32 0.0, %v7746
      %v7748 = vpop.f32.mrf.mxu0
      %7749 = vmatprep.mubr.bf16.mxu0 0
      %7750 = vmatmul.mubr.bf16.gmra.mxu0 %v7646
      %v7751 = vpop.f32.mrf.mxu0
      %v7752 = vadd.f32 0.0, %v7751
      %v7753 = vpop.f32.mrf.mxu0
      %v7754 = vpop.f32.mrf.mxu0
      %v7755 = vadd.f32 0.0, %v7754
      %v7756 = vpop.f32.mrf.mxu0
      %7757 = vmatprep.mubr.bf16.mxu0 0
      %7758 = vmatmul.mubr.bf16.gmra.mxu0 %v7649
      %v7759 = vpop.f32.mrf.mxu0
      %v7760 = vadd.f32 0.0, %v7759
      %v7761 = vpop.f32.mrf.mxu0
      %v7762 = vpop.f32.mrf.mxu0
      %v7763 = vadd.f32 0.0, %v7762
      %v7764 = vpop.f32.mrf.mxu0
      %7765 = vmatprep.mubr.bf16.mxu0 0
      %7766 = vmatmul.mubr.bf16.gmra.mxu0 %v7652
      %v7767 = vpop.f32.mrf.mxu0
      %v7768 = vadd.f32 0.0, %v7767
      %v7769 = vpop.f32.mrf.mxu0
      %v7770 = vpop.f32.mrf.mxu0
      %v7771 = vadd.f32 0.0, %v7770
      %v7772 = vpop.f32.mrf.mxu0
      %7773 = vmatprep.mubr.bf16.mxu0 0
      %7774 = vmatmul.mubr.bf16.gmra.mxu0 %v7655
      %v7775 = vpop.f32.mrf.mxu0
      %v7776 = vadd.f32 0.0, %v7775
      %v7777 = vpop.f32.mrf.mxu0
      %v7778 = vpop.f32.mrf.mxu0
      %v7779 = vadd.f32 0.0, %v7778
      %v7780 = vpop.f32.mrf.mxu0
      %7781 = vmatprep.mubr.bf16.mxu0 0
      %7782 = vmatmul.mubr.bf16.gmra.mxu0 %v7658
      %v7783 = vpop.f32.mrf.mxu0
      %v7784 = vadd.f32 0.0, %v7783
      %v7785 = vpop.f32.mrf.mxu0
      %v7786 = vpop.f32.mrf.mxu0
      %v7787 = vadd.f32 0.0, %v7786
      %v7788 = vpop.f32.mrf.mxu0
      %7789 = vmatprep.mubr.bf16.mxu0 0
      %7790 = vmatmul.mubr.bf16.gmra.mxu0 %v7661
      %v7791 = vpop.f32.mrf.mxu0
      %v7792 = vadd.f32 0.0, %v7791
      %v7793 = vpop.f32.mrf.mxu0
      %v7794 = vpop.f32.mrf.mxu0
      %v7795 = vadd.f32 0.0, %v7794
      %v7796 = vpop.f32.mrf.mxu0
      %7797 = vmatprep.mubr.bf16.mxu0 0
      %7798 = vmatmul.mubr.bf16.gmra.mxu0 %v7664
      %v7799 = vpop.f32.mrf.mxu0
      %v7800 = vadd.f32 0.0, %v7799
      %v7801 = vpop.f32.mrf.mxu0
      %v7802 = vpop.f32.mrf.mxu0
      %v7803 = vadd.f32 0.0, %v7802
      %v7804 = vpop.f32.mrf.mxu0
      %7805 = vmatprep.mubr.bf16.mxu0 0
      %7806 = vmatmul.mubr.bf16.gmra.mxu0 %v7667
      %v7807 = vpop.f32.mrf.mxu0
      %v7808 = vadd.f32 0.0, %v7807
      %v7809 = vpop.f32.mrf.mxu0
      %v7810 = vpop.f32.mrf.mxu0
      %v7811 = vadd.f32 0.0, %v7810
      %v7812 = vpop.f32.mrf.mxu0
      %7813 = vmatprep.mubr.bf16.mxu0 0
      %7814 = vmatmul.mubr.bf16.gmra.mxu0 %v7670
      %v7815 = vpop.f32.mrf.mxu0
      %v7816 = vadd.f32 0.0, %v7815
      %v7817 = vpop.f32.mrf.mxu0
      %v7818 = vpop.f32.mrf.mxu0
      %v7819 = vadd.f32 0.0, %v7818
      %v7820 = vpop.f32.mrf.mxu0
      %7821 = vmatprep.mubr.bf16.mxu0 0
      %7822 = vmatmul.mubr.bf16.gmra.mxu0 %v7673
      %v7823 = vpop.f32.mrf.mxu0
      %v7824 = vadd.f32 0.0, %v7823
      %v7825 = vpop.f32.mrf.mxu0
      %v7826 = vpop.f32.mrf.mxu0
      %v7827 = vadd.f32 0.0, %v7826
      %v7828 = vpop.f32.mrf.mxu0
      %7829 = vmatprep.mubr.bf16.mxu0 0
      %7830 = vmatmul.mubr.bf16.gmra.mxu0 %v7676
      %v7831 = vpop.f32.mrf.mxu0
      %v7832 = vadd.f32 0.0, %v7831
      %v7833 = vpop.f32.mrf.mxu0
      %v7834 = vpop.f32.mrf.mxu0
      %v7835 = vadd.f32 0.0, %v7834
      %v7836 = vpop.f32.mrf.mxu0
      %7837 = vmatprep.mubr.bf16.mxu0 0
      %7838 = vmatmul.mubr.bf16.gmra.mxu0 %v7679
      %v7839 = vpop.f32.mrf.mxu0
      %v7840 = vadd.f32 0.0, %v7839
      %v7841 = vpop.f32.mrf.mxu0
      %v7842 = vpop.f32.mrf.mxu0
      %v7843 = vadd.f32 0.0, %v7842
      %v7844 = vpop.f32.mrf.mxu0
      %7845 = vdwg.mxu0
      %v7878 = vunpack.c.l.b16 %v7471
      %v7879 = vunpack.c.l.b16 %v7472
      %v7880 = vunpack.c.l.b16 %v7473
      %v7881 = vunpack.c.l.b16 %v7474
      %v7882 = vunpack.c.l.b16 %v7475
      %v7883 = vunpack.c.l.b16 %v7476
      %v7884 = vunpack.c.l.b16 %v7477
      %v7885 = vunpack.c.l.b16 %v7478
      %v7886 = vunpack.c.l.b16 %v7479
      %v7887 = vunpack.c.l.b16 %v7480
      %v7888 = vunpack.c.l.b16 %v7481
      %v7889 = vunpack.c.l.b16 %v7482
      %v7890 = vunpack.c.l.b16 %v7483
      %v7891 = vunpack.c.l.b16 %v7484
      %v7892 = vunpack.c.l.b16 %v7485
      %v7893 = vunpack.c.l.b16 %v7486
      %v7894 = vunpack.c.l.b16 %v7487
      %v7895 = vunpack.c.l.b16 %v7488
      %v7896 = vunpack.c.l.b16 %v7489
      %v7897 = vunpack.c.l.b16 %v7490
      %v7898 = vunpack.c.l.b16 %v7491
      %v7899 = vunpack.c.l.b16 %v7492
      %v7900 = vunpack.c.l.b16 %v7493
      %v7901 = vunpack.c.l.b16 %v7494
      %v7902 = vunpack.c.l.b16 %v7495
      %v7903 = vunpack.c.l.b16 %v7496
      %v7904 = vunpack.c.l.b16 %v7497
      %v7905 = vunpack.c.l.b16 %v7498
      %v7906 = vunpack.c.l.b16 %v7499
      %v7907 = vunpack.c.l.b16 %v7500
      %v7908 = vunpack.c.l.b16 %v7501
      %v7909 = vunpack.c.l.b16 %v7502
      %v7910 = vpack.c.b16 %v7879, %v7878
      %v7911 = vpack.c.b16 %v7881, %v7880
      %v7912 = vpack.c.b16 %v7883, %v7882
      %v7913 = vpack.c.b16 %v7885, %v7884
      %v7914 = vpack.c.b16 %v7887, %v7886
      %v7915 = vpack.c.b16 %v7889, %v7888
      %v7916 = vpack.c.b16 %v7891, %v7890
      %v7917 = vpack.c.b16 %v7893, %v7892
      %v7918 = vpack.c.b16 %v7895, %v7894
      %v7919 = vpack.c.b16 %v7897, %v7896
      %v7920 = vpack.c.b16 %v7899, %v7898
      %v7921 = vpack.c.b16 %v7901, %v7900
      %v7922 = vpack.c.b16 %v7903, %v7902
      %v7923 = vpack.c.b16 %v7905, %v7904
      %v7924 = vpack.c.b16 %v7907, %v7906
      %v7925 = vpack.c.b16 %v7909, %v7908
      %v7929 = vunpack.c.l.b16 %v7503
      %v7930 = vunpack.c.l.b16 %v7504
      %v7931 = vunpack.c.l.b16 %v7505
      %v7932 = vpack.c.b16 %v7930, %v7929
      %v7933 = vpack.c.b16 %v7931, %v7931
      %v7936 = vsel %vm7632, %v7910, 0
      %v7939 = vsel %vm7632, %v7911, 0
      %v7942 = vsel %vm7632, %v7912, 0
      %v7945 = vsel %vm7632, %v7913, 0
      %v7948 = vsel %vm7632, %v7914, 0
      %v7951 = vsel %vm7632, %v7915, 0
      %v7954 = vsel %vm7632, %v7916, 0
      %v7957 = vsel %vm7632, %v7917, 0
      %v7960 = vsel %vm7632, %v7918, 0
      %v7963 = vsel %vm7632, %v7919, 0
      %v7966 = vsel %vm7632, %v7920, 0
      %v7969 = vsel %vm7632, %v7921, 0
      %v7972 = vsel %vm7632, %v7922, 0
      %v7975 = vsel %vm7632, %v7923, 0
      %v7978 = vsel %vm7632, %v7924, 0
      %v7981 = vsel %vm7632, %v7925, 0
      %v7984 = vsel %vm7681, %v7933, 0
      %7986 = vmatprep.subr.bf16.mxu0 0
      %7987 = vmatpush1.bf16.msra.mxu0 0
      %7988 = vmatprep.subr.bf16.mxu0 0
      %7989 = vmatpush1.bf16.msra.mxu0 0
      %7990 = vmatprep.subr.bf16.mxu0 0
      %7991 = vmatpush1.bf16.msra.mxu0 0
      %7992 = vmatprep.subr.bf16.mxu0 0
      %7993 = vmatpush1.bf16.msra.mxu0 0
      %7994 = vmatprep.subr.bf16.mxu0 0
      %7995 = vmatpush1.bf16.msra.mxu0 0
      %7996 = vmatprep.subr.bf16.mxu0 0
      %7997 = vmatpush1.bf16.msra.mxu0 0
      %7998 = vmatprep.subr.bf16.mxu0 0
      %7999 = vmatpush1.bf16.msra.mxu0 %v7984
      %8000 = vmatprep.subr.bf16.mxu0 0
      %8001 = vmatpush1.bf16.msra.mxu0 %v7932
      %8002 = vmatprep.subr.bf16.mxu0 0
      %8003 = vmatpush2.bf16.msra.mxu0 0
      %8004 = vmatprep.subr.bf16.mxu0 0
      %8005 = vmatpush2.bf16.msra.mxu0 0
      %8006 = vmatprep.subr.bf16.mxu0 0
      %8007 = vmatpush2.bf16.msra.mxu0 0
      %8008 = vmatprep.subr.bf16.mxu0 0
      %8009 = vmatpush2.bf16.msra.mxu0 0
      %8010 = vmatprep.subr.bf16.mxu0 0
      %8011 = vmatpush2.bf16.msra.mxu0 0
      %8012 = vmatprep.subr.bf16.mxu0 0
      %8013 = vmatpush2.bf16.msra.mxu0 0
      %8014 = vmatprep.subr.bf16.mxu0 0
      %8015 = vmatpush2.bf16.msra.mxu0 0
      %8016 = vmatprep.subr.bf16.mxu0 0
      %8017 = vmatpush2.bf16.msra.mxu0 0
      %8018 = vmatprep.mubr.bf16.mxu0 0
      %8019 = vmatmul.mubr.bf16.gmra.mxu0 %v7936
      %v8020 = vpop.f32.mrf.mxu0
      %v8021 = vadd.f32 %v7720, %v8020
      %v8022 = vpop.f32.mrf.mxu0
      %v8023 = vpop.f32.mrf.mxu0
      %v8024 = vadd.f32 %v7723, %v8023
      %v8025 = vpop.f32.mrf.mxu0
      %8026 = vmatprep.mubr.bf16.mxu0 0
      %8027 = vmatmul.mubr.bf16.gmra.mxu0 %v7939
      %v8028 = vpop.f32.mrf.mxu0
      %v8029 = vadd.f32 %v7728, %v8028
      %v8030 = vpop.f32.mrf.mxu0
      %v8031 = vpop.f32.mrf.mxu0
      %v8032 = vadd.f32 %v7731, %v8031
      %v8033 = vpop.f32.mrf.mxu0
      %8034 = vmatprep.mubr.bf16.mxu0 0
      %8035 = vmatmul.mubr.bf16.gmra.mxu0 %v7942
      %v8036 = vpop.f32.mrf.mxu0
      %v8037 = vadd.f32 %v7736, %v8036
      %v8038 = vpop.f32.mrf.mxu0
      %v8039 = vpop.f32.mrf.mxu0
      %v8040 = vadd.f32 %v7739, %v8039
      %v8041 = vpop.f32.mrf.mxu0
      %8042 = vmatprep.mubr.bf16.mxu0 0
      %8043 = vmatmul.mubr.bf16.gmra.mxu0 %v7945
      %v8044 = vpop.f32.mrf.mxu0
      %v8045 = vadd.f32 %v7744, %v8044
      %v8046 = vpop.f32.mrf.mxu0
      %v8047 = vpop.f32.mrf.mxu0
      %v8048 = vadd.f32 %v7747, %v8047
      %v8049 = vpop.f32.mrf.mxu0
      %8050 = vmatprep.mubr.bf16.mxu0 0
      %8051 = vmatmul.mubr.bf16.gmra.mxu0 %v7948
      %v8052 = vpop.f32.mrf.mxu0
      %v8053 = vadd.f32 %v7752, %v8052
      %v8054 = vpop.f32.mrf.mxu0
      %v8055 = vpop.f32.mrf.mxu0
      %v8056 = vadd.f32 %v7755, %v8055
      %v8057 = vpop.f32.mrf.mxu0
      %8058 = vmatprep.mubr.bf16.mxu0 0
      %8059 = vmatmul.mubr.bf16.gmra.mxu0 %v7951
      %v8060 = vpop.f32.mrf.mxu0
      %v8061 = vadd.f32 %v7760, %v8060
      %v8062 = vpop.f32.mrf.mxu0
      %v8063 = vpop.f32.mrf.mxu0
      %v8064 = vadd.f32 %v7763, %v8063
      %v8065 = vpop.f32.mrf.mxu0
      %8066 = vmatprep.mubr.bf16.mxu0 0
      %8067 = vmatmul.mubr.bf16.gmra.mxu0 %v7954
      %v8068 = vpop.f32.mrf.mxu0
      %v8069 = vadd.f32 %v7768, %v8068
      %v8070 = vpop.f32.mrf.mxu0
      %v8071 = vpop.f32.mrf.mxu0
      %v8072 = vadd.f32 %v7771, %v8071
      %v8073 = vpop.f32.mrf.mxu0
      %8074 = vmatprep.mubr.bf16.mxu0 0
      %8075 = vmatmul.mubr.bf16.gmra.mxu0 %v7957
      %v8076 = vpop.f32.mrf.mxu0
      %v8077 = vadd.f32 %v7776, %v8076
      %v8078 = vpop.f32.mrf.mxu0
      %v8079 = vpop.f32.mrf.mxu0
      %v8080 = vadd.f32 %v7779, %v8079
      %v8081 = vpop.f32.mrf.mxu0
      %8082 = vmatprep.mubr.bf16.mxu0 0
      %8083 = vmatmul.mubr.bf16.gmra.mxu0 %v7960
      %v8084 = vpop.f32.mrf.mxu0
      %v8085 = vadd.f32 %v7784, %v8084
      %v8086 = vpop.f32.mrf.mxu0
      %v8087 = vpop.f32.mrf.mxu0
      %v8088 = vadd.f32 %v7787, %v8087
      %v8089 = vpop.f32.mrf.mxu0
      %8090 = vmatprep.mubr.bf16.mxu0 0
      %8091 = vmatmul.mubr.bf16.gmra.mxu0 %v7963
      %v8092 = vpop.f32.mrf.mxu0
      %v8093 = vadd.f32 %v7792, %v8092
      %v8094 = vpop.f32.mrf.mxu0
      %v8095 = vpop.f32.mrf.mxu0
      %v8096 = vadd.f32 %v7795, %v8095
      %v8097 = vpop.f32.mrf.mxu0
      %8098 = vmatprep.mubr.bf16.mxu0 0
      %8099 = vmatmul.mubr.bf16.gmra.mxu0 %v7966
      %v8100 = vpop.f32.mrf.mxu0
      %v8101 = vadd.f32 %v7800, %v8100
      %v8102 = vpop.f32.mrf.mxu0
      %v8103 = vpop.f32.mrf.mxu0
      %v8104 = vadd.f32 %v7803, %v8103
      %v8105 = vpop.f32.mrf.mxu0
      %8106 = vmatprep.mubr.bf16.mxu0 0
      %8107 = vmatmul.mubr.bf16.gmra.mxu0 %v7969
      %v8108 = vpop.f32.mrf.mxu0
      %v8109 = vadd.f32 %v7808, %v8108
      %v8110 = vpop.f32.mrf.mxu0
      %v8111 = vpop.f32.mrf.mxu0
      %v8112 = vadd.f32 %v7811, %v8111
      %v8113 = vpop.f32.mrf.mxu0
      %8114 = vmatprep.mubr.bf16.mxu0 0
      %8115 = vmatmul.mubr.bf16.gmra.mxu0 %v7972
      %v8116 = vpop.f32.mrf.mxu0
      %v8117 = vadd.f32 %v7816, %v8116
      %v8118 = vpop.f32.mrf.mxu0
      %v8119 = vpop.f32.mrf.mxu0
      %v8120 = vadd.f32 %v7819, %v8119
      %v8121 = vpop.f32.mrf.mxu0
      %8122 = vmatprep.mubr.bf16.mxu0 0
      %8123 = vmatmul.mubr.bf16.gmra.mxu0 %v7975
      %v8124 = vpop.f32.mrf.mxu0
      %v8125 = vadd.f32 %v7824, %v8124
      %v8126 = vpop.f32.mrf.mxu0
      %v8127 = vpop.f32.mrf.mxu0
      %v8128 = vadd.f32 %v7827, %v8127
      %v8129 = vpop.f32.mrf.mxu0
      %8130 = vmatprep.mubr.bf16.mxu0 0
      %8131 = vmatmul.mubr.bf16.gmra.mxu0 %v7978
      %v8132 = vpop.f32.mrf.mxu0
      %v8133 = vadd.f32 %v7832, %v8132
      %v8134 = vpop.f32.mrf.mxu0
      %v8135 = vpop.f32.mrf.mxu0
      %v8136 = vadd.f32 %v7835, %v8135
      %v8137 = vpop.f32.mrf.mxu0
      %8138 = vmatprep.mubr.bf16.mxu0 0
      %8139 = vmatmul.mubr.bf16.gmra.mxu0 %v7981
      %v8140 = vpop.f32.mrf.mxu0
      %v8141 = vadd.f32 %v7840, %v8140
      %v8142 = vpop.f32.mrf.mxu0
      %v8143 = vpop.f32.mrf.mxu0
      %v8144 = vadd.f32 %v7843, %v8143
      %v8145 = vpop.f32.mrf.mxu0
      %8146 = vdwg.mxu0
      %s8147 = scalar_lea.vmem [#allocation7], 16
      %v8148 = vld [vmem:[%s8147] sm:$0xf]
      %v8149 = vld [vmem:[%s8147 + $0x4] sm:$0xf]
      %v8150 = vld [vmem:[%s8147 + $0x8] sm:$0xf]
      %v8151 = vld [vmem:[%s8147 + $0xc] sm:$0xf]
      %v8152 = vld [vmem:[%s8147 + $0x10] sm:$0xf]
      %v8153 = vld [vmem:[%s8147 + $0x14] sm:$0xf]
      %v8154 = vld [vmem:[%s8147 + $0x18] sm:$0xf]
      %v8155 = vld [vmem:[%s8147 + $0x1c] sm:$0xf]
      %v8156 = vld [vmem:[%s8147 + $0x20] sm:$0xf]
      %v8157 = vld [vmem:[%s8147 + $0x24] sm:$0xf]
      %v8158 = vld [vmem:[%s8147 + $0x28] sm:$0xf]
      %v8159 = vld [vmem:[%s8147 + $0x2c] sm:$0xf]
      %v8160 = vld [vmem:[%s8147 + $0x30] sm:$0xf]
      %v8161 = vld [vmem:[%s8147 + $0x34] sm:$0xf]
      %v8162 = vld [vmem:[%s8147 + $0x38] sm:$0xf]
      %v8163 = vld [vmem:[%s8147 + $0x3c] sm:$0xf]
      %v8164 = vld [vmem:[%s8147 + $0x40] sm:$0xf]
      %v8165 = vld [vmem:[%s8147 + $0x44] sm:$0xf]
      %v8166 = vld [vmem:[%s8147 + $0x48] sm:$0xf]
      %v8167 = vld [vmem:[%s8147 + $0x4c] sm:$0xf]
      %v8168 = vld [vmem:[%s8147 + $0x50] sm:$0xf]
      %v8169 = vld [vmem:[%s8147 + $0x54] sm:$0xf]
      %v8170 = vld [vmem:[%s8147 + $0x58] sm:$0xf]
      %v8171 = vld [vmem:[%s8147 + $0x5c] sm:$0xf]
      %v8172 = vld [vmem:[%s8147 + $0x60] sm:$0xf]
      %v8173 = vld [vmem:[%s8147 + $0x64] sm:$0xf]
      %v8174 = vld [vmem:[%s8147 + $0x68] sm:$0xf]
      %v8175 = vld [vmem:[%s8147 + $0x6c] sm:$0xf]
      %v8176 = vld [vmem:[%s8147 + $0x70] sm:$0xf]
      %v8177 = vld [vmem:[%s8147 + $0x74] sm:$0xf]
      %v8178 = vld [vmem:[%s8147 + $0x78] sm:$0xf]
      %v8179 = vld [vmem:[%s8147 + $0x7c] sm:$0xf]
      %s8180 = scalar_lea.vmem %s5, 24
      %v8181 = vld [vmem:[%s8180] sm:$0xf]
      %v8182 = vld [vmem:[%s8180 + $0x4] sm:$0xf]
      %v8183 = vld [vmem:[%s8180 + $0x8] sm:$0xf]
      %v8216 = vunpack.c.l.b16 %v8148
      %v8217 = vunpack.c.l.b16 %v8149
      %v8218 = vunpack.c.l.b16 %v8150
      %v8219 = vunpack.c.l.b16 %v8151
      %v8220 = vunpack.c.l.b16 %v8152
      %v8221 = vunpack.c.l.b16 %v8153
      %v8222 = vunpack.c.l.b16 %v8154
      %v8223 = vunpack.c.l.b16 %v8155
      %v8224 = vunpack.c.l.b16 %v8156
      %v8225 = vunpack.c.l.b16 %v8157
      %v8226 = vunpack.c.l.b16 %v8158
      %v8227 = vunpack.c.l.b16 %v8159
      %v8228 = vunpack.c.l.b16 %v8160
      %v8229 = vunpack.c.l.b16 %v8161
      %v8230 = vunpack.c.l.b16 %v8162
      %v8231 = vunpack.c.l.b16 %v8163
      %v8232 = vunpack.c.l.b16 %v8164
      %v8233 = vunpack.c.l.b16 %v8165
      %v8234 = vunpack.c.l.b16 %v8166
      %v8235 = vunpack.c.l.b16 %v8167
      %v8236 = vunpack.c.l.b16 %v8168
      %v8237 = vunpack.c.l.b16 %v8169
      %v8238 = vunpack.c.l.b16 %v8170
      %v8239 = vunpack.c.l.b16 %v8171
      %v8240 = vunpack.c.l.b16 %v8172
      %v8241 = vunpack.c.l.b16 %v8173
      %v8242 = vunpack.c.l.b16 %v8174
      %v8243 = vunpack.c.l.b16 %v8175
      %v8244 = vunpack.c.l.b16 %v8176
      %v8245 = vunpack.c.l.b16 %v8177
      %v8246 = vunpack.c.l.b16 %v8178
      %v8247 = vunpack.c.l.b16 %v8179
      %v8248 = vpack.c.b16 %v8217, %v8216
      %v8249 = vpack.c.b16 %v8219, %v8218
      %v8250 = vpack.c.b16 %v8221, %v8220
      %v8251 = vpack.c.b16 %v8223, %v8222
      %v8252 = vpack.c.b16 %v8225, %v8224
      %v8253 = vpack.c.b16 %v8227, %v8226
      %v8254 = vpack.c.b16 %v8229, %v8228
      %v8255 = vpack.c.b16 %v8231, %v8230
      %v8256 = vpack.c.b16 %v8233, %v8232
      %v8257 = vpack.c.b16 %v8235, %v8234
      %v8258 = vpack.c.b16 %v8237, %v8236
      %v8259 = vpack.c.b16 %v8239, %v8238
      %v8260 = vpack.c.b16 %v8241, %v8240
      %v8261 = vpack.c.b16 %v8243, %v8242
      %v8262 = vpack.c.b16 %v8245, %v8244
      %v8263 = vpack.c.b16 %v8247, %v8246
      %v8267 = vunpack.c.l.b16 %v8181
      %v8268 = vunpack.c.l.b16 %v8182
      %v8269 = vunpack.c.l.b16 %v8183
      %v8270 = vpack.c.b16 %v8268, %v8267
      %v8271 = vpack.c.b16 %v8269, %v8269
      %v8274 = vsel %vm7632, %v8248, 0
      %v8277 = vsel %vm7632, %v8249, 0
      %v8280 = vsel %vm7632, %v8250, 0
      %v8283 = vsel %vm7632, %v8251, 0
      %v8286 = vsel %vm7632, %v8252, 0
      %v8289 = vsel %vm7632, %v8253, 0
      %v8292 = vsel %vm7632, %v8254, 0
      %v8295 = vsel %vm7632, %v8255, 0
      %v8298 = vsel %vm7632, %v8256, 0
      %v8301 = vsel %vm7632, %v8257, 0
      %v8304 = vsel %vm7632, %v8258, 0
      %v8307 = vsel %vm7632, %v8259, 0
      %v8310 = vsel %vm7632, %v8260, 0
      %v8313 = vsel %vm7632, %v8261, 0
      %v8316 = vsel %vm7632, %v8262, 0
      %v8319 = vsel %vm7632, %v8263, 0
      %v8322 = vsel %vm7681, %v8271, 0
      %8324 = vmatprep.subr.bf16.mxu0 0
      %8325 = vmatpush1.bf16.msra.mxu0 0
      %8326 = vmatprep.subr.bf16.mxu0 0
      %8327 = vmatpush1.bf16.msra.mxu0 0
      %8328 = vmatprep.subr.bf16.mxu0 0
      %8329 = vmatpush1.bf16.msra.mxu0 0
      %8330 = vmatprep.subr.bf16.mxu0 0
      %8331 = vmatpush1.bf16.msra.mxu0 0
      %8332 = vmatprep.subr.bf16.mxu0 0
      %8333 = vmatpush1.bf16.msra.mxu0 0
      %8334 = vmatprep.subr.bf16.mxu0 0
      %8335 = vmatpush1.bf16.msra.mxu0 0
      %8336 = vmatprep.subr.bf16.mxu0 0
      %8337 = vmatpush1.bf16.msra.mxu0 %v8322
      %8338 = vmatprep.subr.bf16.mxu0 0
      %8339 = vmatpush1.bf16.msra.mxu0 %v8270
      %8340 = vmatprep.subr.bf16.mxu0 0
      %8341 = vmatpush2.bf16.msra.mxu0 0
      %8342 = vmatprep.subr.bf16.mxu0 0
      %8343 = vmatpush2.bf16.msra.mxu0 0
      %8344 = vmatprep.subr.bf16.mxu0 0
      %8345 = vmatpush2.bf16.msra.mxu0 0
      %8346 = vmatprep.subr.bf16.mxu0 0
      %8347 = vmatpush2.bf16.msra.mxu0 0
      %8348 = vmatprep.subr.bf16.mxu0 0
      %8349 = vmatpush2.bf16.msra.mxu0 0
      %8350 = vmatprep.subr.bf16.mxu0 0
      %8351 = vmatpush2.bf16.msra.mxu0 0
      %8352 = vmatprep.subr.bf16.mxu0 0
      %8353 = vmatpush2.bf16.msra.mxu0 0
      %8354 = vmatprep.subr.bf16.mxu0 0
      %8355 = vmatpush2.bf16.msra.mxu0 0
      %8356 = vmatprep.mubr.bf16.mxu0 0
      %8357 = vmatmul.mubr.bf16.gmra.mxu0 %v8274
      %v8358 = vpop.f32.mrf.mxu0
      %v8359 = vadd.f32 0.0, %v8358
      %v8360 = vpop.f32.mrf.mxu0
      %v8361 = vpop.f32.mrf.mxu0
      %v8362 = vadd.f32 0.0, %v8361
      %v8363 = vpop.f32.mrf.mxu0
      %8364 = vmatprep.mubr.bf16.mxu0 0
      %8365 = vmatmul.mubr.bf16.gmra.mxu0 %v8277
      %v8366 = vpop.f32.mrf.mxu0
      %v8367 = vadd.f32 0.0, %v8366
      %v8368 = vpop.f32.mrf.mxu0
      %v8369 = vpop.f32.mrf.mxu0
      %v8370 = vadd.f32 0.0, %v8369
      %v8371 = vpop.f32.mrf.mxu0
      %8372 = vmatprep.mubr.bf16.mxu0 0
      %8373 = vmatmul.mubr.bf16.gmra.mxu0 %v8280
      %v8374 = vpop.f32.mrf.mxu0
      %v8375 = vadd.f32 0.0, %v8374
      %v8376 = vpop.f32.mrf.mxu0
      %v8377 = vpop.f32.mrf.mxu0
      %v8378 = vadd.f32 0.0, %v8377
      %v8379 = vpop.f32.mrf.mxu0
      %8380 = vmatprep.mubr.bf16.mxu0 0
      %8381 = vmatmul.mubr.bf16.gmra.mxu0 %v8283
      %v8382 = vpop.f32.mrf.mxu0
      %v8383 = vadd.f32 0.0, %v8382
      %v8384 = vpop.f32.mrf.mxu0
      %v8385 = vpop.f32.mrf.mxu0
      %v8386 = vadd.f32 0.0, %v8385
      %v8387 = vpop.f32.mrf.mxu0
      %8388 = vmatprep.mubr.bf16.mxu0 0
      %8389 = vmatmul.mubr.bf16.gmra.mxu0 %v8286
      %v8390 = vpop.f32.mrf.mxu0
      %v8391 = vadd.f32 0.0, %v8390
      %v8392 = vpop.f32.mrf.mxu0
      %v8393 = vpop.f32.mrf.mxu0
      %v8394 = vadd.f32 0.0, %v8393
      %v8395 = vpop.f32.mrf.mxu0
      %8396 = vmatprep.mubr.bf16.mxu0 0
      %8397 = vmatmul.mubr.bf16.gmra.mxu0 %v8289
      %v8398 = vpop.f32.mrf.mxu0
      %v8399 = vadd.f32 0.0, %v8398
      %v8400 = vpop.f32.mrf.mxu0
      %v8401 = vpop.f32.mrf.mxu0
      %v8402 = vadd.f32 0.0, %v8401
      %v8403 = vpop.f32.mrf.mxu0
      %8404 = vmatprep.mubr.bf16.mxu0 0
      %8405 = vmatmul.mubr.bf16.gmra.mxu0 %v8292
      %v8406 = vpop.f32.mrf.mxu0
      %v8407 = vadd.f32 0.0, %v8406
      %v8408 = vpop.f32.mrf.mxu0
      %v8409 = vpop.f32.mrf.mxu0
      %v8410 = vadd.f32 0.0, %v8409
      %v8411 = vpop.f32.mrf.mxu0
      %8412 = vmatprep.mubr.bf16.mxu0 0
      %8413 = vmatmul.mubr.bf16.gmra.mxu0 %v8295
      %v8414 = vpop.f32.mrf.mxu0
      %v8415 = vadd.f32 0.0, %v8414
      %v8416 = vpop.f32.mrf.mxu0
      %v8417 = vpop.f32.mrf.mxu0
      %v8418 = vadd.f32 0.0, %v8417
      %v8419 = vpop.f32.mrf.mxu0
      %8420 = vmatprep.mubr.bf16.mxu0 0
      %8421 = vmatmul.mubr.bf16.gmra.mxu0 %v8298
      %v8422 = vpop.f32.mrf.mxu0
      %v8423 = vadd.f32 0.0, %v8422
      %v8424 = vpop.f32.mrf.mxu0
      %v8425 = vpop.f32.mrf.mxu0
      %v8426 = vadd.f32 0.0, %v8425
      %v8427 = vpop.f32.mrf.mxu0
      %8428 = vmatprep.mubr.bf16.mxu0 0
      %8429 = vmatmul.mubr.bf16.gmra.mxu0 %v8301
      %v8430 = vpop.f32.mrf.mxu0
      %v8431 = vadd.f32 0.0, %v8430
      %v8432 = vpop.f32.mrf.mxu0
      %v8433 = vpop.f32.mrf.mxu0
      %v8434 = vadd.f32 0.0, %v8433
      %v8435 = vpop.f32.mrf.mxu0
      %8436 = vmatprep.mubr.bf16.mxu0 0
      %8437 = vmatmul.mubr.bf16.gmra.mxu0 %v8304
      %v8438 = vpop.f32.mrf.mxu0
      %v8439 = vadd.f32 0.0, %v8438
      %v8440 = vpop.f32.mrf.mxu0
      %v8441 = vpop.f32.mrf.mxu0
      %v8442 = vadd.f32 0.0, %v8441
      %v8443 = vpop.f32.mrf.mxu0
      %8444 = vmatprep.mubr.bf16.mxu0 0
      %8445 = vmatmul.mubr.bf16.gmra.mxu0 %v8307
      %v8446 = vpop.f32.mrf.mxu0
      %v8447 = vadd.f32 0.0, %v8446
      %v8448 = vpop.f32.mrf.mxu0
      %v8449 = vpop.f32.mrf.mxu0
      %v8450 = vadd.f32 0.0, %v8449
      %v8451 = vpop.f32.mrf.mxu0
      %8452 = vmatprep.mubr.bf16.mxu0 0
      %8453 = vmatmul.mubr.bf16.gmra.mxu0 %v8310
      %v8454 = vpop.f32.mrf.mxu0
      %v8455 = vadd.f32 0.0, %v8454
      %v8456 = vpop.f32.mrf.mxu0
      %v8457 = vpop.f32.mrf.mxu0
      %v8458 = vadd.f32 0.0, %v8457
      %v8459 = vpop.f32.mrf.mxu0
      %8460 = vmatprep.mubr.bf16.mxu0 0
      %8461 = vmatmul.mubr.bf16.gmra.mxu0 %v8313
      %v8462 = vpop.f32.mrf.mxu0
      %v8463 = vadd.f32 0.0, %v8462
      %v8464 = vpop.f32.mrf.mxu0
      %v8465 = vpop.f32.mrf.mxu0
      %v8466 = vadd.f32 0.0, %v8465
      %v8467 = vpop.f32.mrf.mxu0
      %8468 = vmatprep.mubr.bf16.mxu0 0
      %8469 = vmatmul.mubr.bf16.gmra.mxu0 %v8316
      %v8470 = vpop.f32.mrf.mxu0
      %v8471 = vadd.f32 0.0, %v8470
      %v8472 = vpop.f32.mrf.mxu0
      %v8473 = vpop.f32.mrf.mxu0
      %v8474 = vadd.f32 0.0, %v8473
      %v8475 = vpop.f32.mrf.mxu0
      %8476 = vmatprep.mubr.bf16.mxu0 0
      %8477 = vmatmul.mubr.bf16.gmra.mxu0 %v8319
      %v8478 = vpop.f32.mrf.mxu0
      %v8479 = vadd.f32 0.0, %v8478
      %v8480 = vpop.f32.mrf.mxu0
      %v8481 = vpop.f32.mrf.mxu0
      %v8482 = vadd.f32 0.0, %v8481
      %v8483 = vpop.f32.mrf.mxu0
      %8484 = vdwg.mxu0
      %v8485 = vadd.f32 %v8021, %v8359
      %v8486 = vadd.f32 %v8024, %v8362
      %v8487 = vadd.f32 %v8029, %v8367
      %v8488 = vadd.f32 %v8032, %v8370
      %v8489 = vadd.f32 %v8037, %v8375
      %v8490 = vadd.f32 %v8040, %v8378
      %v8491 = vadd.f32 %v8045, %v8383
      %v8492 = vadd.f32 %v8048, %v8386
      %v8493 = vadd.f32 %v8053, %v8391
      %v8494 = vadd.f32 %v8056, %v8394
      %v8495 = vadd.f32 %v8061, %v8399
      %v8496 = vadd.f32 %v8064, %v8402
      %v8497 = vadd.f32 %v8069, %v8407
      %v8498 = vadd.f32 %v8072, %v8410
      %v8499 = vadd.f32 %v8077, %v8415
      %v8500 = vadd.f32 %v8080, %v8418
      %v8501 = vadd.f32 %v8085, %v8423
      %v8502 = vadd.f32 %v8088, %v8426
      %v8503 = vadd.f32 %v8093, %v8431
      %v8504 = vadd.f32 %v8096, %v8434
      %v8505 = vadd.f32 %v8101, %v8439
      %v8506 = vadd.f32 %v8104, %v8442
      %v8507 = vadd.f32 %v8109, %v8447
      %v8508 = vadd.f32 %v8112, %v8450
      %v8509 = vadd.f32 %v8117, %v8455
      %v8510 = vadd.f32 %v8120, %v8458
      %v8511 = vadd.f32 %v8125, %v8463
      %v8512 = vadd.f32 %v8128, %v8466
      %v8513 = vadd.f32 %v8133, %v8471
      %v8514 = vadd.f32 %v8136, %v8474
      %v8515 = vadd.f32 %v8141, %v8479
      %v8516 = vadd.f32 %v8144, %v8482
      %s8517 = scalar_lea.vmem %s7, 1
      %v8518 = vld [vmem:[%s8517] sm:$0x1]
      %v8520 = vlaneseq
      %v8521 = vshrl.u32 %v8520, 7
      %v8522 = vsub.s32 0, %v8521
      %v8523 = vrot.slane %v8518, %v8522
      %v8525 = vmul.f32 %v8485, %v8523
      %v8526 = vmul.f32 %v8486, %v8523
      %v8527 = vmul.f32 %v8487, %v8523
      %v8528 = vmul.f32 %v8488, %v8523
      %v8529 = vmul.f32 %v8489, %v8523
      %v8530 = vmul.f32 %v8490, %v8523
      %v8531 = vmul.f32 %v8491, %v8523
      %v8532 = vmul.f32 %v8492, %v8523
      %v8533 = vmul.f32 %v8493, %v8523
      %v8534 = vmul.f32 %v8494, %v8523
      %v8535 = vmul.f32 %v8495, %v8523
      %v8536 = vmul.f32 %v8496, %v8523
      %v8537 = vmul.f32 %v8497, %v8523
      %v8538 = vmul.f32 %v8498, %v8523
      %v8539 = vmul.f32 %v8499, %v8523
      %v8540 = vmul.f32 %v8500, %v8523
      %v8541 = vmul.f32 %v8501, %v8523
      %v8542 = vmul.f32 %v8502, %v8523
      %v8543 = vmul.f32 %v8503, %v8523
      %v8544 = vmul.f32 %v8504, %v8523
      %v8545 = vmul.f32 %v8505, %v8523
      %v8546 = vmul.f32 %v8506, %v8523
      %v8547 = vmul.f32 %v8507, %v8523
      %v8548 = vmul.f32 %v8508, %v8523
      %v8549 = vmul.f32 %v8509, %v8523
      %v8550 = vmul.f32 %v8510, %v8523
      %v8551 = vmul.f32 %v8511, %v8523
      %v8552 = vmul.f32 %v8512, %v8523
      %v8553 = vmul.f32 %v8513, %v8523
      %v8554 = vmul.f32 %v8514, %v8523
      %v8555 = vmul.f32 %v8515, %v8523
      %v8556 = vmul.f32 %v8516, %v8523
      %s8557 = scalar_lea.vmem %s8, 1
      %v8558 = vld [vmem:[%s8557] sm:$0x1]
      %v8560 = vlaneseq
      %v8561 = vshrl.u32 %v8560, 7
      %v8562 = vsub.s32 0, %v8561
      %v8563 = vrot.slane %v8558, %v8562
      %v8565 = vadd.f32 %v8525, %v8563
      %v8566 = vadd.f32 %v8526, %v8563
      %v8567 = vadd.f32 %v8527, %v8563
      %v8568 = vadd.f32 %v8528, %v8563
      %v8569 = vadd.f32 %v8529, %v8563
      %v8570 = vadd.f32 %v8530, %v8563
      %v8571 = vadd.f32 %v8531, %v8563
      %v8572 = vadd.f32 %v8532, %v8563
      %v8573 = vadd.f32 %v8533, %v8563
      %v8574 = vadd.f32 %v8534, %v8563
      %v8575 = vadd.f32 %v8535, %v8563
      %v8576 = vadd.f32 %v8536, %v8563
      %v8577 = vadd.f32 %v8537, %v8563
      %v8578 = vadd.f32 %v8538, %v8563
      %v8579 = vadd.f32 %v8539, %v8563
      %v8580 = vadd.f32 %v8540, %v8563
      %v8581 = vadd.f32 %v8541, %v8563
      %v8582 = vadd.f32 %v8542, %v8563
      %v8583 = vadd.f32 %v8543, %v8563
      %v8584 = vadd.f32 %v8544, %v8563
      %v8585 = vadd.f32 %v8545, %v8563
      %v8586 = vadd.f32 %v8546, %v8563
      %v8587 = vadd.f32 %v8547, %v8563
      %v8588 = vadd.f32 %v8548, %v8563
      %v8589 = vadd.f32 %v8549, %v8563
      %v8590 = vadd.f32 %v8550, %v8563
      %v8591 = vadd.f32 %v8551, %v8563
      %v8592 = vadd.f32 %v8552, %v8563
      %v8593 = vadd.f32 %v8553, %v8563
      %v8594 = vadd.f32 %v8554, %v8563
      %v8595 = vadd.f32 %v8555, %v8563
      %v8596 = vadd.f32 %v8556, %v8563
      %v8597 = vmax.f32 %v8565, 0.0
      %v8598 = vmax.f32 %v8566, 0.0
      %v8599 = vmax.f32 %v8567, 0.0
      %v8600 = vmax.f32 %v8568, 0.0
      %v8601 = vmax.f32 %v8569, 0.0
      %v8602 = vmax.f32 %v8570, 0.0
      %v8603 = vmax.f32 %v8571, 0.0
      %v8604 = vmax.f32 %v8572, 0.0
      %v8605 = vmax.f32 %v8573, 0.0
      %v8606 = vmax.f32 %v8574, 0.0
      %v8607 = vmax.f32 %v8575, 0.0
      %v8608 = vmax.f32 %v8576, 0.0
      %v8609 = vmax.f32 %v8577, 0.0
      %v8610 = vmax.f32 %v8578, 0.0
      %v8611 = vmax.f32 %v8579, 0.0
      %v8612 = vmax.f32 %v8580, 0.0
      %v8613 = vmax.f32 %v8581, 0.0
      %v8614 = vmax.f32 %v8582, 0.0
      %v8615 = vmax.f32 %v8583, 0.0
      %v8616 = vmax.f32 %v8584, 0.0
      %v8617 = vmax.f32 %v8585, 0.0
      %v8618 = vmax.f32 %v8586, 0.0
      %v8619 = vmax.f32 %v8587, 0.0
      %v8620 = vmax.f32 %v8588, 0.0
      %v8621 = vmax.f32 %v8589, 0.0
      %v8622 = vmax.f32 %v8590, 0.0
      %v8623 = vmax.f32 %v8591, 0.0
      %v8624 = vmax.f32 %v8592, 0.0
      %v8625 = vmax.f32 %v8593, 0.0
      %v8626 = vmax.f32 %v8594, 0.0
      %v8627 = vmax.f32 %v8595, 0.0
      %v8628 = vmax.f32 %v8596, 0.0
      %v8629 = vpack.c.bf16 %v8598, %v8597
      %v8630 = vpack.c.bf16 %v8600, %v8599
      %v8631 = vpack.c.bf16 %v8602, %v8601
      %v8632 = vpack.c.bf16 %v8604, %v8603
      %v8633 = vpack.c.bf16 %v8606, %v8605
      %v8634 = vpack.c.bf16 %v8608, %v8607
      %v8635 = vpack.c.bf16 %v8610, %v8609
      %v8636 = vpack.c.bf16 %v8612, %v8611
      %v8637 = vpack.c.bf16 %v8614, %v8613
      %v8638 = vpack.c.bf16 %v8616, %v8615
      %v8639 = vpack.c.bf16 %v8618, %v8617
      %v8640 = vpack.c.bf16 %v8620, %v8619
      %v8641 = vpack.c.bf16 %v8622, %v8621
      %v8642 = vpack.c.bf16 %v8624, %v8623
      %v8643 = vpack.c.bf16 %v8626, %v8625
      %v8644 = vpack.c.bf16 %v8628, %v8627
      %v8661 = vunpack.c.l.b16 %v8629
      %v8662 = vunpack.c.h.b16 %v8629
      %v8663 = vunpack.c.l.b16 %v8630
      %v8664 = vunpack.c.h.b16 %v8630
      %v8665 = vunpack.c.l.b16 %v8631
      %v8666 = vunpack.c.h.b16 %v8631
      %v8667 = vunpack.c.l.b16 %v8632
      %v8668 = vunpack.c.h.b16 %v8632
      %v8669 = vunpack.c.l.b16 %v8633
      %v8670 = vunpack.c.h.b16 %v8633
      %v8671 = vunpack.c.l.b16 %v8634
      %v8672 = vunpack.c.h.b16 %v8634
      %v8673 = vunpack.c.l.b16 %v8635
      %v8674 = vunpack.c.h.b16 %v8635
      %v8675 = vunpack.c.l.b16 %v8636
      %v8676 = vunpack.c.h.b16 %v8636
      %v8677 = vunpack.c.l.b16 %v8637
      %v8678 = vunpack.c.h.b16 %v8637
      %v8679 = vunpack.c.l.b16 %v8638
      %v8680 = vunpack.c.h.b16 %v8638
      %v8681 = vunpack.c.l.b16 %v8639
      %v8682 = vunpack.c.h.b16 %v8639
      %v8683 = vunpack.c.l.b16 %v8640
      %v8684 = vunpack.c.h.b16 %v8640
      %v8685 = vunpack.c.l.b16 %v8641
      %v8686 = vunpack.c.h.b16 %v8641
      %v8687 = vunpack.c.l.b16 %v8642
      %v8688 = vunpack.c.h.b16 %v8642
      %v8689 = vunpack.c.l.b16 %v8643
      %v8690 = vunpack.c.h.b16 %v8643
      %v8691 = vunpack.c.l.b16 %v8644
      %v8692 = vunpack.c.h.b16 %v8644
      %v8693 = vpack.c.b16 %v8661, %v8661
      %v8694 = vpack.c.b16 %v8662, %v8662
      %v8695 = vpack.c.b16 %v8663, %v8663
      %v8696 = vpack.c.b16 %v8664, %v8664
      %v8697 = vpack.c.b16 %v8665, %v8665
      %v8698 = vpack.c.b16 %v8666, %v8666
      %v8699 = vpack.c.b16 %v8667, %v8667
      %v8700 = vpack.c.b16 %v8668, %v8668
      %v8701 = vpack.c.b16 %v8669, %v8669
      %v8702 = vpack.c.b16 %v8670, %v8670
      %v8703 = vpack.c.b16 %v8671, %v8671
      %v8704 = vpack.c.b16 %v8672, %v8672
      %v8705 = vpack.c.b16 %v8673, %v8673
      %v8706 = vpack.c.b16 %v8674, %v8674
      %v8707 = vpack.c.b16 %v8675, %v8675
      %v8708 = vpack.c.b16 %v8676, %v8676
      %v8709 = vpack.c.b16 %v8677, %v8677
      %v8710 = vpack.c.b16 %v8678, %v8678
      %v8711 = vpack.c.b16 %v8679, %v8679
      %v8712 = vpack.c.b16 %v8680, %v8680
      %v8713 = vpack.c.b16 %v8681, %v8681
      %v8714 = vpack.c.b16 %v8682, %v8682
      %v8715 = vpack.c.b16 %v8683, %v8683
      %v8716 = vpack.c.b16 %v8684, %v8684
      %v8717 = vpack.c.b16 %v8685, %v8685
      %v8718 = vpack.c.b16 %v8686, %v8686
      %v8719 = vpack.c.b16 %v8687, %v8687
      %v8720 = vpack.c.b16 %v8688, %v8688
      %v8721 = vpack.c.b16 %v8689, %v8689
      %v8722 = vpack.c.b16 %v8690, %v8690
      %v8723 = vpack.c.b16 %v8691, %v8691
      %v8724 = vpack.c.b16 %v8692, %v8692
      %v8726 = vshrl.u32 %v8693, 16
      %v8728 = vrot.slane %v8726, 7
      %v8729 = vshll.u32 %v8693, 16
      %v8731 = vor.u32 %v8728, %v8729
      %v8732 = vrot.slane %v8728, 4
      %v8734 = vshrl.u32 %v8694, 16
      %v8736 = vrot.slane %v8734, 7
      %v8737 = vshll.u32 %v8694, 16
      %v8739 = vor.u32 %v8736, %v8737
      %v8740 = vsel %vm1175, %v8732, %v8739
      %v8741 = vrot.slane %v8736, 4
      %v8743 = vshrl.u32 %v8695, 16
      %v8745 = vrot.slane %v8743, 7
      %v8746 = vshll.u32 %v8695, 16
      %v8748 = vor.u32 %v8745, %v8746
      %v8749 = vrot.slane %v8745, 4
      %v8751 = vshrl.u32 %v8696, 16
      %v8753 = vrot.slane %v8751, 7
      %v8754 = vshll.u32 %v8696, 16
      %v8756 = vor.u32 %v8753, %v8754
      %v8757 = vsel %vm1175, %v8749, %v8756
      %v8758 = vrot.slane %v8753, 4
      %v8760 = vshrl.u32 %v8697, 16
      %v8762 = vrot.slane %v8760, 7
      %v8763 = vshll.u32 %v8697, 16
      %v8765 = vor.u32 %v8762, %v8763
      %v8766 = vrot.slane %v8762, 4
      %v8768 = vshrl.u32 %v8698, 16
      %v8770 = vrot.slane %v8768, 7
      %v8771 = vshll.u32 %v8698, 16
      %v8773 = vor.u32 %v8770, %v8771
      %v8774 = vsel %vm1175, %v8766, %v8773
      %v8775 = vrot.slane %v8770, 4
      %v8777 = vshrl.u32 %v8699, 16
      %v8779 = vrot.slane %v8777, 7
      %v8780 = vshll.u32 %v8699, 16
      %v8782 = vor.u32 %v8779, %v8780
      %v8783 = vrot.slane %v8779, 4
      %v8785 = vshrl.u32 %v8700, 16
      %v8787 = vrot.slane %v8785, 7
      %v8788 = vshll.u32 %v8700, 16
      %v8790 = vor.u32 %v8787, %v8788
      %v8791 = vsel %vm1175, %v8783, %v8790
      %v8792 = vrot.slane %v8787, 4
      %v8794 = vshrl.u32 %v8701, 16
      %v8796 = vrot.slane %v8794, 7
      %v8797 = vshll.u32 %v8701, 16
      %v8799 = vor.u32 %v8796, %v8797
      %v8800 = vrot.slane %v8796, 4
      %v8802 = vshrl.u32 %v8702, 16
      %v8804 = vrot.slane %v8802, 7
      %v8805 = vshll.u32 %v8702, 16
      %v8807 = vor.u32 %v8804, %v8805
      %v8808 = vsel %vm1175, %v8800, %v8807
      %v8809 = vrot.slane %v8804, 4
      %v8811 = vshrl.u32 %v8703, 16
      %v8813 = vrot.slane %v8811, 7
      %v8814 = vshll.u32 %v8703, 16
      %v8816 = vor.u32 %v8813, %v8814
      %v8817 = vrot.slane %v8813, 4
      %v8819 = vshrl.u32 %v8704, 16
      %v8821 = vrot.slane %v8819, 7
      %v8822 = vshll.u32 %v8704, 16
      %v8824 = vor.u32 %v8821, %v8822
      %v8825 = vsel %vm1175, %v8817, %v8824
      %v8826 = vrot.slane %v8821, 4
      %v8828 = vshrl.u32 %v8705, 16
      %v8830 = vrot.slane %v8828, 7
      %v8831 = vshll.u32 %v8705, 16
      %v8833 = vor.u32 %v8830, %v8831
      %v8834 = vrot.slane %v8830, 4
      %v8836 = vshrl.u32 %v8706, 16
      %v8838 = vrot.slane %v8836, 7
      %v8839 = vshll.u32 %v8706, 16
      %v8841 = vor.u32 %v8838, %v8839
      %v8842 = vsel %vm1175, %v8834, %v8841
      %v8843 = vrot.slane %v8838, 4
      %v8845 = vshrl.u32 %v8707, 16
      %v8847 = vrot.slane %v8845, 7
      %v8848 = vshll.u32 %v8707, 16
      %v8850 = vor.u32 %v8847, %v8848
      %v8851 = vrot.slane %v8847, 4
      %v8853 = vshrl.u32 %v8708, 16
      %v8855 = vrot.slane %v8853, 7
      %v8856 = vshll.u32 %v8708, 16
      %v8858 = vor.u32 %v8855, %v8856
      %v8859 = vsel %vm1175, %v8851, %v8858
      %v8860 = vrot.slane %v8855, 4
      %v8862 = vshrl.u32 %v8709, 16
      %v8864 = vrot.slane %v8862, 7
      %v8865 = vshll.u32 %v8709, 16
      %v8867 = vor.u32 %v8864, %v8865
      %v8868 = vrot.slane %v8864, 4
      %v8870 = vshrl.u32 %v8710, 16
      %v8872 = vrot.slane %v8870, 7
      %v8873 = vshll.u32 %v8710, 16
      %v8875 = vor.u32 %v8872, %v8873
      %v8876 = vsel %vm1175, %v8868, %v8875
      %v8877 = vrot.slane %v8872, 4
      %v8879 = vshrl.u32 %v8711, 16
      %v8881 = vrot.slane %v8879, 7
      %v8882 = vshll.u32 %v8711, 16
      %v8884 = vor.u32 %v8881, %v8882
      %v8885 = vrot.slane %v8881, 4
      %v8887 = vshrl.u32 %v8712, 16
      %v8889 = vrot.slane %v8887, 7
      %v8890 = vshll.u32 %v8712, 16
      %v8892 = vor.u32 %v8889, %v8890
      %v8893 = vsel %vm1175, %v8885, %v8892
      %v8894 = vrot.slane %v8889, 4
      %v8896 = vshrl.u32 %v8713, 16
      %v8898 = vrot.slane %v8896, 7
      %v8899 = vshll.u32 %v8713, 16
      %v8901 = vor.u32 %v8898, %v8899
      %v8902 = vrot.slane %v8898, 4
      %v8904 = vshrl.u32 %v8714, 16
      %v8906 = vrot.slane %v8904, 7
      %v8907 = vshll.u32 %v8714, 16
      %v8909 = vor.u32 %v8906, %v8907
      %v8910 = vsel %vm1175, %v8902, %v8909
      %v8911 = vrot.slane %v8906, 4
      %v8913 = vshrl.u32 %v8715, 16
      %v8915 = vrot.slane %v8913, 7
      %v8916 = vshll.u32 %v8715, 16
      %v8918 = vor.u32 %v8915, %v8916
      %v8919 = vrot.slane %v8915, 4
      %v8921 = vshrl.u32 %v8716, 16
      %v8923 = vrot.slane %v8921, 7
      %v8924 = vshll.u32 %v8716, 16
      %v8926 = vor.u32 %v8923, %v8924
      %v8927 = vsel %vm1175, %v8919, %v8926
      %v8928 = vrot.slane %v8923, 4
      %v8930 = vshrl.u32 %v8717, 16
      %v8932 = vrot.slane %v8930, 7
      %v8933 = vshll.u32 %v8717, 16
      %v8935 = vor.u32 %v8932, %v8933
      %v8936 = vrot.slane %v8932, 4
      %v8938 = vshrl.u32 %v8718, 16
      %v8940 = vrot.slane %v8938, 7
      %v8941 = vshll.u32 %v8718, 16
      %v8943 = vor.u32 %v8940, %v8941
      %v8944 = vsel %vm1175, %v8936, %v8943
      %v8945 = vrot.slane %v8940, 4
      %v8947 = vshrl.u32 %v8719, 16
      %v8949 = vrot.slane %v8947, 7
      %v8950 = vshll.u32 %v8719, 16
      %v8952 = vor.u32 %v8949, %v8950
      %v8953 = vrot.slane %v8949, 4
      %v8955 = vshrl.u32 %v8720, 16
      %v8957 = vrot.slane %v8955, 7
      %v8958 = vshll.u32 %v8720, 16
      %v8960 = vor.u32 %v8957, %v8958
      %v8961 = vsel %vm1175, %v8953, %v8960
      %v8962 = vrot.slane %v8957, 4
      %v8964 = vshrl.u32 %v8721, 16
      %v8966 = vrot.slane %v8964, 7
      %v8967 = vshll.u32 %v8721, 16
      %v8969 = vor.u32 %v8966, %v8967
      %v8970 = vrot.slane %v8966, 4
      %v8972 = vshrl.u32 %v8722, 16
      %v8974 = vrot.slane %v8972, 7
      %v8975 = vshll.u32 %v8722, 16
      %v8977 = vor.u32 %v8974, %v8975
      %v8978 = vsel %vm1175, %v8970, %v8977
      %v8979 = vrot.slane %v8974, 4
      %v8981 = vshrl.u32 %v8723, 16
      %v8983 = vrot.slane %v8981, 7
      %v8984 = vshll.u32 %v8723, 16
      %v8986 = vor.u32 %v8983, %v8984
      %v8987 = vrot.slane %v8983, 4
      %v8989 = vshrl.u32 %v8724, 16
      %v8991 = vrot.slane %v8989, 7
      %v8992 = vshll.u32 %v8724, 16
      %v8994 = vor.u32 %v8991, %v8992
      %v8995 = vsel %vm1175, %v8987, %v8994
      %v8996 = vrot.slane %v8991, 4
      %v9045 = vld [vmem:[%s6508] sm:$0xf]
      %v9046 = vsel %vm6510, %v8731, %v9045
      %9047 = vst [vmem:[%s6508] sm:$0xf] %v9046
      %9048 = vst.msk [vmem:[%s6508 + $0x4] sm:$0xf] %vm596, %v8740
      %v9049 = vld [vmem:[%s6508 + $0x8] sm:$0x1]
      %v9050 = vsel %vm606, %v8741, %v9049
      %9051 = vst [vmem:[%s6508 + $0x8] sm:$0x1] %v9050
      %v9052 = vld [vmem:[%s6508 + $0xc] sm:$0xf]
      %v9053 = vsel %vm6510, %v8748, %v9052
      %9054 = vst [vmem:[%s6508 + $0xc] sm:$0xf] %v9053
      %9055 = vst.msk [vmem:[%s6508 + $0x10] sm:$0xf] %vm596, %v8757
      %v9056 = vld [vmem:[%s6508 + $0x14] sm:$0x1]
      %v9057 = vsel %vm606, %v8758, %v9056
      %9058 = vst [vmem:[%s6508 + $0x14] sm:$0x1] %v9057
      %v9059 = vld [vmem:[%s6508 + $0x18] sm:$0xf]
      %v9060 = vsel %vm6510, %v8765, %v9059
      %9061 = vst [vmem:[%s6508 + $0x18] sm:$0xf] %v9060
      %9062 = vst.msk [vmem:[%s6508 + $0x1c] sm:$0xf] %vm596, %v8774
      %v9063 = vld [vmem:[%s6508 + $0x20] sm:$0x1]
      %v9064 = vsel %vm606, %v8775, %v9063
      %9065 = vst [vmem:[%s6508 + $0x20] sm:$0x1] %v9064
      %v9066 = vld [vmem:[%s6508 + $0x24] sm:$0xf]
      %v9067 = vsel %vm6510, %v8782, %v9066
      %9068 = vst [vmem:[%s6508 + $0x24] sm:$0xf] %v9067
      %9069 = vst.msk [vmem:[%s6508 + $0x28] sm:$0xf] %vm596, %v8791
      %v9070 = vld [vmem:[%s6508 + $0x2c] sm:$0x1]
      %v9071 = vsel %vm606, %v8792, %v9070
      %9072 = vst [vmem:[%s6508 + $0x2c] sm:$0x1] %v9071
      %v9073 = vld [vmem:[%s6508 + $0x30] sm:$0xf]
      %v9074 = vsel %vm6510, %v8799, %v9073
      %9075 = vst [vmem:[%s6508 + $0x30] sm:$0xf] %v9074
      %9076 = vst.msk [vmem:[%s6508 + $0x34] sm:$0xf] %vm596, %v8808
      %v9077 = vld [vmem:[%s6508 + $0x38] sm:$0x1]
      %v9078 = vsel %vm606, %v8809, %v9077
      %9079 = vst [vmem:[%s6508 + $0x38] sm:$0x1] %v9078
      %v9080 = vld [vmem:[%s6508 + $0x3c] sm:$0xf]
      %v9081 = vsel %vm6510, %v8816, %v9080
      %9082 = vst [vmem:[%s6508 + $0x3c] sm:$0xf] %v9081
      %9083 = vst.msk [vmem:[%s6508 + $0x40] sm:$0xf] %vm596, %v8825
      %v9084 = vld [vmem:[%s6508 + $0x44] sm:$0x1]
      %v9085 = vsel %vm606, %v8826, %v9084
      %9086 = vst [vmem:[%s6508 + $0x44] sm:$0x1] %v9085
      %v9087 = vld [vmem:[%s6508 + $0x48] sm:$0xf]
      %v9088 = vsel %vm6510, %v8833, %v9087
      %9089 = vst [vmem:[%s6508 + $0x48] sm:$0xf] %v9088
      %9090 = vst.msk [vmem:[%s6508 + $0x4c] sm:$0xf] %vm596, %v8842
      %v9091 = vld [vmem:[%s6508 + $0x50] sm:$0x1]
      %v9092 = vsel %vm606, %v8843, %v9091
      %9093 = vst [vmem:[%s6508 + $0x50] sm:$0x1] %v9092
      %v9094 = vld [vmem:[%s6508 + $0x54] sm:$0xf]
      %v9095 = vsel %vm6510, %v8850, %v9094
      %9096 = vst [vmem:[%s6508 + $0x54] sm:$0xf] %v9095
      %9097 = vst.msk [vmem:[%s6508 + $0x58] sm:$0xf] %vm596, %v8859
      %v9098 = vld [vmem:[%s6508 + $0x5c] sm:$0x1]
      %v9099 = vsel %vm606, %v8860, %v9098
      %9100 = vst [vmem:[%s6508 + $0x5c] sm:$0x1] %v9099
      %v9101 = vld [vmem:[%s6508 + $0x60] sm:$0xf]
      %v9102 = vsel %vm6510, %v8867, %v9101
      %9103 = vst [vmem:[%s6508 + $0x60] sm:$0xf] %v9102
      %9104 = vst.msk [vmem:[%s6508 + $0x64] sm:$0xf] %vm596, %v8876
      %v9105 = vld [vmem:[%s6508 + $0x68] sm:$0x1]
      %v9106 = vsel %vm606, %v8877, %v9105
      %9107 = vst [vmem:[%s6508 + $0x68] sm:$0x1] %v9106
      %v9108 = vld [vmem:[%s6508 + $0x6c] sm:$0xf]
      %v9109 = vsel %vm6510, %v8884, %v9108
      %9110 = vst [vmem:[%s6508 + $0x6c] sm:$0xf] %v9109
      %9111 = vst.msk [vmem:[%s6508 + $0x70] sm:$0xf] %vm596, %v8893
      %v9112 = vld [vmem:[%s6508 + $0x74] sm:$0x1]
      %v9113 = vsel %vm606, %v8894, %v9112
      %9114 = vst [vmem:[%s6508 + $0x74] sm:$0x1] %v9113
      %v9115 = vld [vmem:[%s6508 + $0x78] sm:$0xf]
      %v9116 = vsel %vm6510, %v8901, %v9115
      %9117 = vst [vmem:[%s6508 + $0x78] sm:$0xf] %v9116
      %9118 = vst.msk [vmem:[%s6508 + $0x7c] sm:$0xf] %vm596, %v8910
      %v9119 = vld [vmem:[%s6508 + $0x80] sm:$0x1]
      %v9120 = vsel %vm606, %v8911, %v9119
      %9121 = vst [vmem:[%s6508 + $0x80] sm:$0x1] %v9120
      %v9122 = vld [vmem:[%s6508 + $0x84] sm:$0xf]
      %v9123 = vsel %vm6510, %v8918, %v9122
      %9124 = vst [vmem:[%s6508 + $0x84] sm:$0xf] %v9123
      %9125 = vst.msk [vmem:[%s6508 + $0x88] sm:$0xf] %vm596, %v8927
      %v9126 = vld [vmem:[%s6508 + $0x8c] sm:$0x1]
      %v9127 = vsel %vm606, %v8928, %v9126
      %9128 = vst [vmem:[%s6508 + $0x8c] sm:$0x1] %v9127
      %v9129 = vld [vmem:[%s6508 + $0x90] sm:$0xf]
      %v9130 = vsel %vm6510, %v8935, %v9129
      %9131 = vst [vmem:[%s6508 + $0x90] sm:$0xf] %v9130
      %9132 = vst.msk [vmem:[%s6508 + $0x94] sm:$0xf] %vm596, %v8944
      %v9133 = vld [vmem:[%s6508 + $0x98] sm:$0x1]
      %v9134 = vsel %vm606, %v8945, %v9133
      %9135 = vst [vmem:[%s6508 + $0x98] sm:$0x1] %v9134
      %v9136 = vld [vmem:[%s6508 + $0x9c] sm:$0xf]
      %v9137 = vsel %vm6510, %v8952, %v9136
      %9138 = vst [vmem:[%s6508 + $0x9c] sm:$0xf] %v9137
      %9139 = vst.msk [vmem:[%s6508 + $0xa0] sm:$0xf] %vm596, %v8961
      %v9140 = vld [vmem:[%s6508 + $0xa4] sm:$0x1]
      %v9141 = vsel %vm606, %v8962, %v9140
      %9142 = vst [vmem:[%s6508 + $0xa4] sm:$0x1] %v9141
      %v9143 = vld [vmem:[%s6508 + $0xa8] sm:$0xf]
      %v9144 = vsel %vm6510, %v8969, %v9143
      %9145 = vst [vmem:[%s6508 + $0xa8] sm:$0xf] %v9144
      %9146 = vst.msk [vmem:[%s6508 + $0xac] sm:$0xf] %vm596, %v8978
      %v9147 = vld [vmem:[%s6508 + $0xb0] sm:$0x1]
      %v9148 = vsel %vm606, %v8979, %v9147
      %9149 = vst [vmem:[%s6508 + $0xb0] sm:$0x1] %v9148
      %v9150 = vld [vmem:[%s6508 + $0xb4] sm:$0xf]
      %v9151 = vsel %vm6510, %v8986, %v9150
      %9152 = vst [vmem:[%s6508 + $0xb4] sm:$0xf] %v9151
      %9153 = vst.msk [vmem:[%s6508 + $0xb8] sm:$0xf] %vm596, %v8995
      %v9154 = vld [vmem:[%s6508 + $0xbc] sm:$0x1]
      %v9155 = vsel %vm606, %v8996, %v9154
      %9156 = vst [vmem:[%s6508 + $0xbc] sm:$0x1] %v9155
      %v9157 = vld [vmem:[#allocation4] sm:$0xf]
      %v9158 = vld [vmem:[#allocation4 + $0x4] sm:$0xf]
      %v9159 = vld [vmem:[#allocation4 + $0xc] sm:$0xf]
      %v9160 = vld [vmem:[#allocation4 + $0x10] sm:$0xf]
      %v9161 = vld [vmem:[#allocation4 + $0x18] sm:$0xf]
      %v9162 = vld [vmem:[#allocation4 + $0x1c] sm:$0xf]
      %v9163 = vld [vmem:[#allocation4 + $0x24] sm:$0xf]
      %v9164 = vld [vmem:[#allocation4 + $0x28] sm:$0xf]
      %v9165 = vld [vmem:[#allocation4 + $0x30] sm:$0xf]
      %v9166 = vld [vmem:[#allocation4 + $0x34] sm:$0xf]
      %v9167 = vld [vmem:[#allocation4 + $0x3c] sm:$0xf]
      %v9168 = vld [vmem:[#allocation4 + $0x40] sm:$0xf]
      %v9169 = vld [vmem:[#allocation4 + $0x48] sm:$0xf]
      %v9170 = vld [vmem:[#allocation4 + $0x4c] sm:$0xf]
      %v9171 = vld [vmem:[#allocation4 + $0x54] sm:$0xf]
      %v9172 = vld [vmem:[#allocation4 + $0x58] sm:$0xf]
      %v9173 = vld [vmem:[#allocation4 + $0x60] sm:$0xf]
      %v9174 = vld [vmem:[#allocation4 + $0x64] sm:$0xf]
      %v9175 = vld [vmem:[#allocation4 + $0x6c] sm:$0xf]
      %v9176 = vld [vmem:[#allocation4 + $0x70] sm:$0xf]
      %v9177 = vld [vmem:[#allocation4 + $0x78] sm:$0xf]
      %v9178 = vld [vmem:[#allocation4 + $0x7c] sm:$0xf]
      %v9179 = vld [vmem:[#allocation4 + $0x84] sm:$0xf]
      %v9180 = vld [vmem:[#allocation4 + $0x88] sm:$0xf]
      %v9181 = vld [vmem:[#allocation4 + $0x90] sm:$0xf]
      %v9182 = vld [vmem:[#allocation4 + $0x94] sm:$0xf]
      %v9183 = vld [vmem:[#allocation4 + $0x9c] sm:$0xf]
      %v9184 = vld [vmem:[#allocation4 + $0xa0] sm:$0xf]
      %v9185 = vld [vmem:[#allocation4 + $0xa8] sm:$0xf]
      %v9186 = vld [vmem:[#allocation4 + $0xac] sm:$0xf]
      %v9187 = vld [vmem:[#allocation4 + $0xb4] sm:$0xf]
      %v9188 = vld [vmem:[#allocation4 + $0xb8] sm:$0xf]
      %v9189 = vld [vmem:[#allocation4 + $0xc0] sm:$0xf]
      %v9190 = vld [vmem:[#allocation4 + $0xc4] sm:$0xf]
      %v9191 = vld [vmem:[#allocation4 + $0xcc] sm:$0xf]
      %v9192 = vld [vmem:[#allocation4 + $0xd0] sm:$0xf]
      %v9193 = vld [vmem:[#allocation4 + $0x8] sm:$0x1]
      %v9194 = vld [vmem:[#allocation4 + $0x14] sm:$0x1]
      %v9195 = vld [vmem:[#allocation4 + $0x20] sm:$0x1]
      %v9196 = vld [vmem:[#allocation4 + $0x2c] sm:$0x1]
      %v9197 = vld [vmem:[#allocation4 + $0x38] sm:$0x1]
      %v9198 = vld [vmem:[#allocation4 + $0x44] sm:$0x1]
      %v9199 = vld [vmem:[#allocation4 + $0x50] sm:$0x1]
      %v9200 = vld [vmem:[#allocation4 + $0x5c] sm:$0x1]
      %v9201 = vld [vmem:[#allocation4 + $0x68] sm:$0x1]
      %v9202 = vld [vmem:[#allocation4 + $0x74] sm:$0x1]
      %v9203 = vld [vmem:[#allocation4 + $0x80] sm:$0x1]
      %v9204 = vld [vmem:[#allocation4 + $0x8c] sm:$0x1]
      %v9205 = vld [vmem:[#allocation4 + $0x98] sm:$0x1]
      %v9206 = vld [vmem:[#allocation4 + $0xa4] sm:$0x1]
      %v9207 = vld [vmem:[#allocation4 + $0xb0] sm:$0x1]
      %v9208 = vld [vmem:[#allocation4 + $0xbc] sm:$0x1]
      %v9209 = vld [vmem:[#allocation4 + $0xc8] sm:$0x1]
      %v9210 = vld [vmem:[#allocation4 + $0xd4] sm:$0x1]
      %v9211 = vld [vmem:[#allocation4] sm:$0xe]
      %v9212 = vld [vmem:[#allocation4 + $0xc] sm:$0xe]
      %v9213 = vld [vmem:[#allocation4 + $0x18] sm:$0xe]
      %v9214 = vld [vmem:[#allocation4 + $0x24] sm:$0xe]
      %v9215 = vld [vmem:[#allocation4 + $0x30] sm:$0xe]
      %v9216 = vld [vmem:[#allocation4 + $0x3c] sm:$0xe]
      %v9217 = vld [vmem:[#allocation4 + $0x48] sm:$0xe]
      %v9218 = vld [vmem:[#allocation4 + $0x54] sm:$0xe]
      %v9219 = vld [vmem:[#allocation4 + $0x60] sm:$0xe]
      %v9220 = vld [vmem:[#allocation4 + $0x6c] sm:$0xe]
      %v9221 = vld [vmem:[#allocation4 + $0x78] sm:$0xe]
      %v9222 = vld [vmem:[#allocation4 + $0x84] sm:$0xe]
      %v9223 = vld [vmem:[#allocation4 + $0x90] sm:$0xe]
      %v9224 = vld [vmem:[#allocation4 + $0x9c] sm:$0xe]
      %v9225 = vld [vmem:[#allocation4 + $0xa8] sm:$0xe]
      %v9226 = vld [vmem:[#allocation4 + $0xb4] sm:$0xe]
      %v9227 = vld [vmem:[#allocation4 + $0xc0] sm:$0xe]
      %v9228 = vld [vmem:[#allocation4 + $0xcc] sm:$0xe]
      %v9265 = vunpack.c.l.b16 %v9157
      %v9266 = vunpack.c.l.b16 %v9158
      %v9267 = vunpack.c.l.b16 %v9159
      %v9268 = vunpack.c.l.b16 %v9160
      %v9269 = vunpack.c.l.b16 %v9161
      %v9270 = vunpack.c.l.b16 %v9162
      %v9271 = vunpack.c.l.b16 %v9163
      %v9272 = vunpack.c.l.b16 %v9164
      %v9273 = vunpack.c.l.b16 %v9165
      %v9274 = vunpack.c.l.b16 %v9166
      %v9275 = vunpack.c.l.b16 %v9167
      %v9276 = vunpack.c.l.b16 %v9168
      %v9277 = vunpack.c.l.b16 %v9169
      %v9278 = vunpack.c.l.b16 %v9170
      %v9279 = vunpack.c.l.b16 %v9171
      %v9280 = vunpack.c.l.b16 %v9172
      %v9281 = vunpack.c.l.b16 %v9173
      %v9282 = vunpack.c.l.b16 %v9174
      %v9283 = vunpack.c.l.b16 %v9175
      %v9284 = vunpack.c.l.b16 %v9176
      %v9285 = vunpack.c.l.b16 %v9177
      %v9286 = vunpack.c.l.b16 %v9178
      %v9287 = vunpack.c.l.b16 %v9179
      %v9288 = vunpack.c.l.b16 %v9180
      %v9289 = vunpack.c.l.b16 %v9181
      %v9290 = vunpack.c.l.b16 %v9182
      %v9291 = vunpack.c.l.b16 %v9183
      %v9292 = vunpack.c.l.b16 %v9184
      %v9293 = vunpack.c.l.b16 %v9185
      %v9294 = vunpack.c.l.b16 %v9186
      %v9295 = vunpack.c.l.b16 %v9187
      %v9296 = vunpack.c.l.b16 %v9188
      %v9297 = vunpack.c.l.b16 %v9189
      %v9298 = vunpack.c.l.b16 %v9190
      %v9299 = vunpack.c.l.b16 %v9191
      %v9300 = vunpack.c.l.b16 %v9192
      %v9301 = vpack.c.b16 %v9266, %v9265
      %v9302 = vpack.c.b16 %v9268, %v9267
      %v9303 = vpack.c.b16 %v9270, %v9269
      %v9304 = vpack.c.b16 %v9272, %v9271
      %v9305 = vpack.c.b16 %v9274, %v9273
      %v9306 = vpack.c.b16 %v9276, %v9275
      %v9307 = vpack.c.b16 %v9278, %v9277
      %v9308 = vpack.c.b16 %v9280, %v9279
      %v9309 = vpack.c.b16 %v9282, %v9281
      %v9310 = vpack.c.b16 %v9284, %v9283
      %v9311 = vpack.c.b16 %v9286, %v9285
      %v9312 = vpack.c.b16 %v9288, %v9287
      %v9313 = vpack.c.b16 %v9290, %v9289
      %v9314 = vpack.c.b16 %v9292, %v9291
      %v9315 = vpack.c.b16 %v9294, %v9293
      %v9316 = vpack.c.b16 %v9296, %v9295
      %v9317 = vpack.c.b16 %v9298, %v9297
      %v9318 = vpack.c.b16 %v9300, %v9299
      %v9337 = vunpack.c.l.b16 %v9193
      %v9338 = vunpack.c.l.b16 %v9194
      %v9339 = vunpack.c.l.b16 %v9195
      %v9340 = vunpack.c.l.b16 %v9196
      %v9341 = vunpack.c.l.b16 %v9197
      %v9342 = vunpack.c.l.b16 %v9198
      %v9343 = vunpack.c.l.b16 %v9199
      %v9344 = vunpack.c.l.b16 %v9200
      %v9345 = vunpack.c.l.b16 %v9201
      %v9346 = vunpack.c.l.b16 %v9202
      %v9347 = vunpack.c.l.b16 %v9203
      %v9348 = vunpack.c.l.b16 %v9204
      %v9349 = vunpack.c.l.b16 %v9205
      %v9350 = vunpack.c.l.b16 %v9206
      %v9351 = vunpack.c.l.b16 %v9207
      %v9352 = vunpack.c.l.b16 %v9208
      %v9353 = vunpack.c.l.b16 %v9209
      %v9354 = vunpack.c.l.b16 %v9210
      %v9355 = vpack.c.b16 %v9337, %v9337
      %v9356 = vpack.c.b16 %v9338, %v9338
      %v9357 = vpack.c.b16 %v9339, %v9339
      %v9358 = vpack.c.b16 %v9340, %v9340
      %v9359 = vpack.c.b16 %v9341, %v9341
      %v9360 = vpack.c.b16 %v9342, %v9342
      %v9361 = vpack.c.b16 %v9343, %v9343
      %v9362 = vpack.c.b16 %v9344, %v9344
      %v9363 = vpack.c.b16 %v9345, %v9345
      %v9364 = vpack.c.b16 %v9346, %v9346
      %v9365 = vpack.c.b16 %v9347, %v9347
      %v9366 = vpack.c.b16 %v9348, %v9348
      %v9367 = vpack.c.b16 %v9349, %v9349
      %v9368 = vpack.c.b16 %v9350, %v9350
      %v9369 = vpack.c.b16 %v9351, %v9351
      %v9370 = vpack.c.b16 %v9352, %v9352
      %v9371 = vpack.c.b16 %v9353, %v9353
      %v9372 = vpack.c.b16 %v9354, %v9354
      %v9374 = vshrl.u32 %v9301, 16
      %v9376 = vshll.u32 %v9301, 16
      %v9378 = vrot.slane %v9376, 1
      %v9379 = vor.u32 %v9374, %v9378
      %v9381 = vshll.u32 %v9355, 16
      %v9383 = vrot.slane %v9381, 1
      %v9384 = vsel %vm2390, %v9379, %v9383
      %v9386 = vshrl.u32 %v9302, 16
      %v9388 = vshll.u32 %v9302, 16
      %v9390 = vrot.slane %v9388, 1
      %v9391 = vor.u32 %v9386, %v9390
      %v9393 = vshll.u32 %v9356, 16
      %v9395 = vrot.slane %v9393, 1
      %v9396 = vsel %vm2390, %v9391, %v9395
      %v9398 = vshrl.u32 %v9303, 16
      %v9400 = vshll.u32 %v9303, 16
      %v9402 = vrot.slane %v9400, 1
      %v9403 = vor.u32 %v9398, %v9402
      %v9405 = vshll.u32 %v9357, 16
      %v9407 = vrot.slane %v9405, 1
      %v9408 = vsel %vm2390, %v9403, %v9407
      %v9410 = vshrl.u32 %v9304, 16
      %v9412 = vshll.u32 %v9304, 16
      %v9414 = vrot.slane %v9412, 1
      %v9415 = vor.u32 %v9410, %v9414
      %v9417 = vshll.u32 %v9358, 16
      %v9419 = vrot.slane %v9417, 1
      %v9420 = vsel %vm2390, %v9415, %v9419
      %v9422 = vshrl.u32 %v9305, 16
      %v9424 = vshll.u32 %v9305, 16
      %v9426 = vrot.slane %v9424, 1
      %v9427 = vor.u32 %v9422, %v9426
      %v9429 = vshll.u32 %v9359, 16
      %v9431 = vrot.slane %v9429, 1
      %v9432 = vsel %vm2390, %v9427, %v9431
      %v9434 = vshrl.u32 %v9306, 16
      %v9436 = vshll.u32 %v9306, 16
      %v9438 = vrot.slane %v9436, 1
      %v9439 = vor.u32 %v9434, %v9438
      %v9441 = vshll.u32 %v9360, 16
      %v9443 = vrot.slane %v9441, 1
      %v9444 = vsel %vm2390, %v9439, %v9443
      %v9446 = vshrl.u32 %v9307, 16
      %v9448 = vshll.u32 %v9307, 16
      %v9450 = vrot.slane %v9448, 1
      %v9451 = vor.u32 %v9446, %v9450
      %v9453 = vshll.u32 %v9361, 16
      %v9455 = vrot.slane %v9453, 1
      %v9456 = vsel %vm2390, %v9451, %v9455
      %v9458 = vshrl.u32 %v9308, 16
      %v9460 = vshll.u32 %v9308, 16
      %v9462 = vrot.slane %v9460, 1
      %v9463 = vor.u32 %v9458, %v9462
      %v9465 = vshll.u32 %v9362, 16
      %v9467 = vrot.slane %v9465, 1
      %v9468 = vsel %vm2390, %v9463, %v9467
      %v9470 = vshrl.u32 %v9309, 16
      %v9472 = vshll.u32 %v9309, 16
      %v9474 = vrot.slane %v9472, 1
      %v9475 = vor.u32 %v9470, %v9474
      %v9477 = vshll.u32 %v9363, 16
      %v9479 = vrot.slane %v9477, 1
      %v9480 = vsel %vm2390, %v9475, %v9479
      %v9482 = vshrl.u32 %v9310, 16
      %v9484 = vshll.u32 %v9310, 16
      %v9486 = vrot.slane %v9484, 1
      %v9487 = vor.u32 %v9482, %v9486
      %v9489 = vshll.u32 %v9364, 16
      %v9491 = vrot.slane %v9489, 1
      %v9492 = vsel %vm2390, %v9487, %v9491
      %v9494 = vshrl.u32 %v9311, 16
      %v9496 = vshll.u32 %v9311, 16
      %v9498 = vrot.slane %v9496, 1
      %v9499 = vor.u32 %v9494, %v9498
      %v9501 = vshll.u32 %v9365, 16
      %v9503 = vrot.slane %v9501, 1
      %v9504 = vsel %vm2390, %v9499, %v9503
      %v9506 = vshrl.u32 %v9312, 16
      %v9508 = vshll.u32 %v9312, 16
      %v9510 = vrot.slane %v9508, 1
      %v9511 = vor.u32 %v9506, %v9510
      %v9513 = vshll.u32 %v9366, 16
      %v9515 = vrot.slane %v9513, 1
      %v9516 = vsel %vm2390, %v9511, %v9515
      %v9518 = vshrl.u32 %v9313, 16
      %v9520 = vshll.u32 %v9313, 16
      %v9522 = vrot.slane %v9520, 1
      %v9523 = vor.u32 %v9518, %v9522
      %v9525 = vshll.u32 %v9367, 16
      %v9527 = vrot.slane %v9525, 1
      %v9528 = vsel %vm2390, %v9523, %v9527
      %v9530 = vshrl.u32 %v9314, 16
      %v9532 = vshll.u32 %v9314, 16
      %v9534 = vrot.slane %v9532, 1
      %v9535 = vor.u32 %v9530, %v9534
      %v9537 = vshll.u32 %v9368, 16
      %v9539 = vrot.slane %v9537, 1
      %v9540 = vsel %vm2390, %v9535, %v9539
      %v9542 = vshrl.u32 %v9315, 16
      %v9544 = vshll.u32 %v9315, 16
      %v9546 = vrot.slane %v9544, 1
      %v9547 = vor.u32 %v9542, %v9546
      %v9549 = vshll.u32 %v9369, 16
      %v9551 = vrot.slane %v9549, 1
      %v9552 = vsel %vm2390, %v9547, %v9551
      %v9554 = vshrl.u32 %v9316, 16
      %v9556 = vshll.u32 %v9316, 16
      %v9558 = vrot.slane %v9556, 1
      %v9559 = vor.u32 %v9554, %v9558
      %v9561 = vshll.u32 %v9370, 16
      %v9563 = vrot.slane %v9561, 1
      %v9564 = vsel %vm2390, %v9559, %v9563
      %v9566 = vshrl.u32 %v9317, 16
      %v9568 = vshll.u32 %v9317, 16
      %v9570 = vrot.slane %v9568, 1
      %v9571 = vor.u32 %v9566, %v9570
      %v9573 = vshll.u32 %v9371, 16
      %v9575 = vrot.slane %v9573, 1
      %v9576 = vsel %vm2390, %v9571, %v9575
      %v9578 = vshrl.u32 %v9318, 16
      %v9580 = vshll.u32 %v9318, 16
      %v9582 = vrot.slane %v9580, 1
      %v9583 = vor.u32 %v9578, %v9582
      %v9585 = vshll.u32 %v9372, 16
      %v9587 = vrot.slane %v9585, 1
      %v9588 = vsel %vm2390, %v9583, %v9587
      %9589 = vrot.lane.b32.xlu0 %v9384, 8
      %v9590 = vpop.permute.xlu0 %9589
      %9591 = vrot.lane.b32.xlu0 %v9396, 8
      %v9592 = vpop.permute.xlu0 %9591
      %9593 = vrot.lane.b32.xlu0 %v9408, 8
      %v9594 = vpop.permute.xlu0 %9593
      %9595 = vrot.lane.b32.xlu0 %v9420, 8
      %v9596 = vpop.permute.xlu0 %9595
      %9597 = vrot.lane.b32.xlu0 %v9432, 8
      %v9598 = vpop.permute.xlu0 %9597
      %9599 = vrot.lane.b32.xlu0 %v9444, 8
      %v9600 = vpop.permute.xlu0 %9599
      %9601 = vrot.lane.b32.xlu0 %v9456, 8
      %v9602 = vpop.permute.xlu0 %9601
      %9603 = vrot.lane.b32.xlu0 %v9468, 8
      %v9604 = vpop.permute.xlu0 %9603
      %9605 = vrot.lane.b32.xlu0 %v9480, 8
      %v9606 = vpop.permute.xlu0 %9605
      %9607 = vrot.lane.b32.xlu0 %v9492, 8
      %v9608 = vpop.permute.xlu0 %9607
      %9609 = vrot.lane.b32.xlu0 %v9504, 8
      %v9610 = vpop.permute.xlu0 %9609
      %9611 = vrot.lane.b32.xlu0 %v9516, 8
      %v9612 = vpop.permute.xlu0 %9611
      %9613 = vrot.lane.b32.xlu0 %v9528, 8
      %v9614 = vpop.permute.xlu0 %9613
      %9615 = vrot.lane.b32.xlu0 %v9540, 8
      %v9616 = vpop.permute.xlu0 %9615
      %9617 = vrot.lane.b32.xlu0 %v9552, 8
      %v9618 = vpop.permute.xlu0 %9617
      %9619 = vrot.lane.b32.xlu0 %v9564, 8
      %v9620 = vpop.permute.xlu0 %9619
      %9621 = vrot.lane.b32.xlu0 %v9576, 8
      %v9622 = vpop.permute.xlu0 %9621
      %9623 = vrot.lane.b32.xlu0 %v9588, 8
      %v9624 = vpop.permute.xlu0 %9623
      %v9643 = vunpack.c.l.b16 %v9211
      %v9644 = vunpack.c.l.b16 %v9212
      %v9645 = vunpack.c.l.b16 %v9213
      %v9646 = vunpack.c.l.b16 %v9214
      %v9647 = vunpack.c.l.b16 %v9215
      %v9648 = vunpack.c.l.b16 %v9216
      %v9649 = vunpack.c.l.b16 %v9217
      %v9650 = vunpack.c.l.b16 %v9218
      %v9651 = vunpack.c.l.b16 %v9219
      %v9652 = vunpack.c.l.b16 %v9220
      %v9653 = vunpack.c.l.b16 %v9221
      %v9654 = vunpack.c.l.b16 %v9222
      %v9655 = vunpack.c.l.b16 %v9223
      %v9656 = vunpack.c.l.b16 %v9224
      %v9657 = vunpack.c.l.b16 %v9225
      %v9658 = vunpack.c.l.b16 %v9226
      %v9659 = vunpack.c.l.b16 %v9227
      %v9660 = vunpack.c.l.b16 %v9228
      %v9661 = vpack.c.b16 %v9266, %v9643
      %v9662 = vpack.c.b16 %v9268, %v9644
      %v9663 = vpack.c.b16 %v9270, %v9645
      %v9664 = vpack.c.b16 %v9272, %v9646
      %v9665 = vpack.c.b16 %v9274, %v9647
      %v9666 = vpack.c.b16 %v9276, %v9648
      %v9667 = vpack.c.b16 %v9278, %v9649
      %v9668 = vpack.c.b16 %v9280, %v9650
      %v9669 = vpack.c.b16 %v9282, %v9651
      %v9670 = vpack.c.b16 %v9284, %v9652
      %v9671 = vpack.c.b16 %v9286, %v9653
      %v9672 = vpack.c.b16 %v9288, %v9654
      %v9673 = vpack.c.b16 %v9290, %v9655
      %v9674 = vpack.c.b16 %v9292, %v9656
      %v9675 = vpack.c.b16 %v9294, %v9657
      %v9676 = vpack.c.b16 %v9296, %v9658
      %v9677 = vpack.c.b16 %v9298, %v9659
      %v9678 = vpack.c.b16 %v9300, %v9660
      %v9679 = vrot.slane %v9661, 1
      %v9680 = vrot.slane %v9355, 1
      %v9681 = vsel %vm2697, %v9679, %v9680
      %v9682 = vrot.slane %v9662, 1
      %v9683 = vrot.slane %v9356, 1
      %v9684 = vsel %vm2697, %v9682, %v9683
      %v9685 = vrot.slane %v9663, 1
      %v9686 = vrot.slane %v9357, 1
      %v9687 = vsel %vm2697, %v9685, %v9686
      %v9688 = vrot.slane %v9664, 1
      %v9689 = vrot.slane %v9358, 1
      %v9690 = vsel %vm2697, %v9688, %v9689
      %v9691 = vrot.slane %v9665, 1
      %v9692 = vrot.slane %v9359, 1
      %v9693 = vsel %vm2697, %v9691, %v9692
      %v9694 = vrot.slane %v9666, 1
      %v9695 = vrot.slane %v9360, 1
      %v9696 = vsel %vm2697, %v9694, %v9695
      %v9697 = vrot.slane %v9667, 1
      %v9698 = vrot.slane %v9361, 1
      %v9699 = vsel %vm2697, %v9697, %v9698
      %v9700 = vrot.slane %v9668, 1
      %v9701 = vrot.slane %v9362, 1
      %v9702 = vsel %vm2697, %v9700, %v9701
      %v9703 = vrot.slane %v9669, 1
      %v9704 = vrot.slane %v9363, 1
      %v9705 = vsel %vm2697, %v9703, %v9704
      %v9706 = vrot.slane %v9670, 1
      %v9707 = vrot.slane %v9364, 1
      %v9708 = vsel %vm2697, %v9706, %v9707
      %v9709 = vrot.slane %v9671, 1
      %v9710 = vrot.slane %v9365, 1
      %v9711 = vsel %vm2697, %v9709, %v9710
      %v9712 = vrot.slane %v9672, 1
      %v9713 = vrot.slane %v9366, 1
      %v9714 = vsel %vm2697, %v9712, %v9713
      %v9715 = vrot.slane %v9673, 1
      %v9716 = vrot.slane %v9367, 1
      %v9717 = vsel %vm2697, %v9715, %v9716
      %v9718 = vrot.slane %v9674, 1
      %v9719 = vrot.slane %v9368, 1
      %v9720 = vsel %vm2697, %v9718, %v9719
      %v9721 = vrot.slane %v9675, 1
      %v9722 = vrot.slane %v9369, 1
      %v9723 = vsel %vm2697, %v9721, %v9722
      %v9724 = vrot.slane %v9676, 1
      %v9725 = vrot.slane %v9370, 1
      %v9726 = vsel %vm2697, %v9724, %v9725
      %v9727 = vrot.slane %v9677, 1
      %v9728 = vrot.slane %v9371, 1
      %v9729 = vsel %vm2697, %v9727, %v9728
      %v9730 = vrot.slane %v9678, 1
      %v9731 = vrot.slane %v9372, 1
      %v9732 = vsel %vm2697, %v9730, %v9731
      %9733 = vrot.lane.b32.xlu0 %v9681, 16
      %v9734 = vpop.permute.xlu0 %9733
      %9735 = vrot.lane.b32.xlu0 %v9684, 16
      %v9736 = vpop.permute.xlu0 %9735
      %9737 = vrot.lane.b32.xlu0 %v9687, 16
      %v9738 = vpop.permute.xlu0 %9737
      %9739 = vrot.lane.b32.xlu0 %v9690, 16
      %v9740 = vpop.permute.xlu0 %9739
      %9741 = vrot.lane.b32.xlu0 %v9693, 16
      %v9742 = vpop.permute.xlu0 %9741
      %9743 = vrot.lane.b32.xlu0 %v9696, 16
      %v9744 = vpop.permute.xlu0 %9743
      %9745 = vrot.lane.b32.xlu0 %v9699, 16
      %v9746 = vpop.permute.xlu0 %9745
      %9747 = vrot.lane.b32.xlu0 %v9702, 16
      %v9748 = vpop.permute.xlu0 %9747
      %9749 = vrot.lane.b32.xlu0 %v9705, 16
      %v9750 = vpop.permute.xlu0 %9749
      %9751 = vrot.lane.b32.xlu0 %v9708, 16
      %v9752 = vpop.permute.xlu0 %9751
      %9753 = vrot.lane.b32.xlu0 %v9711, 16
      %v9754 = vpop.permute.xlu0 %9753
      %9755 = vrot.lane.b32.xlu0 %v9714, 16
      %v9756 = vpop.permute.xlu0 %9755
      %9757 = vrot.lane.b32.xlu0 %v9717, 16
      %v9758 = vpop.permute.xlu0 %9757
      %9759 = vrot.lane.b32.xlu0 %v9720, 16
      %v9760 = vpop.permute.xlu0 %9759
      %9761 = vrot.lane.b32.xlu0 %v9723, 16
      %v9762 = vpop.permute.xlu0 %9761
      %9763 = vrot.lane.b32.xlu0 %v9726, 16
      %v9764 = vpop.permute.xlu0 %9763
      %9765 = vrot.lane.b32.xlu0 %v9729, 16
      %v9766 = vpop.permute.xlu0 %9765
      %9767 = vrot.lane.b32.xlu0 %v9732, 16
      %v9768 = vpop.permute.xlu0 %9767
      %v9770 = vsel %vm3674, %v9301, %v9590
      %v9772 = vsel %vm3674, %v9302, %v9592
      %v9774 = vsel %vm3674, %v9303, %v9594
      %v9776 = vsel %vm3674, %v9304, %v9596
      %v9778 = vsel %vm3674, %v9305, %v9598
      %v9780 = vsel %vm3674, %v9306, %v9600
      %v9782 = vsel %vm3674, %v9307, %v9602
      %v9784 = vsel %vm3674, %v9308, %v9604
      %v9786 = vsel %vm3674, %v9309, %v9606
      %v9788 = vsel %vm3674, %v9310, %v9608
      %v9790 = vsel %vm3674, %v9311, %v9610
      %v9792 = vsel %vm3674, %v9312, %v9612
      %v9794 = vsel %vm3674, %v9313, %v9614
      %v9796 = vsel %vm3674, %v9314, %v9616
      %v9798 = vsel %vm3674, %v9315, %v9618
      %v9800 = vsel %vm3674, %v9316, %v9620
      %v9802 = vsel %vm3674, %v9317, %v9622
      %v9804 = vsel %vm3674, %v9318, %v9624
      %v9806 = vsel %vm7271, %v9770, %v9734
      %v9808 = vsel %vm7271, %v9772, %v9736
      %v9810 = vsel %vm7271, %v9774, %v9738
      %v9812 = vsel %vm7271, %v9776, %v9740
      %v9814 = vsel %vm7271, %v9778, %v9742
      %v9816 = vsel %vm7271, %v9780, %v9744
      %v9818 = vsel %vm7271, %v9782, %v9746
      %v9820 = vsel %vm7271, %v9784, %v9748
      %v9822 = vsel %vm7271, %v9786, %v9750
      %v9824 = vsel %vm7271, %v9788, %v9752
      %v9826 = vsel %vm7271, %v9790, %v9754
      %v9828 = vsel %vm7271, %v9792, %v9756
      %v9830 = vsel %vm7271, %v9794, %v9758
      %v9832 = vsel %vm7271, %v9796, %v9760
      %v9834 = vsel %vm7271, %v9798, %v9762
      %v9836 = vsel %vm7271, %v9800, %v9764
      %v9838 = vsel %vm7271, %v9802, %v9766
      %v9840 = vsel %vm7271, %v9804, %v9768
      %v9859 = vunpack.c.l.b16 %v9806
      %v9860 = vunpack.c.h.b16 %v9806
      %v9861 = vunpack.c.l.b16 %v9808
      %v9862 = vunpack.c.h.b16 %v9808
      %v9863 = vunpack.c.l.b16 %v9810
      %v9864 = vunpack.c.h.b16 %v9810
      %v9865 = vunpack.c.l.b16 %v9812
      %v9866 = vunpack.c.h.b16 %v9812
      %v9867 = vunpack.c.l.b16 %v9814
      %v9868 = vunpack.c.h.b16 %v9814
      %v9869 = vunpack.c.l.b16 %v9816
      %v9870 = vunpack.c.h.b16 %v9816
      %v9871 = vunpack.c.l.b16 %v9818
      %v9872 = vunpack.c.h.b16 %v9818
      %v9873 = vunpack.c.l.b16 %v9820
      %v9874 = vunpack.c.h.b16 %v9820
      %v9875 = vunpack.c.l.b16 %v9822
      %v9876 = vunpack.c.h.b16 %v9822
      %v9877 = vunpack.c.l.b16 %v9824
      %v9878 = vunpack.c.h.b16 %v9824
      %v9879 = vunpack.c.l.b16 %v9826
      %v9880 = vunpack.c.h.b16 %v9826
      %v9881 = vunpack.c.l.b16 %v9828
      %v9882 = vunpack.c.h.b16 %v9828
      %v9883 = vunpack.c.l.b16 %v9830
      %v9884 = vunpack.c.h.b16 %v9830
      %v9885 = vunpack.c.l.b16 %v9832
      %v9886 = vunpack.c.h.b16 %v9832
      %v9887 = vunpack.c.l.b16 %v9834
      %v9888 = vunpack.c.h.b16 %v9834
      %v9889 = vunpack.c.l.b16 %v9836
      %v9890 = vunpack.c.h.b16 %v9836
      %v9891 = vunpack.c.l.b16 %v9838
      %v9892 = vunpack.c.h.b16 %v9838
      %v9893 = vunpack.c.l.b16 %v9840
      %v9894 = vunpack.c.h.b16 %v9840
      %v9895 = vpack.c.b16 %v9859, %v9859
      %v9896 = vpack.c.b16 %v9860, %v9860
      %v9897 = vpack.c.b16 %v9861, %v9861
      %v9898 = vpack.c.b16 %v9862, %v9862
      %v9899 = vpack.c.b16 %v9863, %v9863
      %v9900 = vpack.c.b16 %v9864, %v9864
      %v9901 = vpack.c.b16 %v9865, %v9865
      %v9902 = vpack.c.b16 %v9866, %v9866
      %v9903 = vpack.c.b16 %v9867, %v9867
      %v9904 = vpack.c.b16 %v9868, %v9868
      %v9905 = vpack.c.b16 %v9869, %v9869
      %v9906 = vpack.c.b16 %v9870, %v9870
      %v9907 = vpack.c.b16 %v9871, %v9871
      %v9908 = vpack.c.b16 %v9872, %v9872
      %v9909 = vpack.c.b16 %v9873, %v9873
      %v9910 = vpack.c.b16 %v9874, %v9874
      %v9911 = vpack.c.b16 %v9875, %v9875
      %v9912 = vpack.c.b16 %v9876, %v9876
      %v9913 = vpack.c.b16 %v9877, %v9877
      %v9914 = vpack.c.b16 %v9878, %v9878
      %v9915 = vpack.c.b16 %v9879, %v9879
      %v9916 = vpack.c.b16 %v9880, %v9880
      %v9917 = vpack.c.b16 %v9881, %v9881
      %v9918 = vpack.c.b16 %v9882, %v9882
      %v9919 = vpack.c.b16 %v9883, %v9883
      %v9920 = vpack.c.b16 %v9884, %v9884
      %v9921 = vpack.c.b16 %v9885, %v9885
      %v9922 = vpack.c.b16 %v9886, %v9886
      %v9923 = vpack.c.b16 %v9887, %v9887
      %v9924 = vpack.c.b16 %v9888, %v9888
      %v9925 = vpack.c.b16 %v9889, %v9889
      %v9926 = vpack.c.b16 %v9890, %v9890
      %v9927 = vpack.c.b16 %v9891, %v9891
      %v9928 = vpack.c.b16 %v9892, %v9892
      %v9929 = vpack.c.b16 %v9893, %v9893
      %v9930 = vpack.c.b16 %v9894, %v9894
      %9967 = vst.msk [vmem:[#allocation7] sm:$0xf] %vm7434, %v9895
      %9968 = vst.msk [vmem:[#allocation7 + $0x4] sm:$0xf] %vm7434, %v9896
      %9969 = vst.msk [vmem:[#allocation7 + $0x8] sm:$0xf] %vm7434, %v9897
      %9970 = vst.msk [vmem:[#allocation7 + $0xc] sm:$0xf] %vm7434, %v9898
      %9971 = vst.msk [vmem:[#allocation7 + $0x10] sm:$0xf] %vm7434, %v9899
      %9972 = vst.msk [vmem:[#allocation7 + $0x14] sm:$0xf] %vm7434, %v9900
      %9973 = vst.msk [vmem:[#allocation7 + $0x18] sm:$0xf] %vm7434, %v9901
      %9974 = vst.msk [vmem:[#allocation7 + $0x1c] sm:$0xf] %vm7434, %v9902
      %9975 = vst.msk [vmem:[#allocation7 + $0x20] sm:$0xf] %vm7434, %v9903
      %9976 = vst.msk [vmem:[#allocation7 + $0x24] sm:$0xf] %vm7434, %v9904
      %9977 = vst.msk [vmem:[#allocation7 + $0x28] sm:$0xf] %vm7434, %v9905
      %9978 = vst.msk [vmem:[#allocation7 + $0x2c] sm:$0xf] %vm7434, %v9906
      %9979 = vst.msk [vmem:[#allocation7 + $0x30] sm:$0xf] %vm7434, %v9907
      %9980 = vst.msk [vmem:[#allocation7 + $0x34] sm:$0xf] %vm7434, %v9908
      %9981 = vst.msk [vmem:[#allocation7 + $0x38] sm:$0xf] %vm7434, %v9909
      %9982 = vst.msk [vmem:[#allocation7 + $0x3c] sm:$0xf] %vm7434, %v9910
      %9983 = vst.msk [vmem:[#allocation7 + $0x40] sm:$0xf] %vm7434, %v9911
      %9984 = vst.msk [vmem:[#allocation7 + $0x44] sm:$0xf] %vm7434, %v9912
      %9985 = vst.msk [vmem:[#allocation7 + $0x48] sm:$0xf] %vm7434, %v9913
      %9986 = vst.msk [vmem:[#allocation7 + $0x4c] sm:$0xf] %vm7434, %v9914
      %9987 = vst.msk [vmem:[#allocation7 + $0x50] sm:$0xf] %vm7434, %v9915
      %9988 = vst.msk [vmem:[#allocation7 + $0x54] sm:$0xf] %vm7434, %v9916
      %9989 = vst.msk [vmem:[#allocation7 + $0x58] sm:$0xf] %vm7434, %v9917
      %9990 = vst.msk [vmem:[#allocation7 + $0x5c] sm:$0xf] %vm7434, %v9918
      %9991 = vst.msk [vmem:[#allocation7 + $0x60] sm:$0xf] %vm7434, %v9919
      %9992 = vst.msk [vmem:[#allocation7 + $0x64] sm:$0xf] %vm7434, %v9920
      %9993 = vst.msk [vmem:[#allocation7 + $0x68] sm:$0xf] %vm7434, %v9921
      %9994 = vst.msk [vmem:[#allocation7 + $0x6c] sm:$0xf] %vm7434, %v9922
      %9995 = vst.msk [vmem:[#allocation7 + $0x70] sm:$0xf] %vm7434, %v9923
      %9996 = vst.msk [vmem:[#allocation7 + $0x74] sm:$0xf] %vm7434, %v9924
      %9997 = vst.msk [vmem:[#allocation7 + $0x78] sm:$0xf] %vm7434, %v9925
      %9998 = vst.msk [vmem:[#allocation7 + $0x7c] sm:$0xf] %vm7434, %v9926
      %9999 = vst.msk [vmem:[#allocation7 + $0x80] sm:$0xf] %vm7434, %v9927
      %10000 = vst.msk [vmem:[#allocation7 + $0x84] sm:$0xf] %vm7434, %v9928
      %10001 = vst.msk [vmem:[#allocation7 + $0x88] sm:$0xf] %vm7434, %v9929
      %10002 = vst.msk [vmem:[#allocation7 + $0x8c] sm:$0xf] %vm7434, %v9930
      %v10003 = vld [vmem:[#allocation7] sm:$0xf]
      %v10004 = vld [vmem:[#allocation7 + $0x4] sm:$0xf]
      %v10005 = vld [vmem:[#allocation7 + $0x8] sm:$0xf]
      %v10006 = vld [vmem:[#allocation7 + $0xc] sm:$0xf]
      %v10007 = vld [vmem:[#allocation7 + $0x10] sm:$0xf]
      %v10008 = vld [vmem:[#allocation7 + $0x14] sm:$0xf]
      %v10009 = vld [vmem:[#allocation7 + $0x18] sm:$0xf]
      %v10010 = vld [vmem:[#allocation7 + $0x1c] sm:$0xf]
      %v10011 = vld [vmem:[#allocation7 + $0x20] sm:$0xf]
      %v10012 = vld [vmem:[#allocation7 + $0x24] sm:$0xf]
      %v10013 = vld [vmem:[#allocation7 + $0x28] sm:$0xf]
      %v10014 = vld [vmem:[#allocation7 + $0x2c] sm:$0xf]
      %v10015 = vld [vmem:[#allocation7 + $0x30] sm:$0xf]
      %v10016 = vld [vmem:[#allocation7 + $0x34] sm:$0xf]
      %v10017 = vld [vmem:[#allocation7 + $0x38] sm:$0xf]
      %v10018 = vld [vmem:[#allocation7 + $0x3c] sm:$0xf]
      %v10019 = vld [vmem:[#allocation7 + $0x40] sm:$0xf]
      %v10020 = vld [vmem:[#allocation7 + $0x44] sm:$0xf]
      %v10021 = vld [vmem:[#allocation7 + $0x48] sm:$0xf]
      %v10022 = vld [vmem:[#allocation7 + $0x4c] sm:$0xf]
      %v10023 = vld [vmem:[#allocation7 + $0x50] sm:$0xf]
      %v10024 = vld [vmem:[#allocation7 + $0x54] sm:$0xf]
      %v10025 = vld [vmem:[#allocation7 + $0x58] sm:$0xf]
      %v10026 = vld [vmem:[#allocation7 + $0x5c] sm:$0xf]
      %v10027 = vld [vmem:[#allocation7 + $0x60] sm:$0xf]
      %v10028 = vld [vmem:[#allocation7 + $0x64] sm:$0xf]
      %v10029 = vld [vmem:[#allocation7 + $0x68] sm:$0xf]
      %v10030 = vld [vmem:[#allocation7 + $0x6c] sm:$0xf]
      %v10031 = vld [vmem:[#allocation7 + $0x70] sm:$0xf]
      %v10032 = vld [vmem:[#allocation7 + $0x74] sm:$0xf]
      %v10033 = vld [vmem:[#allocation7 + $0x78] sm:$0xf]
      %v10034 = vld [vmem:[#allocation7 + $0x7c] sm:$0xf]
      %v10035 = vld [vmem:[%s6] sm:$0xf]
      %v10036 = vld [vmem:[%s6 + $0x4] sm:$0xf]
      %v10037 = vld [vmem:[%s6 + $0x8] sm:$0xf]
      %v10038 = vld [vmem:[%s7506] sm:$0xf]
      %v10039 = vld [vmem:[%s7506 + $0x4] sm:$0xf]
      %v10040 = vld [vmem:[%s7506 + $0x8] sm:$0xf]
      %v10041 = vld [vmem:[%s7506 + $0xc] sm:$0xf]
      %v10042 = vld [vmem:[%s7506 + $0x10] sm:$0xf]
      %v10043 = vld [vmem:[%s7506 + $0x14] sm:$0xf]
      %v10044 = vld [vmem:[%s7506 + $0x18] sm:$0xf]
      %v10045 = vld [vmem:[%s7506 + $0x1c] sm:$0xf]
      %v10046 = vld [vmem:[%s7506 + $0x20] sm:$0xf]
      %v10047 = vld [vmem:[%s7506 + $0x24] sm:$0xf]
      %v10048 = vld [vmem:[%s7506 + $0x28] sm:$0xf]
      %v10049 = vld [vmem:[%s7506 + $0x2c] sm:$0xf]
      %v10050 = vld [vmem:[%s7506 + $0x30] sm:$0xf]
      %v10051 = vld [vmem:[%s7506 + $0x34] sm:$0xf]
      %v10052 = vld [vmem:[%s7506 + $0x38] sm:$0xf]
      %v10053 = vld [vmem:[%s7506 + $0x3c] sm:$0xf]
      %v10054 = vld [vmem:[%s7506 + $0x40] sm:$0xf]
      %v10055 = vld [vmem:[%s7506 + $0x44] sm:$0xf]
      %v10056 = vld [vmem:[%s7506 + $0x48] sm:$0xf]
      %v10057 = vld [vmem:[%s7506 + $0x4c] sm:$0xf]
      %v10058 = vld [vmem:[%s7506 + $0x50] sm:$0xf]
      %v10059 = vld [vmem:[%s7506 + $0x54] sm:$0xf]
      %v10060 = vld [vmem:[%s7506 + $0x58] sm:$0xf]
      %v10061 = vld [vmem:[%s7506 + $0x5c] sm:$0xf]
      %v10062 = vld [vmem:[%s7506 + $0x60] sm:$0xf]
      %v10063 = vld [vmem:[%s7506 + $0x64] sm:$0xf]
      %v10064 = vld [vmem:[%s7506 + $0x68] sm:$0xf]
      %v10065 = vld [vmem:[%s7506 + $0x6c] sm:$0xf]
      %v10066 = vld [vmem:[%s7506 + $0x70] sm:$0xf]
      %v10067 = vld [vmem:[%s7506 + $0x74] sm:$0xf]
      %v10068 = vld [vmem:[%s7506 + $0x78] sm:$0xf]
      %v10069 = vld [vmem:[%s7506 + $0x7c] sm:$0xf]
      %s10070 = scalar_lea.vmem %s6, 12
      %v10071 = vld [vmem:[%s10070] sm:$0xf]
      %v10072 = vld [vmem:[%s10070 + $0x4] sm:$0xf]
      %v10073 = vld [vmem:[%s10070 + $0x8] sm:$0xf]
      %v10106 = vunpack.c.l.b16 %v10038
      %v10107 = vunpack.c.l.b16 %v10039
      %v10108 = vunpack.c.l.b16 %v10040
      %v10109 = vunpack.c.l.b16 %v10041
      %v10110 = vunpack.c.l.b16 %v10042
      %v10111 = vunpack.c.l.b16 %v10043
      %v10112 = vunpack.c.l.b16 %v10044
      %v10113 = vunpack.c.l.b16 %v10045
      %v10114 = vunpack.c.l.b16 %v10046
      %v10115 = vunpack.c.l.b16 %v10047
      %v10116 = vunpack.c.l.b16 %v10048
      %v10117 = vunpack.c.l.b16 %v10049
      %v10118 = vunpack.c.l.b16 %v10050
      %v10119 = vunpack.c.l.b16 %v10051
      %v10120 = vunpack.c.l.b16 %v10052
      %v10121 = vunpack.c.l.b16 %v10053
      %v10122 = vunpack.c.l.b16 %v10054
      %v10123 = vunpack.c.l.b16 %v10055
      %v10124 = vunpack.c.l.b16 %v10056
      %v10125 = vunpack.c.l.b16 %v10057
      %v10126 = vunpack.c.l.b16 %v10058
      %v10127 = vunpack.c.l.b16 %v10059
      %v10128 = vunpack.c.l.b16 %v10060
      %v10129 = vunpack.c.l.b16 %v10061
      %v10130 = vunpack.c.l.b16 %v10062
      %v10131 = vunpack.c.l.b16 %v10063
      %v10132 = vunpack.c.l.b16 %v10064
      %v10133 = vunpack.c.l.b16 %v10065
      %v10134 = vunpack.c.l.b16 %v10066
      %v10135 = vunpack.c.l.b16 %v10067
      %v10136 = vunpack.c.l.b16 %v10068
      %v10137 = vunpack.c.l.b16 %v10069
      %v10138 = vpack.c.b16 %v10107, %v10106
      %v10139 = vpack.c.b16 %v10109, %v10108
      %v10140 = vpack.c.b16 %v10111, %v10110
      %v10141 = vpack.c.b16 %v10113, %v10112
      %v10142 = vpack.c.b16 %v10115, %v10114
      %v10143 = vpack.c.b16 %v10117, %v10116
      %v10144 = vpack.c.b16 %v10119, %v10118
      %v10145 = vpack.c.b16 %v10121, %v10120
      %v10146 = vpack.c.b16 %v10123, %v10122
      %v10147 = vpack.c.b16 %v10125, %v10124
      %v10148 = vpack.c.b16 %v10127, %v10126
      %v10149 = vpack.c.b16 %v10129, %v10128
      %v10150 = vpack.c.b16 %v10131, %v10130
      %v10151 = vpack.c.b16 %v10133, %v10132
      %v10152 = vpack.c.b16 %v10135, %v10134
      %v10153 = vpack.c.b16 %v10137, %v10136
      %v10157 = vunpack.c.l.b16 %v10071
      %v10158 = vunpack.c.l.b16 %v10072
      %v10159 = vunpack.c.l.b16 %v10073
      %v10160 = vpack.c.b16 %v10158, %v10157
      %v10161 = vpack.c.b16 %v10159, %v10159
      %v10164 = vsel %vm7632, %v10138, 0
      %v10167 = vsel %vm7632, %v10139, 0
      %v10170 = vsel %vm7632, %v10140, 0
      %v10173 = vsel %vm7632, %v10141, 0
      %v10176 = vsel %vm7632, %v10142, 0
      %v10179 = vsel %vm7632, %v10143, 0
      %v10182 = vsel %vm7632, %v10144, 0
      %v10185 = vsel %vm7632, %v10145, 0
      %v10188 = vsel %vm7632, %v10146, 0
      %v10191 = vsel %vm7632, %v10147, 0
      %v10194 = vsel %vm7632, %v10148, 0
      %v10197 = vsel %vm7632, %v10149, 0
      %v10200 = vsel %vm7632, %v10150, 0
      %v10203 = vsel %vm7632, %v10151, 0
      %v10206 = vsel %vm7632, %v10152, 0
      %v10209 = vsel %vm7632, %v10153, 0
      %v10212 = vsel %vm7681, %v10161, 0
      %10214 = vmatprep.subr.bf16.mxu0 0
      %10215 = vmatpush1.bf16.msra.mxu0 0
      %10216 = vmatprep.subr.bf16.mxu0 0
      %10217 = vmatpush1.bf16.msra.mxu0 0
      %10218 = vmatprep.subr.bf16.mxu0 0
      %10219 = vmatpush1.bf16.msra.mxu0 0
      %10220 = vmatprep.subr.bf16.mxu0 0
      %10221 = vmatpush1.bf16.msra.mxu0 0
      %10222 = vmatprep.subr.bf16.mxu0 0
      %10223 = vmatpush1.bf16.msra.mxu0 0
      %10224 = vmatprep.subr.bf16.mxu0 0
      %10225 = vmatpush1.bf16.msra.mxu0 0
      %10226 = vmatprep.subr.bf16.mxu0 0
      %10227 = vmatpush1.bf16.msra.mxu0 %v10212
      %10228 = vmatprep.subr.bf16.mxu0 0
      %10229 = vmatpush1.bf16.msra.mxu0 %v10160
      %10230 = vmatprep.subr.bf16.mxu0 0
      %10231 = vmatpush2.bf16.msra.mxu0 0
      %10232 = vmatprep.subr.bf16.mxu0 0
      %10233 = vmatpush2.bf16.msra.mxu0 0
      %10234 = vmatprep.subr.bf16.mxu0 0
      %10235 = vmatpush2.bf16.msra.mxu0 0
      %10236 = vmatprep.subr.bf16.mxu0 0
      %10237 = vmatpush2.bf16.msra.mxu0 0
      %10238 = vmatprep.subr.bf16.mxu0 0
      %10239 = vmatpush2.bf16.msra.mxu0 0
      %10240 = vmatprep.subr.bf16.mxu0 0
      %10241 = vmatpush2.bf16.msra.mxu0 0
      %10242 = vmatprep.subr.bf16.mxu0 0
      %10243 = vmatpush2.bf16.msra.mxu0 0
      %10244 = vmatprep.subr.bf16.mxu0 0
      %10245 = vmatpush2.bf16.msra.mxu0 0
      %10246 = vmatprep.mubr.bf16.mxu0 0
      %10247 = vmatmul.mubr.bf16.gmra.mxu0 %v10164
      %v10248 = vpop.f32.mrf.mxu0
      %v10249 = vadd.f32 0.0, %v10248
      %v10250 = vpop.f32.mrf.mxu0
      %v10251 = vpop.f32.mrf.mxu0
      %v10252 = vadd.f32 0.0, %v10251
      %v10253 = vpop.f32.mrf.mxu0
      %10254 = vmatprep.mubr.bf16.mxu0 0
      %10255 = vmatmul.mubr.bf16.gmra.mxu0 %v10167
      %v10256 = vpop.f32.mrf.mxu0
      %v10257 = vadd.f32 0.0, %v10256
      %v10258 = vpop.f32.mrf.mxu0
      %v10259 = vpop.f32.mrf.mxu0
      %v10260 = vadd.f32 0.0, %v10259
      %v10261 = vpop.f32.mrf.mxu0
      %10262 = vmatprep.mubr.bf16.mxu0 0
      %10263 = vmatmul.mubr.bf16.gmra.mxu0 %v10170
      %v10264 = vpop.f32.mrf.mxu0
      %v10265 = vadd.f32 0.0, %v10264
      %v10266 = vpop.f32.mrf.mxu0
      %v10267 = vpop.f32.mrf.mxu0
      %v10268 = vadd.f32 0.0, %v10267
      %v10269 = vpop.f32.mrf.mxu0
      %10270 = vmatprep.mubr.bf16.mxu0 0
      %10271 = vmatmul.mubr.bf16.gmra.mxu0 %v10173
      %v10272 = vpop.f32.mrf.mxu0
      %v10273 = vadd.f32 0.0, %v10272
      %v10274 = vpop.f32.mrf.mxu0
      %v10275 = vpop.f32.mrf.mxu0
      %v10276 = vadd.f32 0.0, %v10275
      %v10277 = vpop.f32.mrf.mxu0
      %10278 = vmatprep.mubr.bf16.mxu0 0
      %10279 = vmatmul.mubr.bf16.gmra.mxu0 %v10176
      %v10280 = vpop.f32.mrf.mxu0
      %v10281 = vadd.f32 0.0, %v10280
      %v10282 = vpop.f32.mrf.mxu0
      %v10283 = vpop.f32.mrf.mxu0
      %v10284 = vadd.f32 0.0, %v10283
      %v10285 = vpop.f32.mrf.mxu0
      %10286 = vmatprep.mubr.bf16.mxu0 0
      %10287 = vmatmul.mubr.bf16.gmra.mxu0 %v10179
      %v10288 = vpop.f32.mrf.mxu0
      %v10289 = vadd.f32 0.0, %v10288
      %v10290 = vpop.f32.mrf.mxu0
      %v10291 = vpop.f32.mrf.mxu0
      %v10292 = vadd.f32 0.0, %v10291
      %v10293 = vpop.f32.mrf.mxu0
      %10294 = vmatprep.mubr.bf16.mxu0 0
      %10295 = vmatmul.mubr.bf16.gmra.mxu0 %v10182
      %v10296 = vpop.f32.mrf.mxu0
      %v10297 = vadd.f32 0.0, %v10296
      %v10298 = vpop.f32.mrf.mxu0
      %v10299 = vpop.f32.mrf.mxu0
      %v10300 = vadd.f32 0.0, %v10299
      %v10301 = vpop.f32.mrf.mxu0
      %10302 = vmatprep.mubr.bf16.mxu0 0
      %10303 = vmatmul.mubr.bf16.gmra.mxu0 %v10185
      %v10304 = vpop.f32.mrf.mxu0
      %v10305 = vadd.f32 0.0, %v10304
      %v10306 = vpop.f32.mrf.mxu0
      %v10307 = vpop.f32.mrf.mxu0
      %v10308 = vadd.f32 0.0, %v10307
      %v10309 = vpop.f32.mrf.mxu0
      %10310 = vmatprep.mubr.bf16.mxu0 0
      %10311 = vmatmul.mubr.bf16.gmra.mxu0 %v10188
      %v10312 = vpop.f32.mrf.mxu0
      %v10313 = vadd.f32 0.0, %v10312
      %v10314 = vpop.f32.mrf.mxu0
      %v10315 = vpop.f32.mrf.mxu0
      %v10316 = vadd.f32 0.0, %v10315
      %v10317 = vpop.f32.mrf.mxu0
      %10318 = vmatprep.mubr.bf16.mxu0 0
      %10319 = vmatmul.mubr.bf16.gmra.mxu0 %v10191
      %v10320 = vpop.f32.mrf.mxu0
      %v10321 = vadd.f32 0.0, %v10320
      %v10322 = vpop.f32.mrf.mxu0
      %v10323 = vpop.f32.mrf.mxu0
      %v10324 = vadd.f32 0.0, %v10323
      %v10325 = vpop.f32.mrf.mxu0
      %10326 = vmatprep.mubr.bf16.mxu0 0
      %10327 = vmatmul.mubr.bf16.gmra.mxu0 %v10194
      %v10328 = vpop.f32.mrf.mxu0
      %v10329 = vadd.f32 0.0, %v10328
      %v10330 = vpop.f32.mrf.mxu0
      %v10331 = vpop.f32.mrf.mxu0
      %v10332 = vadd.f32 0.0, %v10331
      %v10333 = vpop.f32.mrf.mxu0
      %10334 = vmatprep.mubr.bf16.mxu0 0
      %10335 = vmatmul.mubr.bf16.gmra.mxu0 %v10197
      %v10336 = vpop.f32.mrf.mxu0
      %v10337 = vadd.f32 0.0, %v10336
      %v10338 = vpop.f32.mrf.mxu0
      %v10339 = vpop.f32.mrf.mxu0
      %v10340 = vadd.f32 0.0, %v10339
      %v10341 = vpop.f32.mrf.mxu0
      %10342 = vmatprep.mubr.bf16.mxu0 0
      %10343 = vmatmul.mubr.bf16.gmra.mxu0 %v10200
      %v10344 = vpop.f32.mrf.mxu0
      %v10345 = vadd.f32 0.0, %v10344
      %v10346 = vpop.f32.mrf.mxu0
      %v10347 = vpop.f32.mrf.mxu0
      %v10348 = vadd.f32 0.0, %v10347
      %v10349 = vpop.f32.mrf.mxu0
      %10350 = vmatprep.mubr.bf16.mxu0 0
      %10351 = vmatmul.mubr.bf16.gmra.mxu0 %v10203
      %v10352 = vpop.f32.mrf.mxu0
      %v10353 = vadd.f32 0.0, %v10352
      %v10354 = vpop.f32.mrf.mxu0
      %v10355 = vpop.f32.mrf.mxu0
      %v10356 = vadd.f32 0.0, %v10355
      %v10357 = vpop.f32.mrf.mxu0
      %10358 = vmatprep.mubr.bf16.mxu0 0
      %10359 = vmatmul.mubr.bf16.gmra.mxu0 %v10206
      %v10360 = vpop.f32.mrf.mxu0
      %v10361 = vadd.f32 0.0, %v10360
      %v10362 = vpop.f32.mrf.mxu0
      %v10363 = vpop.f32.mrf.mxu0
      %v10364 = vadd.f32 0.0, %v10363
      %v10365 = vpop.f32.mrf.mxu0
      %10366 = vmatprep.mubr.bf16.mxu0 0
      %10367 = vmatmul.mubr.bf16.gmra.mxu0 %v10209
      %v10368 = vpop.f32.mrf.mxu0
      %v10369 = vadd.f32 0.0, %v10368
      %v10370 = vpop.f32.mrf.mxu0
      %v10371 = vpop.f32.mrf.mxu0
      %v10372 = vadd.f32 0.0, %v10371
      %v10373 = vpop.f32.mrf.mxu0
      %10374 = vdwg.mxu0
      %v10407 = vunpack.c.l.b16 %v10003
      %v10408 = vunpack.c.l.b16 %v10004
      %v10409 = vunpack.c.l.b16 %v10005
      %v10410 = vunpack.c.l.b16 %v10006
      %v10411 = vunpack.c.l.b16 %v10007
      %v10412 = vunpack.c.l.b16 %v10008
      %v10413 = vunpack.c.l.b16 %v10009
      %v10414 = vunpack.c.l.b16 %v10010
      %v10415 = vunpack.c.l.b16 %v10011
      %v10416 = vunpack.c.l.b16 %v10012
      %v10417 = vunpack.c.l.b16 %v10013
      %v10418 = vunpack.c.l.b16 %v10014
      %v10419 = vunpack.c.l.b16 %v10015
      %v10420 = vunpack.c.l.b16 %v10016
      %v10421 = vunpack.c.l.b16 %v10017
      %v10422 = vunpack.c.l.b16 %v10018
      %v10423 = vunpack.c.l.b16 %v10019
      %v10424 = vunpack.c.l.b16 %v10020
      %v10425 = vunpack.c.l.b16 %v10021
      %v10426 = vunpack.c.l.b16 %v10022
      %v10427 = vunpack.c.l.b16 %v10023
      %v10428 = vunpack.c.l.b16 %v10024
      %v10429 = vunpack.c.l.b16 %v10025
      %v10430 = vunpack.c.l.b16 %v10026
      %v10431 = vunpack.c.l.b16 %v10027
      %v10432 = vunpack.c.l.b16 %v10028
      %v10433 = vunpack.c.l.b16 %v10029
      %v10434 = vunpack.c.l.b16 %v10030
      %v10435 = vunpack.c.l.b16 %v10031
      %v10436 = vunpack.c.l.b16 %v10032
      %v10437 = vunpack.c.l.b16 %v10033
      %v10438 = vunpack.c.l.b16 %v10034
      %v10439 = vpack.c.b16 %v10408, %v10407
      %v10440 = vpack.c.b16 %v10410, %v10409
      %v10441 = vpack.c.b16 %v10412, %v10411
      %v10442 = vpack.c.b16 %v10414, %v10413
      %v10443 = vpack.c.b16 %v10416, %v10415
      %v10444 = vpack.c.b16 %v10418, %v10417
      %v10445 = vpack.c.b16 %v10420, %v10419
      %v10446 = vpack.c.b16 %v10422, %v10421
      %v10447 = vpack.c.b16 %v10424, %v10423
      %v10448 = vpack.c.b16 %v10426, %v10425
      %v10449 = vpack.c.b16 %v10428, %v10427
      %v10450 = vpack.c.b16 %v10430, %v10429
      %v10451 = vpack.c.b16 %v10432, %v10431
      %v10452 = vpack.c.b16 %v10434, %v10433
      %v10453 = vpack.c.b16 %v10436, %v10435
      %v10454 = vpack.c.b16 %v10438, %v10437
      %v10458 = vunpack.c.l.b16 %v10035
      %v10459 = vunpack.c.l.b16 %v10036
      %v10460 = vunpack.c.l.b16 %v10037
      %v10461 = vpack.c.b16 %v10459, %v10458
      %v10462 = vpack.c.b16 %v10460, %v10460
      %v10465 = vsel %vm7632, %v10439, 0
      %v10468 = vsel %vm7632, %v10440, 0
      %v10471 = vsel %vm7632, %v10441, 0
      %v10474 = vsel %vm7632, %v10442, 0
      %v10477 = vsel %vm7632, %v10443, 0
      %v10480 = vsel %vm7632, %v10444, 0
      %v10483 = vsel %vm7632, %v10445, 0
      %v10486 = vsel %vm7632, %v10446, 0
      %v10489 = vsel %vm7632, %v10447, 0
      %v10492 = vsel %vm7632, %v10448, 0
      %v10495 = vsel %vm7632, %v10449, 0
      %v10498 = vsel %vm7632, %v10450, 0
      %v10501 = vsel %vm7632, %v10451, 0
      %v10504 = vsel %vm7632, %v10452, 0
      %v10507 = vsel %vm7632, %v10453, 0
      %v10510 = vsel %vm7632, %v10454, 0
      %v10513 = vsel %vm7681, %v10462, 0
      %10515 = vmatprep.subr.bf16.mxu0 0
      %10516 = vmatpush1.bf16.msra.mxu0 0
      %10517 = vmatprep.subr.bf16.mxu0 0
      %10518 = vmatpush1.bf16.msra.mxu0 0
      %10519 = vmatprep.subr.bf16.mxu0 0
      %10520 = vmatpush1.bf16.msra.mxu0 0
      %10521 = vmatprep.subr.bf16.mxu0 0
      %10522 = vmatpush1.bf16.msra.mxu0 0
      %10523 = vmatprep.subr.bf16.mxu0 0
      %10524 = vmatpush1.bf16.msra.mxu0 0
      %10525 = vmatprep.subr.bf16.mxu0 0
      %10526 = vmatpush1.bf16.msra.mxu0 0
      %10527 = vmatprep.subr.bf16.mxu0 0
      %10528 = vmatpush1.bf16.msra.mxu0 %v10513
      %10529 = vmatprep.subr.bf16.mxu0 0
      %10530 = vmatpush1.bf16.msra.mxu0 %v10461
      %10531 = vmatprep.subr.bf16.mxu0 0
      %10532 = vmatpush2.bf16.msra.mxu0 0
      %10533 = vmatprep.subr.bf16.mxu0 0
      %10534 = vmatpush2.bf16.msra.mxu0 0
      %10535 = vmatprep.subr.bf16.mxu0 0
      %10536 = vmatpush2.bf16.msra.mxu0 0
      %10537 = vmatprep.subr.bf16.mxu0 0
      %10538 = vmatpush2.bf16.msra.mxu0 0
      %10539 = vmatprep.subr.bf16.mxu0 0
      %10540 = vmatpush2.bf16.msra.mxu0 0
      %10541 = vmatprep.subr.bf16.mxu0 0
      %10542 = vmatpush2.bf16.msra.mxu0 0
      %10543 = vmatprep.subr.bf16.mxu0 0
      %10544 = vmatpush2.bf16.msra.mxu0 0
      %10545 = vmatprep.subr.bf16.mxu0 0
      %10546 = vmatpush2.bf16.msra.mxu0 0
      %10547 = vmatprep.mubr.bf16.mxu0 0
      %10548 = vmatmul.mubr.bf16.gmra.mxu0 %v10465
      %v10549 = vpop.f32.mrf.mxu0
      %v10550 = vadd.f32 %v10249, %v10549
      %v10551 = vpop.f32.mrf.mxu0
      %v10552 = vpop.f32.mrf.mxu0
      %v10553 = vadd.f32 %v10252, %v10552
      %v10554 = vpop.f32.mrf.mxu0
      %10555 = vmatprep.mubr.bf16.mxu0 0
      %10556 = vmatmul.mubr.bf16.gmra.mxu0 %v10468
      %v10557 = vpop.f32.mrf.mxu0
      %v10558 = vadd.f32 %v10257, %v10557
      %v10559 = vpop.f32.mrf.mxu0
      %v10560 = vpop.f32.mrf.mxu0
      %v10561 = vadd.f32 %v10260, %v10560
      %v10562 = vpop.f32.mrf.mxu0
      %10563 = vmatprep.mubr.bf16.mxu0 0
      %10564 = vmatmul.mubr.bf16.gmra.mxu0 %v10471
      %v10565 = vpop.f32.mrf.mxu0
      %v10566 = vadd.f32 %v10265, %v10565
      %v10567 = vpop.f32.mrf.mxu0
      %v10568 = vpop.f32.mrf.mxu0
      %v10569 = vadd.f32 %v10268, %v10568
      %v10570 = vpop.f32.mrf.mxu0
      %10571 = vmatprep.mubr.bf16.mxu0 0
      %10572 = vmatmul.mubr.bf16.gmra.mxu0 %v10474
      %v10573 = vpop.f32.mrf.mxu0
      %v10574 = vadd.f32 %v10273, %v10573
      %v10575 = vpop.f32.mrf.mxu0
      %v10576 = vpop.f32.mrf.mxu0
      %v10577 = vadd.f32 %v10276, %v10576
      %v10578 = vpop.f32.mrf.mxu0
      %10579 = vmatprep.mubr.bf16.mxu0 0
      %10580 = vmatmul.mubr.bf16.gmra.mxu0 %v10477
      %v10581 = vpop.f32.mrf.mxu0
      %v10582 = vadd.f32 %v10281, %v10581
      %v10583 = vpop.f32.mrf.mxu0
      %v10584 = vpop.f32.mrf.mxu0
      %v10585 = vadd.f32 %v10284, %v10584
      %v10586 = vpop.f32.mrf.mxu0
      %10587 = vmatprep.mubr.bf16.mxu0 0
      %10588 = vmatmul.mubr.bf16.gmra.mxu0 %v10480
      %v10589 = vpop.f32.mrf.mxu0
      %v10590 = vadd.f32 %v10289, %v10589
      %v10591 = vpop.f32.mrf.mxu0
      %v10592 = vpop.f32.mrf.mxu0
      %v10593 = vadd.f32 %v10292, %v10592
      %v10594 = vpop.f32.mrf.mxu0
      %10595 = vmatprep.mubr.bf16.mxu0 0
      %10596 = vmatmul.mubr.bf16.gmra.mxu0 %v10483
      %v10597 = vpop.f32.mrf.mxu0
      %v10598 = vadd.f32 %v10297, %v10597
      %v10599 = vpop.f32.mrf.mxu0
      %v10600 = vpop.f32.mrf.mxu0
      %v10601 = vadd.f32 %v10300, %v10600
      %v10602 = vpop.f32.mrf.mxu0
      %10603 = vmatprep.mubr.bf16.mxu0 0
      %10604 = vmatmul.mubr.bf16.gmra.mxu0 %v10486
      %v10605 = vpop.f32.mrf.mxu0
      %v10606 = vadd.f32 %v10305, %v10605
      %v10607 = vpop.f32.mrf.mxu0
      %v10608 = vpop.f32.mrf.mxu0
      %v10609 = vadd.f32 %v10308, %v10608
      %v10610 = vpop.f32.mrf.mxu0
      %10611 = vmatprep.mubr.bf16.mxu0 0
      %10612 = vmatmul.mubr.bf16.gmra.mxu0 %v10489
      %v10613 = vpop.f32.mrf.mxu0
      %v10614 = vadd.f32 %v10313, %v10613
      %v10615 = vpop.f32.mrf.mxu0
      %v10616 = vpop.f32.mrf.mxu0
      %v10617 = vadd.f32 %v10316, %v10616
      %v10618 = vpop.f32.mrf.mxu0
      %10619 = vmatprep.mubr.bf16.mxu0 0
      %10620 = vmatmul.mubr.bf16.gmra.mxu0 %v10492
      %v10621 = vpop.f32.mrf.mxu0
      %v10622 = vadd.f32 %v10321, %v10621
      %v10623 = vpop.f32.mrf.mxu0
      %v10624 = vpop.f32.mrf.mxu0
      %v10625 = vadd.f32 %v10324, %v10624
      %v10626 = vpop.f32.mrf.mxu0
      %10627 = vmatprep.mubr.bf16.mxu0 0
      %10628 = vmatmul.mubr.bf16.gmra.mxu0 %v10495
      %v10629 = vpop.f32.mrf.mxu0
      %v10630 = vadd.f32 %v10329, %v10629
      %v10631 = vpop.f32.mrf.mxu0
      %v10632 = vpop.f32.mrf.mxu0
      %v10633 = vadd.f32 %v10332, %v10632
      %v10634 = vpop.f32.mrf.mxu0
      %10635 = vmatprep.mubr.bf16.mxu0 0
      %10636 = vmatmul.mubr.bf16.gmra.mxu0 %v10498
      %v10637 = vpop.f32.mrf.mxu0
      %v10638 = vadd.f32 %v10337, %v10637
      %v10639 = vpop.f32.mrf.mxu0
      %v10640 = vpop.f32.mrf.mxu0
      %v10641 = vadd.f32 %v10340, %v10640
      %v10642 = vpop.f32.mrf.mxu0
      %10643 = vmatprep.mubr.bf16.mxu0 0
      %10644 = vmatmul.mubr.bf16.gmra.mxu0 %v10501
      %v10645 = vpop.f32.mrf.mxu0
      %v10646 = vadd.f32 %v10345, %v10645
      %v10647 = vpop.f32.mrf.mxu0
      %v10648 = vpop.f32.mrf.mxu0
      %v10649 = vadd.f32 %v10348, %v10648
      %v10650 = vpop.f32.mrf.mxu0
      %10651 = vmatprep.mubr.bf16.mxu0 0
      %10652 = vmatmul.mubr.bf16.gmra.mxu0 %v10504
      %v10653 = vpop.f32.mrf.mxu0
      %v10654 = vadd.f32 %v10353, %v10653
      %v10655 = vpop.f32.mrf.mxu0
      %v10656 = vpop.f32.mrf.mxu0
      %v10657 = vadd.f32 %v10356, %v10656
      %v10658 = vpop.f32.mrf.mxu0
      %10659 = vmatprep.mubr.bf16.mxu0 0
      %10660 = vmatmul.mubr.bf16.gmra.mxu0 %v10507
      %v10661 = vpop.f32.mrf.mxu0
      %v10662 = vadd.f32 %v10361, %v10661
      %v10663 = vpop.f32.mrf.mxu0
      %v10664 = vpop.f32.mrf.mxu0
      %v10665 = vadd.f32 %v10364, %v10664
      %v10666 = vpop.f32.mrf.mxu0
      %10667 = vmatprep.mubr.bf16.mxu0 0
      %10668 = vmatmul.mubr.bf16.gmra.mxu0 %v10510
      %v10669 = vpop.f32.mrf.mxu0
      %v10670 = vadd.f32 %v10369, %v10669
      %v10671 = vpop.f32.mrf.mxu0
      %v10672 = vpop.f32.mrf.mxu0
      %v10673 = vadd.f32 %v10372, %v10672
      %v10674 = vpop.f32.mrf.mxu0
      %10675 = vdwg.mxu0
      %v10676 = vld [vmem:[%s8147] sm:$0xf]
      %v10677 = vld [vmem:[%s8147 + $0x4] sm:$0xf]
      %v10678 = vld [vmem:[%s8147 + $0x8] sm:$0xf]
      %v10679 = vld [vmem:[%s8147 + $0xc] sm:$0xf]
      %v10680 = vld [vmem:[%s8147 + $0x10] sm:$0xf]
      %v10681 = vld [vmem:[%s8147 + $0x14] sm:$0xf]
      %v10682 = vld [vmem:[%s8147 + $0x18] sm:$0xf]
      %v10683 = vld [vmem:[%s8147 + $0x1c] sm:$0xf]
      %v10684 = vld [vmem:[%s8147 + $0x20] sm:$0xf]
      %v10685 = vld [vmem:[%s8147 + $0x24] sm:$0xf]
      %v10686 = vld [vmem:[%s8147 + $0x28] sm:$0xf]
      %v10687 = vld [vmem:[%s8147 + $0x2c] sm:$0xf]
      %v10688 = vld [vmem:[%s8147 + $0x30] sm:$0xf]
      %v10689 = vld [vmem:[%s8147 + $0x34] sm:$0xf]
      %v10690 = vld [vmem:[%s8147 + $0x38] sm:$0xf]
      %v10691 = vld [vmem:[%s8147 + $0x3c] sm:$0xf]
      %v10692 = vld [vmem:[%s8147 + $0x40] sm:$0xf]
      %v10693 = vld [vmem:[%s8147 + $0x44] sm:$0xf]
      %v10694 = vld [vmem:[%s8147 + $0x48] sm:$0xf]
      %v10695 = vld [vmem:[%s8147 + $0x4c] sm:$0xf]
      %v10696 = vld [vmem:[%s8147 + $0x50] sm:$0xf]
      %v10697 = vld [vmem:[%s8147 + $0x54] sm:$0xf]
      %v10698 = vld [vmem:[%s8147 + $0x58] sm:$0xf]
      %v10699 = vld [vmem:[%s8147 + $0x5c] sm:$0xf]
      %v10700 = vld [vmem:[%s8147 + $0x60] sm:$0xf]
      %v10701 = vld [vmem:[%s8147 + $0x64] sm:$0xf]
      %v10702 = vld [vmem:[%s8147 + $0x68] sm:$0xf]
      %v10703 = vld [vmem:[%s8147 + $0x6c] sm:$0xf]
      %v10704 = vld [vmem:[%s8147 + $0x70] sm:$0xf]
      %v10705 = vld [vmem:[%s8147 + $0x74] sm:$0xf]
      %v10706 = vld [vmem:[%s8147 + $0x78] sm:$0xf]
      %v10707 = vld [vmem:[%s8147 + $0x7c] sm:$0xf]
      %s10708 = scalar_lea.vmem %s6, 24
      %v10709 = vld [vmem:[%s10708] sm:$0xf]
      %v10710 = vld [vmem:[%s10708 + $0x4] sm:$0xf]
      %v10711 = vld [vmem:[%s10708 + $0x8] sm:$0xf]
      %v10744 = vunpack.c.l.b16 %v10676
      %v10745 = vunpack.c.l.b16 %v10677
      %v10746 = vunpack.c.l.b16 %v10678
      %v10747 = vunpack.c.l.b16 %v10679
      %v10748 = vunpack.c.l.b16 %v10680
      %v10749 = vunpack.c.l.b16 %v10681
      %v10750 = vunpack.c.l.b16 %v10682
      %v10751 = vunpack.c.l.b16 %v10683
      %v10752 = vunpack.c.l.b16 %v10684
      %v10753 = vunpack.c.l.b16 %v10685
      %v10754 = vunpack.c.l.b16 %v10686
      %v10755 = vunpack.c.l.b16 %v10687
      %v10756 = vunpack.c.l.b16 %v10688
      %v10757 = vunpack.c.l.b16 %v10689
      %v10758 = vunpack.c.l.b16 %v10690
      %v10759 = vunpack.c.l.b16 %v10691
      %v10760 = vunpack.c.l.b16 %v10692
      %v10761 = vunpack.c.l.b16 %v10693
      %v10762 = vunpack.c.l.b16 %v10694
      %v10763 = vunpack.c.l.b16 %v10695
      %v10764 = vunpack.c.l.b16 %v10696
      %v10765 = vunpack.c.l.b16 %v10697
      %v10766 = vunpack.c.l.b16 %v10698
      %v10767 = vunpack.c.l.b16 %v10699
      %v10768 = vunpack.c.l.b16 %v10700
      %v10769 = vunpack.c.l.b16 %v10701
      %v10770 = vunpack.c.l.b16 %v10702
      %v10771 = vunpack.c.l.b16 %v10703
      %v10772 = vunpack.c.l.b16 %v10704
      %v10773 = vunpack.c.l.b16 %v10705
      %v10774 = vunpack.c.l.b16 %v10706
      %v10775 = vunpack.c.l.b16 %v10707
      %v10776 = vpack.c.b16 %v10745, %v10744
      %v10777 = vpack.c.b16 %v10747, %v10746
      %v10778 = vpack.c.b16 %v10749, %v10748
      %v10779 = vpack.c.b16 %v10751, %v10750
      %v10780 = vpack.c.b16 %v10753, %v10752
      %v10781 = vpack.c.b16 %v10755, %v10754
      %v10782 = vpack.c.b16 %v10757, %v10756
      %v10783 = vpack.c.b16 %v10759, %v10758
      %v10784 = vpack.c.b16 %v10761, %v10760
      %v10785 = vpack.c.b16 %v10763, %v10762
      %v10786 = vpack.c.b16 %v10765, %v10764
      %v10787 = vpack.c.b16 %v10767, %v10766
      %v10788 = vpack.c.b16 %v10769, %v10768
      %v10789 = vpack.c.b16 %v10771, %v10770
      %v10790 = vpack.c.b16 %v10773, %v10772
      %v10791 = vpack.c.b16 %v10775, %v10774
      %v10795 = vunpack.c.l.b16 %v10709
      %v10796 = vunpack.c.l.b16 %v10710
      %v10797 = vunpack.c.l.b16 %v10711
      %v10798 = vpack.c.b16 %v10796, %v10795
      %v10799 = vpack.c.b16 %v10797, %v10797
      %v10802 = vsel %vm7632, %v10776, 0
      %v10805 = vsel %vm7632, %v10777, 0
      %v10808 = vsel %vm7632, %v10778, 0
      %v10811 = vsel %vm7632, %v10779, 0
      %v10814 = vsel %vm7632, %v10780, 0
      %v10817 = vsel %vm7632, %v10781, 0
      %v10820 = vsel %vm7632, %v10782, 0
      %v10823 = vsel %vm7632, %v10783, 0
      %v10826 = vsel %vm7632, %v10784, 0
      %v10829 = vsel %vm7632, %v10785, 0
      %v10832 = vsel %vm7632, %v10786, 0
      %v10835 = vsel %vm7632, %v10787, 0
      %v10838 = vsel %vm7632, %v10788, 0
      %v10841 = vsel %vm7632, %v10789, 0
      %v10844 = vsel %vm7632, %v10790, 0
      %v10847 = vsel %vm7632, %v10791, 0
      %v10850 = vsel %vm7681, %v10799, 0
      %10852 = vmatprep.subr.bf16.mxu0 0
      %10853 = vmatpush1.bf16.msra.mxu0 0
      %10854 = vmatprep.subr.bf16.mxu0 0
      %10855 = vmatpush1.bf16.msra.mxu0 0
      %10856 = vmatprep.subr.bf16.mxu0 0
      %10857 = vmatpush1.bf16.msra.mxu0 0
      %10858 = vmatprep.subr.bf16.mxu0 0
      %10859 = vmatpush1.bf16.msra.mxu0 0
      %10860 = vmatprep.subr.bf16.mxu0 0
      %10861 = vmatpush1.bf16.msra.mxu0 0
      %10862 = vmatprep.subr.bf16.mxu0 0
      %10863 = vmatpush1.bf16.msra.mxu0 0
      %10864 = vmatprep.subr.bf16.mxu0 0
      %10865 = vmatpush1.bf16.msra.mxu0 %v10850
      %10866 = vmatprep.subr.bf16.mxu0 0
      %10867 = vmatpush1.bf16.msra.mxu0 %v10798
      %10868 = vmatprep.subr.bf16.mxu0 0
      %10869 = vmatpush2.bf16.msra.mxu0 0
      %10870 = vmatprep.subr.bf16.mxu0 0
      %10871 = vmatpush2.bf16.msra.mxu0 0
      %10872 = vmatprep.subr.bf16.mxu0 0
      %10873 = vmatpush2.bf16.msra.mxu0 0
      %10874 = vmatprep.subr.bf16.mxu0 0
      %10875 = vmatpush2.bf16.msra.mxu0 0
      %10876 = vmatprep.subr.bf16.mxu0 0
      %10877 = vmatpush2.bf16.msra.mxu0 0
      %10878 = vmatprep.subr.bf16.mxu0 0
      %10879 = vmatpush2.bf16.msra.mxu0 0
      %10880 = vmatprep.subr.bf16.mxu0 0
      %10881 = vmatpush2.bf16.msra.mxu0 0
      %10882 = vmatprep.subr.bf16.mxu0 0
      %10883 = vmatpush2.bf16.msra.mxu0 0
      %10884 = vmatprep.mubr.bf16.mxu0 0
      %10885 = vmatmul.mubr.bf16.gmra.mxu0 %v10802
      %v10886 = vpop.f32.mrf.mxu0
      %v10887 = vadd.f32 0.0, %v10886
      %v10888 = vpop.f32.mrf.mxu0
      %v10889 = vpop.f32.mrf.mxu0
      %v10890 = vadd.f32 0.0, %v10889
      %v10891 = vpop.f32.mrf.mxu0
      %10892 = vmatprep.mubr.bf16.mxu0 0
      %10893 = vmatmul.mubr.bf16.gmra.mxu0 %v10805
      %v10894 = vpop.f32.mrf.mxu0
      %v10895 = vadd.f32 0.0, %v10894
      %v10896 = vpop.f32.mrf.mxu0
      %v10897 = vpop.f32.mrf.mxu0
      %v10898 = vadd.f32 0.0, %v10897
      %v10899 = vpop.f32.mrf.mxu0
      %10900 = vmatprep.mubr.bf16.mxu0 0
      %10901 = vmatmul.mubr.bf16.gmra.mxu0 %v10808
      %v10902 = vpop.f32.mrf.mxu0
      %v10903 = vadd.f32 0.0, %v10902
      %v10904 = vpop.f32.mrf.mxu0
      %v10905 = vpop.f32.mrf.mxu0
      %v10906 = vadd.f32 0.0, %v10905
      %v10907 = vpop.f32.mrf.mxu0
      %10908 = vmatprep.mubr.bf16.mxu0 0
      %10909 = vmatmul.mubr.bf16.gmra.mxu0 %v10811
      %v10910 = vpop.f32.mrf.mxu0
      %v10911 = vadd.f32 0.0, %v10910
      %v10912 = vpop.f32.mrf.mxu0
      %v10913 = vpop.f32.mrf.mxu0
      %v10914 = vadd.f32 0.0, %v10913
      %v10915 = vpop.f32.mrf.mxu0
      %10916 = vmatprep.mubr.bf16.mxu0 0
      %10917 = vmatmul.mubr.bf16.gmra.mxu0 %v10814
      %v10918 = vpop.f32.mrf.mxu0
      %v10919 = vadd.f32 0.0, %v10918
      %v10920 = vpop.f32.mrf.mxu0
      %v10921 = vpop.f32.mrf.mxu0
      %v10922 = vadd.f32 0.0, %v10921
      %v10923 = vpop.f32.mrf.mxu0
      %10924 = vmatprep.mubr.bf16.mxu0 0
      %10925 = vmatmul.mubr.bf16.gmra.mxu0 %v10817
      %v10926 = vpop.f32.mrf.mxu0
      %v10927 = vadd.f32 0.0, %v10926
      %v10928 = vpop.f32.mrf.mxu0
      %v10929 = vpop.f32.mrf.mxu0
      %v10930 = vadd.f32 0.0, %v10929
      %v10931 = vpop.f32.mrf.mxu0
      %10932 = vmatprep.mubr.bf16.mxu0 0
      %10933 = vmatmul.mubr.bf16.gmra.mxu0 %v10820
      %v10934 = vpop.f32.mrf.mxu0
      %v10935 = vadd.f32 0.0, %v10934
      %v10936 = vpop.f32.mrf.mxu0
      %v10937 = vpop.f32.mrf.mxu0
      %v10938 = vadd.f32 0.0, %v10937
      %v10939 = vpop.f32.mrf.mxu0
      %10940 = vmatprep.mubr.bf16.mxu0 0
      %10941 = vmatmul.mubr.bf16.gmra.mxu0 %v10823
      %v10942 = vpop.f32.mrf.mxu0
      %v10943 = vadd.f32 0.0, %v10942
      %v10944 = vpop.f32.mrf.mxu0
      %v10945 = vpop.f32.mrf.mxu0
      %v10946 = vadd.f32 0.0, %v10945
      %v10947 = vpop.f32.mrf.mxu0
      %10948 = vmatprep.mubr.bf16.mxu0 0
      %10949 = vmatmul.mubr.bf16.gmra.mxu0 %v10826
      %v10950 = vpop.f32.mrf.mxu0
      %v10951 = vadd.f32 0.0, %v10950
      %v10952 = vpop.f32.mrf.mxu0
      %v10953 = vpop.f32.mrf.mxu0
      %v10954 = vadd.f32 0.0, %v10953
      %v10955 = vpop.f32.mrf.mxu0
      %10956 = vmatprep.mubr.bf16.mxu0 0
      %10957 = vmatmul.mubr.bf16.gmra.mxu0 %v10829
      %v10958 = vpop.f32.mrf.mxu0
      %v10959 = vadd.f32 0.0, %v10958
      %v10960 = vpop.f32.mrf.mxu0
      %v10961 = vpop.f32.mrf.mxu0
      %v10962 = vadd.f32 0.0, %v10961
      %v10963 = vpop.f32.mrf.mxu0
      %10964 = vmatprep.mubr.bf16.mxu0 0
      %10965 = vmatmul.mubr.bf16.gmra.mxu0 %v10832
      %v10966 = vpop.f32.mrf.mxu0
      %v10967 = vadd.f32 0.0, %v10966
      %v10968 = vpop.f32.mrf.mxu0
      %v10969 = vpop.f32.mrf.mxu0
      %v10970 = vadd.f32 0.0, %v10969
      %v10971 = vpop.f32.mrf.mxu0
      %10972 = vmatprep.mubr.bf16.mxu0 0
      %10973 = vmatmul.mubr.bf16.gmra.mxu0 %v10835
      %v10974 = vpop.f32.mrf.mxu0
      %v10975 = vadd.f32 0.0, %v10974
      %v10976 = vpop.f32.mrf.mxu0
      %v10977 = vpop.f32.mrf.mxu0
      %v10978 = vadd.f32 0.0, %v10977
      %v10979 = vpop.f32.mrf.mxu0
      %10980 = vmatprep.mubr.bf16.mxu0 0
      %10981 = vmatmul.mubr.bf16.gmra.mxu0 %v10838
      %v10982 = vpop.f32.mrf.mxu0
      %v10983 = vadd.f32 0.0, %v10982
      %v10984 = vpop.f32.mrf.mxu0
      %v10985 = vpop.f32.mrf.mxu0
      %v10986 = vadd.f32 0.0, %v10985
      %v10987 = vpop.f32.mrf.mxu0
      %10988 = vmatprep.mubr.bf16.mxu0 0
      %10989 = vmatmul.mubr.bf16.gmra.mxu0 %v10841
      %v10990 = vpop.f32.mrf.mxu0
      %v10991 = vadd.f32 0.0, %v10990
      %v10992 = vpop.f32.mrf.mxu0
      %v10993 = vpop.f32.mrf.mxu0
      %v10994 = vadd.f32 0.0, %v10993
      %v10995 = vpop.f32.mrf.mxu0
      %10996 = vmatprep.mubr.bf16.mxu0 0
      %10997 = vmatmul.mubr.bf16.gmra.mxu0 %v10844
      %v10998 = vpop.f32.mrf.mxu0
      %v10999 = vadd.f32 0.0, %v10998
      %v11000 = vpop.f32.mrf.mxu0
      %v11001 = vpop.f32.mrf.mxu0
      %v11002 = vadd.f32 0.0, %v11001
      %v11003 = vpop.f32.mrf.mxu0
      %11004 = vmatprep.mubr.bf16.mxu0 0
      %11005 = vmatmul.mubr.bf16.gmra.mxu0 %v10847
      %v11006 = vpop.f32.mrf.mxu0
      %v11007 = vadd.f32 0.0, %v11006
      %v11008 = vpop.f32.mrf.mxu0
      %v11009 = vpop.f32.mrf.mxu0
      %v11010 = vadd.f32 0.0, %v11009
      %v11011 = vpop.f32.mrf.mxu0
      %11012 = vdwg.mxu0
      %v11013 = vadd.f32 %v10550, %v10887
      %v11014 = vadd.f32 %v10553, %v10890
      %v11015 = vadd.f32 %v10558, %v10895
      %v11016 = vadd.f32 %v10561, %v10898
      %v11017 = vadd.f32 %v10566, %v10903
      %v11018 = vadd.f32 %v10569, %v10906
      %v11019 = vadd.f32 %v10574, %v10911
      %v11020 = vadd.f32 %v10577, %v10914
      %v11021 = vadd.f32 %v10582, %v10919
      %v11022 = vadd.f32 %v10585, %v10922
      %v11023 = vadd.f32 %v10590, %v10927
      %v11024 = vadd.f32 %v10593, %v10930
      %v11025 = vadd.f32 %v10598, %v10935
      %v11026 = vadd.f32 %v10601, %v10938
      %v11027 = vadd.f32 %v10606, %v10943
      %v11028 = vadd.f32 %v10609, %v10946
      %v11029 = vadd.f32 %v10614, %v10951
      %v11030 = vadd.f32 %v10617, %v10954
      %v11031 = vadd.f32 %v10622, %v10959
      %v11032 = vadd.f32 %v10625, %v10962
      %v11033 = vadd.f32 %v10630, %v10967
      %v11034 = vadd.f32 %v10633, %v10970
      %v11035 = vadd.f32 %v10638, %v10975
      %v11036 = vadd.f32 %v10641, %v10978
      %v11037 = vadd.f32 %v10646, %v10983
      %v11038 = vadd.f32 %v10649, %v10986
      %v11039 = vadd.f32 %v10654, %v10991
      %v11040 = vadd.f32 %v10657, %v10994
      %v11041 = vadd.f32 %v10662, %v10999
      %v11042 = vadd.f32 %v10665, %v11002
      %v11043 = vadd.f32 %v10670, %v11007
      %v11044 = vadd.f32 %v10673, %v11010
      %s11045 = scalar_lea.vmem %s7, 2
      %v11046 = vld [vmem:[%s11045] sm:$0x1]
      %v11048 = vlaneseq
      %v11049 = vshrl.u32 %v11048, 7
      %v11050 = vsub.s32 0, %v11049
      %v11051 = vrot.slane %v11046, %v11050
      %v11053 = vmul.f32 %v11013, %v11051
      %v11054 = vmul.f32 %v11014, %v11051
      %v11055 = vmul.f32 %v11015, %v11051
      %v11056 = vmul.f32 %v11016, %v11051
      %v11057 = vmul.f32 %v11017, %v11051
      %v11058 = vmul.f32 %v11018, %v11051
      %v11059 = vmul.f32 %v11019, %v11051
      %v11060 = vmul.f32 %v11020, %v11051
      %v11061 = vmul.f32 %v11021, %v11051
      %v11062 = vmul.f32 %v11022, %v11051
      %v11063 = vmul.f32 %v11023, %v11051
      %v11064 = vmul.f32 %v11024, %v11051
      %v11065 = vmul.f32 %v11025, %v11051
      %v11066 = vmul.f32 %v11026, %v11051
      %v11067 = vmul.f32 %v11027, %v11051
      %v11068 = vmul.f32 %v11028, %v11051
      %v11069 = vmul.f32 %v11029, %v11051
      %v11070 = vmul.f32 %v11030, %v11051
      %v11071 = vmul.f32 %v11031, %v11051
      %v11072 = vmul.f32 %v11032, %v11051
      %v11073 = vmul.f32 %v11033, %v11051
      %v11074 = vmul.f32 %v11034, %v11051
      %v11075 = vmul.f32 %v11035, %v11051
      %v11076 = vmul.f32 %v11036, %v11051
      %v11077 = vmul.f32 %v11037, %v11051
      %v11078 = vmul.f32 %v11038, %v11051
      %v11079 = vmul.f32 %v11039, %v11051
      %v11080 = vmul.f32 %v11040, %v11051
      %v11081 = vmul.f32 %v11041, %v11051
      %v11082 = vmul.f32 %v11042, %v11051
      %v11083 = vmul.f32 %v11043, %v11051
      %v11084 = vmul.f32 %v11044, %v11051
      %s11085 = scalar_lea.vmem %s8, 2
      %v11086 = vld [vmem:[%s11085] sm:$0x1]
      %v11088 = vlaneseq
      %v11089 = vshrl.u32 %v11088, 7
      %v11090 = vsub.s32 0, %v11089
      %v11091 = vrot.slane %v11086, %v11090
      %v11093 = vadd.f32 %v11053, %v11091
      %v11094 = vadd.f32 %v11054, %v11091
      %v11095 = vadd.f32 %v11055, %v11091
      %v11096 = vadd.f32 %v11056, %v11091
      %v11097 = vadd.f32 %v11057, %v11091
      %v11098 = vadd.f32 %v11058, %v11091
      %v11099 = vadd.f32 %v11059, %v11091
      %v11100 = vadd.f32 %v11060, %v11091
      %v11101 = vadd.f32 %v11061, %v11091
      %v11102 = vadd.f32 %v11062, %v11091
      %v11103 = vadd.f32 %v11063, %v11091
      %v11104 = vadd.f32 %v11064, %v11091
      %v11105 = vadd.f32 %v11065, %v11091
      %v11106 = vadd.f32 %v11066, %v11091
      %v11107 = vadd.f32 %v11067, %v11091
      %v11108 = vadd.f32 %v11068, %v11091
      %v11109 = vadd.f32 %v11069, %v11091
      %v11110 = vadd.f32 %v11070, %v11091
      %v11111 = vadd.f32 %v11071, %v11091
      %v11112 = vadd.f32 %v11072, %v11091
      %v11113 = vadd.f32 %v11073, %v11091
      %v11114 = vadd.f32 %v11074, %v11091
      %v11115 = vadd.f32 %v11075, %v11091
      %v11116 = vadd.f32 %v11076, %v11091
      %v11117 = vadd.f32 %v11077, %v11091
      %v11118 = vadd.f32 %v11078, %v11091
      %v11119 = vadd.f32 %v11079, %v11091
      %v11120 = vadd.f32 %v11080, %v11091
      %v11121 = vadd.f32 %v11081, %v11091
      %v11122 = vadd.f32 %v11082, %v11091
      %v11123 = vadd.f32 %v11083, %v11091
      %v11124 = vadd.f32 %v11084, %v11091
      %v11125 = vmax.f32 %v11093, 0.0
      %v11126 = vmax.f32 %v11094, 0.0
      %v11127 = vmax.f32 %v11095, 0.0
      %v11128 = vmax.f32 %v11096, 0.0
      %v11129 = vmax.f32 %v11097, 0.0
      %v11130 = vmax.f32 %v11098, 0.0
      %v11131 = vmax.f32 %v11099, 0.0
      %v11132 = vmax.f32 %v11100, 0.0
      %v11133 = vmax.f32 %v11101, 0.0
      %v11134 = vmax.f32 %v11102, 0.0
      %v11135 = vmax.f32 %v11103, 0.0
      %v11136 = vmax.f32 %v11104, 0.0
      %v11137 = vmax.f32 %v11105, 0.0
      %v11138 = vmax.f32 %v11106, 0.0
      %v11139 = vmax.f32 %v11107, 0.0
      %v11140 = vmax.f32 %v11108, 0.0
      %v11141 = vmax.f32 %v11109, 0.0
      %v11142 = vmax.f32 %v11110, 0.0
      %v11143 = vmax.f32 %v11111, 0.0
      %v11144 = vmax.f32 %v11112, 0.0
      %v11145 = vmax.f32 %v11113, 0.0
      %v11146 = vmax.f32 %v11114, 0.0
      %v11147 = vmax.f32 %v11115, 0.0
      %v11148 = vmax.f32 %v11116, 0.0
      %v11149 = vmax.f32 %v11117, 0.0
      %v11150 = vmax.f32 %v11118, 0.0
      %v11151 = vmax.f32 %v11119, 0.0
      %v11152 = vmax.f32 %v11120, 0.0
      %v11153 = vmax.f32 %v11121, 0.0
      %v11154 = vmax.f32 %v11122, 0.0
      %v11155 = vmax.f32 %v11123, 0.0
      %v11156 = vmax.f32 %v11124, 0.0
      %v11173 = vrot.slane %v11127, 7
      %vm11174 = vcmask 1041409
      %v11175 = vsel %vm11174, %v11173, %v11125
      %v11176 = vrot.slane %v11129, 6
      %vm11177 = vcmask 1042434
      %v11178 = vsel %vm11177, %v11176, %v11175
      %v11179 = vrot.slane %v11131, 5
      %vm11180 = vcmask 1043459
      %v11181 = vsel %vm11180, %v11179, %v11178
      %v11182 = vrot.slane %v11133, 4
      %vm11183 = vcmask 1044484
      %v11184 = vsel %vm11183, %v11182, %v11181
      %v11185 = vrot.slane %v11135, 3
      %vm11186 = vcmask 1045509
      %v11187 = vsel %vm11186, %v11185, %v11184
      %v11188 = vrot.slane %v11137, 2
      %vm11189 = vcmask 1046534
      %v11190 = vsel %vm11189, %v11188, %v11187
      %v11191 = vrot.slane %v11139, 1
      %vm11192 = vcmask 1047559
      %v11193 = vsel %vm11192, %v11191, %v11190
      %v11194 = vrot.slane %v11143, 7
      %v11195 = vsel %vm11174, %v11194, %v11141
      %v11196 = vrot.slane %v11145, 6
      %v11197 = vsel %vm11177, %v11196, %v11195
      %v11198 = vrot.slane %v11147, 5
      %v11199 = vsel %vm11180, %v11198, %v11197
      %v11200 = vrot.slane %v11149, 4
      %v11201 = vsel %vm11183, %v11200, %v11199
      %v11202 = vrot.slane %v11151, 3
      %v11203 = vsel %vm11186, %v11202, %v11201
      %v11204 = vrot.slane %v11153, 2
      %v11205 = vsel %vm11189, %v11204, %v11203
      %v11206 = vrot.slane %v11155, 1
      %v11207 = vsel %vm11192, %v11206, %v11205
      %v11210 = vrot.slane %v11125, 1
      %v11211 = vsel %vm11174, %v11127, %v11210
      %v11212 = vrot.slane %v11129, 7
      %v11213 = vsel %vm11177, %v11212, %v11211
      %v11214 = vrot.slane %v11131, 6
      %v11215 = vsel %vm11180, %v11214, %v11213
      %v11216 = vrot.slane %v11133, 5
      %v11217 = vsel %vm11183, %v11216, %v11215
      %v11218 = vrot.slane %v11135, 4
      %v11219 = vsel %vm11186, %v11218, %v11217
      %v11220 = vrot.slane %v11137, 3
      %v11221 = vsel %vm11189, %v11220, %v11219
      %v11222 = vrot.slane %v11139, 2
      %v11223 = vsel %vm11192, %v11222, %v11221
      %v11224 = vrot.slane %v11141, 1
      %v11225 = vsel %vm11174, %v11143, %v11224
      %v11226 = vrot.slane %v11145, 7
      %v11227 = vsel %vm11177, %v11226, %v11225
      %v11228 = vrot.slane %v11147, 6
      %v11229 = vsel %vm11180, %v11228, %v11227
      %v11230 = vrot.slane %v11149, 5
      %v11231 = vsel %vm11183, %v11230, %v11229
      %v11232 = vrot.slane %v11151, 4
      %v11233 = vsel %vm11186, %v11232, %v11231
      %v11234 = vrot.slane %v11153, 3
      %v11235 = vsel %vm11189, %v11234, %v11233
      %v11236 = vrot.slane %v11155, 2
      %v11237 = vsel %vm11192, %v11236, %v11235
      %11238 = vrot.lane.b32.xlu0 %v11223, 8
      %v11239 = vpop.permute.xlu0 %11238
      %11240 = vrot.lane.b32.xlu0 %v11237, 8
      %v11241 = vpop.permute.xlu0 %11240
      %v11244 = vrot.slane %v11125, 2
      %v11245 = vrot.slane %v11127, 1
      %v11246 = vsel %vm11174, %v11245, %v11244
      %v11247 = vsel %vm11177, %v11129, %v11246
      %v11248 = vrot.slane %v11131, 7
      %v11249 = vsel %vm11180, %v11248, %v11247
      %v11250 = vrot.slane %v11133, 6
      %v11251 = vsel %vm11183, %v11250, %v11249
      %v11252 = vrot.slane %v11135, 5
      %v11253 = vsel %vm11186, %v11252, %v11251
      %v11254 = vrot.slane %v11137, 4
      %v11255 = vsel %vm11189, %v11254, %v11253
      %v11256 = vrot.slane %v11139, 3
      %v11257 = vsel %vm11192, %v11256, %v11255
      %v11258 = vrot.slane %v11141, 2
      %v11259 = vrot.slane %v11143, 1
      %v11260 = vsel %vm11174, %v11259, %v11258
      %v11261 = vsel %vm11177, %v11145, %v11260
      %v11262 = vrot.slane %v11147, 7
      %v11263 = vsel %vm11180, %v11262, %v11261
      %v11264 = vrot.slane %v11149, 6
      %v11265 = vsel %vm11183, %v11264, %v11263
      %v11266 = vrot.slane %v11151, 5
      %v11267 = vsel %vm11186, %v11266, %v11265
      %v11268 = vrot.slane %v11153, 4
      %v11269 = vsel %vm11189, %v11268, %v11267
      %v11270 = vrot.slane %v11155, 3
      %v11271 = vsel %vm11192, %v11270, %v11269
      %11272 = vrot.lane.b32.xlu0 %v11257, 16
      %v11273 = vpop.permute.xlu0 %11272
      %11274 = vrot.lane.b32.xlu0 %v11271, 16
      %v11275 = vpop.permute.xlu0 %11274
      %v11278 = vrot.slane %v11125, 3
      %v11279 = vrot.slane %v11127, 2
      %v11280 = vsel %vm11174, %v11279, %v11278
      %v11281 = vrot.slane %v11129, 1
      %v11282 = vsel %vm11177, %v11281, %v11280
      %v11283 = vsel %vm11180, %v11131, %v11282
      %v11284 = vrot.slane %v11133, 7
      %v11285 = vsel %vm11183, %v11284, %v11283
      %v11286 = vrot.slane %v11135, 6
      %v11287 = vsel %vm11186, %v11286, %v11285
      %v11288 = vrot.slane %v11137, 5
      %v11289 = vsel %vm11189, %v11288, %v11287
      %v11290 = vrot.slane %v11139, 4
      %v11291 = vsel %vm11192, %v11290, %v11289
      %v11292 = vrot.slane %v11141, 3
      %v11293 = vrot.slane %v11143, 2
      %v11294 = vsel %vm11174, %v11293, %v11292
      %v11295 = vrot.slane %v11145, 1
      %v11296 = vsel %vm11177, %v11295, %v11294
      %v11297 = vsel %vm11180, %v11147, %v11296
      %v11298 = vrot.slane %v11149, 7
      %v11299 = vsel %vm11183, %v11298, %v11297
      %v11300 = vrot.slane %v11151, 6
      %v11301 = vsel %vm11186, %v11300, %v11299
      %v11302 = vrot.slane %v11153, 5
      %v11303 = vsel %vm11189, %v11302, %v11301
      %v11304 = vrot.slane %v11155, 4
      %v11305 = vsel %vm11192, %v11304, %v11303
      %11306 = vrot.lane.b32.xlu0 %v11291, 24
      %v11307 = vpop.permute.xlu0 %11306
      %11308 = vrot.lane.b32.xlu0 %v11305, 24
      %v11309 = vpop.permute.xlu0 %11308
      %v11312 = vrot.slane %v11125, 4
      %v11313 = vrot.slane %v11127, 3
      %v11314 = vsel %vm11174, %v11313, %v11312
      %v11315 = vrot.slane %v11129, 2
      %v11316 = vsel %vm11177, %v11315, %v11314
      %v11317 = vrot.slane %v11131, 1
      %v11318 = vsel %vm11180, %v11317, %v11316
      %v11319 = vsel %vm11183, %v11133, %v11318
      %v11320 = vrot.slane %v11135, 7
      %v11321 = vsel %vm11186, %v11320, %v11319
      %v11322 = vrot.slane %v11137, 6
      %v11323 = vsel %vm11189, %v11322, %v11321
      %v11324 = vrot.slane %v11139, 5
      %v11325 = vsel %vm11192, %v11324, %v11323
      %v11326 = vrot.slane %v11141, 4
      %v11327 = vrot.slane %v11143, 3
      %v11328 = vsel %vm11174, %v11327, %v11326
      %v11329 = vrot.slane %v11145, 2
      %v11330 = vsel %vm11177, %v11329, %v11328
      %v11331 = vrot.slane %v11147, 1
      %v11332 = vsel %vm11180, %v11331, %v11330
      %v11333 = vsel %vm11183, %v11149, %v11332
      %v11334 = vrot.slane %v11151, 7
      %v11335 = vsel %vm11186, %v11334, %v11333
      %v11336 = vrot.slane %v11153, 6
      %v11337 = vsel %vm11189, %v11336, %v11335
      %v11338 = vrot.slane %v11155, 5
      %v11339 = vsel %vm11192, %v11338, %v11337
      %11340 = vrot.lane.b32.xlu0 %v11325, 32
      %v11341 = vpop.permute.xlu0 %11340
      %11342 = vrot.lane.b32.xlu0 %v11339, 32
      %v11343 = vpop.permute.xlu0 %11342
      %v11346 = vrot.slane %v11125, 5
      %v11347 = vrot.slane %v11127, 4
      %v11348 = vsel %vm11174, %v11347, %v11346
      %v11349 = vrot.slane %v11129, 3
      %v11350 = vsel %vm11177, %v11349, %v11348
      %v11351 = vrot.slane %v11131, 2
      %v11352 = vsel %vm11180, %v11351, %v11350
      %v11353 = vrot.slane %v11133, 1
      %v11354 = vsel %vm11183, %v11353, %v11352
      %v11355 = vsel %vm11186, %v11135, %v11354
      %v11356 = vrot.slane %v11137, 7
      %v11357 = vsel %vm11189, %v11356, %v11355
      %v11358 = vrot.slane %v11139, 6
      %v11359 = vsel %vm11192, %v11358, %v11357
      %v11360 = vrot.slane %v11141, 5
      %v11361 = vrot.slane %v11143, 4
      %v11362 = vsel %vm11174, %v11361, %v11360
      %v11363 = vrot.slane %v11145, 3
      %v11364 = vsel %vm11177, %v11363, %v11362
      %v11365 = vrot.slane %v11147, 2
      %v11366 = vsel %vm11180, %v11365, %v11364
      %v11367 = vrot.slane %v11149, 1
      %v11368 = vsel %vm11183, %v11367, %v11366
      %v11369 = vsel %vm11186, %v11151, %v11368
      %v11370 = vrot.slane %v11153, 7
      %v11371 = vsel %vm11189, %v11370, %v11369
      %v11372 = vrot.slane %v11155, 6
      %v11373 = vsel %vm11192, %v11372, %v11371
      %11374 = vrot.lane.b32.xlu0 %v11359, 40
      %v11375 = vpop.permute.xlu0 %11374
      %11376 = vrot.lane.b32.xlu0 %v11373, 40
      %v11377 = vpop.permute.xlu0 %11376
      %v11380 = vrot.slane %v11125, 6
      %v11381 = vrot.slane %v11127, 5
      %v11382 = vsel %vm11174, %v11381, %v11380
      %v11383 = vrot.slane %v11129, 4
      %v11384 = vsel %vm11177, %v11383, %v11382
      %v11385 = vrot.slane %v11131, 3
      %v11386 = vsel %vm11180, %v11385, %v11384
      %v11387 = vrot.slane %v11133, 2
      %v11388 = vsel %vm11183, %v11387, %v11386
      %v11389 = vrot.slane %v11135, 1
      %v11390 = vsel %vm11186, %v11389, %v11388
      %v11391 = vsel %vm11189, %v11137, %v11390
      %v11392 = vrot.slane %v11139, 7
      %v11393 = vsel %vm11192, %v11392, %v11391
      %v11394 = vrot.slane %v11141, 6
      %v11395 = vrot.slane %v11143, 5
      %v11396 = vsel %vm11174, %v11395, %v11394
      %v11397 = vrot.slane %v11145, 4
      %v11398 = vsel %vm11177, %v11397, %v11396
      %v11399 = vrot.slane %v11147, 3
      %v11400 = vsel %vm11180, %v11399, %v11398
      %v11401 = vrot.slane %v11149, 2
      %v11402 = vsel %vm11183, %v11401, %v11400
      %v11403 = vrot.slane %v11151, 1
      %v11404 = vsel %vm11186, %v11403, %v11402
      %v11405 = vsel %vm11189, %v11153, %v11404
      %v11406 = vrot.slane %v11155, 7
      %v11407 = vsel %vm11192, %v11406, %v11405
      %11408 = vrot.lane.b32.xlu0 %v11393, 48
      %v11409 = vpop.permute.xlu0 %11408
      %11410 = vrot.lane.b32.xlu0 %v11407, 48
      %v11411 = vpop.permute.xlu0 %11410
      %v11414 = vrot.slane %v11125, 7
      %v11415 = vrot.slane %v11127, 6
      %v11416 = vsel %vm11174, %v11415, %v11414
      %v11417 = vrot.slane %v11129, 5
      %v11418 = vsel %vm11177, %v11417, %v11416
      %v11419 = vrot.slane %v11131, 4
      %v11420 = vsel %vm11180, %v11419, %v11418
      %v11421 = vrot.slane %v11133, 3
      %v11422 = vsel %vm11183, %v11421, %v11420
      %v11423 = vrot.slane %v11135, 2
      %v11424 = vsel %vm11186, %v11423, %v11422
      %v11425 = vrot.slane %v11137, 1
      %v11426 = vsel %vm11189, %v11425, %v11424
      %v11427 = vsel %vm11192, %v11139, %v11426
      %v11428 = vrot.slane %v11141, 7
      %v11429 = vrot.slane %v11143, 6
      %v11430 = vsel %vm11174, %v11429, %v11428
      %v11431 = vrot.slane %v11145, 5
      %v11432 = vsel %vm11177, %v11431, %v11430
      %v11433 = vrot.slane %v11147, 4
      %v11434 = vsel %vm11180, %v11433, %v11432
      %v11435 = vrot.slane %v11149, 3
      %v11436 = vsel %vm11183, %v11435, %v11434
      %v11437 = vrot.slane %v11151, 2
      %v11438 = vsel %vm11186, %v11437, %v11436
      %v11439 = vrot.slane %v11153, 1
      %v11440 = vsel %vm11189, %v11439, %v11438
      %v11441 = vsel %vm11192, %v11155, %v11440
      %11442 = vrot.lane.b32.xlu0 %v11427, 56
      %v11443 = vpop.permute.xlu0 %11442
      %11444 = vrot.lane.b32.xlu0 %v11441, 56
      %v11445 = vpop.permute.xlu0 %11444
      %v11464 = vrot.slane %v11128, 7
      %v11465 = vsel %vm11174, %v11464, %v11126
      %v11466 = vrot.slane %v11130, 6
      %v11467 = vsel %vm11177, %v11466, %v11465
      %v11468 = vrot.slane %v11132, 5
      %v11469 = vsel %vm11180, %v11468, %v11467
      %v11470 = vrot.slane %v11134, 4
      %v11471 = vsel %vm11183, %v11470, %v11469
      %v11472 = vrot.slane %v11136, 3
      %v11473 = vsel %vm11186, %v11472, %v11471
      %v11474 = vrot.slane %v11138, 2
      %v11475 = vsel %vm11189, %v11474, %v11473
      %v11476 = vrot.slane %v11140, 1
      %v11477 = vsel %vm11192, %v11476, %v11475
      %v11478 = vrot.slane %v11144, 7
      %v11479 = vsel %vm11174, %v11478, %v11142
      %v11480 = vrot.slane %v11146, 6
      %v11481 = vsel %vm11177, %v11480, %v11479
      %v11482 = vrot.slane %v11148, 5
      %v11483 = vsel %vm11180, %v11482, %v11481
      %v11484 = vrot.slane %v11150, 4
      %v11485 = vsel %vm11183, %v11484, %v11483
      %v11486 = vrot.slane %v11152, 3
      %v11487 = vsel %vm11186, %v11486, %v11485
      %v11488 = vrot.slane %v11154, 2
      %v11489 = vsel %vm11189, %v11488, %v11487
      %v11490 = vrot.slane %v11156, 1
      %v11491 = vsel %vm11192, %v11490, %v11489
      %11492 = vrot.lane.b32.xlu0 %v11477, 64
      %v11493 = vpop.permute.xlu0 %11492
      %11494 = vrot.lane.b32.xlu0 %v11491, 64
      %v11495 = vpop.permute.xlu0 %11494
      %v11498 = vrot.slane %v11126, 1
      %v11499 = vsel %vm11174, %v11128, %v11498
      %v11500 = vrot.slane %v11130, 7
      %v11501 = vsel %vm11177, %v11500, %v11499
      %v11502 = vrot.slane %v11132, 6
      %v11503 = vsel %vm11180, %v11502, %v11501
      %v11504 = vrot.slane %v11134, 5
      %v11505 = vsel %vm11183, %v11504, %v11503
      %v11506 = vrot.slane %v11136, 4
      %v11507 = vsel %vm11186, %v11506, %v11505
      %v11508 = vrot.slane %v11138, 3
      %v11509 = vsel %vm11189, %v11508, %v11507
      %v11510 = vrot.slane %v11140, 2
      %v11511 = vsel %vm11192, %v11510, %v11509
      %v11512 = vrot.slane %v11142, 1
      %v11513 = vsel %vm11174, %v11144, %v11512
      %v11514 = vrot.slane %v11146, 7
      %v11515 = vsel %vm11177, %v11514, %v11513
      %v11516 = vrot.slane %v11148, 6
      %v11517 = vsel %vm11180, %v11516, %v11515
      %v11518 = vrot.slane %v11150, 5
      %v11519 = vsel %vm11183, %v11518, %v11517
      %v11520 = vrot.slane %v11152, 4
      %v11521 = vsel %vm11186, %v11520, %v11519
      %v11522 = vrot.slane %v11154, 3
      %v11523 = vsel %vm11189, %v11522, %v11521
      %v11524 = vrot.slane %v11156, 2
      %v11525 = vsel %vm11192, %v11524, %v11523
      %11526 = vrot.lane.b32.xlu0 %v11511, 72
      %v11527 = vpop.permute.xlu0 %11526
      %11528 = vrot.lane.b32.xlu0 %v11525, 72
      %v11529 = vpop.permute.xlu0 %11528
      %v11532 = vrot.slane %v11126, 2
      %v11533 = vrot.slane %v11128, 1
      %v11534 = vsel %vm11174, %v11533, %v11532
      %v11535 = vsel %vm11177, %v11130, %v11534
      %v11536 = vrot.slane %v11132, 7
      %v11537 = vsel %vm11180, %v11536, %v11535
      %v11538 = vrot.slane %v11134, 6
      %v11539 = vsel %vm11183, %v11538, %v11537
      %v11540 = vrot.slane %v11136, 5
      %v11541 = vsel %vm11186, %v11540, %v11539
      %v11542 = vrot.slane %v11138, 4
      %v11543 = vsel %vm11189, %v11542, %v11541
      %v11544 = vrot.slane %v11140, 3
      %v11545 = vsel %vm11192, %v11544, %v11543
      %v11546 = vrot.slane %v11142, 2
      %v11547 = vrot.slane %v11144, 1
      %v11548 = vsel %vm11174, %v11547, %v11546
      %v11549 = vsel %vm11177, %v11146, %v11548
      %v11550 = vrot.slane %v11148, 7
      %v11551 = vsel %vm11180, %v11550, %v11549
      %v11552 = vrot.slane %v11150, 6
      %v11553 = vsel %vm11183, %v11552, %v11551
      %v11554 = vrot.slane %v11152, 5
      %v11555 = vsel %vm11186, %v11554, %v11553
      %v11556 = vrot.slane %v11154, 4
      %v11557 = vsel %vm11189, %v11556, %v11555
      %v11558 = vrot.slane %v11156, 3
      %v11559 = vsel %vm11192, %v11558, %v11557
      %11560 = vrot.lane.b32.xlu0 %v11545, 80
      %v11561 = vpop.permute.xlu0 %11560
      %11562 = vrot.lane.b32.xlu0 %v11559, 80
      %v11563 = vpop.permute.xlu0 %11562
      %v11566 = vrot.slane %v11126, 3
      %v11567 = vrot.slane %v11128, 2
      %v11568 = vsel %vm11174, %v11567, %v11566
      %v11569 = vrot.slane %v11130, 1
      %v11570 = vsel %vm11177, %v11569, %v11568
      %v11571 = vsel %vm11180, %v11132, %v11570
      %v11572 = vrot.slane %v11134, 7
      %v11573 = vsel %vm11183, %v11572, %v11571
      %v11574 = vrot.slane %v11136, 6
      %v11575 = vsel %vm11186, %v11574, %v11573
      %v11576 = vrot.slane %v11138, 5
      %v11577 = vsel %vm11189, %v11576, %v11575
      %v11578 = vrot.slane %v11140, 4
      %v11579 = vsel %vm11192, %v11578, %v11577
      %v11580 = vrot.slane %v11142, 3
      %v11581 = vrot.slane %v11144, 2
      %v11582 = vsel %vm11174, %v11581, %v11580
      %v11583 = vrot.slane %v11146, 1
      %v11584 = vsel %vm11177, %v11583, %v11582
      %v11585 = vsel %vm11180, %v11148, %v11584
      %v11586 = vrot.slane %v11150, 7
      %v11587 = vsel %vm11183, %v11586, %v11585
      %v11588 = vrot.slane %v11152, 6
      %v11589 = vsel %vm11186, %v11588, %v11587
      %v11590 = vrot.slane %v11154, 5
      %v11591 = vsel %vm11189, %v11590, %v11589
      %v11592 = vrot.slane %v11156, 4
      %v11593 = vsel %vm11192, %v11592, %v11591
      %11594 = vrot.lane.b32.xlu0 %v11579, 88
      %v11595 = vpop.permute.xlu0 %11594
      %11596 = vrot.lane.b32.xlu0 %v11593, 88
      %v11597 = vpop.permute.xlu0 %11596
      %v11600 = vrot.slane %v11126, 4
      %v11601 = vrot.slane %v11128, 3
      %v11602 = vsel %vm11174, %v11601, %v11600
      %v11603 = vrot.slane %v11130, 2
      %v11604 = vsel %vm11177, %v11603, %v11602
      %v11605 = vrot.slane %v11132, 1
      %v11606 = vsel %vm11180, %v11605, %v11604
      %v11607 = vsel %vm11183, %v11134, %v11606
      %v11608 = vrot.slane %v11136, 7
      %v11609 = vsel %vm11186, %v11608, %v11607
      %v11610 = vrot.slane %v11138, 6
      %v11611 = vsel %vm11189, %v11610, %v11609
      %v11612 = vrot.slane %v11140, 5
      %v11613 = vsel %vm11192, %v11612, %v11611
      %v11614 = vrot.slane %v11142, 4
      %v11615 = vrot.slane %v11144, 3
      %v11616 = vsel %vm11174, %v11615, %v11614
      %v11617 = vrot.slane %v11146, 2
      %v11618 = vsel %vm11177, %v11617, %v11616
      %v11619 = vrot.slane %v11148, 1
      %v11620 = vsel %vm11180, %v11619, %v11618
      %v11621 = vsel %vm11183, %v11150, %v11620
      %v11622 = vrot.slane %v11152, 7
      %v11623 = vsel %vm11186, %v11622, %v11621
      %v11624 = vrot.slane %v11154, 6
      %v11625 = vsel %vm11189, %v11624, %v11623
      %v11626 = vrot.slane %v11156, 5
      %v11627 = vsel %vm11192, %v11626, %v11625
      %11628 = vrot.lane.b32.xlu0 %v11613, 96
      %v11629 = vpop.permute.xlu0 %11628
      %11630 = vrot.lane.b32.xlu0 %v11627, 96
      %v11631 = vpop.permute.xlu0 %11630
      %v11634 = vrot.slane %v11126, 5
      %v11635 = vrot.slane %v11128, 4
      %v11636 = vsel %vm11174, %v11635, %v11634
      %v11637 = vrot.slane %v11130, 3
      %v11638 = vsel %vm11177, %v11637, %v11636
      %v11639 = vrot.slane %v11132, 2
      %v11640 = vsel %vm11180, %v11639, %v11638
      %v11641 = vrot.slane %v11134, 1
      %v11642 = vsel %vm11183, %v11641, %v11640
      %v11643 = vsel %vm11186, %v11136, %v11642
      %v11644 = vrot.slane %v11138, 7
      %v11645 = vsel %vm11189, %v11644, %v11643
      %v11646 = vrot.slane %v11140, 6
      %v11647 = vsel %vm11192, %v11646, %v11645
      %v11648 = vrot.slane %v11142, 5
      %v11649 = vrot.slane %v11144, 4
      %v11650 = vsel %vm11174, %v11649, %v11648
      %v11651 = vrot.slane %v11146, 3
      %v11652 = vsel %vm11177, %v11651, %v11650
      %v11653 = vrot.slane %v11148, 2
      %v11654 = vsel %vm11180, %v11653, %v11652
      %v11655 = vrot.slane %v11150, 1
      %v11656 = vsel %vm11183, %v11655, %v11654
      %v11657 = vsel %vm11186, %v11152, %v11656
      %v11658 = vrot.slane %v11154, 7
      %v11659 = vsel %vm11189, %v11658, %v11657
      %v11660 = vrot.slane %v11156, 6
      %v11661 = vsel %vm11192, %v11660, %v11659
      %11662 = vrot.lane.b32.xlu0 %v11647, 104
      %v11663 = vpop.permute.xlu0 %11662
      %11664 = vrot.lane.b32.xlu0 %v11661, 104
      %v11665 = vpop.permute.xlu0 %11664
      %v11668 = vrot.slane %v11126, 6
      %v11669 = vrot.slane %v11128, 5
      %v11670 = vsel %vm11174, %v11669, %v11668
      %v11671 = vrot.slane %v11130, 4
      %v11672 = vsel %vm11177, %v11671, %v11670
      %v11673 = vrot.slane %v11132, 3
      %v11674 = vsel %vm11180, %v11673, %v11672
      %v11675 = vrot.slane %v11134, 2
      %v11676 = vsel %vm11183, %v11675, %v11674
      %v11677 = vrot.slane %v11136, 1
      %v11678 = vsel %vm11186, %v11677, %v11676
      %v11679 = vsel %vm11189, %v11138, %v11678
      %v11680 = vrot.slane %v11140, 7
      %v11681 = vsel %vm11192, %v11680, %v11679
      %v11682 = vrot.slane %v11142, 6
      %v11683 = vrot.slane %v11144, 5
      %v11684 = vsel %vm11174, %v11683, %v11682
      %v11685 = vrot.slane %v11146, 4
      %v11686 = vsel %vm11177, %v11685, %v11684
      %v11687 = vrot.slane %v11148, 3
      %v11688 = vsel %vm11180, %v11687, %v11686
      %v11689 = vrot.slane %v11150, 2
      %v11690 = vsel %vm11183, %v11689, %v11688
      %v11691 = vrot.slane %v11152, 1
      %v11692 = vsel %vm11186, %v11691, %v11690
      %v11693 = vsel %vm11189, %v11154, %v11692
      %v11694 = vrot.slane %v11156, 7
      %v11695 = vsel %vm11192, %v11694, %v11693
      %11696 = vrot.lane.b32.xlu0 %v11681, 112
      %v11697 = vpop.permute.xlu0 %11696
      %11698 = vrot.lane.b32.xlu0 %v11695, 112
      %v11699 = vpop.permute.xlu0 %11698
      %v11702 = vrot.slane %v11126, 7
      %v11703 = vrot.slane %v11128, 6
      %v11704 = vsel %vm11174, %v11703, %v11702
      %v11705 = vrot.slane %v11130, 5
      %v11706 = vsel %vm11177, %v11705, %v11704
      %v11707 = vrot.slane %v11132, 4
      %v11708 = vsel %vm11180, %v11707, %v11706
      %v11709 = vrot.slane %v11134, 3
      %v11710 = vsel %vm11183, %v11709, %v11708
      %v11711 = vrot.slane %v11136, 2
      %v11712 = vsel %vm11186, %v11711, %v11710
      %v11713 = vrot.slane %v11138, 1
      %v11714 = vsel %vm11189, %v11713, %v11712
      %v11715 = vsel %vm11192, %v11140, %v11714
      %v11716 = vrot.slane %v11142, 7
      %v11717 = vrot.slane %v11144, 6
      %v11718 = vsel %vm11174, %v11717, %v11716
      %v11719 = vrot.slane %v11146, 5
      %v11720 = vsel %vm11177, %v11719, %v11718
      %v11721 = vrot.slane %v11148, 4
      %v11722 = vsel %vm11180, %v11721, %v11720
      %v11723 = vrot.slane %v11150, 3
      %v11724 = vsel %vm11183, %v11723, %v11722
      %v11725 = vrot.slane %v11152, 2
      %v11726 = vsel %vm11186, %v11725, %v11724
      %v11727 = vrot.slane %v11154, 1
      %v11728 = vsel %vm11189, %v11727, %v11726
      %v11729 = vsel %vm11192, %v11156, %v11728
      %11730 = vrot.lane.b32.xlu0 %v11715, 120
      %v11731 = vpop.permute.xlu0 %11730
      %11732 = vrot.lane.b32.xlu0 %v11729, 120
      %v11733 = vpop.permute.xlu0 %11732
      %v11736 = vsel %vm3674, %v11193, %v11239
      %v11737 = vsel %vm3674, %v11207, %v11241
      %v11738 = vsel %vm7271, %v11736, %v11273
      %v11739 = vsel %vm7271, %v11737, %v11275
      %v11740 = vsel %vm7632, %v11738, %v11307
      %v11741 = vsel %vm7632, %v11739, %v11309
      %vm11742 = vcmask 261120
      %v11743 = vsel %vm11742, %v11740, %v11341
      %v11744 = vsel %vm11742, %v11741, %v11343
      %vm11745 = vcmask 326656
      %v11746 = vsel %vm11745, %v11743, %v11375
      %v11747 = vsel %vm11745, %v11744, %v11377
      %vm11748 = vcmask 392192
      %v11749 = vsel %vm11748, %v11746, %v11409
      %v11750 = vsel %vm11748, %v11747, %v11411
      %vm11751 = vcmask 457728
      %v11752 = vsel %vm11751, %v11749, %v11443
      %v11753 = vsel %vm11751, %v11750, %v11445
      %v11754 = vsel %vm756, %v11752, %v11493
      %v11755 = vsel %vm756, %v11753, %v11495
      %vm11756 = vcmask 588800
      %v11757 = vsel %vm11756, %v11754, %v11527
      %v11758 = vsel %vm11756, %v11755, %v11529
      %vm11759 = vcmask 654336
      %v11760 = vsel %vm11759, %v11757, %v11561
      %v11761 = vsel %vm11759, %v11758, %v11563
      %vm11762 = vcmask 719872
      %v11763 = vsel %vm11762, %v11760, %v11595
      %v11764 = vsel %vm11762, %v11761, %v11597
      %vm11765 = vcmask 785408
      %v11766 = vsel %vm11765, %v11763, %v11629
      %v11767 = vsel %vm11765, %v11764, %v11631
      %vm11768 = vcmask 850944
      %v11769 = vsel %vm11768, %v11766, %v11663
      %v11770 = vsel %vm11768, %v11767, %v11665
      %vm11771 = vcmask 916480
      %v11772 = vsel %vm11771, %v11769, %v11697
      %v11773 = vsel %vm11771, %v11770, %v11699
      %vm11774 = vcmask 982016
      %v11775 = vsel %vm11774, %v11772, %v11731
      %v11776 = vsel %vm11774, %v11773, %v11733
      %11777 = vst [vmem:[%s352] sm:$0xff] %v11775
      %11778 = vst [vmem:[%s352 + $0x8] sm:$0xff] %v11776
      %p11779 = scmp.lt.s32.totalorder %s20, 1
      %s11780 = scalar_select %p11779, %s20, 1
      %s11781 = smul.addr %s11780, 2
      %s11782 = smul.addr %s11781, 8
      %s11783 = scalar_lea.vmem %s9, %s11782
      // Predicated region
      $region57: #{stack_decoder_forward.1} parent=55 // pred_check
        %p11784 = pneg %p237
      $region58: #{stack_decoder_forward.1} parent=55 // pred_check_branch
        %11786 = sbr.rel (%p11784) target = $region60
      $region59: #{stack_decoder_forward.1} parent=55 // pred_region
        _
      $region60: #{stack_decoder_forward.1} parent=55 // pred_fallthru
        _
    $region56: #{stack_decoder_forward.1} parent=5 // pred_fallthru
      _
    %p11787 = scmp.le.s32.totalorder 2, %s15
    // Predicated region
    $region61: #{stack_decoder_forward.1} parent=5 // pred_check
      %p11788 = pneg %p11787
    $region62: #{stack_decoder_forward.1} parent=5 // pred_check_branch
      %11790 = sbr.rel (%p11788) target = $region64
    $region63: #{stack_decoder_forward.1} parent=5 // pred_region
      %s11791 = ssub.s32 %s15, 2
      // Predicated region
      $region65: #{stack_decoder_forward.1} parent=63 // pred_check
        %p11792 = pneg %p243
      $region66: #{stack_decoder_forward.1} parent=63 // pred_check_branch
        %11794 = sbr.rel (%p11792) target = $region68
      $region67: #{stack_decoder_forward.1} parent=63 // pred_region
        %p11795 = scmp.lt.s32.totalorder %s21, 1
        %s11796 = scalar_select %p11795, %s21, 1
        %s11797 = smul.addr %s11796, 2
        %s11798 = smul.addr %s11797, 8
        %s11799 = scalar_lea.vmem %s9, %s11798
      $region68: #{stack_decoder_forward.1} parent=63 // pred_fallthru
        _
    $region64: #{stack_decoder_forward.1} parent=5 // pred_fallthru
      _
  $region6: #{stack_decoder_forward.1} parent=0 // loop_footer
    %s19 = sadd.s32 1, %s15
  $region7: #{stack_decoder_forward.1} parent=0 // loop_footer_branch
    %14 = sbr.rel target = $region3
  $region8: #{stack_decoder_forward.1} parent=0 // loop_exit
    _

</llo_original>
